<compile_context>
chip_gen: v6e
topology: v6e:2x2x1
jax: 0.10.0
libtpu: 0.0.40
codegen_flags: <defaults>
</compile_context>

<pallas_src>
import functools

import jax
import jax.numpy as jnp
from jax.experimental import pallas as pl
from jax.experimental.pallas import tpu as pltpu


_INV_SQRT2 = 0.7071067811865476


def _erf_pos(z):
    """erf(z) for z >= 0. A&S 7.1.25 (degree-3 in t), |err| <= 2.5e-5.

    The 1/(1+p*z) term uses the EUP approximate reciprocal refined with one
    Newton step (rel. err ~ seed_err^2, i.e. well below 1e-5), which is cheaper
    than a full-precision divide on the VALU-bound activation phase.
    """
    a1, a2, a3 = 0.3480242, -0.0958798, 0.7478556
    p = 0.47047
    d = 1.0 + p * z                       # d >= 1, always safe
    r = pl.reciprocal(d, approx=True)     # EUP seed
    t = r * (2.0 - d * r)                 # one Newton-Raphson refinement
    poly = ((a3 * t + a2) * t + a1) * t
    return 1.0 - poly * jnp.exp(-z * z)


def _gelu(x):
    """Exact-form GELU, sign folded (no select):
       gelu(x) = 0.5*x*(1 + erf(x/sqrt2)) = 0.5*x + 0.5*|x|*erf_pos(|x|/sqrt2)."""
    ax = jnp.abs(x)
    return 0.5 * x + 0.5 * ax * _erf_pos(ax * _INV_SQRT2)


def _sigmoid_tanh(x):
    """sigmoid(x) == 0.5*(tanh(0.5*x) + 1): single EUP op, mathematically exact."""
    return 0.5 * (jnp.tanh(0.5 * x) + 1.0)


def _modproc4_kernel(
    te_ref, te2_ref, ve_ref,                   # activations   [TB, D] each
    wt1g_ref, bt1g_ref, wt2_ref, bt2_ref,      # text   MLP: [D,2H],[1,2H],[H,D],[1,D]
    wv1g_ref, bv1g_ref, wv2_ref, bv2_ref,      # vision MLP: same shapes
    t_out_ref, v_out_ref,                      # outputs       [TB, D] each
    h_scr,                                     # VMEM scratch  [2*TB, 2H] f32
    *, compute_dtype,
):
    TB = te_ref.shape[0]
    H = wt2_ref.shape[0]

    def dot(a, w):
        # compute_dtype=jnp.float32 -> no-op casts; bf16 halves MXU passes.
        return jnp.dot(a.astype(compute_dtype), w.astype(compute_dtype),
                       preferred_element_type=jnp.float32)

    xt = te_ref[...] + te2_ref[...]
    xv = ve_ref[...]

    # Fused fc1|gate dots for both modalities, written into one scratch slab.
    h_scr[:TB] = dot(xt, wt1g_ref[...]) + bt1g_ref[...]       # text   [TB, 2H]
    h_scr[TB:] = dot(xv, wv1g_ref[...]) + bv1g_ref[...]       # vision [TB, 2H]

    # Single vectorized activation region over both modalities.
    h = h_scr[...]                                             # [2*TB, 2H]
    act = _gelu(h[:, :H]) * _sigmoid_tanh(h[:, H:])            # [2*TB, H]

    t_out_ref[...] = (dot(act[:TB], wt2_ref[...]) + bt2_ref[...]).astype(t_out_ref.dtype)
    v_out_ref[...] = (dot(act[TB:], wv2_ref[...]) + bv2_ref[...]).astype(v_out_ref.dtype)


def _round_up(x, m):
    return (x + m - 1) // m * m


def modality_processor4_forward(text_emb, text_emb2, vision_emb, params, *,
                                block_b=512, compute_dtype=jnp.float32):
    """Forward pass. block_b=512 is safe on v5e/v6e/v7x with the VMEM limit below."""
    B, D = text_emb.shape
    H = params["wt2"].shape[0]

    # Batch tile. When B fits in one tile we still split into >=2 grid steps
    # (rounded to the 8-row sublane granularity) so both v7x TensorCores get
    # work via the "parallel" grid axis. Rows are independent, so ragged /
    # padded last blocks are safe.
    if B <= 8:
        TB = B
    elif B <= block_b:
        TB = _round_up(pl.cdiv(B, 2), 8)
    else:
        TB = block_b
    grid = (pl.cdiv(B, TB),)

    act_spec = pl.BlockSpec((TB, D), lambda i: (i, 0))
    out_shape = (
        jax.ShapeDtypeStruct((B, D), jnp.float32),
        jax.ShapeDtypeStruct((B, D), jnp.float32),
    )

    flops = 12 * B * D * H               # 2 MLPs x (fused [D,2H] dot + [H,D] dot)
    transcendentals = 6 * B * H          # exp + recip-seed + tanh per hidden elem, 2 MLPs
    bytes_accessed = 4 * (
        5 * B * D                                    # 3 inputs + 2 outputs
        + 2 * (D * 2 * H + 2 * H + H * D + D)        # weights + biases
    )

    kernel = functools.partial(_modproc4_kernel, compute_dtype=compute_dtype)
    args = (
        text_emb, text_emb2, vision_emb,
        params["wt1g"], params["bt1g"], params["wt2"], params["bt2"],
        params["wv1g"], params["bv1g"], params["wv2"], params["bv2"],
    )

    def build(single_buffer_weights):
        def resident(shape):
            # Constant index_map: block never changes across batch tiles.
            if single_buffer_weights:
                # Single-buffer the resident weights: the default pipeline would
                # allocate 2 buffers (~4.7 MiB dead VMEM for this weight set).
                return pl.BlockSpec(shape, lambda i: (0, 0),
                                    pipeline_mode=pl.Buffered(1))
            return pl.BlockSpec(shape, lambda i: (0, 0))

        in_specs = [
            act_spec, act_spec, act_spec,
            resident((D, 2 * H)), resident((1, 2 * H)), resident((H, D)), resident((1, D)),
            resident((D, 2 * H)), resident((1, 2 * H)), resident((H, D)), resident((1, D)),
        ]
        return pl.pallas_call(
            kernel,
            grid=grid,
            in_specs=in_specs,
            out_specs=(act_spec, act_spec),
            out_shape=out_shape,
            scratch_shapes=[pltpu.VMEM((2 * TB, 2 * H), jnp.float32)],
            compiler_params=pltpu.CompilerParams(
                dimension_semantics=("parallel",),
                # Explicit scoped-VMEM limit: TB=512 tiles (+ weights + the
                # stacked activation scratch) exceed v5e's 16 MiB default;
                # 48 MiB is below every generation's physical VMEM (v7x: 64 MiB).
                vmem_limit_bytes=48 * 1024 * 1024,
            ),
            cost_estimate=pl.CostEstimate(
                flops=flops, transcendentals=transcendentals,
                bytes_accessed=bytes_accessed,
            ),
        )

    try:
        return build(True)(*args)
    except Exception:
        # pipeline_mode=pl.Buffered not available/supported in this JAX build;
        # fall back to default (double-buffered) resident weights.
        return build(False)(*args)


def init_params(key, dim=384, hidden=512):
    """Deterministic synthetic parameters (shapes mirror the PyTorch module).

    Linear weights are stored pre-transposed as [in, out]; fc1 and gate are
    fused along the output axis into a single [dim, 2*hidden] matrix.
    """
    D, H = dim, hidden
    ks = jax.random.split(key, 8)

    def lin(k, fan_in, shape):
        return (jax.random.normal(k, shape, jnp.float32) / jnp.sqrt(fan_in)).astype(jnp.float32)

    return {
        # text GatedMLP
        "wt1g": lin(ks[0], D, (D, 2 * H)),  # [fc1 | gate] fused
        "bt1g": lin(ks[1], D, (1, 2 * H)),
        "wt2": lin(ks[2], H, (H, D)),
        "bt2": lin(ks[3], H, (1, D)),
        # vision GatedMLP
        "wv1g": lin(ks[4], D, (D, 2 * H)),
        "bv1g": lin(ks[5], D, (1, 2 * H)),
        "wv2": lin(ks[6], H, (H, D)),
        "bv2": lin(ks[7], H, (1, D)),
    }


def modality_processor4_reference(text_emb, text_emb2, vision_emb, p):
    """Pure-JAX reference of the PyTorch forward (exact erf GELU, exact sigmoid)."""
    H = p["wt2"].shape[0]

    def gated_mlp(x, w1g, b1g, w2, b2):
        h = jnp.dot(x, w1g, preferred_element_type=jnp.float32) + b1g
        act = jax.nn.gelu(h[:, :H], approximate=False) * jax.nn.sigmoid(h[:, H:])
        return jnp.dot(act, w2, preferred_element_type=jnp.float32) + b2

    t_out = gated_mlp(text_emb + text_emb2, p["wt1g"], p["bt1g"], p["wt2"], p["bt2"])
    v_out = gated_mlp(vision_emb, p["wv1g"], p["bv1g"], p["wv2"], p["bv2"])
    return t_out, v_out


if __name__ == "__main__":
    B, D, H = 16, 384, 512  # batch, dim, hidden (dim/hidden fixed by the module)
    key = jax.random.PRNGKey(0)
    k_t, k_t2, k_v, k_p = jax.random.split(key, 4)

    text_emb = jax.random.normal(k_t, (B, D), jnp.float32)
    text_emb2 = jax.random.normal(k_t2, (B, D), jnp.float32)
    vision_emb = jax.random.normal(k_v, (B, D), jnp.float32)
    params = init_params(k_p, D, H)

    t_out, v_out = modality_processor4_forward(text_emb, text_emb2, vision_emb, params)
    t_out = jax.block_until_ready(t_out)
    v_out = jax.block_until_ready(v_out)

    t_ref, v_ref = modality_processor4_reference(text_emb, text_emb2, vision_emb, params)

    assert t_out.shape == (B, D) and v_out.shape == (B, D)
    # Tolerance budget: the degree-3 A&S 7.1.25 erf fit (|err| <= 2.5e-5) plus the
    # Newton-refined approximate reciprocal contribute < ~3e-5 absolute error on the
    # outputs after fc2 averaging; 1e-4 leaves comfortable margin. The tanh-form
    # sigmoid is mathematically exact.
    assert jnp.allclose(t_out, t_ref, atol=1e-4, rtol=1e-4), "text branch mismatch vs reference"
    assert jnp.allclose(v_out, v_ref, atol=1e-4, rtol=1e-4), "vision branch mismatch vs reference"

    print("KERNEL_OK")
</pallas_src>

<mosaic_0001>
module attributes {stable_mosaic.version = 11 : i64} {
  func.func @_modproc4_kernel(%arg0: i32, %arg1: memref<8x384xf32, #tpu.memory_space<vmem>>, %arg2: memref<8x384xf32, #tpu.memory_space<vmem>>, %arg3: memref<8x384xf32, #tpu.memory_space<vmem>>, %arg4: memref<384x1024xf32, #tpu.memory_space<vmem>>, %arg5: memref<1x1024xf32, #tpu.memory_space<vmem>>, %arg6: memref<512x384xf32, #tpu.memory_space<vmem>>, %arg7: memref<1x384xf32, #tpu.memory_space<vmem>>, %arg8: memref<384x1024xf32, #tpu.memory_space<vmem>>, %arg9: memref<1x1024xf32, #tpu.memory_space<vmem>>, %arg10: memref<512x384xf32, #tpu.memory_space<vmem>>, %arg11: memref<1x384xf32, #tpu.memory_space<vmem>>, %arg12: memref<8x384xf32, #tpu.memory_space<vmem>>, %arg13: memref<8x384xf32, #tpu.memory_space<vmem>>, %arg14: memref<16x1024xf32, #tpu.memory_space<vmem>>) attributes {dimension_semantics = [#tpu.dimension_semantics<parallel>], iteration_bounds = array<i64: 2>, scalar_prefetch = 0 : i64, scratch_operands = 1 : i64, tpu.core_type = #tpu.core_type<tc>, window_params = [{transform_indices = @transform_0, window_bounds = array<i64: 8, 384>}, {transform_indices = @transform_1, window_bounds = array<i64: 8, 384>}, {transform_indices = @transform_2, window_bounds = array<i64: 8, 384>}, {pipeline_mode = #tpu.pipeline_mode<synchronous>, transform_indices = @transform_3, window_bounds = array<i64: 384, 1024>}, {pipeline_mode = #tpu.pipeline_mode<synchronous>, transform_indices = @transform_4, window_bounds = array<i64: 1, 1024>}, {pipeline_mode = #tpu.pipeline_mode<synchronous>, transform_indices = @transform_5, window_bounds = array<i64: 512, 384>}, {pipeline_mode = #tpu.pipeline_mode<synchronous>, transform_indices = @transform_6, window_bounds = array<i64: 1, 384>}, {pipeline_mode = #tpu.pipeline_mode<synchronous>, transform_indices = @transform_7, window_bounds = array<i64: 384, 1024>}, {pipeline_mode = #tpu.pipeline_mode<synchronous>, transform_indices = @transform_8, window_bounds = array<i64: 1, 1024>}, {pipeline_mode = #tpu.pipeline_mode<synchronous>, transform_indices = @transform_9, window_bounds = array<i64: 512, 384>}, {pipeline_mode = #tpu.pipeline_mode<synchronous>, transform_indices = @transform_10, window_bounds = array<i64: 1, 384>}, {transform_indices = @transform_11, window_bounds = array<i64: 8, 384>}, {transform_indices = @transform_12, window_bounds = array<i64: 8, 384>}]} {
    %c0 = arith.constant 0 : index
    %c0_0 = arith.constant 0 : index
    %0 = vector.load %arg1[%c0, %c0_0] : memref<8x384xf32, #tpu.memory_space<vmem>>, vector<8x384xf32>
    %c0_1 = arith.constant 0 : index
    %c0_2 = arith.constant 0 : index
    %1 = vector.load %arg2[%c0_1, %c0_2] : memref<8x384xf32, #tpu.memory_space<vmem>>, vector<8x384xf32>
    %2 = arith.addf %0, %1 : vector<8x384xf32>
    %c0_3 = arith.constant 0 : index
    %c0_4 = arith.constant 0 : index
    %3 = vector.load %arg3[%c0_3, %c0_4] : memref<8x384xf32, #tpu.memory_space<vmem>>, vector<8x384xf32>
    %c0_5 = arith.constant 0 : index
    %c0_6 = arith.constant 0 : index
    %4 = vector.load %arg4[%c0_5, %c0_6] : memref<384x1024xf32, #tpu.memory_space<vmem>>, vector<384x1024xf32>
    %cst = arith.constant dense<0.000000e+00> : vector<8x1024xf32>
    %5 = tpu.matmul %2, %4, %cst {dimension_numbers = #tpu.dot_dimension_numbers<[1], [0], [0], [1], [0, 0, 1, 1], [], []>} : vector<8x384xf32>, vector<384x1024xf32>, vector<8x1024xf32> -> vector<8x1024xf32>
    %c0_7 = arith.constant 0 : index
    %c0_8 = arith.constant 0 : index
    %6 = vector.load %arg5[%c0_7, %c0_8] : memref<1x1024xf32, #tpu.memory_space<vmem>>, vector<1x1024xf32>
    %7 = vector.broadcast %6 : vector<1x1024xf32> to vector<8x1024xf32>
    %8 = arith.addf %5, %7 : vector<8x1024xf32>
    %c0_9 = arith.constant 0 : index
    %c0_10 = arith.constant 0 : index
    %9 = vector.load %arg14[%c0_9, %c0_10] : memref<16x1024xf32, #tpu.memory_space<vmem>>, vector<8x1024xf32>
    tpu.vector_store %arg14[%c0_9, %c0_10], %8 {strides = array<i32>} : memref<16x1024xf32, #tpu.memory_space<vmem>>, vector<8x1024xf32>,
    %c0_11 = arith.constant 0 : index
    %c0_12 = arith.constant 0 : index
    %10 = vector.load %arg8[%c0_11, %c0_12] : memref<384x1024xf32, #tpu.memory_space<vmem>>, vector<384x1024xf32>
    %cst_13 = arith.constant dense<0.000000e+00> : vector<8x1024xf32>
    %11 = tpu.matmul %3, %10, %cst_13 {dimension_numbers = #tpu.dot_dimension_numbers<[1], [0], [0], [1], [0, 0, 1, 1], [], []>} : vector<8x384xf32>, vector<384x1024xf32>, vector<8x1024xf32> -> vector<8x1024xf32>
    %c0_14 = arith.constant 0 : index
    %c0_15 = arith.constant 0 : index
    %12 = vector.load %arg9[%c0_14, %c0_15] : memref<1x1024xf32, #tpu.memory_space<vmem>>, vector<1x1024xf32>
    %13 = vector.broadcast %12 : vector<1x1024xf32> to vector<8x1024xf32>
    %14 = arith.addf %11, %13 : vector<8x1024xf32>
    %c8 = arith.constant 8 : index
    %c0_16 = arith.constant 0 : index
    %15 = vector.load %arg14[%c8, %c0_16] : memref<16x1024xf32, #tpu.memory_space<vmem>>, vector<8x1024xf32>
    tpu.vector_store %arg14[%c8, %c0_16], %14 {strides = array<i32>} : memref<16x1024xf32, #tpu.memory_space<vmem>>, vector<8x1024xf32>,
    %c0_17 = arith.constant 0 : index
    %c0_18 = arith.constant 0 : index
    %16 = vector.load %arg14[%c0_17, %c0_18] : memref<16x1024xf32, #tpu.memory_space<vmem>>, vector<16x1024xf32>
    %17 = vector.extract_strided_slice %16 {offsets = [0, 0], sizes = [16, 512], strides = [1, 1]} : vector<16x1024xf32> to vector<16x512xf32>
    %18 = math.absf %17 : vector<16x512xf32>
    %cst_19 = arith.constant 5.000000e-01 : f32
    %19 = vector.broadcast %cst_19 : f32 to vector<16x512xf32>
    %20 = arith.mulf %19, %17 : vector<16x512xf32>
    %cst_20 = arith.constant 5.000000e-01 : f32
    %21 = vector.broadcast %cst_20 : f32 to vector<16x512xf32>
    %22 = arith.mulf %21, %18 : vector<16x512xf32>
    %cst_21 = arith.constant 0.707106769 : f32
    %23 = vector.broadcast %cst_21 : f32 to vector<16x512xf32>
    %24 = arith.mulf %18, %23 : vector<16x512xf32>
    %cst_22 = arith.constant 4.704700e-01 : f32
    %25 = vector.broadcast %cst_22 : f32 to vector<16x512xf32>
    %26 = arith.mulf %25, %24 : vector<16x512xf32>
    %cst_23 = arith.constant 1.000000e+00 : f32
    %27 = vector.broadcast %cst_23 : f32 to vector<16x512xf32>
    %28 = arith.addf %27, %26 : vector<16x512xf32>
    %29 = tpu.reciprocal %28 {approx = true} : vector<16x512xf32> -> vector<16x512xf32>
    %30 = arith.mulf %28, %29 : vector<16x512xf32>
    %cst_24 = arith.constant 2.000000e+00 : f32
    %31 = vector.broadcast %cst_24 : f32 to vector<16x512xf32>
    %32 = arith.subf %31, %30 : vector<16x512xf32>
    %33 = arith.mulf %29, %32 : vector<16x512xf32>
    %cst_25 = arith.constant 0.747855603 : f32
    %34 = vector.broadcast %cst_25 : f32 to vector<16x512xf32>
    %35 = arith.mulf %34, %33 : vector<16x512xf32>
    %cst_26 = arith.constant -9.587980e-02 : f32
    %36 = vector.broadcast %cst_26 : f32 to vector<16x512xf32>
    %37 = arith.addf %35, %36 : vector<16x512xf32>
    %38 = arith.mulf %37, %33 : vector<16x512xf32>
    %cst_27 = arith.constant 0.348024189 : f32
    %39 = vector.broadcast %cst_27 : f32 to vector<16x512xf32>
    %40 = arith.addf %38, %39 : vector<16x512xf32>
    %41 = arith.mulf %40, %33 : vector<16x512xf32>
    %cst_28 = arith.constant 0.000000e+00 : f32
    %42 = vector.broadcast %cst_28 : f32 to vector<16x512xf32>
    %43 = arith.subf %42, %24 : vector<16x512xf32>
    %44 = arith.mulf %43, %24 : vector<16x512xf32>
    %45 = math.exp %44 : vector<16x512xf32>
    %46 = arith.mulf %41, %45 : vector<16x512xf32>
    %cst_29 = arith.constant 1.000000e+00 : f32
    %47 = vector.broadcast %cst_29 : f32 to vector<16x512xf32>
    %48 = arith.subf %47, %46 : vector<16x512xf32>
    %49 = arith.mulf %22, %48 : vector<16x512xf32>
    %50 = arith.addf %20, %49 : vector<16x512xf32>
    %51 = vector.extract_strided_slice %16 {offsets = [0, 512], sizes = [16, 512], strides = [1, 1]} : vector<16x1024xf32> to vector<16x512xf32>
    %cst_30 = arith.constant 5.000000e-01 : f32
    %52 = vector.broadcast %cst_30 : f32 to vector<16x512xf32>
    %53 = arith.mulf %52, %51 : vector<16x512xf32>
    %54 = math.tanh %53 : vector<16x512xf32>
    %cst_31 = arith.constant 1.000000e+00 : f32
    %55 = vector.broadcast %cst_31 : f32 to vector<16x512xf32>
    %56 = arith.addf %54, %55 : vector<16x512xf32>
    %cst_32 = arith.constant 5.000000e-01 : f32
    %57 = vector.broadcast %cst_32 : f32 to vector<16x512xf32>
    %58 = arith.mulf %57, %56 : vector<16x512xf32>
    %59 = arith.mulf %50, %58 : vector<16x512xf32>
    %60 = vector.extract_strided_slice %59 {offsets = [0, 0], sizes = [8, 512], strides = [1, 1]} : vector<16x512xf32> to vector<8x512xf32>
    %c0_33 = arith.constant 0 : index
    %c0_34 = arith.constant 0 : index
    %61 = vector.load %arg6[%c0_33, %c0_34] : memref<512x384xf32, #tpu.memory_space<vmem>>, vector<512x384xf32>
    %cst_35 = arith.constant dense<0.000000e+00> : vector<8x384xf32>
    %62 = tpu.matmul %60, %61, %cst_35 {dimension_numbers = #tpu.dot_dimension_numbers<[1], [0], [0], [1], [0, 0, 1, 1], [], []>} : vector<8x512xf32>, vector<512x384xf32>, vector<8x384xf32> -> vector<8x384xf32>
    %c0_36 = arith.constant 0 : index
    %c0_37 = arith.constant 0 : index
    %63 = vector.load %arg7[%c0_36, %c0_37] : memref<1x384xf32, #tpu.memory_space<vmem>>, vector<1x384xf32>
    %64 = vector.broadcast %63 : vector<1x384xf32> to vector<8x384xf32>
    %65 = arith.addf %62, %64 : vector<8x384xf32>
    %c0_38 = arith.constant 0 : index
    %c0_39 = arith.constant 0 : index
    %66 = vector.load %arg12[%c0_38, %c0_39] : memref<8x384xf32, #tpu.memory_space<vmem>>, vector<8x384xf32>
    tpu.vector_store %arg12[%c0_38, %c0_39], %65 {strides = array<i32>} : memref<8x384xf32, #tpu.memory_space<vmem>>, vector<8x384xf32>,
    %67 = vector.extract_strided_slice %59 {offsets = [8, 0], sizes = [8, 512], strides = [1, 1]} : vector<16x512xf32> to vector<8x512xf32>
    %c0_40 = arith.constant 0 : index
    %c0_41 = arith.constant 0 : index
    %68 = vector.load %arg10[%c0_40, %c0_41] : memref<512x384xf32, #tpu.memory_space<vmem>>, vector<512x384xf32>
    %cst_42 = arith.constant dense<0.000000e+00> : vector<8x384xf32>
    %69 = tpu.matmul %67, %68, %cst_42 {dimension_numbers = #tpu.dot_dimension_numbers<[1], [0], [0], [1], [0, 0, 1, 1], [], []>} : vector<8x512xf32>, vector<512x384xf32>, vector<8x384xf32> -> vector<8x384xf32>
    %c0_43 = arith.constant 0 : index
    %c0_44 = arith.constant 0 : index
    %70 = vector.load %arg11[%c0_43, %c0_44] : memref<1x384xf32, #tpu.memory_space<vmem>>, vector<1x384xf32>
    %71 = vector.broadcast %70 : vector<1x384xf32> to vector<8x384xf32>
    %72 = arith.addf %69, %71 : vector<8x384xf32>
    %c0_45 = arith.constant 0 : index
    %c0_46 = arith.constant 0 : index
    %73 = vector.load %arg13[%c0_45, %c0_46] : memref<8x384xf32, #tpu.memory_space<vmem>>, vector<8x384xf32>
    tpu.vector_store %arg13[%c0_45, %c0_46], %72 {strides = array<i32>} : memref<8x384xf32, #tpu.memory_space<vmem>>, vector<8x384xf32>,
    return
  }
  func.func @transform_0(%arg0: i32) -> (i32, i32) {
    %c0_i32 = arith.constant 0 : i32
    %c0_i32_0 = arith.constant 0 : i32
    return %arg0, %c0_i32 : i32, i32
  }
  func.func @transform_1(%arg0: i32) -> (i32, i32) {
    %c0_i32 = arith.constant 0 : i32
    %c0_i32_0 = arith.constant 0 : i32
    return %arg0, %c0_i32 : i32, i32
  }
  func.func @transform_2(%arg0: i32) -> (i32, i32) {
    %c0_i32 = arith.constant 0 : i32
    %c0_i32_0 = arith.constant 0 : i32
    return %arg0, %c0_i32 : i32, i32
  }
  func.func @transform_3(%arg0: i32) -> (i32, i32) {
    %c0_i32 = arith.constant 0 : i32
    %c0_i32_0 = arith.constant 0 : i32
    %c0_i32_1 = arith.constant 0 : i32
    return %c0_i32, %c0_i32_0 : i32, i32
  }
  func.func @transform_4(%arg0: i32) -> (i32, i32) {
    %c0_i32 = arith.constant 0 : i32
    %c0_i32_0 = arith.constant 0 : i32
    %c0_i32_1 = arith.constant 0 : i32
    return %c0_i32, %c0_i32_0 : i32, i32
  }
  func.func @transform_5(%arg0: i32) -> (i32, i32) {
    %c0_i32 = arith.constant 0 : i32
    %c0_i32_0 = arith.constant 0 : i32
    %c0_i32_1 = arith.constant 0 : i32
    return %c0_i32, %c0_i32_0 : i32, i32
  }
  func.func @transform_6(%arg0: i32) -> (i32, i32) {
    %c0_i32 = arith.constant 0 : i32
    %c0_i32_0 = arith.constant 0 : i32
    %c0_i32_1 = arith.constant 0 : i32
    return %c0_i32, %c0_i32_0 : i32, i32
  }
  func.func @transform_7(%arg0: i32) -> (i32, i32) {
    %c0_i32 = arith.constant 0 : i32
    %c0_i32_0 = arith.constant 0 : i32
    %c0_i32_1 = arith.constant 0 : i32
    return %c0_i32, %c0_i32_0 : i32, i32
  }
  func.func @transform_8(%arg0: i32) -> (i32, i32) {
    %c0_i32 = arith.constant 0 : i32
    %c0_i32_0 = arith.constant 0 : i32
    %c0_i32_1 = arith.constant 0 : i32
    return %c0_i32, %c0_i32_0 : i32, i32
  }
  func.func @transform_9(%arg0: i32) -> (i32, i32) {
    %c0_i32 = arith.constant 0 : i32
    %c0_i32_0 = arith.constant 0 : i32
    %c0_i32_1 = arith.constant 0 : i32
    return %c0_i32, %c0_i32_0 : i32, i32
  }
  func.func @transform_10(%arg0: i32) -> (i32, i32) {
    %c0_i32 = arith.constant 0 : i32
    %c0_i32_0 = arith.constant 0 : i32
    %c0_i32_1 = arith.constant 0 : i32
    return %c0_i32, %c0_i32_0 : i32, i32
  }
  func.func @transform_11(%arg0: i32) -> (i32, i32) {
    %c0_i32 = arith.constant 0 : i32
    %c0_i32_0 = arith.constant 0 : i32
    return %arg0, %c0_i32 : i32, i32
  }
  func.func @transform_12(%arg0: i32) -> (i32, i32) {
    %c0_i32 = arith.constant 0 : i32
    %c0_i32_0 = arith.constant 0 : i32
    return %arg0, %c0_i32 : i32, i32
  }
}

module attributes {stable_mosaic.version = 11 : i64} {
  func.func @_modproc4_kernel(%arg0: i32, %arg1: memref<8x384xf32, #tpu.memory_space<vmem>>, %arg2: memref<8x384xf32, #tpu.memory_space<vmem>>, %arg3: memref<8x384xf32, #tpu.memory_space<vmem>>, %arg4: memref<384x1024xf32, #tpu.memory_space<vmem>>, %arg5: memref<1x1024xf32, #tpu.memory_space<vmem>>, %arg6: memref<512x384xf32, #tpu.memory_space<vmem>>, %arg7: memref<1x384xf32, #tpu.memory_space<vmem>>, %arg8: memref<384x1024xf32, #tpu.memory_space<vmem>>, %arg9: memref<1x1024xf32, #tpu.memory_space<vmem>>, %arg10: memref<512x384xf32, #tpu.memory_space<vmem>>, %arg11: memref<1x384xf32, #tpu.memory_space<vmem>>, %arg12: memref<8x384xf32, #tpu.memory_space<vmem>>, %arg13: memref<8x384xf32, #tpu.memory_space<vmem>>, %arg14: memref<16x1024xf32, #tpu.memory_space<vmem>>) attributes {dimension_semantics = [#tpu.dimension_semantics<parallel>], iteration_bounds = array<i64: 2>, scalar_prefetch = 0 : i64, scratch_operands = 1 : i64, tpu.core_type = #tpu.core_type<tc>, window_params = [{transform_indices = @transform_0, window_bounds = array<i64: 8, 384>}, {transform_indices = @transform_1, window_bounds = array<i64: 8, 384>}, {transform_indices = @transform_2, window_bounds = array<i64: 8, 384>}, {pipeline_mode = #tpu.pipeline_mode<synchronous>, transform_indices = @transform_3, window_bounds = array<i64: 384, 1024>}, {pipeline_mode = #tpu.pipeline_mode<synchronous>, transform_indices = @transform_4, window_bounds = array<i64: 1, 1024>}, {pipeline_mode = #tpu.pipeline_mode<synchronous>, transform_indices = @transform_5, window_bounds = array<i64: 512, 384>}, {pipeline_mode = #tpu.pipeline_mode<synchronous>, transform_indices = @transform_6, window_bounds = array<i64: 1, 384>}, {pipeline_mode = #tpu.pipeline_mode<synchronous>, transform_indices = @transform_7, window_bounds = array<i64: 384, 1024>}, {pipeline_mode = #tpu.pipeline_mode<synchronous>, transform_indices = @transform_8, window_bounds = array<i64: 1, 1024>}, {pipeline_mode = #tpu.pipeline_mode<synchronous>, transform_indices = @transform_9, window_bounds = array<i64: 512, 384>}, {pipeline_mode = #tpu.pipeline_mode<synchronous>, transform_indices = @transform_10, window_bounds = array<i64: 1, 384>}, {transform_indices = @transform_11, window_bounds = array<i64: 8, 384>}, {transform_indices = @transform_12, window_bounds = array<i64: 8, 384>}]} {
    %c0 = arith.constant 0 : index
    %c0_0 = arith.constant 0 : index
    %0 = vector.load %arg1[%c0, %c0_0] : memref<8x384xf32, #tpu.memory_space<vmem>>, vector<8x384xf32>
    %c0_1 = arith.constant 0 : index
    %c0_2 = arith.constant 0 : index
    %1 = vector.load %arg2[%c0_1, %c0_2] : memref<8x384xf32, #tpu.memory_space<vmem>>, vector<8x384xf32>
    %2 = arith.addf %0, %1 : vector<8x384xf32>
    %c0_3 = arith.constant 0 : index
    %c0_4 = arith.constant 0 : index
    %3 = vector.load %arg3[%c0_3, %c0_4] : memref<8x384xf32, #tpu.memory_space<vmem>>, vector<8x384xf32>
    %c0_5 = arith.constant 0 : index
    %c0_6 = arith.constant 0 : index
    %4 = vector.load %arg4[%c0_5, %c0_6] : memref<384x1024xf32, #tpu.memory_space<vmem>>, vector<384x1024xf32>
    %cst = arith.constant dense<0.000000e+00> : vector<8x1024xf32>
    %5 = tpu.matmul %2, %4, %cst {dimension_numbers = #tpu.dot_dimension_numbers<[1], [0], [0], [1], [0, 0, 1, 1], [], []>} : vector<8x384xf32>, vector<384x1024xf32>, vector<8x1024xf32> -> vector<8x1024xf32>
    %c0_7 = arith.constant 0 : index
    %c0_8 = arith.constant 0 : index
    %6 = vector.load %arg5[%c0_7, %c0_8] : memref<1x1024xf32, #tpu.memory_space<vmem>>, vector<1x1024xf32>
    %7 = vector.broadcast %6 : vector<1x1024xf32> to vector<8x1024xf32>
    %8 = arith.addf %5, %7 : vector<8x1024xf32>
    %c0_9 = arith.constant 0 : index
    %c0_10 = arith.constant 0 : index
    %9 = vector.load %arg14[%c0_9, %c0_10] : memref<16x1024xf32, #tpu.memory_space<vmem>>, vector<8x1024xf32>
    tpu.vector_store %arg14[%c0_9, %c0_10], %8 {strides = array<i32>} : memref<16x1024xf32, #tpu.memory_space<vmem>>, vector<8x1024xf32>,
    %c0_11 = arith.constant 0 : index
    %c0_12 = arith.constant 0 : index
    %10 = vector.load %arg8[%c0_11, %c0_12] : memref<384x1024xf32, #tpu.memory_space<vmem>>, vector<384x1024xf32>
    %cst_13 = arith.constant dense<0.000000e+00> : vector<8x1024xf32>
    %11 = tpu.matmul %3, %10, %cst_13 {dimension_numbers = #tpu.dot_dimension_numbers<[1], [0], [0], [1], [0, 0, 1, 1], [], []>} : vector<8x384xf32>, vector<384x1024xf32>, vector<8x1024xf32> -> vector<8x1024xf32>
    %c0_14 = arith.constant 0 : index
    %c0_15 = arith.constant 0 : index
    %12 = vector.load %arg9[%c0_14, %c0_15] : memref<1x1024xf32, #tpu.memory_space<vmem>>, vector<1x1024xf32>
    %13 = vector.broadcast %12 : vector<1x1024xf32> to vector<8x1024xf32>
    %14 = arith.addf %11, %13 : vector<8x1024xf32>
    %c8 = arith.constant 8 : index
    %c0_16 = arith.constant 0 : index
    %15 = vector.load %arg14[%c8, %c0_16] : memref<16x1024xf32, #tpu.memory_space<vmem>>, vector<8x1024xf32>
    tpu.vector_store %arg14[%c8, %c0_16], %14 {strides = array<i32>} : memref<16x1024xf32, #tpu.memory_space<vmem>>, vector<8x1024xf32>,
    %c0_17 = arith.constant 0 : index
    %c0_18 = arith.constant 0 : index
    %16 = vector.load %arg14[%c0_17, %c0_18] : memref<16x1024xf32, #tpu.memory_space<vmem>>, vector<16x1024xf32>
    %17 = vector.extract_strided_slice %16 {offsets = [0, 0], sizes = [16, 512], strides = [1, 1]} : vector<16x1024xf32> to vector<16x512xf32>
    %18 = math.absf %17 : vector<16x512xf32>
    %cst_19 = arith.constant 5.000000e-01 : f32
    %19 = vector.broadcast %cst_19 : f32 to vector<16x512xf32>
    %20 = arith.mulf %19, %17 : vector<16x512xf32>
    %cst_20 = arith.constant 5.000000e-01 : f32
    %21 = vector.broadcast %cst_20 : f32 to vector<16x512xf32>
    %22 = arith.mulf %21, %18 : vector<16x512xf32>
    %cst_21 = arith.constant 0.707106769 : f32
    %23 = vector.broadcast %cst_21 : f32 to vector<16x512xf32>
    %24 = arith.mulf %18, %23 : vector<16x512xf32>
    %cst_22 = arith.constant 4.704700e-01 : f32
    %25 = vector.broadcast %cst_22 : f32 to vector<16x512xf32>
    %26 = arith.mulf %25, %24 : vector<16x512xf32>
    %cst_23 = arith.constant 1.000000e+00 : f32
    %27 = vector.broadcast %cst_23 : f32 to vector<16x512xf32>
    %28 = arith.addf %27, %26 : vector<16x512xf32>
    %29 = tpu.reciprocal %28 {approx = true} : vector<16x512xf32> -> vector<16x512xf32>
    %30 = arith.mulf %28, %29 : vector<16x512xf32>
    %cst_24 = arith.constant 2.000000e+00 : f32
    %31 = vector.broadcast %cst_24 : f32 to vector<16x512xf32>
    %32 = arith.subf %31, %30 : vector<16x512xf32>
    %33 = arith.mulf %29, %32 : vector<16x512xf32>
    %cst_25 = arith.constant 0.747855603 : f32
    %34 = vector.broadcast %cst_25 : f32 to vector<16x512xf32>
    %35 = arith.mulf %34, %33 : vector<16x512xf32>
    %cst_26 = arith.constant -9.587980e-02 : f32
    %36 = vector.broadcast %cst_26 : f32 to vector<16x512xf32>
    %37 = arith.addf %35, %36 : vector<16x512xf32>
    %38 = arith.mulf %37, %33 : vector<16x512xf32>
    %cst_27 = arith.constant 0.348024189 : f32
    %39 = vector.broadcast %cst_27 : f32 to vector<16x512xf32>
    %40 = arith.addf %38, %39 : vector<16x512xf32>
    %41 = arith.mulf %40, %33 : vector<16x512xf32>
    %cst_28 = arith.constant 0.000000e+00 : f32
    %42 = vector.broadcast %cst_28 : f32 to vector<16x512xf32>
    %43 = arith.subf %42, %24 : vector<16x512xf32>
    %44 = arith.mulf %43, %24 : vector<16x512xf32>
    %45 = math.exp %44 : vector<16x512xf32>
    %46 = arith.mulf %41, %45 : vector<16x512xf32>
    %cst_29 = arith.constant 1.000000e+00 : f32
    %47 = vector.broadcast %cst_29 : f32 to vector<16x512xf32>
    %48 = arith.subf %47, %46 : vector<16x512xf32>
    %49 = arith.mulf %22, %48 : vector<16x512xf32>
    %50 = arith.addf %20, %49 : vector<16x512xf32>
    %51 = vector.extract_strided_slice %16 {offsets = [0, 512], sizes = [16, 512], strides = [1, 1]} : vector<16x1024xf32> to vector<16x512xf32>
    %cst_30 = arith.constant 5.000000e-01 : f32
    %52 = vector.broadcast %cst_30 : f32 to vector<16x512xf32>
    %53 = arith.mulf %52, %51 : vector<16x512xf32>
    %54 = math.tanh %53 : vector<16x512xf32>
    %cst_31 = arith.constant 1.000000e+00 : f32
    %55 = vector.broadcast %cst_31 : f32 to vector<16x512xf32>
    %56 = arith.addf %54, %55 : vector<16x512xf32>
    %cst_32 = arith.constant 5.000000e-01 : f32
    %57 = vector.broadcast %cst_32 : f32 to vector<16x512xf32>
    %58 = arith.mulf %57, %56 : vector<16x512xf32>
    %59 = arith.mulf %50, %58 : vector<16x512xf32>
    %60 = vector.extract_strided_slice %59 {offsets = [0, 0], sizes = [8, 512], strides = [1, 1]} : vector<16x512xf32> to vector<8x512xf32>
    %c0_33 = arith.constant 0 : index
    %c0_34 = arith.constant 0 : index
    %61 = vector.load %arg6[%c0_33, %c0_34] : memref<512x384xf32, #tpu.memory_space<vmem>>, vector<512x384xf32>
    %cst_35 = arith.constant dense<0.000000e+00> : vector<8x384xf32>
    %62 = tpu.matmul %60, %61, %cst_35 {dimension_numbers = #tpu.dot_dimension_numbers<[1], [0], [0], [1], [0, 0, 1, 1], [], []>} : vector<8x512xf32>, vector<512x384xf32>, vector<8x384xf32> -> vector<8x384xf32>
    %c0_36 = arith.constant 0 : index
    %c0_37 = arith.constant 0 : index
    %63 = vector.load %arg7[%c0_36, %c0_37] : memref<1x384xf32, #tpu.memory_space<vmem>>, vector<1x384xf32>
    %64 = vector.broadcast %63 : vector<1x384xf32> to vector<8x384xf32>
    %65 = arith.addf %62, %64 : vector<8x384xf32>
    %c0_38 = arith.constant 0 : index
    %c0_39 = arith.constant 0 : index
    %66 = vector.load %arg12[%c0_38, %c0_39] : memref<8x384xf32, #tpu.memory_space<vmem>>, vector<8x384xf32>
    tpu.vector_store %arg12[%c0_38, %c0_39], %65 {strides = array<i32>} : memref<8x384xf32, #tpu.memory_space<vmem>>, vector<8x384xf32>,
    %67 = vector.extract_strided_slice %59 {offsets = [8, 0], sizes = [8, 512], strides = [1, 1]} : vector<16x512xf32> to vector<8x512xf32>
    %c0_40 = arith.constant 0 : index
    %c0_41 = arith.constant 0 : index
    %68 = vector.load %arg10[%c0_40, %c0_41] : memref<512x384xf32, #tpu.memory_space<vmem>>, vector<512x384xf32>
    %cst_42 = arith.constant dense<0.000000e+00> : vector<8x384xf32>
    %69 = tpu.matmul %67, %68, %cst_42 {dimension_numbers = #tpu.dot_dimension_numbers<[1], [0], [0], [1], [0, 0, 1, 1], [], []>} : vector<8x512xf32>, vector<512x384xf32>, vector<8x384xf32> -> vector<8x384xf32>
    %c0_43 = arith.constant 0 : index
    %c0_44 = arith.constant 0 : index
    %70 = vector.load %arg11[%c0_43, %c0_44] : memref<1x384xf32, #tpu.memory_space<vmem>>, vector<1x384xf32>
    %71 = vector.broadcast %70 : vector<1x384xf32> to vector<8x384xf32>
    %72 = arith.addf %69, %71 : vector<8x384xf32>
    %c0_45 = arith.constant 0 : index
    %c0_46 = arith.constant 0 : index
    %73 = vector.load %arg13[%c0_45, %c0_46] : memref<8x384xf32, #tpu.memory_space<vmem>>, vector<8x384xf32>
    tpu.vector_store %arg13[%c0_45, %c0_46], %72 {strides = array<i32>} : memref<8x384xf32, #tpu.memory_space<vmem>>, vector<8x384xf32>,
    return
  }
  func.func @transform_0(%arg0: i32) -> (i32, i32) {
    %c0_i32 = arith.constant 0 : i32
    %c0_i32_0 = arith.constant 0 : i32
    return %arg0, %c0_i32 : i32, i32
  }
  func.func @transform_1(%arg0: i32) -> (i32, i32) {
    %c0_i32 = arith.constant 0 : i32
    %c0_i32_0 = arith.constant 0 : i32
    return %arg0, %c0_i32 : i32, i32
  }
  func.func @transform_2(%arg0: i32) -> (i32, i32) {
    %c0_i32 = arith.constant 0 : i32
    %c0_i32_0 = arith.constant 0 : i32
    return %arg0, %c0_i32 : i32, i32
  }
  func.func @transform_3(%arg0: i32) -> (i32, i32) {
    %c0_i32 = arith.constant 0 : i32
    %c0_i32_0 = arith.constant 0 : i32
    %c0_i32_1 = arith.constant 0 : i32
    return %c0_i32, %c0_i32_0 : i32, i32
  }
  func.func @transform_4(%arg0: i32) -> (i32, i32) {
    %c0_i32 = arith.constant 0 : i32
    %c0_i32_0 = arith.constant 0 : i32
    %c0_i32_1 = arith.constant 0 : i32
    return %c0_i32, %c0_i32_0 : i32, i32
  }
  func.func @transform_5(%arg0: i32) -> (i32, i32) {
    %c0_i32 = arith.constant 0 : i32
    %c0_i32_0 = arith.constant 0 : i32
    %c0_i32_1 = arith.constant 0 : i32
    return %c0_i32, %c0_i32_0 : i32, i32
  }
  func.func @transform_6(%arg0: i32) -> (i32, i32) {
    %c0_i32 = arith.constant 0 : i32
    %c0_i32_0 = arith.constant 0 : i32
    %c0_i32_1 = arith.constant 0 : i32
    return %c0_i32, %c0_i32_0 : i32, i32
  }
  func.func @transform_7(%arg0: i32) -> (i32, i32) {
    %c0_i32 = arith.constant 0 : i32
    %c0_i32_0 = arith.constant 0 : i32
    %c0_i32_1 = arith.constant 0 : i32
    return %c0_i32, %c0_i32_0 : i32, i32
  }
  func.func @transform_8(%arg0: i32) -> (i32, i32) {
    %c0_i32 = arith.constant 0 : i32
    %c0_i32_0 = arith.constant 0 : i32
    %c0_i32_1 = arith.constant 0 : i32
    return %c0_i32, %c0_i32_0 : i32, i32
  }
  func.func @transform_9(%arg0: i32) -> (i32, i32) {
    %c0_i32 = arith.constant 0 : i32
    %c0_i32_0 = arith.constant 0 : i32
    %c0_i32_1 = arith.constant 0 : i32
    return %c0_i32, %c0_i32_0 : i32, i32
  }
  func.func @transform_10(%arg0: i32) -> (i32, i32) {
    %c0_i32 = arith.constant 0 : i32
    %c0_i32_0 = arith.constant 0 : i32
    %c0_i32_1 = arith.constant 0 : i32
    return %c0_i32, %c0_i32_0 : i32, i32
  }
  func.func @transform_11(%arg0: i32) -> (i32, i32) {
    %c0_i32 = arith.constant 0 : i32
    %c0_i32_0 = arith.constant 0 : i32
    return %arg0, %c0_i32 : i32, i32
  }
  func.func @transform_12(%arg0: i32) -> (i32, i32) {
    %c0_i32 = arith.constant 0 : i32
    %c0_i32_0 = arith.constant 0 : i32
    return %arg0, %c0_i32 : i32, i32
  }
}

</mosaic_0001>

<llo_original>
// kernel: tpu_custom_call.1
$region0: #{tpu_custom_call.1}
  #allocation0 [shape = 'u32[]', space=smem, size = 0x4, offset = 0x4, fixed_abs, tag = 'smem constant byte address 0x4 - core index']
  #allocation1 [shape = 'u32[144,128]{1,0:T(1,128)}', space=vmem, size = 0x12000, scoped, tag = 'internal scratch']
  #allocation2 [shape = 'f32[16,1024]{1,0:T(8,128)}', space=vmem, size = 0x10000, scoped, tag = 'scratch operand']
  %s0 = inlined_call_operand.hbm [shape: f32[16,384], index: 0, kind: input, shape index: {}]
  %s1 = inlined_call_operand.hbm [shape: f32[16,384], index: 1, kind: input, shape index: {}]
  %s2 = inlined_call_operand.hbm [shape: f32[16,384], index: 2, kind: input, shape index: {}]
  %s3 = inlined_call_operand.hbm [shape: f32[384,1024], index: 3, kind: input, shape index: {}]
  %s4 = inlined_call_operand.hbm [shape: f32[1,1024], index: 4, kind: input, shape index: {}]
  %s5 = inlined_call_operand.hbm [shape: f32[512,384], index: 5, kind: input, shape index: {}]
  %s6 = inlined_call_operand.hbm [shape: f32[1,384], index: 6, kind: input, shape index: {}]
  %s7 = inlined_call_operand.hbm [shape: f32[384,1024], index: 7, kind: input, shape index: {}]
  %s8 = inlined_call_operand.hbm [shape: f32[1,1024], index: 8, kind: input, shape index: {}]
  %s9 = inlined_call_operand.hbm [shape: f32[512,384], index: 9, kind: input, shape index: {}]
  %s10 = inlined_call_operand.hbm [shape: f32[1,384], index: 10, kind: input, shape index: {}]
  %s11 = inlined_call_operand.hbm [shape: f32[16,384], index: 11, kind: output, shape index: {0}]
  %s12 = inlined_call_operand.hbm [shape: f32[16,384], index: 12, kind: output, shape index: {1}]
  %13 = xla_tuple %s11, %s12
  %s14 = sld [smem:[#allocation0]]
  $region129: #{tpu_custom_call.1} parent=0
    _
  %s16 = ssub.s32 1, %s14
  %s17 = scalar_select 0, %s16, %s14
  $region1: #{tpu_custom_call.1} parent=0
    #allocation3 [shape = 'u8[24576]{0}', space=vmem, size = 0x6000, scoped, tag = 'input window, operand 0']
    #allocation4 [shape = 's32[2]{0}', space=sflag, size = 0x8, scoped, tag = 'scoped memory for tpu_custom_call.1']
    #allocation5 [shape = 's32[2]{0}', space=sflag, size = 0x8, scoped, tag = 'scoped memory for tpu_custom_call.1']
    #allocation6 [shape = 'u8[24576]{0}', space=vmem, size = 0x6000, scoped, tag = 'input window, operand 1']
    #allocation7 [shape = 's32[2]{0}', space=sflag, size = 0x8, scoped, tag = 'scoped memory for tpu_custom_call.1']
    #allocation8 [shape = 'u8[24576]{0}', space=vmem, size = 0x6000, scoped, tag = 'input window, operand 2']
    #allocation9 [shape = 'u8[1572864]{0}', space=vmem, size = 0x180000, scoped, tag = 'input window, operand 3, single buffered']
    #allocation10 [shape = 's32[1]{0}', space=sflag, size = 0x4, scoped, tag = 'scoped memory for tpu_custom_call.1']
    #allocation11 [shape = 'u8[4096]{0}', space=vmem, size = 0x1000, scoped, tag = 'input window, operand 4, single buffered']
    #allocation12 [shape = 'u8[786432]{0}', space=vmem, size = 0xc0000, scoped, tag = 'input window, operand 5, single buffered']
    #allocation13 [shape = 's32[1]{0}', space=sflag, size = 0x4, scoped, tag = 'scoped memory for tpu_custom_call.1']
    #allocation14 [shape = 'u8[1536]{0}', space=vmem, size = 0x800, scoped, tag = 'input window, operand 6, single buffered']
    #allocation15 [shape = 'u8[1572864]{0}', space=vmem, size = 0x180000, scoped, tag = 'input window, operand 7, single buffered']
    #allocation16 [shape = 's32[1]{0}', space=sflag, size = 0x4, scoped, tag = 'scoped memory for tpu_custom_call.1']
    #allocation17 [shape = 'u8[4096]{0}', space=vmem, size = 0x1000, scoped, tag = 'input window, operand 8, single buffered']
    #allocation18 [shape = 'u8[786432]{0}', space=vmem, size = 0xc0000, scoped, tag = 'input window, operand 9, single buffered']
    #allocation19 [shape = 's32[1]{0}', space=sflag, size = 0x4, scoped, tag = 'scoped memory for tpu_custom_call.1']
    #allocation20 [shape = 'u8[1536]{0}', space=vmem, size = 0x800, scoped, tag = 'input window, operand 10, single buffered']
    #allocation21 [shape = 'u8[24576]{0}', space=vmem, size = 0x6000, scoped, tag = 'output window, operand 0']
    #allocation22 [shape = 'u8[24576]{0}', space=vmem, size = 0x6000, scoped, tag = 'output window, operand 1']
    #allocation23 [shape = 's32[2]{0}', space=sflag, size = 0x8, scoped, tag = 'scoped memory for tpu_custom_call.1']
    %18 = vsyncpa [#allocation4], 0
    %s19 = scalar_lea.sflag [#allocation4], 1
    %20 = vsyncpa %s19, 0
    %21 = vsyncpa [#allocation7], 0
    %s22 = scalar_lea.sflag [#allocation7], 1
    %23 = vsyncpa %s22, 0
    %24 = vsyncpa [#allocation10], 0
    %25 = vsyncpa [#allocation13], 0
    %26 = vsyncpa [#allocation16], 0
    %27 = vsyncpa [#allocation19], 0
    %28 = vsyncpa [#allocation5], 0
    %s29 = scalar_lea.sflag [#allocation5], 1
    %30 = vsyncpa %s29, 0
    %31 = vsyncpa [#allocation23], 0
    %s32 = scalar_lea.sflag [#allocation23], 1
    %33 = vsyncpa %s32, 0
    loop: start=0, step=1, limit=4
    $region2: #{tpu_custom_call.1} parent=1 // loop_pre_header
      _
    $region3: #{tpu_custom_call.1} parent=1 // loop_header
      %s35 = sphi 0, %s39
      %p36 = scmp.ge.s32.totalorder %s35, 4
      %s45 = sphi 0, %s47
      %s48 = sphi 0, %s45
      %s49 = sphi 0, %s48
      %s65 = sphi 0, %s49
      %s71 = sphi 0, %s73
      %s74 = sphi 0, %s71
      %s75 = sphi 0, %s74
      %s91 = sphi 0, %s75
      %s97 = sphi 0, %s99
      %s100 = sphi 0, %s97
      %s101 = sphi 0, %s100
      %s117 = sphi 0, %s101
      %s121 = sphi 0, %s121
      %s123 = sphi 0, %s121
      %s124 = sphi 0, %s123
      %s138 = sphi 0, %s124
      %s142 = sphi 0, %s142
      %s144 = sphi 0, %s142
      %s145 = sphi 0, %s144
      %s159 = sphi 0, %s145
      %s163 = sphi 0, %s163
      %s165 = sphi 0, %s163
      %s166 = sphi 0, %s165
      %s180 = sphi 0, %s166
      %s184 = sphi 0, %s184
      %s186 = sphi 0, %s184
      %s187 = sphi 0, %s186
      %s201 = sphi 0, %s187
      %s205 = sphi 0, %s205
      %s207 = sphi 0, %s205
      %s208 = sphi 0, %s207
      %s222 = sphi 0, %s208
      %s226 = sphi 0, %s226
      %s228 = sphi 0, %s226
      %s229 = sphi 0, %s228
      %s243 = sphi 0, %s229
      %s247 = sphi 0, %s247
      %s249 = sphi 0, %s247
      %s250 = sphi 0, %s249
      %s264 = sphi 0, %s250
      %s268 = sphi 0, %s268
      %s270 = sphi 0, %s268
      %s271 = sphi 0, %s270
      %s285 = sphi 0, %s271
      %s291 = sphi 0, %s293
      %s294 = sphi 0, %s291
      %s295 = sphi 0, %s294
      %s311 = sphi 0, %s295
      %s317 = sphi 0, %s319
      %s320 = sphi 0, %s317
      %s321 = sphi 0, %s320
      %s337 = sphi 0, %s321
    $region4: #{tpu_custom_call.1} parent=1 // loop_header_branch
      %38 = sbr.rel (%p36) target = $region8
    $region5: #{tpu_custom_call.1} parent=1 // loop_body
      %s40 = ssub.s32 %s35, 1
      %s41 = ssub.s32 %s35, 2
      %s42 = sadd.s32 %s35, 1
      %s43 = ssub.s32 %s35, %s42
      %p44 = scmp.eq.s32.totalorder %s43, 0
      %s46 = sadd.s32 %s45, 1
      %s47 = scalar_select %p44, %s45, %s46
      %p50 = pneg %p44
      %p51 = scmp.eq.s32.totalorder %s35, 1
      %p52 = por %p50, %p51
      %p53 = scmp.ne.s32.totalorder %s45, %s48
      %p54 = scmp.eq.s32.totalorder %s35, 0
      %p55 = por %p53, %p54
      %p56 = scmp.ne.s32.totalorder %s45, %s48
      %p57 = scmp.eq.s32.totalorder %s40, 1
      %p58 = por %p56, %p57
      %p59 = scmp.ne.s32.totalorder %s48, %s49
      %p60 = scmp.eq.s32.totalorder %s40, 0
      %p61 = por %p59, %p60
      %p62 = scmp.ne.s32.totalorder %s48, %s49
      %p63 = scmp.eq.s32.totalorder %s41, 1
      %p64 = por %p62, %p63
      %p66 = scmp.ne.s32.totalorder %s49, %s65
      %p67 = scmp.eq.s32.totalorder %s41, 0
      %p68 = por %p66, %p67
      %s69 = ssub.s32 %s35, %s42
      %p70 = scmp.eq.s32.totalorder %s69, 0
      %s72 = sadd.s32 %s71, 1
      %s73 = scalar_select %p70, %s71, %s72
      %p76 = pneg %p70
      %p77 = scmp.eq.s32.totalorder %s35, 1
      %p78 = por %p76, %p77
      %p79 = scmp.ne.s32.totalorder %s71, %s74
      %p80 = scmp.eq.s32.totalorder %s35, 0
      %p81 = por %p79, %p80
      %p82 = scmp.ne.s32.totalorder %s71, %s74
      %p83 = scmp.eq.s32.totalorder %s40, 1
      %p84 = por %p82, %p83
      %p85 = scmp.ne.s32.totalorder %s74, %s75
      %p86 = scmp.eq.s32.totalorder %s40, 0
      %p87 = por %p85, %p86
      %p88 = scmp.ne.s32.totalorder %s74, %s75
      %p89 = scmp.eq.s32.totalorder %s41, 1
      %p90 = por %p88, %p89
      %p92 = scmp.ne.s32.totalorder %s75, %s91
      %p93 = scmp.eq.s32.totalorder %s41, 0
      %p94 = por %p92, %p93
      %s95 = ssub.s32 %s35, %s42
      %p96 = scmp.eq.s32.totalorder %s95, 0
      %s98 = sadd.s32 %s97, 1
      %s99 = scalar_select %p96, %s97, %s98
      %p102 = pneg %p96
      %p103 = scmp.eq.s32.totalorder %s35, 1
      %p104 = por %p102, %p103
      %p105 = scmp.ne.s32.totalorder %s97, %s100
      %p106 = scmp.eq.s32.totalorder %s35, 0
      %p107 = por %p105, %p106
      %p108 = scmp.ne.s32.totalorder %s97, %s100
      %p109 = scmp.eq.s32.totalorder %s40, 1
      %p110 = por %p108, %p109
      %p111 = scmp.ne.s32.totalorder %s100, %s101
      %p112 = scmp.eq.s32.totalorder %s40, 0
      %p113 = por %p111, %p112
      %p114 = scmp.ne.s32.totalorder %s100, %s101
      %p115 = scmp.eq.s32.totalorder %s41, 1
      %p116 = por %p114, %p115
      %p118 = scmp.ne.s32.totalorder %s101, %s117
      %p119 = scmp.eq.s32.totalorder %s41, 0
      %p120 = por %p118, %p119
      %s122 = sadd.s32 %s121, 1
      %p125 = scmp.eq.s32.totalorder %s35, 1
      %p126 = scmp.ne.s32.totalorder %s121, %s123
      %p127 = scmp.eq.s32.totalorder %s35, 0
      %p128 = por %p126, %p127
      %p129 = scmp.ne.s32.totalorder %s121, %s123
      %p130 = scmp.eq.s32.totalorder %s40, 1
      %p131 = por %p129, %p130
      %p132 = scmp.ne.s32.totalorder %s123, %s124
      %p133 = scmp.eq.s32.totalorder %s40, 0
      %p134 = por %p132, %p133
      %p135 = scmp.ne.s32.totalorder %s123, %s124
      %p136 = scmp.eq.s32.totalorder %s41, 1
      %p137 = por %p135, %p136
      %p139 = scmp.ne.s32.totalorder %s124, %s138
      %p140 = scmp.eq.s32.totalorder %s41, 0
      %p141 = por %p139, %p140
      %s143 = sadd.s32 %s142, 1
      %p146 = scmp.eq.s32.totalorder %s35, 1
      %p147 = scmp.ne.s32.totalorder %s142, %s144
      %p148 = scmp.eq.s32.totalorder %s35, 0
      %p149 = por %p147, %p148
      %p150 = scmp.ne.s32.totalorder %s142, %s144
      %p151 = scmp.eq.s32.totalorder %s40, 1
      %p152 = por %p150, %p151
      %p153 = scmp.ne.s32.totalorder %s144, %s145
      %p154 = scmp.eq.s32.totalorder %s40, 0
      %p155 = por %p153, %p154
      %p156 = scmp.ne.s32.totalorder %s144, %s145
      %p157 = scmp.eq.s32.totalorder %s41, 1
      %p158 = por %p156, %p157
      %p160 = scmp.ne.s32.totalorder %s145, %s159
      %p161 = scmp.eq.s32.totalorder %s41, 0
      %p162 = por %p160, %p161
      %s164 = sadd.s32 %s163, 1
      %p167 = scmp.eq.s32.totalorder %s35, 1
      %p168 = scmp.ne.s32.totalorder %s163, %s165
      %p169 = scmp.eq.s32.totalorder %s35, 0
      %p170 = por %p168, %p169
      %p171 = scmp.ne.s32.totalorder %s163, %s165
      %p172 = scmp.eq.s32.totalorder %s40, 1
      %p173 = por %p171, %p172
      %p174 = scmp.ne.s32.totalorder %s165, %s166
      %p175 = scmp.eq.s32.totalorder %s40, 0
      %p176 = por %p174, %p175
      %p177 = scmp.ne.s32.totalorder %s165, %s166
      %p178 = scmp.eq.s32.totalorder %s41, 1
      %p179 = por %p177, %p178
      %p181 = scmp.ne.s32.totalorder %s166, %s180
      %p182 = scmp.eq.s32.totalorder %s41, 0
      %p183 = por %p181, %p182
      %s185 = sadd.s32 %s184, 1
      %p188 = scmp.eq.s32.totalorder %s35, 1
      %p189 = scmp.ne.s32.totalorder %s184, %s186
      %p190 = scmp.eq.s32.totalorder %s35, 0
      %p191 = por %p189, %p190
      %p192 = scmp.ne.s32.totalorder %s184, %s186
      %p193 = scmp.eq.s32.totalorder %s40, 1
      %p194 = por %p192, %p193
      %p195 = scmp.ne.s32.totalorder %s186, %s187
      %p196 = scmp.eq.s32.totalorder %s40, 0
      %p197 = por %p195, %p196
      %p198 = scmp.ne.s32.totalorder %s186, %s187
      %p199 = scmp.eq.s32.totalorder %s41, 1
      %p200 = por %p198, %p199
      %p202 = scmp.ne.s32.totalorder %s187, %s201
      %p203 = scmp.eq.s32.totalorder %s41, 0
      %p204 = por %p202, %p203
      %s206 = sadd.s32 %s205, 1
      %p209 = scmp.eq.s32.totalorder %s35, 1
      %p210 = scmp.ne.s32.totalorder %s205, %s207
      %p211 = scmp.eq.s32.totalorder %s35, 0
      %p212 = por %p210, %p211
      %p213 = scmp.ne.s32.totalorder %s205, %s207
      %p214 = scmp.eq.s32.totalorder %s40, 1
      %p215 = por %p213, %p214
      %p216 = scmp.ne.s32.totalorder %s207, %s208
      %p217 = scmp.eq.s32.totalorder %s40, 0
      %p218 = por %p216, %p217
      %p219 = scmp.ne.s32.totalorder %s207, %s208
      %p220 = scmp.eq.s32.totalorder %s41, 1
      %p221 = por %p219, %p220
      %p223 = scmp.ne.s32.totalorder %s208, %s222
      %p224 = scmp.eq.s32.totalorder %s41, 0
      %p225 = por %p223, %p224
      %s227 = sadd.s32 %s226, 1
      %p230 = scmp.eq.s32.totalorder %s35, 1
      %p231 = scmp.ne.s32.totalorder %s226, %s228
      %p232 = scmp.eq.s32.totalorder %s35, 0
      %p233 = por %p231, %p232
      %p234 = scmp.ne.s32.totalorder %s226, %s228
      %p235 = scmp.eq.s32.totalorder %s40, 1
      %p236 = por %p234, %p235
      %p237 = scmp.ne.s32.totalorder %s228, %s229
      %p238 = scmp.eq.s32.totalorder %s40, 0
      %p239 = por %p237, %p238
      %p240 = scmp.ne.s32.totalorder %s228, %s229
      %p241 = scmp.eq.s32.totalorder %s41, 1
      %p242 = por %p240, %p241
      %p244 = scmp.ne.s32.totalorder %s229, %s243
      %p245 = scmp.eq.s32.totalorder %s41, 0
      %p246 = por %p244, %p245
      %s248 = sadd.s32 %s247, 1
      %p251 = scmp.eq.s32.totalorder %s35, 1
      %p252 = scmp.ne.s32.totalorder %s247, %s249
      %p253 = scmp.eq.s32.totalorder %s35, 0
      %p254 = por %p252, %p253
      %p255 = scmp.ne.s32.totalorder %s247, %s249
      %p256 = scmp.eq.s32.totalorder %s40, 1
      %p257 = por %p255, %p256
      %p258 = scmp.ne.s32.totalorder %s249, %s250
      %p259 = scmp.eq.s32.totalorder %s40, 0
      %p260 = por %p258, %p259
      %p261 = scmp.ne.s32.totalorder %s249, %s250
      %p262 = scmp.eq.s32.totalorder %s41, 1
      %p263 = por %p261, %p262
      %p265 = scmp.ne.s32.totalorder %s250, %s264
      %p266 = scmp.eq.s32.totalorder %s41, 0
      %p267 = por %p265, %p266
      %s269 = sadd.s32 %s268, 1
      %p272 = scmp.eq.s32.totalorder %s35, 1
      %p273 = scmp.ne.s32.totalorder %s268, %s270
      %p274 = scmp.eq.s32.totalorder %s35, 0
      %p275 = por %p273, %p274
      %p276 = scmp.ne.s32.totalorder %s268, %s270
      %p277 = scmp.eq.s32.totalorder %s40, 1
      %p278 = por %p276, %p277
      %p279 = scmp.ne.s32.totalorder %s270, %s271
      %p280 = scmp.eq.s32.totalorder %s40, 0
      %p281 = por %p279, %p280
      %p282 = scmp.ne.s32.totalorder %s270, %s271
      %p283 = scmp.eq.s32.totalorder %s41, 1
      %p284 = por %p282, %p283
      %p286 = scmp.ne.s32.totalorder %s271, %s285
      %p287 = scmp.eq.s32.totalorder %s41, 0
      %p288 = por %p286, %p287
      %s289 = ssub.s32 %s35, %s42
      %p290 = scmp.eq.s32.totalorder %s289, 0
      %s292 = sadd.s32 %s291, 1
      %s293 = scalar_select %p290, %s291, %s292
      %p296 = pneg %p290
      %p297 = scmp.eq.s32.totalorder %s35, 1
      %p298 = por %p296, %p297
      %p299 = scmp.ne.s32.totalorder %s291, %s294
      %p300 = scmp.eq.s32.totalorder %s35, 0
      %p301 = por %p299, %p300
      %p302 = scmp.ne.s32.totalorder %s291, %s294
      %p303 = scmp.eq.s32.totalorder %s40, 1
      %p304 = por %p302, %p303
      %p305 = scmp.ne.s32.totalorder %s294, %s295
      %p306 = scmp.eq.s32.totalorder %s40, 0
      %p307 = por %p305, %p306
      %p308 = scmp.ne.s32.totalorder %s294, %s295
      %p309 = scmp.eq.s32.totalorder %s41, 1
      %p310 = por %p308, %p309
      %p312 = scmp.ne.s32.totalorder %s295, %s311
      %p313 = scmp.eq.s32.totalorder %s41, 0
      %p314 = por %p312, %p313
      %s315 = ssub.s32 %s35, %s42
      %p316 = scmp.eq.s32.totalorder %s315, 0
      %s318 = sadd.s32 %s317, 1
      %s319 = scalar_select %p316, %s317, %s318
      %p322 = pneg %p316
      %p323 = scmp.eq.s32.totalorder %s35, 1
      %p324 = por %p322, %p323
      %p325 = scmp.ne.s32.totalorder %s317, %s320
      %p326 = scmp.eq.s32.totalorder %s35, 0
      %p327 = por %p325, %p326
      %p328 = scmp.ne.s32.totalorder %s317, %s320
      %p329 = scmp.eq.s32.totalorder %s40, 1
      %p330 = por %p328, %p329
      %p331 = scmp.ne.s32.totalorder %s320, %s321
      %p332 = scmp.eq.s32.totalorder %s40, 0
      %p333 = por %p331, %p332
      %p334 = scmp.ne.s32.totalorder %s320, %s321
      %p335 = scmp.eq.s32.totalorder %s41, 1
      %p336 = por %p334, %p335
      %p338 = scmp.ne.s32.totalorder %s321, %s337
      %p339 = scmp.eq.s32.totalorder %s41, 0
      %p340 = por %p338, %p339
      %p341 = scmp.le.s32.totalorder 1, %s35
      %p342 = scmp.lt.s32.totalorder %s35, 3
      %p343 = pnand %p341, %p342
      %p344 = pneg %p343
      // Predicated region
      $region9: #{tpu_custom_call.1} parent=5 // pred_check
        _
      $region10: #{tpu_custom_call.1} parent=5 // pred_check_branch
        %346 = sbr.rel (%p343) target = $region12
      $region11: #{tpu_custom_call.1} parent=5 // pred_region
        %s347 = ssub.s32 %s35, 1
        // Predicated region
        $region13: #{tpu_custom_call.1} parent=11 // pred_check
          %p348 = pneg %p134
        $region14: #{tpu_custom_call.1} parent=11 // pred_check_branch
          %350 = sbr.rel (%p348) target = $region16
        $region15: #{tpu_custom_call.1} parent=11 // pred_region
          %s352 = ssub.s32 49152, 49152
          %353 = vsyncadd [#allocation10], %s352
          %s354 = sshll.u32 [#allocation9], 4
          %s355 = int_to_ptr.vmem [resolvable:$true] %s354
          %360 = dma.hbm_to_vmem [thread:$0]  %s3, 49152, %s355, [#allocation10], 1024, 1024, 64
        $region16: #{tpu_custom_call.1} parent=11 // pred_fallthru
          _
        // Predicated region
        $region17: #{tpu_custom_call.1} parent=11 // pred_check
          %p361 = pneg %p155
        $region18: #{tpu_custom_call.1} parent=11 // pred_check_branch
          %363 = sbr.rel (%p361) target = $region20
        $region19: #{tpu_custom_call.1} parent=11 // pred_region
          %s365 = ssub.s32 128, 128
          %366 = vsyncadd [#allocation10], %s365
          %s368 = sshll.u32 [#allocation11], 4
          %s369 = int_to_ptr.vmem [resolvable:$true] %s368
          %371 = dma.hbm_to_vmem [thread:$0]  %s4, 128, %s369, [#allocation10]
        $region20: #{tpu_custom_call.1} parent=11 // pred_fallthru
          _
        // Predicated region
        $region21: #{tpu_custom_call.1} parent=11 // pred_check
          %p372 = pneg %p176
        $region22: #{tpu_custom_call.1} parent=11 // pred_check_branch
          %374 = sbr.rel (%p372) target = $region24
        $region23: #{tpu_custom_call.1} parent=11 // pred_region
          %s376 = ssub.s32 24576, 24576
          %377 = vsyncadd [#allocation13], %s376
          %s378 = sshll.u32 [#allocation12], 4
          %s379 = int_to_ptr.vmem [resolvable:$true] %s378
          %384 = dma.hbm_to_vmem [thread:$0]  %s5, 24576, %s379, [#allocation13], 384, 384, 24
        $region24: #{tpu_custom_call.1} parent=11 // pred_fallthru
          _
        // Predicated region
        $region25: #{tpu_custom_call.1} parent=11 // pred_check
          %p385 = pneg %p197
        $region26: #{tpu_custom_call.1} parent=11 // pred_check_branch
          %387 = sbr.rel (%p385) target = $region28
        $region27: #{tpu_custom_call.1} parent=11 // pred_region
          %s389 = ssub.s32 48, 48
          %390 = vsyncadd [#allocation13], %s389
          %s392 = sshll.u32 [#allocation14], 4
          %s393 = int_to_ptr.vmem [resolvable:$true] %s392
          %395 = dma.hbm_to_vmem [thread:$0]  %s6, 48, %s393, [#allocation13]
        $region28: #{tpu_custom_call.1} parent=11 // pred_fallthru
          _
        // Predicated region
        $region29: #{tpu_custom_call.1} parent=11 // pred_check
          %p396 = pneg %p218
        $region30: #{tpu_custom_call.1} parent=11 // pred_check_branch
          %398 = sbr.rel (%p396) target = $region32
        $region31: #{tpu_custom_call.1} parent=11 // pred_region
          %s400 = ssub.s32 49152, 49152
          %401 = vsyncadd [#allocation16], %s400
          %s402 = sshll.u32 [#allocation15], 4
          %s403 = int_to_ptr.vmem [resolvable:$true] %s402
          %408 = dma.hbm_to_vmem [thread:$0]  %s7, 49152, %s403, [#allocation16], 1024, 1024, 64
        $region32: #{tpu_custom_call.1} parent=11 // pred_fallthru
          _
        // Predicated region
        $region33: #{tpu_custom_call.1} parent=11 // pred_check
          %p409 = pneg %p239
        $region34: #{tpu_custom_call.1} parent=11 // pred_check_branch
          %411 = sbr.rel (%p409) target = $region36
        $region35: #{tpu_custom_call.1} parent=11 // pred_region
          %s413 = ssub.s32 128, 128
          %414 = vsyncadd [#allocation16], %s413
          %s416 = sshll.u32 [#allocation17], 4
          %s417 = int_to_ptr.vmem [resolvable:$true] %s416
          %419 = dma.hbm_to_vmem [thread:$0]  %s8, 128, %s417, [#allocation16]
        $region36: #{tpu_custom_call.1} parent=11 // pred_fallthru
          _
        // Predicated region
        $region37: #{tpu_custom_call.1} parent=11 // pred_check
          %p420 = pneg %p260
        $region38: #{tpu_custom_call.1} parent=11 // pred_check_branch
          %422 = sbr.rel (%p420) target = $region40
        $region39: #{tpu_custom_call.1} parent=11 // pred_region
          %s424 = ssub.s32 24576, 24576
          %425 = vsyncadd [#allocation19], %s424
          %s426 = sshll.u32 [#allocation18], 4
          %s427 = int_to_ptr.vmem [resolvable:$true] %s426
          %432 = dma.hbm_to_vmem [thread:$0]  %s9, 24576, %s427, [#allocation19], 384, 384, 24
        $region40: #{tpu_custom_call.1} parent=11 // pred_fallthru
          _
        // Predicated region
        $region41: #{tpu_custom_call.1} parent=11 // pred_check
          %p433 = pneg %p281
        $region42: #{tpu_custom_call.1} parent=11 // pred_check_branch
          %435 = sbr.rel (%p433) target = $region44
        $region43: #{tpu_custom_call.1} parent=11 // pred_region
          %s437 = ssub.s32 48, 48
          %438 = vsyncadd [#allocation19], %s437
          %s440 = sshll.u32 [#allocation20], 4
          %s441 = int_to_ptr.vmem [resolvable:$true] %s440
          %443 = dma.hbm_to_vmem [thread:$0]  %s10, 48, %s441, [#allocation19]
        $region44: #{tpu_custom_call.1} parent=11 // pred_fallthru
          _
      $region12: #{tpu_custom_call.1} parent=5 // pred_fallthru
        _
      %p444 = scmp.lt.s32.totalorder %s35, 2
      // Predicated region
      $region45: #{tpu_custom_call.1} parent=5 // pred_check
        %p445 = pneg %p444
      $region46: #{tpu_custom_call.1} parent=5 // pred_check_branch
        %447 = sbr.rel (%p445) target = $region48
      $region47: #{tpu_custom_call.1} parent=5 // pred_region
        // Predicated region
        $region49: #{tpu_custom_call.1} parent=47 // pred_check
          %p448 = pneg %p55
        $region50: #{tpu_custom_call.1} parent=47 // pred_check_branch
          %450 = sbr.rel (%p448) target = $region52
        $region51: #{tpu_custom_call.1} parent=47 // pred_region
          %s451 = sand.u32 %s45, 1
          %s452 = scalar_lea.sflag [#allocation4], %s451
          %s453 = sand.u32 %s45, 1
          %s454 = smul.addr %s453, 24
          %s455 = scalar_lea.vmem [#allocation3], %s454
          %s457 = ssub.s32 384, 384
          %458 = vsyncadd %s452, %s457
          %s459 = smul.addr %s35, 3
          %s460 = smul.addr %s459, 128
          %s461 = scalar_lea.hbm %s0, %s460
          %s463 = sshll.u32 %s455, 4
          %s464 = int_to_ptr.vmem [resolvable:$true] %s463
          %466 = dma.hbm_to_vmem [thread:$0]  %s461, 384, %s464, %s452
        $region52: #{tpu_custom_call.1} parent=47 // pred_fallthru
          _
        // Predicated region
        $region53: #{tpu_custom_call.1} parent=47 // pred_check
          %p467 = pneg %p81
        $region54: #{tpu_custom_call.1} parent=47 // pred_check_branch
          %469 = sbr.rel (%p467) target = $region56
        $region55: #{tpu_custom_call.1} parent=47 // pred_region
          %s470 = sand.u32 %s35, 1
          %s471 = scalar_lea.sflag [#allocation7], %s470
          %s472 = sand.u32 %s71, 1
          %s473 = smul.addr %s472, 24
          %s474 = scalar_lea.vmem [#allocation6], %s473
          %s476 = ssub.s32 384, 384
          %477 = vsyncadd %s471, %s476
          %s478 = smul.addr %s35, 3
          %s479 = smul.addr %s478, 128
          %s480 = scalar_lea.hbm %s1, %s479
          %s482 = sshll.u32 %s474, 4
          %s483 = int_to_ptr.vmem [resolvable:$true] %s482
          %485 = dma.hbm_to_vmem [thread:$0]  %s480, 384, %s483, %s471
        $region56: #{tpu_custom_call.1} parent=47 // pred_fallthru
          _
        // Predicated region
        $region57: #{tpu_custom_call.1} parent=47 // pred_check
          %p486 = pneg %p107
        $region58: #{tpu_custom_call.1} parent=47 // pred_check_branch
          %488 = sbr.rel (%p486) target = $region60
        $region59: #{tpu_custom_call.1} parent=47 // pred_region
          %s489 = sand.u32 %s35, 1
          %s490 = scalar_lea.sflag [#allocation7], %s489
          %s491 = sand.u32 %s97, 1
          %s492 = smul.addr %s491, 24
          %s493 = scalar_lea.vmem [#allocation8], %s492
          %s495 = ssub.s32 384, 384
          %496 = vsyncadd %s490, %s495
          %s497 = smul.addr %s35, 3
          %s498 = smul.addr %s497, 128
          %s499 = scalar_lea.hbm %s2, %s498
          %s501 = sshll.u32 %s493, 4
          %s502 = int_to_ptr.vmem [resolvable:$true] %s501
          %504 = dma.hbm_to_vmem [thread:$0]  %s499, 384, %s502, %s490
        $region60: #{tpu_custom_call.1} parent=47 // pred_fallthru
          _
      $region48: #{tpu_custom_call.1} parent=5 // pred_fallthru
        _
      %p505 = scmp.le.s32.totalorder 1, %s35
      %p506 = scmp.lt.s32.totalorder %s35, 3
      %p507 = pnand %p505, %p506
      %p508 = pneg %p507
      // Predicated region
      $region61: #{tpu_custom_call.1} parent=5 // pred_check
        _
      $region62: #{tpu_custom_call.1} parent=5 // pred_check_branch
        %510 = sbr.rel (%p507) target = $region64
      $region63: #{tpu_custom_call.1} parent=5 // pred_region
        %s511 = ssub.s32 %s35, 1
        %s512 = sand.u32 %s48, 1
        %s513 = scalar_lea.sflag [#allocation4], %s512
        %s514 = sand.u32 %s48, 1
        %s515 = smul.addr %s514, 24
        %s516 = scalar_lea.vmem [#allocation3], %s515
        // Predicated region
        $region65: #{tpu_custom_call.1} parent=63 // pred_check
          %p517 = pneg %p61
        $region66: #{tpu_custom_call.1} parent=63 // pred_check_branch
          %519 = sbr.rel (%p517) target = $region68
        $region67: #{tpu_custom_call.1} parent=63 // pred_region
          %520 = dma.done %s513, 384
        $region68: #{tpu_custom_call.1} parent=63 // pred_fallthru
          _
        %s521 = sand.u32 %s40, 1
        %s522 = scalar_lea.sflag [#allocation7], %s521
        %s523 = sand.u32 %s74, 1
        %s524 = smul.addr %s523, 24
        %s525 = scalar_lea.vmem [#allocation6], %s524
        // Predicated region
        $region69: #{tpu_custom_call.1} parent=63 // pred_check
          %p526 = pneg %p87
        $region70: #{tpu_custom_call.1} parent=63 // pred_check_branch
          %528 = sbr.rel (%p526) target = $region72
        $region71: #{tpu_custom_call.1} parent=63 // pred_region
          %529 = dma.done %s522, 384
        $region72: #{tpu_custom_call.1} parent=63 // pred_fallthru
          _
        %s530 = sand.u32 %s40, 1
        %s531 = scalar_lea.sflag [#allocation7], %s530
        %s532 = sand.u32 %s100, 1
        %s533 = smul.addr %s532, 24
        %s534 = scalar_lea.vmem [#allocation8], %s533
        // Predicated region
        $region73: #{tpu_custom_call.1} parent=63 // pred_check
          %p535 = pneg %p113
        $region74: #{tpu_custom_call.1} parent=63 // pred_check_branch
          %537 = sbr.rel (%p535) target = $region76
        $region75: #{tpu_custom_call.1} parent=63 // pred_region
          %538 = dma.done %s531, 384
        $region76: #{tpu_custom_call.1} parent=63 // pred_fallthru
          _
        // Predicated region
        $region77: #{tpu_custom_call.1} parent=63 // pred_check
          %p539 = pneg %p134
        $region78: #{tpu_custom_call.1} parent=63 // pred_check_branch
          %541 = sbr.rel (%p539) target = $region80
        $region79: #{tpu_custom_call.1} parent=63 // pred_region
          %542 = dma.done [#allocation10], 49152
        $region80: #{tpu_custom_call.1} parent=63 // pred_fallthru
          _
        // Predicated region
        $region81: #{tpu_custom_call.1} parent=63 // pred_check
          %p543 = pneg %p155
        $region82: #{tpu_custom_call.1} parent=63 // pred_check_branch
          %545 = sbr.rel (%p543) target = $region84
        $region83: #{tpu_custom_call.1} parent=63 // pred_region
          %546 = dma.done [#allocation10], 128
        $region84: #{tpu_custom_call.1} parent=63 // pred_fallthru
          _
        // Predicated region
        $region85: #{tpu_custom_call.1} parent=63 // pred_check
          %p547 = pneg %p176
        $region86: #{tpu_custom_call.1} parent=63 // pred_check_branch
          %549 = sbr.rel (%p547) target = $region88
        $region87: #{tpu_custom_call.1} parent=63 // pred_region
          %550 = dma.done [#allocation13], 24576
        $region88: #{tpu_custom_call.1} parent=63 // pred_fallthru
          _
        // Predicated region
        $region89: #{tpu_custom_call.1} parent=63 // pred_check
          %p551 = pneg %p197
        $region90: #{tpu_custom_call.1} parent=63 // pred_check_branch
          %553 = sbr.rel (%p551) target = $region92
        $region91: #{tpu_custom_call.1} parent=63 // pred_region
          %554 = dma.done [#allocation13], 48
        $region92: #{tpu_custom_call.1} parent=63 // pred_fallthru
          _
        // Predicated region
        $region93: #{tpu_custom_call.1} parent=63 // pred_check
          %p555 = pneg %p218
        $region94: #{tpu_custom_call.1} parent=63 // pred_check_branch
          %557 = sbr.rel (%p555) target = $region96
        $region95: #{tpu_custom_call.1} parent=63 // pred_region
          %558 = dma.done [#allocation16], 49152
        $region96: #{tpu_custom_call.1} parent=63 // pred_fallthru
          _
        // Predicated region
        $region97: #{tpu_custom_call.1} parent=63 // pred_check
          %p559 = pneg %p239
        $region98: #{tpu_custom_call.1} parent=63 // pred_check_branch
          %561 = sbr.rel (%p559) target = $region100
        $region99: #{tpu_custom_call.1} parent=63 // pred_region
          %562 = dma.done [#allocation16], 128
        $region100: #{tpu_custom_call.1} parent=63 // pred_fallthru
          _
        // Predicated region
        $region101: #{tpu_custom_call.1} parent=63 // pred_check
          %p563 = pneg %p260
        $region102: #{tpu_custom_call.1} parent=63 // pred_check_branch
          %565 = sbr.rel (%p563) target = $region104
        $region103: #{tpu_custom_call.1} parent=63 // pred_region
          %566 = dma.done [#allocation19], 24576
        $region104: #{tpu_custom_call.1} parent=63 // pred_fallthru
          _
        // Predicated region
        $region105: #{tpu_custom_call.1} parent=63 // pred_check
          %p567 = pneg %p281
        $region106: #{tpu_custom_call.1} parent=63 // pred_check_branch
          %569 = sbr.rel (%p567) target = $region108
        $region107: #{tpu_custom_call.1} parent=63 // pred_region
          %570 = dma.done [#allocation19], 48
        $region108: #{tpu_custom_call.1} parent=63 // pred_fallthru
          _
        %s571 = sand.u32 %s48, 1
        %s572 = scalar_lea.sflag [#allocation4], %s571
        %s573 = sand.u32 %s48, 1
        %s574 = smul.addr %s573, 24
        %s575 = scalar_lea.vmem [#allocation3], %s574
        %p576 = pneg %p61
        %p577 = pneg %p58
        %s578 = sand.u32 %s40, 1
        %s579 = scalar_lea.sflag [#allocation7], %s578
        %s580 = sand.u32 %s74, 1
        %s581 = smul.addr %s580, 24
        %s582 = scalar_lea.vmem [#allocation6], %s581
        %p583 = pneg %p87
        %p584 = pneg %p84
        %s585 = sand.u32 %s40, 1
        %s586 = scalar_lea.sflag [#allocation7], %s585
        %s587 = sand.u32 %s100, 1
        %s588 = smul.addr %s587, 24
        %s589 = scalar_lea.vmem [#allocation8], %s588
        %p590 = pneg %p113
        %p591 = pneg %p110
        %p592 = pneg %p134
        %p593 = pneg %p131
        %p594 = pneg %p155
        %p595 = pneg %p152
        %p596 = pneg %p176
        %p597 = pneg %p173
        %p598 = pneg %p197
        %p599 = pneg %p194
        %p600 = pneg %p218
        %p601 = pneg %p215
        %p602 = pneg %p239
        %p603 = pneg %p236
        %p604 = pneg %p260
        %p605 = pneg %p257
        %p606 = pneg %p281
        %p607 = pneg %p278
        %p608 = pneg %p307
        %p609 = pneg %p304
        %s610 = sand.u32 %s294, 1
        %s611 = scalar_lea.sflag [#allocation5], %s610
        %s612 = sand.u32 %s294, 1
        %s613 = smul.addr %s612, 24
        %s614 = scalar_lea.vmem [#allocation21], %s613
        %p615 = pneg %p333
        %p616 = pneg %p330
        %s617 = sand.u32 %s320, 1
        %s618 = scalar_lea.sflag [#allocation23], %s617
        %s619 = sand.u32 %s320, 1
        %s620 = smul.addr %s619, 24
        %s621 = scalar_lea.vmem [#allocation22], %s620
        %v622 = vld [vmem:[%s516] sm:$0xff]
        %v623 = vld [vmem:[%s516 + $0x8] sm:$0xff]
        %v624 = vld [vmem:[%s516 + $0x10] sm:$0xff]
        %v625 = vld [vmem:[%s525] sm:$0xff]
        %v626 = vld [vmem:[%s525 + $0x8] sm:$0xff]
        %v627 = vld [vmem:[%s525 + $0x10] sm:$0xff]
        %v628 = vadd.f32 %v622, %v625
        %v629 = vadd.f32 %v623, %v626
        %v630 = vadd.f32 %v624, %v627
        %v631 = vld [vmem:[%s534] sm:$0xff]
        %v632 = vld [vmem:[%s534 + $0x8] sm:$0xff]
        %v633 = vld [vmem:[%s534 + $0x10] sm:$0xff]
        %v634 = vld [vmem:[#allocation9] sm:$0xff]
        %v635 = vld [vmem:[#allocation9 + $0x8] sm:$0xff]
        %v636 = vld [vmem:[#allocation9 + $0x10] sm:$0xff]
        %v637 = vld [vmem:[#allocation9 + $0x18] sm:$0xff]
        %v638 = vld [vmem:[#allocation9 + $0x20] sm:$0xff]
        %v639 = vld [vmem:[#allocation9 + $0x28] sm:$0xff]
        %v640 = vld [vmem:[#allocation9 + $0x30] sm:$0xff]
        %v641 = vld [vmem:[#allocation9 + $0x38] sm:$0xff]
        %v642 = vld [vmem:[#allocation9 + $0x40] sm:$0xff]
        %v643 = vld [vmem:[#allocation9 + $0x48] sm:$0xff]
        %v644 = vld [vmem:[#allocation9 + $0x50] sm:$0xff]
        %v645 = vld [vmem:[#allocation9 + $0x58] sm:$0xff]
        %v646 = vld [vmem:[#allocation9 + $0x60] sm:$0xff]
        %v647 = vld [vmem:[#allocation9 + $0x68] sm:$0xff]
        %v648 = vld [vmem:[#allocation9 + $0x70] sm:$0xff]
        %v649 = vld [vmem:[#allocation9 + $0x78] sm:$0xff]
        %v650 = vld [vmem:[#allocation9 + $0x80] sm:$0xff]
        %v651 = vld [vmem:[#allocation9 + $0x88] sm:$0xff]
        %v652 = vld [vmem:[#allocation9 + $0x90] sm:$0xff]
        %v653 = vld [vmem:[#allocation9 + $0x98] sm:$0xff]
        %v654 = vld [vmem:[#allocation9 + $0xa0] sm:$0xff]
        %v655 = vld [vmem:[#allocation9 + $0xa8] sm:$0xff]
        %v656 = vld [vmem:[#allocation9 + $0xb0] sm:$0xff]
        %v657 = vld [vmem:[#allocation9 + $0xb8] sm:$0xff]
        %v658 = vld [vmem:[#allocation9 + $0xc0] sm:$0xff]
        %v659 = vld [vmem:[#allocation9 + $0xc8] sm:$0xff]
        %v660 = vld [vmem:[#allocation9 + $0xd0] sm:$0xff]
        %v661 = vld [vmem:[#allocation9 + $0xd8] sm:$0xff]
        %v662 = vld [vmem:[#allocation9 + $0xe0] sm:$0xff]
        %v663 = vld [vmem:[#allocation9 + $0xe8] sm:$0xff]
        %v664 = vld [vmem:[#allocation9 + $0xf0] sm:$0xff]
        %v665 = vld [vmem:[#allocation9 + $0xf8] sm:$0xff]
        %v666 = vld [vmem:[#allocation9 + $0x100] sm:$0xff]
        %v667 = vld [vmem:[#allocation9 + $0x108] sm:$0xff]
        %v668 = vld [vmem:[#allocation9 + $0x110] sm:$0xff]
        %v669 = vld [vmem:[#allocation9 + $0x118] sm:$0xff]
        %v670 = vld [vmem:[#allocation9 + $0x120] sm:$0xff]
        %v671 = vld [vmem:[#allocation9 + $0x128] sm:$0xff]
        %v672 = vld [vmem:[#allocation9 + $0x130] sm:$0xff]
        %v673 = vld [vmem:[#allocation9 + $0x138] sm:$0xff]
        %v674 = vld [vmem:[#allocation9 + $0x140] sm:$0xff]
        %v675 = vld [vmem:[#allocation9 + $0x148] sm:$0xff]
        %v676 = vld [vmem:[#allocation9 + $0x150] sm:$0xff]
        %v677 = vld [vmem:[#allocation9 + $0x158] sm:$0xff]
        %v678 = vld [vmem:[#allocation9 + $0x160] sm:$0xff]
        %v679 = vld [vmem:[#allocation9 + $0x168] sm:$0xff]
        %v680 = vld [vmem:[#allocation9 + $0x170] sm:$0xff]
        %v681 = vld [vmem:[#allocation9 + $0x178] sm:$0xff]
        %v682 = vld [vmem:[#allocation9 + $0x180] sm:$0xff]
        %v683 = vld [vmem:[#allocation9 + $0x188] sm:$0xff]
        %v684 = vld [vmem:[#allocation9 + $0x190] sm:$0xff]
        %v685 = vld [vmem:[#allocation9 + $0x198] sm:$0xff]
        %v686 = vld [vmem:[#allocation9 + $0x1a0] sm:$0xff]
        %v687 = vld [vmem:[#allocation9 + $0x1a8] sm:$0xff]
        %v688 = vld [vmem:[#allocation9 + $0x1b0] sm:$0xff]
        %v689 = vld [vmem:[#allocation9 + $0x1b8] sm:$0xff]
        %v690 = vld [vmem:[#allocation9 + $0x1c0] sm:$0xff]
        %v691 = vld [vmem:[#allocation9 + $0x1c8] sm:$0xff]
        %v692 = vld [vmem:[#allocation9 + $0x1d0] sm:$0xff]
        %v693 = vld [vmem:[#allocation9 + $0x1d8] sm:$0xff]
        %v694 = vld [vmem:[#allocation9 + $0x1e0] sm:$0xff]
        %v695 = vld [vmem:[#allocation9 + $0x1e8] sm:$0xff]
        %v696 = vld [vmem:[#allocation9 + $0x1f0] sm:$0xff]
        %v697 = vld [vmem:[#allocation9 + $0x1f8] sm:$0xff]
        %v698 = vld [vmem:[#allocation9 + $0x200] sm:$0xff]
        %v699 = vld [vmem:[#allocation9 + $0x208] sm:$0xff]
        %v700 = vld [vmem:[#allocation9 + $0x210] sm:$0xff]
        %v701 = vld [vmem:[#allocation9 + $0x218] sm:$0xff]
        %v702 = vld [vmem:[#allocation9 + $0x220] sm:$0xff]
        %v703 = vld [vmem:[#allocation9 + $0x228] sm:$0xff]
        %v704 = vld [vmem:[#allocation9 + $0x230] sm:$0xff]
        %v705 = vld [vmem:[#allocation9 + $0x238] sm:$0xff]
        %v706 = vld [vmem:[#allocation9 + $0x240] sm:$0xff]
        %v707 = vld [vmem:[#allocation9 + $0x248] sm:$0xff]
        %v708 = vld [vmem:[#allocation9 + $0x250] sm:$0xff]
        %v709 = vld [vmem:[#allocation9 + $0x258] sm:$0xff]
        %v710 = vld [vmem:[#allocation9 + $0x260] sm:$0xff]
        %v711 = vld [vmem:[#allocation9 + $0x268] sm:$0xff]
        %v712 = vld [vmem:[#allocation9 + $0x270] sm:$0xff]
        %v713 = vld [vmem:[#allocation9 + $0x278] sm:$0xff]
        %v714 = vld [vmem:[#allocation9 + $0x280] sm:$0xff]
        %v715 = vld [vmem:[#allocation9 + $0x288] sm:$0xff]
        %v716 = vld [vmem:[#allocation9 + $0x290] sm:$0xff]
        %v717 = vld [vmem:[#allocation9 + $0x298] sm:$0xff]
        %v718 = vld [vmem:[#allocation9 + $0x2a0] sm:$0xff]
        %v719 = vld [vmem:[#allocation9 + $0x2a8] sm:$0xff]
        %v720 = vld [vmem:[#allocation9 + $0x2b0] sm:$0xff]
        %v721 = vld [vmem:[#allocation9 + $0x2b8] sm:$0xff]
        %v722 = vld [vmem:[#allocation9 + $0x2c0] sm:$0xff]
        %v723 = vld [vmem:[#allocation9 + $0x2c8] sm:$0xff]
        %v724 = vld [vmem:[#allocation9 + $0x2d0] sm:$0xff]
        %v725 = vld [vmem:[#allocation9 + $0x2d8] sm:$0xff]
        %v726 = vld [vmem:[#allocation9 + $0x2e0] sm:$0xff]
        %v727 = vld [vmem:[#allocation9 + $0x2e8] sm:$0xff]
        %v728 = vld [vmem:[#allocation9 + $0x2f0] sm:$0xff]
        %v729 = vld [vmem:[#allocation9 + $0x2f8] sm:$0xff]
        %v730 = vld [vmem:[#allocation9 + $0x300] sm:$0xff]
        %v731 = vld [vmem:[#allocation9 + $0x308] sm:$0xff]
        %v732 = vld [vmem:[#allocation9 + $0x310] sm:$0xff]
        %v733 = vld [vmem:[#allocation9 + $0x318] sm:$0xff]
        %v734 = vld [vmem:[#allocation9 + $0x320] sm:$0xff]
        %v735 = vld [vmem:[#allocation9 + $0x328] sm:$0xff]
        %v736 = vld [vmem:[#allocation9 + $0x330] sm:$0xff]
        %v737 = vld [vmem:[#allocation9 + $0x338] sm:$0xff]
        %v738 = vld [vmem:[#allocation9 + $0x340] sm:$0xff]
        %v739 = vld [vmem:[#allocation9 + $0x348] sm:$0xff]
        %v740 = vld [vmem:[#allocation9 + $0x350] sm:$0xff]
        %v741 = vld [vmem:[#allocation9 + $0x358] sm:$0xff]
        %v742 = vld [vmem:[#allocation9 + $0x360] sm:$0xff]
        %v743 = vld [vmem:[#allocation9 + $0x368] sm:$0xff]
        %v744 = vld [vmem:[#allocation9 + $0x370] sm:$0xff]
        %v745 = vld [vmem:[#allocation9 + $0x378] sm:$0xff]
        %v746 = vld [vmem:[#allocation9 + $0x380] sm:$0xff]
        %v747 = vld [vmem:[#allocation9 + $0x388] sm:$0xff]
        %v748 = vld [vmem:[#allocation9 + $0x390] sm:$0xff]
        %v749 = vld [vmem:[#allocation9 + $0x398] sm:$0xff]
        %v750 = vld [vmem:[#allocation9 + $0x3a0] sm:$0xff]
        %v751 = vld [vmem:[#allocation9 + $0x3a8] sm:$0xff]
        %v752 = vld [vmem:[#allocation9 + $0x3b0] sm:$0xff]
        %v753 = vld [vmem:[#allocation9 + $0x3b8] sm:$0xff]
        %v754 = vld [vmem:[#allocation9 + $0x3c0] sm:$0xff]
        %v755 = vld [vmem:[#allocation9 + $0x3c8] sm:$0xff]
        %v756 = vld [vmem:[#allocation9 + $0x3d0] sm:$0xff]
        %v757 = vld [vmem:[#allocation9 + $0x3d8] sm:$0xff]
        %v758 = vld [vmem:[#allocation9 + $0x3e0] sm:$0xff]
        %v759 = vld [vmem:[#allocation9 + $0x3e8] sm:$0xff]
        %v760 = vld [vmem:[#allocation9 + $0x3f0] sm:$0xff]
        %v761 = vld [vmem:[#allocation9 + $0x3f8] sm:$0xff]
        %v762 = vld [vmem:[#allocation9 + $0x400] sm:$0xff]
        %v763 = vld [vmem:[#allocation9 + $0x408] sm:$0xff]
        %v764 = vld [vmem:[#allocation9 + $0x410] sm:$0xff]
        %v765 = vld [vmem:[#allocation9 + $0x418] sm:$0xff]
        %v766 = vld [vmem:[#allocation9 + $0x420] sm:$0xff]
        %v767 = vld [vmem:[#allocation9 + $0x428] sm:$0xff]
        %v768 = vld [vmem:[#allocation9 + $0x430] sm:$0xff]
        %v769 = vld [vmem:[#allocation9 + $0x438] sm:$0xff]
        %v770 = vld [vmem:[#allocation9 + $0x440] sm:$0xff]
        %v771 = vld [vmem:[#allocation9 + $0x448] sm:$0xff]
        %v772 = vld [vmem:[#allocation9 + $0x450] sm:$0xff]
        %v773 = vld [vmem:[#allocation9 + $0x458] sm:$0xff]
        %v774 = vld [vmem:[#allocation9 + $0x460] sm:$0xff]
        %v775 = vld [vmem:[#allocation9 + $0x468] sm:$0xff]
        %v776 = vld [vmem:[#allocation9 + $0x470] sm:$0xff]
        %v777 = vld [vmem:[#allocation9 + $0x478] sm:$0xff]
        %v778 = vld [vmem:[#allocation9 + $0x480] sm:$0xff]
        %v779 = vld [vmem:[#allocation9 + $0x488] sm:$0xff]
        %v780 = vld [vmem:[#allocation9 + $0x490] sm:$0xff]
        %v781 = vld [vmem:[#allocation9 + $0x498] sm:$0xff]
        %v782 = vld [vmem:[#allocation9 + $0x4a0] sm:$0xff]
        %v783 = vld [vmem:[#allocation9 + $0x4a8] sm:$0xff]
        %v784 = vld [vmem:[#allocation9 + $0x4b0] sm:$0xff]
        %v785 = vld [vmem:[#allocation9 + $0x4b8] sm:$0xff]
        %v786 = vld [vmem:[#allocation9 + $0x4c0] sm:$0xff]
        %v787 = vld [vmem:[#allocation9 + $0x4c8] sm:$0xff]
        %v788 = vld [vmem:[#allocation9 + $0x4d0] sm:$0xff]
        %v789 = vld [vmem:[#allocation9 + $0x4d8] sm:$0xff]
        %v790 = vld [vmem:[#allocation9 + $0x4e0] sm:$0xff]
        %v791 = vld [vmem:[#allocation9 + $0x4e8] sm:$0xff]
        %v792 = vld [vmem:[#allocation9 + $0x4f0] sm:$0xff]
        %v793 = vld [vmem:[#allocation9 + $0x4f8] sm:$0xff]
        %v794 = vld [vmem:[#allocation9 + $0x500] sm:$0xff]
        %v795 = vld [vmem:[#allocation9 + $0x508] sm:$0xff]
        %v796 = vld [vmem:[#allocation9 + $0x510] sm:$0xff]
        %v797 = vld [vmem:[#allocation9 + $0x518] sm:$0xff]
        %v798 = vld [vmem:[#allocation9 + $0x520] sm:$0xff]
        %v799 = vld [vmem:[#allocation9 + $0x528] sm:$0xff]
        %v800 = vld [vmem:[#allocation9 + $0x530] sm:$0xff]
        %v801 = vld [vmem:[#allocation9 + $0x538] sm:$0xff]
        %v802 = vld [vmem:[#allocation9 + $0x540] sm:$0xff]
        %v803 = vld [vmem:[#allocation9 + $0x548] sm:$0xff]
        %v804 = vld [vmem:[#allocation9 + $0x550] sm:$0xff]
        %v805 = vld [vmem:[#allocation9 + $0x558] sm:$0xff]
        %v806 = vld [vmem:[#allocation9 + $0x560] sm:$0xff]
        %v807 = vld [vmem:[#allocation9 + $0x568] sm:$0xff]
        %v808 = vld [vmem:[#allocation9 + $0x570] sm:$0xff]
        %v809 = vld [vmem:[#allocation9 + $0x578] sm:$0xff]
        %v810 = vld [vmem:[#allocation9 + $0x580] sm:$0xff]
        %v811 = vld [vmem:[#allocation9 + $0x588] sm:$0xff]
        %v812 = vld [vmem:[#allocation9 + $0x590] sm:$0xff]
        %v813 = vld [vmem:[#allocation9 + $0x598] sm:$0xff]
        %v814 = vld [vmem:[#allocation9 + $0x5a0] sm:$0xff]
        %v815 = vld [vmem:[#allocation9 + $0x5a8] sm:$0xff]
        %v816 = vld [vmem:[#allocation9 + $0x5b0] sm:$0xff]
        %v817 = vld [vmem:[#allocation9 + $0x5b8] sm:$0xff]
        %v818 = vld [vmem:[#allocation9 + $0x5c0] sm:$0xff]
        %v819 = vld [vmem:[#allocation9 + $0x5c8] sm:$0xff]
        %v820 = vld [vmem:[#allocation9 + $0x5d0] sm:$0xff]
        %v821 = vld [vmem:[#allocation9 + $0x5d8] sm:$0xff]
        %v822 = vld [vmem:[#allocation9 + $0x5e0] sm:$0xff]
        %v823 = vld [vmem:[#allocation9 + $0x5e8] sm:$0xff]
        %v824 = vld [vmem:[#allocation9 + $0x5f0] sm:$0xff]
        %v825 = vld [vmem:[#allocation9 + $0x5f8] sm:$0xff]
        %v826 = vld [vmem:[#allocation9 + $0x600] sm:$0xff]
        %v827 = vld [vmem:[#allocation9 + $0x608] sm:$0xff]
        %v828 = vld [vmem:[#allocation9 + $0x610] sm:$0xff]
        %v829 = vld [vmem:[#allocation9 + $0x618] sm:$0xff]
        %v830 = vld [vmem:[#allocation9 + $0x620] sm:$0xff]
        %v831 = vld [vmem:[#allocation9 + $0x628] sm:$0xff]
        %v832 = vld [vmem:[#allocation9 + $0x630] sm:$0xff]
        %v833 = vld [vmem:[#allocation9 + $0x638] sm:$0xff]
        %v834 = vld [vmem:[#allocation9 + $0x640] sm:$0xff]
        %v835 = vld [vmem:[#allocation9 + $0x648] sm:$0xff]
        %v836 = vld [vmem:[#allocation9 + $0x650] sm:$0xff]
        %v837 = vld [vmem:[#allocation9 + $0x658] sm:$0xff]
        %v838 = vld [vmem:[#allocation9 + $0x660] sm:$0xff]
        %v839 = vld [vmem:[#allocation9 + $0x668] sm:$0xff]
        %v840 = vld [vmem:[#allocation9 + $0x670] sm:$0xff]
        %v841 = vld [vmem:[#allocation9 + $0x678] sm:$0xff]
        %v842 = vld [vmem:[#allocation9 + $0x680] sm:$0xff]
        %v843 = vld [vmem:[#allocation9 + $0x688] sm:$0xff]
        %v844 = vld [vmem:[#allocation9 + $0x690] sm:$0xff]
        %v845 = vld [vmem:[#allocation9 + $0x698] sm:$0xff]
        %v846 = vld [vmem:[#allocation9 + $0x6a0] sm:$0xff]
        %v847 = vld [vmem:[#allocation9 + $0x6a8] sm:$0xff]
        %v848 = vld [vmem:[#allocation9 + $0x6b0] sm:$0xff]
        %v849 = vld [vmem:[#allocation9 + $0x6b8] sm:$0xff]
        %v850 = vld [vmem:[#allocation9 + $0x6c0] sm:$0xff]
        %v851 = vld [vmem:[#allocation9 + $0x6c8] sm:$0xff]
        %v852 = vld [vmem:[#allocation9 + $0x6d0] sm:$0xff]
        %v853 = vld [vmem:[#allocation9 + $0x6d8] sm:$0xff]
        %v854 = vld [vmem:[#allocation9 + $0x6e0] sm:$0xff]
        %v855 = vld [vmem:[#allocation9 + $0x6e8] sm:$0xff]
        %v856 = vld [vmem:[#allocation9 + $0x6f0] sm:$0xff]
        %v857 = vld [vmem:[#allocation9 + $0x6f8] sm:$0xff]
        %v858 = vld [vmem:[#allocation9 + $0x700] sm:$0xff]
        %v859 = vld [vmem:[#allocation9 + $0x708] sm:$0xff]
        %v860 = vld [vmem:[#allocation9 + $0x710] sm:$0xff]
        %v861 = vld [vmem:[#allocation9 + $0x718] sm:$0xff]
        %v862 = vld [vmem:[#allocation9 + $0x720] sm:$0xff]
        %v863 = vld [vmem:[#allocation9 + $0x728] sm:$0xff]
        %v864 = vld [vmem:[#allocation9 + $0x730] sm:$0xff]
        %v865 = vld [vmem:[#allocation9 + $0x738] sm:$0xff]
        %v866 = vld [vmem:[#allocation9 + $0x740] sm:$0xff]
        %v867 = vld [vmem:[#allocation9 + $0x748] sm:$0xff]
        %v868 = vld [vmem:[#allocation9 + $0x750] sm:$0xff]
        %v869 = vld [vmem:[#allocation9 + $0x758] sm:$0xff]
        %v870 = vld [vmem:[#allocation9 + $0x760] sm:$0xff]
        %v871 = vld [vmem:[#allocation9 + $0x768] sm:$0xff]
        %v872 = vld [vmem:[#allocation9 + $0x770] sm:$0xff]
        %v873 = vld [vmem:[#allocation9 + $0x778] sm:$0xff]
        %v874 = vld [vmem:[#allocation9 + $0x780] sm:$0xff]
        %v875 = vld [vmem:[#allocation9 + $0x788] sm:$0xff]
        %v876 = vld [vmem:[#allocation9 + $0x790] sm:$0xff]
        %v877 = vld [vmem:[#allocation9 + $0x798] sm:$0xff]
        %v878 = vld [vmem:[#allocation9 + $0x7a0] sm:$0xff]
        %v879 = vld [vmem:[#allocation9 + $0x7a8] sm:$0xff]
        %v880 = vld [vmem:[#allocation9 + $0x7b0] sm:$0xff]
        %v881 = vld [vmem:[#allocation9 + $0x7b8] sm:$0xff]
        %v882 = vld [vmem:[#allocation9 + $0x7c0] sm:$0xff]
        %v883 = vld [vmem:[#allocation9 + $0x7c8] sm:$0xff]
        %v884 = vld [vmem:[#allocation9 + $0x7d0] sm:$0xff]
        %v885 = vld [vmem:[#allocation9 + $0x7d8] sm:$0xff]
        %v886 = vld [vmem:[#allocation9 + $0x7e0] sm:$0xff]
        %v887 = vld [vmem:[#allocation9 + $0x7e8] sm:$0xff]
        %v888 = vld [vmem:[#allocation9 + $0x7f0] sm:$0xff]
        %v889 = vld [vmem:[#allocation9 + $0x7f8] sm:$0xff]
        %v890 = vld [vmem:[#allocation9 + $0x800] sm:$0xff]
        %v891 = vld [vmem:[#allocation9 + $0x808] sm:$0xff]
        %v892 = vld [vmem:[#allocation9 + $0x810] sm:$0xff]
        %v893 = vld [vmem:[#allocation9 + $0x818] sm:$0xff]
        %v894 = vld [vmem:[#allocation9 + $0x820] sm:$0xff]
        %v895 = vld [vmem:[#allocation9 + $0x828] sm:$0xff]
        %v896 = vld [vmem:[#allocation9 + $0x830] sm:$0xff]
        %v897 = vld [vmem:[#allocation9 + $0x838] sm:$0xff]
        %v898 = vld [vmem:[#allocation9 + $0x840] sm:$0xff]
        %v899 = vld [vmem:[#allocation9 + $0x848] sm:$0xff]
        %v900 = vld [vmem:[#allocation9 + $0x850] sm:$0xff]
        %v901 = vld [vmem:[#allocation9 + $0x858] sm:$0xff]
        %v902 = vld [vmem:[#allocation9 + $0x860] sm:$0xff]
        %v903 = vld [vmem:[#allocation9 + $0x868] sm:$0xff]
        %v904 = vld [vmem:[#allocation9 + $0x870] sm:$0xff]
        %v905 = vld [vmem:[#allocation9 + $0x878] sm:$0xff]
        %v906 = vld [vmem:[#allocation9 + $0x880] sm:$0xff]
        %v907 = vld [vmem:[#allocation9 + $0x888] sm:$0xff]
        %v908 = vld [vmem:[#allocation9 + $0x890] sm:$0xff]
        %v909 = vld [vmem:[#allocation9 + $0x898] sm:$0xff]
        %v910 = vld [vmem:[#allocation9 + $0x8a0] sm:$0xff]
        %v911 = vld [vmem:[#allocation9 + $0x8a8] sm:$0xff]
        %v912 = vld [vmem:[#allocation9 + $0x8b0] sm:$0xff]
        %v913 = vld [vmem:[#allocation9 + $0x8b8] sm:$0xff]
        %v914 = vld [vmem:[#allocation9 + $0x8c0] sm:$0xff]
        %v915 = vld [vmem:[#allocation9 + $0x8c8] sm:$0xff]
        %v916 = vld [vmem:[#allocation9 + $0x8d0] sm:$0xff]
        %v917 = vld [vmem:[#allocation9 + $0x8d8] sm:$0xff]
        %v918 = vld [vmem:[#allocation9 + $0x8e0] sm:$0xff]
        %v919 = vld [vmem:[#allocation9 + $0x8e8] sm:$0xff]
        %v920 = vld [vmem:[#allocation9 + $0x8f0] sm:$0xff]
        %v921 = vld [vmem:[#allocation9 + $0x8f8] sm:$0xff]
        %v922 = vld [vmem:[#allocation9 + $0x900] sm:$0xff]
        %v923 = vld [vmem:[#allocation9 + $0x908] sm:$0xff]
        %v924 = vld [vmem:[#allocation9 + $0x910] sm:$0xff]
        %v925 = vld [vmem:[#allocation9 + $0x918] sm:$0xff]
        %v926 = vld [vmem:[#allocation9 + $0x920] sm:$0xff]
        %v927 = vld [vmem:[#allocation9 + $0x928] sm:$0xff]
        %v928 = vld [vmem:[#allocation9 + $0x930] sm:$0xff]
        %v929 = vld [vmem:[#allocation9 + $0x938] sm:$0xff]
        %v930 = vld [vmem:[#allocation9 + $0x940] sm:$0xff]
        %v931 = vld [vmem:[#allocation9 + $0x948] sm:$0xff]
        %v932 = vld [vmem:[#allocation9 + $0x950] sm:$0xff]
        %v933 = vld [vmem:[#allocation9 + $0x958] sm:$0xff]
        %v934 = vld [vmem:[#allocation9 + $0x960] sm:$0xff]
        %v935 = vld [vmem:[#allocation9 + $0x968] sm:$0xff]
        %v936 = vld [vmem:[#allocation9 + $0x970] sm:$0xff]
        %v937 = vld [vmem:[#allocation9 + $0x978] sm:$0xff]
        %v938 = vld [vmem:[#allocation9 + $0x980] sm:$0xff]
        %v939 = vld [vmem:[#allocation9 + $0x988] sm:$0xff]
        %v940 = vld [vmem:[#allocation9 + $0x990] sm:$0xff]
        %v941 = vld [vmem:[#allocation9 + $0x998] sm:$0xff]
        %v942 = vld [vmem:[#allocation9 + $0x9a0] sm:$0xff]
        %v943 = vld [vmem:[#allocation9 + $0x9a8] sm:$0xff]
        %v944 = vld [vmem:[#allocation9 + $0x9b0] sm:$0xff]
        %v945 = vld [vmem:[#allocation9 + $0x9b8] sm:$0xff]
        %v946 = vld [vmem:[#allocation9 + $0x9c0] sm:$0xff]
        %v947 = vld [vmem:[#allocation9 + $0x9c8] sm:$0xff]
        %v948 = vld [vmem:[#allocation9 + $0x9d0] sm:$0xff]
        %v949 = vld [vmem:[#allocation9 + $0x9d8] sm:$0xff]
        %v950 = vld [vmem:[#allocation9 + $0x9e0] sm:$0xff]
        %v951 = vld [vmem:[#allocation9 + $0x9e8] sm:$0xff]
        %v952 = vld [vmem:[#allocation9 + $0x9f0] sm:$0xff]
        %v953 = vld [vmem:[#allocation9 + $0x9f8] sm:$0xff]
        %v954 = vld [vmem:[#allocation9 + $0xa00] sm:$0xff]
        %v955 = vld [vmem:[#allocation9 + $0xa08] sm:$0xff]
        %v956 = vld [vmem:[#allocation9 + $0xa10] sm:$0xff]
        %v957 = vld [vmem:[#allocation9 + $0xa18] sm:$0xff]
        %v958 = vld [vmem:[#allocation9 + $0xa20] sm:$0xff]
        %v959 = vld [vmem:[#allocation9 + $0xa28] sm:$0xff]
        %v960 = vld [vmem:[#allocation9 + $0xa30] sm:$0xff]
        %v961 = vld [vmem:[#allocation9 + $0xa38] sm:$0xff]
        %v962 = vld [vmem:[#allocation9 + $0xa40] sm:$0xff]
        %v963 = vld [vmem:[#allocation9 + $0xa48] sm:$0xff]
        %v964 = vld [vmem:[#allocation9 + $0xa50] sm:$0xff]
        %v965 = vld [vmem:[#allocation9 + $0xa58] sm:$0xff]
        %v966 = vld [vmem:[#allocation9 + $0xa60] sm:$0xff]
        %v967 = vld [vmem:[#allocation9 + $0xa68] sm:$0xff]
        %v968 = vld [vmem:[#allocation9 + $0xa70] sm:$0xff]
        %v969 = vld [vmem:[#allocation9 + $0xa78] sm:$0xff]
        %v970 = vld [vmem:[#allocation9 + $0xa80] sm:$0xff]
        %v971 = vld [vmem:[#allocation9 + $0xa88] sm:$0xff]
        %v972 = vld [vmem:[#allocation9 + $0xa90] sm:$0xff]
        %v973 = vld [vmem:[#allocation9 + $0xa98] sm:$0xff]
        %v974 = vld [vmem:[#allocation9 + $0xaa0] sm:$0xff]
        %v975 = vld [vmem:[#allocation9 + $0xaa8] sm:$0xff]
        %v976 = vld [vmem:[#allocation9 + $0xab0] sm:$0xff]
        %v977 = vld [vmem:[#allocation9 + $0xab8] sm:$0xff]
        %v978 = vld [vmem:[#allocation9 + $0xac0] sm:$0xff]
        %v979 = vld [vmem:[#allocation9 + $0xac8] sm:$0xff]
        %v980 = vld [vmem:[#allocation9 + $0xad0] sm:$0xff]
        %v981 = vld [vmem:[#allocation9 + $0xad8] sm:$0xff]
        %v982 = vld [vmem:[#allocation9 + $0xae0] sm:$0xff]
        %v983 = vld [vmem:[#allocation9 + $0xae8] sm:$0xff]
        %v984 = vld [vmem:[#allocation9 + $0xaf0] sm:$0xff]
        %v985 = vld [vmem:[#allocation9 + $0xaf8] sm:$0xff]
        %v986 = vld [vmem:[#allocation9 + $0xb00] sm:$0xff]
        %v987 = vld [vmem:[#allocation9 + $0xb08] sm:$0xff]
        %v988 = vld [vmem:[#allocation9 + $0xb10] sm:$0xff]
        %v989 = vld [vmem:[#allocation9 + $0xb18] sm:$0xff]
        %v990 = vld [vmem:[#allocation9 + $0xb20] sm:$0xff]
        %v991 = vld [vmem:[#allocation9 + $0xb28] sm:$0xff]
        %v992 = vld [vmem:[#allocation9 + $0xb30] sm:$0xff]
        %v993 = vld [vmem:[#allocation9 + $0xb38] sm:$0xff]
        %v994 = vld [vmem:[#allocation9 + $0xb40] sm:$0xff]
        %v995 = vld [vmem:[#allocation9 + $0xb48] sm:$0xff]
        %v996 = vld [vmem:[#allocation9 + $0xb50] sm:$0xff]
        %v997 = vld [vmem:[#allocation9 + $0xb58] sm:$0xff]
        %v998 = vld [vmem:[#allocation9 + $0xb60] sm:$0xff]
        %v999 = vld [vmem:[#allocation9 + $0xb68] sm:$0xff]
        %v1000 = vld [vmem:[#allocation9 + $0xb70] sm:$0xff]
        %v1001 = vld [vmem:[#allocation9 + $0xb78] sm:$0xff]
        %v1002 = vld [vmem:[#allocation9 + $0xb80] sm:$0xff]
        %v1003 = vld [vmem:[#allocation9 + $0xb88] sm:$0xff]
        %v1004 = vld [vmem:[#allocation9 + $0xb90] sm:$0xff]
        %v1005 = vld [vmem:[#allocation9 + $0xb98] sm:$0xff]
        %v1006 = vld [vmem:[#allocation9 + $0xba0] sm:$0xff]
        %v1007 = vld [vmem:[#allocation9 + $0xba8] sm:$0xff]
        %v1008 = vld [vmem:[#allocation9 + $0xbb0] sm:$0xff]
        %v1009 = vld [vmem:[#allocation9 + $0xbb8] sm:$0xff]
        %v1010 = vld [vmem:[#allocation9 + $0xbc0] sm:$0xff]
        %v1011 = vld [vmem:[#allocation9 + $0xbc8] sm:$0xff]
        %v1012 = vld [vmem:[#allocation9 + $0xbd0] sm:$0xff]
        %v1013 = vld [vmem:[#allocation9 + $0xbd8] sm:$0xff]
        %v1014 = vld [vmem:[#allocation9 + $0xbe0] sm:$0xff]
        %v1015 = vld [vmem:[#allocation9 + $0xbe8] sm:$0xff]
        %v1016 = vld [vmem:[#allocation9 + $0xbf0] sm:$0xff]
        %v1017 = vld [vmem:[#allocation9 + $0xbf8] sm:$0xff]
        %v1018 = vld [vmem:[#allocation11] sm:$0xff]
        %v1020 = vlaneseq
        %v1021 = vshrl.u32 %v1020, 7
        %v1022 = vsub.s32 0, %v1021
        %v1023 = vrot.slane %v1018, %v1022
        %v1024 = vlaneseq
        %v1025 = vshrl.u32 %v1024, 7
        %v1026 = vsub.s32 1, %v1025
        %v1027 = vrot.slane %v1018, %v1026
        %v1028 = vlaneseq
        %v1029 = vshrl.u32 %v1028, 7
        %v1030 = vsub.s32 2, %v1029
        %v1031 = vrot.slane %v1018, %v1030
        %v1032 = vlaneseq
        %v1033 = vshrl.u32 %v1032, 7
        %v1034 = vsub.s32 3, %v1033
        %v1035 = vrot.slane %v1018, %v1034
        %v1036 = vlaneseq
        %v1037 = vshrl.u32 %v1036, 7
        %v1038 = vsub.s32 4, %v1037
        %v1039 = vrot.slane %v1018, %v1038
        %v1040 = vlaneseq
        %v1041 = vshrl.u32 %v1040, 7
        %v1042 = vsub.s32 5, %v1041
        %v1043 = vrot.slane %v1018, %v1042
        %v1044 = vlaneseq
        %v1045 = vshrl.u32 %v1044, 7
        %v1046 = vsub.s32 6, %v1045
        %v1047 = vrot.slane %v1018, %v1046
        %v1048 = vlaneseq
        %v1049 = vshrl.u32 %v1048, 7
        %v1050 = vsub.s32 7, %v1049
        %v1051 = vrot.slane %v1018, %v1050
        %1060 = vmatprep.subr.mxu0 %v755
        %1061 = vmatpush1.msra.mxu0 %v754
        %1062 = vmatprep.subr.mxu0 %v747
        %1063 = vmatpush1.msra.mxu0 %v746
        %1064 = vmatprep.subr.mxu0 %v739
        %1065 = vmatpush1.msra.mxu0 %v738
        %1066 = vmatprep.subr.mxu0 %v731
        %1067 = vmatpush1.msra.mxu0 %v730
        %1068 = vmatprep.subr.mxu0 %v723
        %1069 = vmatpush1.msra.mxu0 %v722
        %1070 = vmatprep.subr.mxu0 %v715
        %1071 = vmatpush1.msra.mxu0 %v714
        %1072 = vmatprep.subr.mxu0 %v707
        %1073 = vmatpush1.msra.mxu0 %v706
        %1074 = vmatprep.subr.mxu0 %v699
        %1075 = vmatpush1.msra.mxu0 %v698
        %1076 = vmatprep.subr.mxu0 %v691
        %1077 = vmatpush1.msra.mxu0 %v690
        %1078 = vmatprep.subr.mxu0 %v683
        %1079 = vmatpush1.msra.mxu0 %v682
        %1080 = vmatprep.subr.mxu0 %v675
        %1081 = vmatpush1.msra.mxu0 %v674
        %1082 = vmatprep.subr.mxu0 %v667
        %1083 = vmatpush1.msra.mxu0 %v666
        %1084 = vmatprep.subr.mxu0 %v659
        %1085 = vmatpush1.msra.mxu0 %v658
        %1086 = vmatprep.subr.mxu0 %v651
        %1087 = vmatpush1.msra.mxu0 %v650
        %1088 = vmatprep.subr.mxu0 %v643
        %1089 = vmatpush1.msra.mxu0 %v642
        %1090 = vmatprep.subr.mxu0 %v635
        %1091 = vmatpush1.msra.mxu0 %v634
        %1092 = vmatprep.subr.mxu0 %v883
        %1093 = vmatpush2.msra.mxu0 %v882
        %1094 = vmatprep.subr.mxu0 %v875
        %1095 = vmatpush2.msra.mxu0 %v874
        %1096 = vmatprep.subr.mxu0 %v867
        %1097 = vmatpush2.msra.mxu0 %v866
        %1098 = vmatprep.subr.mxu0 %v859
        %1099 = vmatpush2.msra.mxu0 %v858
        %1100 = vmatprep.subr.mxu0 %v851
        %1101 = vmatpush2.msra.mxu0 %v850
        %1102 = vmatprep.subr.mxu0 %v843
        %1103 = vmatpush2.msra.mxu0 %v842
        %1104 = vmatprep.subr.mxu0 %v835
        %1105 = vmatpush2.msra.mxu0 %v834
        %1106 = vmatprep.subr.mxu0 %v827
        %1107 = vmatpush2.msra.mxu0 %v826
        %1108 = vmatprep.subr.mxu0 %v819
        %1109 = vmatpush2.msra.mxu0 %v818
        %1110 = vmatprep.subr.mxu0 %v811
        %1111 = vmatpush2.msra.mxu0 %v810
        %1112 = vmatprep.subr.mxu0 %v803
        %1113 = vmatpush2.msra.mxu0 %v802
        %1114 = vmatprep.subr.mxu0 %v795
        %1115 = vmatpush2.msra.mxu0 %v794
        %1116 = vmatprep.subr.mxu0 %v787
        %1117 = vmatpush2.msra.mxu0 %v786
        %1118 = vmatprep.subr.mxu0 %v779
        %1119 = vmatpush2.msra.mxu0 %v778
        %1120 = vmatprep.subr.mxu0 %v771
        %1121 = vmatpush2.msra.mxu0 %v770
        %1122 = vmatprep.subr.mxu0 %v763
        %1123 = vmatpush2.msra.mxu0 %v762
        %1124 = vmatprep.mubr.f32.mxu0 %v629
        %1125 = vmatmul.mubr.f32.gmra.mxu0 %v628
        %v1126 = vpop.f32.mrf.mxu0
        %v1127 = vadd.f32 %v1023, %v1126
        %v1128 = vpop.f32.mrf.mxu0
        %v1129 = vadd.f32 %v1027, %v1128
        %1130 = vdwg.mxu0
        %1131 = vmatprep.subr.mxu0 %v1011
        %1132 = vmatpush1.msra.mxu0 %v1010
        %1133 = vmatprep.subr.mxu0 %v1003
        %1134 = vmatpush1.msra.mxu0 %v1002
        %1135 = vmatprep.subr.mxu0 %v995
        %1136 = vmatpush1.msra.mxu0 %v994
        %1137 = vmatprep.subr.mxu0 %v987
        %1138 = vmatpush1.msra.mxu0 %v986
        %1139 = vmatprep.subr.mxu0 %v979
        %1140 = vmatpush1.msra.mxu0 %v978
        %1141 = vmatprep.subr.mxu0 %v971
        %1142 = vmatpush1.msra.mxu0 %v970
        %1143 = vmatprep.subr.mxu0 %v963
        %1144 = vmatpush1.msra.mxu0 %v962
        %1145 = vmatprep.subr.mxu0 %v955
        %1146 = vmatpush1.msra.mxu0 %v954
        %1147 = vmatprep.subr.mxu0 %v947
        %1148 = vmatpush1.msra.mxu0 %v946
        %1149 = vmatprep.subr.mxu0 %v939
        %1150 = vmatpush1.msra.mxu0 %v938
        %1151 = vmatprep.subr.mxu0 %v931
        %1152 = vmatpush1.msra.mxu0 %v930
        %1153 = vmatprep.subr.mxu0 %v923
        %1154 = vmatpush1.msra.mxu0 %v922
        %1155 = vmatprep.subr.mxu0 %v915
        %1156 = vmatpush1.msra.mxu0 %v914
        %1157 = vmatprep.subr.mxu0 %v907
        %1158 = vmatpush1.msra.mxu0 %v906
        %1159 = vmatprep.subr.mxu0 %v899
        %1160 = vmatpush1.msra.mxu0 %v898
        %1161 = vmatprep.subr.mxu0 %v891
        %1162 = vmatpush1.msra.mxu0 %v890
        %1163 = vmatprep.subr.mxu0 0.0
        %1164 = vmatpush2.msra.mxu0 0.0
        %1165 = vmatprep.subr.mxu0 0.0
        %1166 = vmatpush2.msra.mxu0 0.0
        %1167 = vmatprep.subr.mxu0 0.0
        %1168 = vmatpush2.msra.mxu0 0.0
        %1169 = vmatprep.subr.mxu0 0.0
        %1170 = vmatpush2.msra.mxu0 0.0
        %1171 = vmatprep.subr.mxu0 0.0
        %1172 = vmatpush2.msra.mxu0 0.0
        %1173 = vmatprep.subr.mxu0 0.0
        %1174 = vmatpush2.msra.mxu0 0.0
        %1175 = vmatprep.subr.mxu0 0.0
        %1176 = vmatpush2.msra.mxu0 0.0
        %1177 = vmatprep.subr.mxu0 0.0
        %1178 = vmatpush2.msra.mxu0 0.0
        %1179 = vmatprep.subr.mxu0 0.0
        %1180 = vmatpush2.msra.mxu0 0.0
        %1181 = vmatprep.subr.mxu0 0.0
        %1182 = vmatpush2.msra.mxu0 0.0
        %1183 = vmatprep.subr.mxu0 0.0
        %1184 = vmatpush2.msra.mxu0 0.0
        %1185 = vmatprep.subr.mxu0 0.0
        %1186 = vmatpush2.msra.mxu0 0.0
        %1187 = vmatprep.subr.mxu0 0.0
        %1188 = vmatpush2.msra.mxu0 0.0
        %1189 = vmatprep.subr.mxu0 0.0
        %1190 = vmatpush2.msra.mxu0 0.0
        %1191 = vmatprep.subr.mxu0 0.0
        %1192 = vmatpush2.msra.mxu0 0.0
        %1193 = vmatprep.subr.mxu0 0.0
        %1194 = vmatpush2.msra.mxu0 0.0
        %1195 = vmatprep.mubr.f32.mxu0 0.0
        %1196 = vmatmul.mubr.f32.gmra.mxu0 %v630
        %v1197 = vpop.f32.mrf.mxu0
        %v1198 = vadd.f32 %v1127, %v1197
        %v1199 = vpop.f32.mrf.mxu0
        %v1200 = vadd.f32 %v1129, %v1199
        %1201 = vdwg.mxu0
        %1202 = vmatprep.subr.mxu0 %v757
        %1203 = vmatpush1.msra.mxu0 %v756
        %1204 = vmatprep.subr.mxu0 %v749
        %1205 = vmatpush1.msra.mxu0 %v748
        %1206 = vmatprep.subr.mxu0 %v741
        %1207 = vmatpush1.msra.mxu0 %v740
        %1208 = vmatprep.subr.mxu0 %v733
        %1209 = vmatpush1.msra.mxu0 %v732
        %1210 = vmatprep.subr.mxu0 %v725
        %1211 = vmatpush1.msra.mxu0 %v724
        %1212 = vmatprep.subr.mxu0 %v717
        %1213 = vmatpush1.msra.mxu0 %v716
        %1214 = vmatprep.subr.mxu0 %v709
        %1215 = vmatpush1.msra.mxu0 %v708
        %1216 = vmatprep.subr.mxu0 %v701
        %1217 = vmatpush1.msra.mxu0 %v700
        %1218 = vmatprep.subr.mxu0 %v693
        %1219 = vmatpush1.msra.mxu0 %v692
        %1220 = vmatprep.subr.mxu0 %v685
        %1221 = vmatpush1.msra.mxu0 %v684
        %1222 = vmatprep.subr.mxu0 %v677
        %1223 = vmatpush1.msra.mxu0 %v676
        %1224 = vmatprep.subr.mxu0 %v669
        %1225 = vmatpush1.msra.mxu0 %v668
        %1226 = vmatprep.subr.mxu0 %v661
        %1227 = vmatpush1.msra.mxu0 %v660
        %1228 = vmatprep.subr.mxu0 %v653
        %1229 = vmatpush1.msra.mxu0 %v652
        %1230 = vmatprep.subr.mxu0 %v645
        %1231 = vmatpush1.msra.mxu0 %v644
        %1232 = vmatprep.subr.mxu0 %v637
        %1233 = vmatpush1.msra.mxu0 %v636
        %1234 = vmatprep.subr.mxu0 %v885
        %1235 = vmatpush2.msra.mxu0 %v884
        %1236 = vmatprep.subr.mxu0 %v877
        %1237 = vmatpush2.msra.mxu0 %v876
        %1238 = vmatprep.subr.mxu0 %v869
        %1239 = vmatpush2.msra.mxu0 %v868
        %1240 = vmatprep.subr.mxu0 %v861
        %1241 = vmatpush2.msra.mxu0 %v860
        %1242 = vmatprep.subr.mxu0 %v853
        %1243 = vmatpush2.msra.mxu0 %v852
        %1244 = vmatprep.subr.mxu0 %v845
        %1245 = vmatpush2.msra.mxu0 %v844
        %1246 = vmatprep.subr.mxu0 %v837
        %1247 = vmatpush2.msra.mxu0 %v836
        %1248 = vmatprep.subr.mxu0 %v829
        %1249 = vmatpush2.msra.mxu0 %v828
        %1250 = vmatprep.subr.mxu0 %v821
        %1251 = vmatpush2.msra.mxu0 %v820
        %1252 = vmatprep.subr.mxu0 %v813
        %1253 = vmatpush2.msra.mxu0 %v812
        %1254 = vmatprep.subr.mxu0 %v805
        %1255 = vmatpush2.msra.mxu0 %v804
        %1256 = vmatprep.subr.mxu0 %v797
        %1257 = vmatpush2.msra.mxu0 %v796
        %1258 = vmatprep.subr.mxu0 %v789
        %1259 = vmatpush2.msra.mxu0 %v788
        %1260 = vmatprep.subr.mxu0 %v781
        %1261 = vmatpush2.msra.mxu0 %v780
        %1262 = vmatprep.subr.mxu0 %v773
        %1263 = vmatpush2.msra.mxu0 %v772
        %1264 = vmatprep.subr.mxu0 %v765
        %1265 = vmatpush2.msra.mxu0 %v764
        %1266 = vmatprep.mubr.f32.mxu0 %v629
        %1267 = vmatmul.mubr.f32.gmra.mxu0 %v628
        %v1268 = vpop.f32.mrf.mxu0
        %v1269 = vadd.f32 %v1031, %v1268
        %v1270 = vpop.f32.mrf.mxu0
        %v1271 = vadd.f32 %v1035, %v1270
        %1272 = vdwg.mxu0
        %1273 = vmatprep.subr.mxu0 %v1013
        %1274 = vmatpush1.msra.mxu0 %v1012
        %1275 = vmatprep.subr.mxu0 %v1005
        %1276 = vmatpush1.msra.mxu0 %v1004
        %1277 = vmatprep.subr.mxu0 %v997
        %1278 = vmatpush1.msra.mxu0 %v996
        %1279 = vmatprep.subr.mxu0 %v989
        %1280 = vmatpush1.msra.mxu0 %v988
        %1281 = vmatprep.subr.mxu0 %v981
        %1282 = vmatpush1.msra.mxu0 %v980
        %1283 = vmatprep.subr.mxu0 %v973
        %1284 = vmatpush1.msra.mxu0 %v972
        %1285 = vmatprep.subr.mxu0 %v965
        %1286 = vmatpush1.msra.mxu0 %v964
        %1287 = vmatprep.subr.mxu0 %v957
        %1288 = vmatpush1.msra.mxu0 %v956
        %1289 = vmatprep.subr.mxu0 %v949
        %1290 = vmatpush1.msra.mxu0 %v948
        %1291 = vmatprep.subr.mxu0 %v941
        %1292 = vmatpush1.msra.mxu0 %v940
        %1293 = vmatprep.subr.mxu0 %v933
        %1294 = vmatpush1.msra.mxu0 %v932
        %1295 = vmatprep.subr.mxu0 %v925
        %1296 = vmatpush1.msra.mxu0 %v924
        %1297 = vmatprep.subr.mxu0 %v917
        %1298 = vmatpush1.msra.mxu0 %v916
        %1299 = vmatprep.subr.mxu0 %v909
        %1300 = vmatpush1.msra.mxu0 %v908
        %1301 = vmatprep.subr.mxu0 %v901
        %1302 = vmatpush1.msra.mxu0 %v900
        %1303 = vmatprep.subr.mxu0 %v893
        %1304 = vmatpush1.msra.mxu0 %v892
        %1305 = vmatprep.subr.mxu0 0.0
        %1306 = vmatpush2.msra.mxu0 0.0
        %1307 = vmatprep.subr.mxu0 0.0
        %1308 = vmatpush2.msra.mxu0 0.0
        %1309 = vmatprep.subr.mxu0 0.0
        %1310 = vmatpush2.msra.mxu0 0.0
        %1311 = vmatprep.subr.mxu0 0.0
        %1312 = vmatpush2.msra.mxu0 0.0
        %1313 = vmatprep.subr.mxu0 0.0
        %1314 = vmatpush2.msra.mxu0 0.0
        %1315 = vmatprep.subr.mxu0 0.0
        %1316 = vmatpush2.msra.mxu0 0.0
        %1317 = vmatprep.subr.mxu0 0.0
        %1318 = vmatpush2.msra.mxu0 0.0
        %1319 = vmatprep.subr.mxu0 0.0
        %1320 = vmatpush2.msra.mxu0 0.0
        %1321 = vmatprep.subr.mxu0 0.0
        %1322 = vmatpush2.msra.mxu0 0.0
        %1323 = vmatprep.subr.mxu0 0.0
        %1324 = vmatpush2.msra.mxu0 0.0
        %1325 = vmatprep.subr.mxu0 0.0
        %1326 = vmatpush2.msra.mxu0 0.0
        %1327 = vmatprep.subr.mxu0 0.0
        %1328 = vmatpush2.msra.mxu0 0.0
        %1329 = vmatprep.subr.mxu0 0.0
        %1330 = vmatpush2.msra.mxu0 0.0
        %1331 = vmatprep.subr.mxu0 0.0
        %1332 = vmatpush2.msra.mxu0 0.0
        %1333 = vmatprep.subr.mxu0 0.0
        %1334 = vmatpush2.msra.mxu0 0.0
        %1335 = vmatprep.subr.mxu0 0.0
        %1336 = vmatpush2.msra.mxu0 0.0
        %1337 = vmatprep.mubr.f32.mxu0 0.0
        %1338 = vmatmul.mubr.f32.gmra.mxu0 %v630
        %v1339 = vpop.f32.mrf.mxu0
        %v1340 = vadd.f32 %v1269, %v1339
        %v1341 = vpop.f32.mrf.mxu0
        %v1342 = vadd.f32 %v1271, %v1341
        %1343 = vdwg.mxu0
        %1344 = vmatprep.subr.mxu0 %v759
        %1345 = vmatpush1.msra.mxu0 %v758
        %1346 = vmatprep.subr.mxu0 %v751
        %1347 = vmatpush1.msra.mxu0 %v750
        %1348 = vmatprep.subr.mxu0 %v743
        %1349 = vmatpush1.msra.mxu0 %v742
        %1350 = vmatprep.subr.mxu0 %v735
        %1351 = vmatpush1.msra.mxu0 %v734
        %1352 = vmatprep.subr.mxu0 %v727
        %1353 = vmatpush1.msra.mxu0 %v726
        %1354 = vmatprep.subr.mxu0 %v719
        %1355 = vmatpush1.msra.mxu0 %v718
        %1356 = vmatprep.subr.mxu0 %v711
        %1357 = vmatpush1.msra.mxu0 %v710
        %1358 = vmatprep.subr.mxu0 %v703
        %1359 = vmatpush1.msra.mxu0 %v702
        %1360 = vmatprep.subr.mxu0 %v695
        %1361 = vmatpush1.msra.mxu0 %v694
        %1362 = vmatprep.subr.mxu0 %v687
        %1363 = vmatpush1.msra.mxu0 %v686
        %1364 = vmatprep.subr.mxu0 %v679
        %1365 = vmatpush1.msra.mxu0 %v678
        %1366 = vmatprep.subr.mxu0 %v671
        %1367 = vmatpush1.msra.mxu0 %v670
        %1368 = vmatprep.subr.mxu0 %v663
        %1369 = vmatpush1.msra.mxu0 %v662
        %1370 = vmatprep.subr.mxu0 %v655
        %1371 = vmatpush1.msra.mxu0 %v654
        %1372 = vmatprep.subr.mxu0 %v647
        %1373 = vmatpush1.msra.mxu0 %v646
        %1374 = vmatprep.subr.mxu0 %v639
        %1375 = vmatpush1.msra.mxu0 %v638
        %1376 = vmatprep.subr.mxu0 %v887
        %1377 = vmatpush2.msra.mxu0 %v886
        %1378 = vmatprep.subr.mxu0 %v879
        %1379 = vmatpush2.msra.mxu0 %v878
        %1380 = vmatprep.subr.mxu0 %v871
        %1381 = vmatpush2.msra.mxu0 %v870
        %1382 = vmatprep.subr.mxu0 %v863
        %1383 = vmatpush2.msra.mxu0 %v862
        %1384 = vmatprep.subr.mxu0 %v855
        %1385 = vmatpush2.msra.mxu0 %v854
        %1386 = vmatprep.subr.mxu0 %v847
        %1387 = vmatpush2.msra.mxu0 %v846
        %1388 = vmatprep.subr.mxu0 %v839
        %1389 = vmatpush2.msra.mxu0 %v838
        %1390 = vmatprep.subr.mxu0 %v831
        %1391 = vmatpush2.msra.mxu0 %v830
        %1392 = vmatprep.subr.mxu0 %v823
        %1393 = vmatpush2.msra.mxu0 %v822
        %1394 = vmatprep.subr.mxu0 %v815
        %1395 = vmatpush2.msra.mxu0 %v814
        %1396 = vmatprep.subr.mxu0 %v807
        %1397 = vmatpush2.msra.mxu0 %v806
        %1398 = vmatprep.subr.mxu0 %v799
        %1399 = vmatpush2.msra.mxu0 %v798
        %1400 = vmatprep.subr.mxu0 %v791
        %1401 = vmatpush2.msra.mxu0 %v790
        %1402 = vmatprep.subr.mxu0 %v783
        %1403 = vmatpush2.msra.mxu0 %v782
        %1404 = vmatprep.subr.mxu0 %v775
        %1405 = vmatpush2.msra.mxu0 %v774
        %1406 = vmatprep.subr.mxu0 %v767
        %1407 = vmatpush2.msra.mxu0 %v766
        %1408 = vmatprep.mubr.f32.mxu0 %v629
        %1409 = vmatmul.mubr.f32.gmra.mxu0 %v628
        %v1410 = vpop.f32.mrf.mxu0
        %v1411 = vadd.f32 %v1039, %v1410
        %v1412 = vpop.f32.mrf.mxu0
        %v1413 = vadd.f32 %v1043, %v1412
        %1414 = vdwg.mxu0
        %1415 = vmatprep.subr.mxu0 %v1015
        %1416 = vmatpush1.msra.mxu0 %v1014
        %1417 = vmatprep.subr.mxu0 %v1007
        %1418 = vmatpush1.msra.mxu0 %v1006
        %1419 = vmatprep.subr.mxu0 %v999
        %1420 = vmatpush1.msra.mxu0 %v998
        %1421 = vmatprep.subr.mxu0 %v991
        %1422 = vmatpush1.msra.mxu0 %v990
        %1423 = vmatprep.subr.mxu0 %v983
        %1424 = vmatpush1.msra.mxu0 %v982
        %1425 = vmatprep.subr.mxu0 %v975
        %1426 = vmatpush1.msra.mxu0 %v974
        %1427 = vmatprep.subr.mxu0 %v967
        %1428 = vmatpush1.msra.mxu0 %v966
        %1429 = vmatprep.subr.mxu0 %v959
        %1430 = vmatpush1.msra.mxu0 %v958
        %1431 = vmatprep.subr.mxu0 %v951
        %1432 = vmatpush1.msra.mxu0 %v950
        %1433 = vmatprep.subr.mxu0 %v943
        %1434 = vmatpush1.msra.mxu0 %v942
        %1435 = vmatprep.subr.mxu0 %v935
        %1436 = vmatpush1.msra.mxu0 %v934
        %1437 = vmatprep.subr.mxu0 %v927
        %1438 = vmatpush1.msra.mxu0 %v926
        %1439 = vmatprep.subr.mxu0 %v919
        %1440 = vmatpush1.msra.mxu0 %v918
        %1441 = vmatprep.subr.mxu0 %v911
        %1442 = vmatpush1.msra.mxu0 %v910
        %1443 = vmatprep.subr.mxu0 %v903
        %1444 = vmatpush1.msra.mxu0 %v902
        %1445 = vmatprep.subr.mxu0 %v895
        %1446 = vmatpush1.msra.mxu0 %v894
        %1447 = vmatprep.subr.mxu0 0.0
        %1448 = vmatpush2.msra.mxu0 0.0
        %1449 = vmatprep.subr.mxu0 0.0
        %1450 = vmatpush2.msra.mxu0 0.0
        %1451 = vmatprep.subr.mxu0 0.0
        %1452 = vmatpush2.msra.mxu0 0.0
        %1453 = vmatprep.subr.mxu0 0.0
        %1454 = vmatpush2.msra.mxu0 0.0
        %1455 = vmatprep.subr.mxu0 0.0
        %1456 = vmatpush2.msra.mxu0 0.0
        %1457 = vmatprep.subr.mxu0 0.0
        %1458 = vmatpush2.msra.mxu0 0.0
        %1459 = vmatprep.subr.mxu0 0.0
        %1460 = vmatpush2.msra.mxu0 0.0
        %1461 = vmatprep.subr.mxu0 0.0
        %1462 = vmatpush2.msra.mxu0 0.0
        %1463 = vmatprep.subr.mxu0 0.0
        %1464 = vmatpush2.msra.mxu0 0.0
        %1465 = vmatprep.subr.mxu0 0.0
        %1466 = vmatpush2.msra.mxu0 0.0
        %1467 = vmatprep.subr.mxu0 0.0
        %1468 = vmatpush2.msra.mxu0 0.0
        %1469 = vmatprep.subr.mxu0 0.0
        %1470 = vmatpush2.msra.mxu0 0.0
        %1471 = vmatprep.subr.mxu0 0.0
        %1472 = vmatpush2.msra.mxu0 0.0
        %1473 = vmatprep.subr.mxu0 0.0
        %1474 = vmatpush2.msra.mxu0 0.0
        %1475 = vmatprep.subr.mxu0 0.0
        %1476 = vmatpush2.msra.mxu0 0.0
        %1477 = vmatprep.subr.mxu0 0.0
        %1478 = vmatpush2.msra.mxu0 0.0
        %1479 = vmatprep.mubr.f32.mxu0 0.0
        %1480 = vmatmul.mubr.f32.gmra.mxu0 %v630
        %v1481 = vpop.f32.mrf.mxu0
        %v1482 = vadd.f32 %v1411, %v1481
        %v1483 = vpop.f32.mrf.mxu0
        %v1484 = vadd.f32 %v1413, %v1483
        %1485 = vdwg.mxu0
        %1486 = vmatprep.subr.mxu0 %v761
        %1487 = vmatpush1.msra.mxu0 %v760
        %1488 = vmatprep.subr.mxu0 %v753
        %1489 = vmatpush1.msra.mxu0 %v752
        %1490 = vmatprep.subr.mxu0 %v745
        %1491 = vmatpush1.msra.mxu0 %v744
        %1492 = vmatprep.subr.mxu0 %v737
        %1493 = vmatpush1.msra.mxu0 %v736
        %1494 = vmatprep.subr.mxu0 %v729
        %1495 = vmatpush1.msra.mxu0 %v728
        %1496 = vmatprep.subr.mxu0 %v721
        %1497 = vmatpush1.msra.mxu0 %v720
        %1498 = vmatprep.subr.mxu0 %v713
        %1499 = vmatpush1.msra.mxu0 %v712
        %1500 = vmatprep.subr.mxu0 %v705
        %1501 = vmatpush1.msra.mxu0 %v704
        %1502 = vmatprep.subr.mxu0 %v697
        %1503 = vmatpush1.msra.mxu0 %v696
        %1504 = vmatprep.subr.mxu0 %v689
        %1505 = vmatpush1.msra.mxu0 %v688
        %1506 = vmatprep.subr.mxu0 %v681
        %1507 = vmatpush1.msra.mxu0 %v680
        %1508 = vmatprep.subr.mxu0 %v673
        %1509 = vmatpush1.msra.mxu0 %v672
        %1510 = vmatprep.subr.mxu0 %v665
        %1511 = vmatpush1.msra.mxu0 %v664
        %1512 = vmatprep.subr.mxu0 %v657
        %1513 = vmatpush1.msra.mxu0 %v656
        %1514 = vmatprep.subr.mxu0 %v649
        %1515 = vmatpush1.msra.mxu0 %v648
        %1516 = vmatprep.subr.mxu0 %v641
        %1517 = vmatpush1.msra.mxu0 %v640
        %1518 = vmatprep.subr.mxu0 %v889
        %1519 = vmatpush2.msra.mxu0 %v888
        %1520 = vmatprep.subr.mxu0 %v881
        %1521 = vmatpush2.msra.mxu0 %v880
        %1522 = vmatprep.subr.mxu0 %v873
        %1523 = vmatpush2.msra.mxu0 %v872
        %1524 = vmatprep.subr.mxu0 %v865
        %1525 = vmatpush2.msra.mxu0 %v864
        %1526 = vmatprep.subr.mxu0 %v857
        %1527 = vmatpush2.msra.mxu0 %v856
        %1528 = vmatprep.subr.mxu0 %v849
        %1529 = vmatpush2.msra.mxu0 %v848
        %1530 = vmatprep.subr.mxu0 %v841
        %1531 = vmatpush2.msra.mxu0 %v840
        %1532 = vmatprep.subr.mxu0 %v833
        %1533 = vmatpush2.msra.mxu0 %v832
        %1534 = vmatprep.subr.mxu0 %v825
        %1535 = vmatpush2.msra.mxu0 %v824
        %1536 = vmatprep.subr.mxu0 %v817
        %1537 = vmatpush2.msra.mxu0 %v816
        %1538 = vmatprep.subr.mxu0 %v809
        %1539 = vmatpush2.msra.mxu0 %v808
        %1540 = vmatprep.subr.mxu0 %v801
        %1541 = vmatpush2.msra.mxu0 %v800
        %1542 = vmatprep.subr.mxu0 %v793
        %1543 = vmatpush2.msra.mxu0 %v792
        %1544 = vmatprep.subr.mxu0 %v785
        %1545 = vmatpush2.msra.mxu0 %v784
        %1546 = vmatprep.subr.mxu0 %v777
        %1547 = vmatpush2.msra.mxu0 %v776
        %1548 = vmatprep.subr.mxu0 %v769
        %1549 = vmatpush2.msra.mxu0 %v768
        %1550 = vmatprep.mubr.f32.mxu0 %v629
        %1551 = vmatmul.mubr.f32.gmra.mxu0 %v628
        %v1552 = vpop.f32.mrf.mxu0
        %v1553 = vadd.f32 %v1047, %v1552
        %v1554 = vpop.f32.mrf.mxu0
        %v1555 = vadd.f32 %v1051, %v1554
        %1556 = vdwg.mxu0
        %1557 = vmatprep.subr.mxu0 %v1017
        %1558 = vmatpush1.msra.mxu0 %v1016
        %1559 = vmatprep.subr.mxu0 %v1009
        %1560 = vmatpush1.msra.mxu0 %v1008
        %1561 = vmatprep.subr.mxu0 %v1001
        %1562 = vmatpush1.msra.mxu0 %v1000
        %1563 = vmatprep.subr.mxu0 %v993
        %1564 = vmatpush1.msra.mxu0 %v992
        %1565 = vmatprep.subr.mxu0 %v985
        %1566 = vmatpush1.msra.mxu0 %v984
        %1567 = vmatprep.subr.mxu0 %v977
        %1568 = vmatpush1.msra.mxu0 %v976
        %1569 = vmatprep.subr.mxu0 %v969
        %1570 = vmatpush1.msra.mxu0 %v968
        %1571 = vmatprep.subr.mxu0 %v961
        %1572 = vmatpush1.msra.mxu0 %v960
        %1573 = vmatprep.subr.mxu0 %v953
        %1574 = vmatpush1.msra.mxu0 %v952
        %1575 = vmatprep.subr.mxu0 %v945
        %1576 = vmatpush1.msra.mxu0 %v944
        %1577 = vmatprep.subr.mxu0 %v937
        %1578 = vmatpush1.msra.mxu0 %v936
        %1579 = vmatprep.subr.mxu0 %v929
        %1580 = vmatpush1.msra.mxu0 %v928
        %1581 = vmatprep.subr.mxu0 %v921
        %1582 = vmatpush1.msra.mxu0 %v920
        %1583 = vmatprep.subr.mxu0 %v913
        %1584 = vmatpush1.msra.mxu0 %v912
        %1585 = vmatprep.subr.mxu0 %v905
        %1586 = vmatpush1.msra.mxu0 %v904
        %1587 = vmatprep.subr.mxu0 %v897
        %1588 = vmatpush1.msra.mxu0 %v896
        %1589 = vmatprep.subr.mxu0 0.0
        %1590 = vmatpush2.msra.mxu0 0.0
        %1591 = vmatprep.subr.mxu0 0.0
        %1592 = vmatpush2.msra.mxu0 0.0
        %1593 = vmatprep.subr.mxu0 0.0
        %1594 = vmatpush2.msra.mxu0 0.0
        %1595 = vmatprep.subr.mxu0 0.0
        %1596 = vmatpush2.msra.mxu0 0.0
        %1597 = vmatprep.subr.mxu0 0.0
        %1598 = vmatpush2.msra.mxu0 0.0
        %1599 = vmatprep.subr.mxu0 0.0
        %1600 = vmatpush2.msra.mxu0 0.0
        %1601 = vmatprep.subr.mxu0 0.0
        %1602 = vmatpush2.msra.mxu0 0.0
        %1603 = vmatprep.subr.mxu0 0.0
        %1604 = vmatpush2.msra.mxu0 0.0
        %1605 = vmatprep.subr.mxu0 0.0
        %1606 = vmatpush2.msra.mxu0 0.0
        %1607 = vmatprep.subr.mxu0 0.0
        %1608 = vmatpush2.msra.mxu0 0.0
        %1609 = vmatprep.subr.mxu0 0.0
        %1610 = vmatpush2.msra.mxu0 0.0
        %1611 = vmatprep.subr.mxu0 0.0
        %1612 = vmatpush2.msra.mxu0 0.0
        %1613 = vmatprep.subr.mxu0 0.0
        %1614 = vmatpush2.msra.mxu0 0.0
        %1615 = vmatprep.subr.mxu0 0.0
        %1616 = vmatpush2.msra.mxu0 0.0
        %1617 = vmatprep.subr.mxu0 0.0
        %1618 = vmatpush2.msra.mxu0 0.0
        %1619 = vmatprep.subr.mxu0 0.0
        %1620 = vmatpush2.msra.mxu0 0.0
        %1621 = vmatprep.mubr.f32.mxu0 0.0
        %1622 = vmatmul.mubr.f32.gmra.mxu0 %v630
        %v1623 = vpop.f32.mrf.mxu0
        %v1624 = vadd.f32 %v1553, %v1623
        %v1625 = vpop.f32.mrf.mxu0
        %v1626 = vadd.f32 %v1555, %v1625
        %1627 = vdwg.mxu0
        %1628 = vst [vmem:[#allocation2] sm:$0xff] %v1198
        %1629 = vst [vmem:[#allocation2 + $0x8] sm:$0xff] %v1200
        %1630 = vst [vmem:[#allocation2 + $0x10] sm:$0xff] %v1340
        %1631 = vst [vmem:[#allocation2 + $0x18] sm:$0xff] %v1342
        %1632 = vst [vmem:[#allocation2 + $0x20] sm:$0xff] %v1482
        %1633 = vst [vmem:[#allocation2 + $0x28] sm:$0xff] %v1484
        %1634 = vst [vmem:[#allocation2 + $0x30] sm:$0xff] %v1624
        %1635 = vst [vmem:[#allocation2 + $0x38] sm:$0xff] %v1626
        %v1636 = vld [vmem:[#allocation15] sm:$0xff]
        %v1637 = vld [vmem:[#allocation15 + $0x8] sm:$0xff]
        %v1638 = vld [vmem:[#allocation15 + $0x10] sm:$0xff]
        %v1639 = vld [vmem:[#allocation15 + $0x18] sm:$0xff]
        %v1640 = vld [vmem:[#allocation15 + $0x20] sm:$0xff]
        %v1641 = vld [vmem:[#allocation15 + $0x28] sm:$0xff]
        %v1642 = vld [vmem:[#allocation15 + $0x30] sm:$0xff]
        %v1643 = vld [vmem:[#allocation15 + $0x38] sm:$0xff]
        %v1644 = vld [vmem:[#allocation15 + $0x40] sm:$0xff]
        %v1645 = vld [vmem:[#allocation15 + $0x48] sm:$0xff]
        %v1646 = vld [vmem:[#allocation15 + $0x50] sm:$0xff]
        %v1647 = vld [vmem:[#allocation15 + $0x58] sm:$0xff]
        %v1648 = vld [vmem:[#allocation15 + $0x60] sm:$0xff]
        %v1649 = vld [vmem:[#allocation15 + $0x68] sm:$0xff]
        %v1650 = vld [vmem:[#allocation15 + $0x70] sm:$0xff]
        %v1651 = vld [vmem:[#allocation15 + $0x78] sm:$0xff]
        %v1652 = vld [vmem:[#allocation15 + $0x80] sm:$0xff]
        %v1653 = vld [vmem:[#allocation15 + $0x88] sm:$0xff]
        %v1654 = vld [vmem:[#allocation15 + $0x90] sm:$0xff]
        %v1655 = vld [vmem:[#allocation15 + $0x98] sm:$0xff]
        %v1656 = vld [vmem:[#allocation15 + $0xa0] sm:$0xff]
        %v1657 = vld [vmem:[#allocation15 + $0xa8] sm:$0xff]
        %v1658 = vld [vmem:[#allocation15 + $0xb0] sm:$0xff]
        %v1659 = vld [vmem:[#allocation15 + $0xb8] sm:$0xff]
        %v1660 = vld [vmem:[#allocation15 + $0xc0] sm:$0xff]
        %v1661 = vld [vmem:[#allocation15 + $0xc8] sm:$0xff]
        %v1662 = vld [vmem:[#allocation15 + $0xd0] sm:$0xff]
        %v1663 = vld [vmem:[#allocation15 + $0xd8] sm:$0xff]
        %v1664 = vld [vmem:[#allocation15 + $0xe0] sm:$0xff]
        %v1665 = vld [vmem:[#allocation15 + $0xe8] sm:$0xff]
        %v1666 = vld [vmem:[#allocation15 + $0xf0] sm:$0xff]
        %v1667 = vld [vmem:[#allocation15 + $0xf8] sm:$0xff]
        %v1668 = vld [vmem:[#allocation15 + $0x100] sm:$0xff]
        %v1669 = vld [vmem:[#allocation15 + $0x108] sm:$0xff]
        %v1670 = vld [vmem:[#allocation15 + $0x110] sm:$0xff]
        %v1671 = vld [vmem:[#allocation15 + $0x118] sm:$0xff]
        %v1672 = vld [vmem:[#allocation15 + $0x120] sm:$0xff]
        %v1673 = vld [vmem:[#allocation15 + $0x128] sm:$0xff]
        %v1674 = vld [vmem:[#allocation15 + $0x130] sm:$0xff]
        %v1675 = vld [vmem:[#allocation15 + $0x138] sm:$0xff]
        %v1676 = vld [vmem:[#allocation15 + $0x140] sm:$0xff]
        %v1677 = vld [vmem:[#allocation15 + $0x148] sm:$0xff]
        %v1678 = vld [vmem:[#allocation15 + $0x150] sm:$0xff]
        %v1679 = vld [vmem:[#allocation15 + $0x158] sm:$0xff]
        %v1680 = vld [vmem:[#allocation15 + $0x160] sm:$0xff]
        %v1681 = vld [vmem:[#allocation15 + $0x168] sm:$0xff]
        %v1682 = vld [vmem:[#allocation15 + $0x170] sm:$0xff]
        %v1683 = vld [vmem:[#allocation15 + $0x178] sm:$0xff]
        %v1684 = vld [vmem:[#allocation15 + $0x180] sm:$0xff]
        %v1685 = vld [vmem:[#allocation15 + $0x188] sm:$0xff]
        %v1686 = vld [vmem:[#allocation15 + $0x190] sm:$0xff]
        %v1687 = vld [vmem:[#allocation15 + $0x198] sm:$0xff]
        %v1688 = vld [vmem:[#allocation15 + $0x1a0] sm:$0xff]
        %v1689 = vld [vmem:[#allocation15 + $0x1a8] sm:$0xff]
        %v1690 = vld [vmem:[#allocation15 + $0x1b0] sm:$0xff]
        %v1691 = vld [vmem:[#allocation15 + $0x1b8] sm:$0xff]
        %v1692 = vld [vmem:[#allocation15 + $0x1c0] sm:$0xff]
        %v1693 = vld [vmem:[#allocation15 + $0x1c8] sm:$0xff]
        %v1694 = vld [vmem:[#allocation15 + $0x1d0] sm:$0xff]
        %v1695 = vld [vmem:[#allocation15 + $0x1d8] sm:$0xff]
        %v1696 = vld [vmem:[#allocation15 + $0x1e0] sm:$0xff]
        %v1697 = vld [vmem:[#allocation15 + $0x1e8] sm:$0xff]
        %v1698 = vld [vmem:[#allocation15 + $0x1f0] sm:$0xff]
        %v1699 = vld [vmem:[#allocation15 + $0x1f8] sm:$0xff]
        %v1700 = vld [vmem:[#allocation15 + $0x200] sm:$0xff]
        %v1701 = vld [vmem:[#allocation15 + $0x208] sm:$0xff]
        %v1702 = vld [vmem:[#allocation15 + $0x210] sm:$0xff]
        %v1703 = vld [vmem:[#allocation15 + $0x218] sm:$0xff]
        %v1704 = vld [vmem:[#allocation15 + $0x220] sm:$0xff]
        %v1705 = vld [vmem:[#allocation15 + $0x228] sm:$0xff]
        %v1706 = vld [vmem:[#allocation15 + $0x230] sm:$0xff]
        %v1707 = vld [vmem:[#allocation15 + $0x238] sm:$0xff]
        %v1708 = vld [vmem:[#allocation15 + $0x240] sm:$0xff]
        %v1709 = vld [vmem:[#allocation15 + $0x248] sm:$0xff]
        %v1710 = vld [vmem:[#allocation15 + $0x250] sm:$0xff]
        %v1711 = vld [vmem:[#allocation15 + $0x258] sm:$0xff]
        %v1712 = vld [vmem:[#allocation15 + $0x260] sm:$0xff]
        %v1713 = vld [vmem:[#allocation15 + $0x268] sm:$0xff]
        %v1714 = vld [vmem:[#allocation15 + $0x270] sm:$0xff]
        %v1715 = vld [vmem:[#allocation15 + $0x278] sm:$0xff]
        %v1716 = vld [vmem:[#allocation15 + $0x280] sm:$0xff]
        %v1717 = vld [vmem:[#allocation15 + $0x288] sm:$0xff]
        %v1718 = vld [vmem:[#allocation15 + $0x290] sm:$0xff]
        %v1719 = vld [vmem:[#allocation15 + $0x298] sm:$0xff]
        %v1720 = vld [vmem:[#allocation15 + $0x2a0] sm:$0xff]
        %v1721 = vld [vmem:[#allocation15 + $0x2a8] sm:$0xff]
        %v1722 = vld [vmem:[#allocation15 + $0x2b0] sm:$0xff]
        %v1723 = vld [vmem:[#allocation15 + $0x2b8] sm:$0xff]
        %v1724 = vld [vmem:[#allocation15 + $0x2c0] sm:$0xff]
        %v1725 = vld [vmem:[#allocation15 + $0x2c8] sm:$0xff]
        %v1726 = vld [vmem:[#allocation15 + $0x2d0] sm:$0xff]
        %v1727 = vld [vmem:[#allocation15 + $0x2d8] sm:$0xff]
        %v1728 = vld [vmem:[#allocation15 + $0x2e0] sm:$0xff]
        %v1729 = vld [vmem:[#allocation15 + $0x2e8] sm:$0xff]
        %v1730 = vld [vmem:[#allocation15 + $0x2f0] sm:$0xff]
        %v1731 = vld [vmem:[#allocation15 + $0x2f8] sm:$0xff]
        %v1732 = vld [vmem:[#allocation15 + $0x300] sm:$0xff]
        %v1733 = vld [vmem:[#allocation15 + $0x308] sm:$0xff]
        %v1734 = vld [vmem:[#allocation15 + $0x310] sm:$0xff]
        %v1735 = vld [vmem:[#allocation15 + $0x318] sm:$0xff]
        %v1736 = vld [vmem:[#allocation15 + $0x320] sm:$0xff]
        %v1737 = vld [vmem:[#allocation15 + $0x328] sm:$0xff]
        %v1738 = vld [vmem:[#allocation15 + $0x330] sm:$0xff]
        %v1739 = vld [vmem:[#allocation15 + $0x338] sm:$0xff]
        %v1740 = vld [vmem:[#allocation15 + $0x340] sm:$0xff]
        %v1741 = vld [vmem:[#allocation15 + $0x348] sm:$0xff]
        %v1742 = vld [vmem:[#allocation15 + $0x350] sm:$0xff]
        %v1743 = vld [vmem:[#allocation15 + $0x358] sm:$0xff]
        %v1744 = vld [vmem:[#allocation15 + $0x360] sm:$0xff]
        %v1745 = vld [vmem:[#allocation15 + $0x368] sm:$0xff]
        %v1746 = vld [vmem:[#allocation15 + $0x370] sm:$0xff]
        %v1747 = vld [vmem:[#allocation15 + $0x378] sm:$0xff]
        %v1748 = vld [vmem:[#allocation15 + $0x380] sm:$0xff]
        %v1749 = vld [vmem:[#allocation15 + $0x388] sm:$0xff]
        %v1750 = vld [vmem:[#allocation15 + $0x390] sm:$0xff]
        %v1751 = vld [vmem:[#allocation15 + $0x398] sm:$0xff]
        %v1752 = vld [vmem:[#allocation15 + $0x3a0] sm:$0xff]
        %v1753 = vld [vmem:[#allocation15 + $0x3a8] sm:$0xff]
        %v1754 = vld [vmem:[#allocation15 + $0x3b0] sm:$0xff]
        %v1755 = vld [vmem:[#allocation15 + $0x3b8] sm:$0xff]
        %v1756 = vld [vmem:[#allocation15 + $0x3c0] sm:$0xff]
        %v1757 = vld [vmem:[#allocation15 + $0x3c8] sm:$0xff]
        %v1758 = vld [vmem:[#allocation15 + $0x3d0] sm:$0xff]
        %v1759 = vld [vmem:[#allocation15 + $0x3d8] sm:$0xff]
        %v1760 = vld [vmem:[#allocation15 + $0x3e0] sm:$0xff]
        %v1761 = vld [vmem:[#allocation15 + $0x3e8] sm:$0xff]
        %v1762 = vld [vmem:[#allocation15 + $0x3f0] sm:$0xff]
        %v1763 = vld [vmem:[#allocation15 + $0x3f8] sm:$0xff]
        %v1764 = vld [vmem:[#allocation15 + $0x400] sm:$0xff]
        %v1765 = vld [vmem:[#allocation15 + $0x408] sm:$0xff]
        %v1766 = vld [vmem:[#allocation15 + $0x410] sm:$0xff]
        %v1767 = vld [vmem:[#allocation15 + $0x418] sm:$0xff]
        %v1768 = vld [vmem:[#allocation15 + $0x420] sm:$0xff]
        %v1769 = vld [vmem:[#allocation15 + $0x428] sm:$0xff]
        %v1770 = vld [vmem:[#allocation15 + $0x430] sm:$0xff]
        %v1771 = vld [vmem:[#allocation15 + $0x438] sm:$0xff]
        %v1772 = vld [vmem:[#allocation15 + $0x440] sm:$0xff]
        %v1773 = vld [vmem:[#allocation15 + $0x448] sm:$0xff]
        %v1774 = vld [vmem:[#allocation15 + $0x450] sm:$0xff]
        %v1775 = vld [vmem:[#allocation15 + $0x458] sm:$0xff]
        %v1776 = vld [vmem:[#allocation15 + $0x460] sm:$0xff]
        %v1777 = vld [vmem:[#allocation15 + $0x468] sm:$0xff]
        %v1778 = vld [vmem:[#allocation15 + $0x470] sm:$0xff]
        %v1779 = vld [vmem:[#allocation15 + $0x478] sm:$0xff]
        %v1780 = vld [vmem:[#allocation15 + $0x480] sm:$0xff]
        %v1781 = vld [vmem:[#allocation15 + $0x488] sm:$0xff]
        %v1782 = vld [vmem:[#allocation15 + $0x490] sm:$0xff]
        %v1783 = vld [vmem:[#allocation15 + $0x498] sm:$0xff]
        %v1784 = vld [vmem:[#allocation15 + $0x4a0] sm:$0xff]
        %v1785 = vld [vmem:[#allocation15 + $0x4a8] sm:$0xff]
        %v1786 = vld [vmem:[#allocation15 + $0x4b0] sm:$0xff]
        %v1787 = vld [vmem:[#allocation15 + $0x4b8] sm:$0xff]
        %v1788 = vld [vmem:[#allocation15 + $0x4c0] sm:$0xff]
        %v1789 = vld [vmem:[#allocation15 + $0x4c8] sm:$0xff]
        %v1790 = vld [vmem:[#allocation15 + $0x4d0] sm:$0xff]
        %v1791 = vld [vmem:[#allocation15 + $0x4d8] sm:$0xff]
        %v1792 = vld [vmem:[#allocation15 + $0x4e0] sm:$0xff]
        %v1793 = vld [vmem:[#allocation15 + $0x4e8] sm:$0xff]
        %v1794 = vld [vmem:[#allocation15 + $0x4f0] sm:$0xff]
        %v1795 = vld [vmem:[#allocation15 + $0x4f8] sm:$0xff]
        %v1796 = vld [vmem:[#allocation15 + $0x500] sm:$0xff]
        %v1797 = vld [vmem:[#allocation15 + $0x508] sm:$0xff]
        %v1798 = vld [vmem:[#allocation15 + $0x510] sm:$0xff]
        %v1799 = vld [vmem:[#allocation15 + $0x518] sm:$0xff]
        %v1800 = vld [vmem:[#allocation15 + $0x520] sm:$0xff]
        %v1801 = vld [vmem:[#allocation15 + $0x528] sm:$0xff]
        %v1802 = vld [vmem:[#allocation15 + $0x530] sm:$0xff]
        %v1803 = vld [vmem:[#allocation15 + $0x538] sm:$0xff]
        %v1804 = vld [vmem:[#allocation15 + $0x540] sm:$0xff]
        %v1805 = vld [vmem:[#allocation15 + $0x548] sm:$0xff]
        %v1806 = vld [vmem:[#allocation15 + $0x550] sm:$0xff]
        %v1807 = vld [vmem:[#allocation15 + $0x558] sm:$0xff]
        %v1808 = vld [vmem:[#allocation15 + $0x560] sm:$0xff]
        %v1809 = vld [vmem:[#allocation15 + $0x568] sm:$0xff]
        %v1810 = vld [vmem:[#allocation15 + $0x570] sm:$0xff]
        %v1811 = vld [vmem:[#allocation15 + $0x578] sm:$0xff]
        %v1812 = vld [vmem:[#allocation15 + $0x580] sm:$0xff]
        %v1813 = vld [vmem:[#allocation15 + $0x588] sm:$0xff]
        %v1814 = vld [vmem:[#allocation15 + $0x590] sm:$0xff]
        %v1815 = vld [vmem:[#allocation15 + $0x598] sm:$0xff]
        %v1816 = vld [vmem:[#allocation15 + $0x5a0] sm:$0xff]
        %v1817 = vld [vmem:[#allocation15 + $0x5a8] sm:$0xff]
        %v1818 = vld [vmem:[#allocation15 + $0x5b0] sm:$0xff]
        %v1819 = vld [vmem:[#allocation15 + $0x5b8] sm:$0xff]
        %v1820 = vld [vmem:[#allocation15 + $0x5c0] sm:$0xff]
        %v1821 = vld [vmem:[#allocation15 + $0x5c8] sm:$0xff]
        %v1822 = vld [vmem:[#allocation15 + $0x5d0] sm:$0xff]
        %v1823 = vld [vmem:[#allocation15 + $0x5d8] sm:$0xff]
        %v1824 = vld [vmem:[#allocation15 + $0x5e0] sm:$0xff]
        %v1825 = vld [vmem:[#allocation15 + $0x5e8] sm:$0xff]
        %v1826 = vld [vmem:[#allocation15 + $0x5f0] sm:$0xff]
        %v1827 = vld [vmem:[#allocation15 + $0x5f8] sm:$0xff]
        %v1828 = vld [vmem:[#allocation15 + $0x600] sm:$0xff]
        %v1829 = vld [vmem:[#allocation15 + $0x608] sm:$0xff]
        %v1830 = vld [vmem:[#allocation15 + $0x610] sm:$0xff]
        %v1831 = vld [vmem:[#allocation15 + $0x618] sm:$0xff]
        %v1832 = vld [vmem:[#allocation15 + $0x620] sm:$0xff]
        %v1833 = vld [vmem:[#allocation15 + $0x628] sm:$0xff]
        %v1834 = vld [vmem:[#allocation15 + $0x630] sm:$0xff]
        %v1835 = vld [vmem:[#allocation15 + $0x638] sm:$0xff]
        %v1836 = vld [vmem:[#allocation15 + $0x640] sm:$0xff]
        %v1837 = vld [vmem:[#allocation15 + $0x648] sm:$0xff]
        %v1838 = vld [vmem:[#allocation15 + $0x650] sm:$0xff]
        %v1839 = vld [vmem:[#allocation15 + $0x658] sm:$0xff]
        %v1840 = vld [vmem:[#allocation15 + $0x660] sm:$0xff]
        %v1841 = vld [vmem:[#allocation15 + $0x668] sm:$0xff]
        %v1842 = vld [vmem:[#allocation15 + $0x670] sm:$0xff]
        %v1843 = vld [vmem:[#allocation15 + $0x678] sm:$0xff]
        %v1844 = vld [vmem:[#allocation15 + $0x680] sm:$0xff]
        %v1845 = vld [vmem:[#allocation15 + $0x688] sm:$0xff]
        %v1846 = vld [vmem:[#allocation15 + $0x690] sm:$0xff]
        %v1847 = vld [vmem:[#allocation15 + $0x698] sm:$0xff]
        %v1848 = vld [vmem:[#allocation15 + $0x6a0] sm:$0xff]
        %v1849 = vld [vmem:[#allocation15 + $0x6a8] sm:$0xff]
        %v1850 = vld [vmem:[#allocation15 + $0x6b0] sm:$0xff]
        %v1851 = vld [vmem:[#allocation15 + $0x6b8] sm:$0xff]
        %v1852 = vld [vmem:[#allocation15 + $0x6c0] sm:$0xff]
        %v1853 = vld [vmem:[#allocation15 + $0x6c8] sm:$0xff]
        %v1854 = vld [vmem:[#allocation15 + $0x6d0] sm:$0xff]
        %v1855 = vld [vmem:[#allocation15 + $0x6d8] sm:$0xff]
        %v1856 = vld [vmem:[#allocation15 + $0x6e0] sm:$0xff]
        %v1857 = vld [vmem:[#allocation15 + $0x6e8] sm:$0xff]
        %v1858 = vld [vmem:[#allocation15 + $0x6f0] sm:$0xff]
        %v1859 = vld [vmem:[#allocation15 + $0x6f8] sm:$0xff]
        %v1860 = vld [vmem:[#allocation15 + $0x700] sm:$0xff]
        %v1861 = vld [vmem:[#allocation15 + $0x708] sm:$0xff]
        %v1862 = vld [vmem:[#allocation15 + $0x710] sm:$0xff]
        %v1863 = vld [vmem:[#allocation15 + $0x718] sm:$0xff]
        %v1864 = vld [vmem:[#allocation15 + $0x720] sm:$0xff]
        %v1865 = vld [vmem:[#allocation15 + $0x728] sm:$0xff]
        %v1866 = vld [vmem:[#allocation15 + $0x730] sm:$0xff]
        %v1867 = vld [vmem:[#allocation15 + $0x738] sm:$0xff]
        %v1868 = vld [vmem:[#allocation15 + $0x740] sm:$0xff]
        %v1869 = vld [vmem:[#allocation15 + $0x748] sm:$0xff]
        %v1870 = vld [vmem:[#allocation15 + $0x750] sm:$0xff]
        %v1871 = vld [vmem:[#allocation15 + $0x758] sm:$0xff]
        %v1872 = vld [vmem:[#allocation15 + $0x760] sm:$0xff]
        %v1873 = vld [vmem:[#allocation15 + $0x768] sm:$0xff]
        %v1874 = vld [vmem:[#allocation15 + $0x770] sm:$0xff]
        %v1875 = vld [vmem:[#allocation15 + $0x778] sm:$0xff]
        %v1876 = vld [vmem:[#allocation15 + $0x780] sm:$0xff]
        %v1877 = vld [vmem:[#allocation15 + $0x788] sm:$0xff]
        %v1878 = vld [vmem:[#allocation15 + $0x790] sm:$0xff]
        %v1879 = vld [vmem:[#allocation15 + $0x798] sm:$0xff]
        %v1880 = vld [vmem:[#allocation15 + $0x7a0] sm:$0xff]
        %v1881 = vld [vmem:[#allocation15 + $0x7a8] sm:$0xff]
        %v1882 = vld [vmem:[#allocation15 + $0x7b0] sm:$0xff]
        %v1883 = vld [vmem:[#allocation15 + $0x7b8] sm:$0xff]
        %v1884 = vld [vmem:[#allocation15 + $0x7c0] sm:$0xff]
        %v1885 = vld [vmem:[#allocation15 + $0x7c8] sm:$0xff]
        %v1886 = vld [vmem:[#allocation15 + $0x7d0] sm:$0xff]
        %v1887 = vld [vmem:[#allocation15 + $0x7d8] sm:$0xff]
        %v1888 = vld [vmem:[#allocation15 + $0x7e0] sm:$0xff]
        %v1889 = vld [vmem:[#allocation15 + $0x7e8] sm:$0xff]
        %v1890 = vld [vmem:[#allocation15 + $0x7f0] sm:$0xff]
        %v1891 = vld [vmem:[#allocation15 + $0x7f8] sm:$0xff]
        %v1892 = vld [vmem:[#allocation15 + $0x800] sm:$0xff]
        %v1893 = vld [vmem:[#allocation15 + $0x808] sm:$0xff]
        %v1894 = vld [vmem:[#allocation15 + $0x810] sm:$0xff]
        %v1895 = vld [vmem:[#allocation15 + $0x818] sm:$0xff]
        %v1896 = vld [vmem:[#allocation15 + $0x820] sm:$0xff]
        %v1897 = vld [vmem:[#allocation15 + $0x828] sm:$0xff]
        %v1898 = vld [vmem:[#allocation15 + $0x830] sm:$0xff]
        %v1899 = vld [vmem:[#allocation15 + $0x838] sm:$0xff]
        %v1900 = vld [vmem:[#allocation15 + $0x840] sm:$0xff]
        %v1901 = vld [vmem:[#allocation15 + $0x848] sm:$0xff]
        %v1902 = vld [vmem:[#allocation15 + $0x850] sm:$0xff]
        %v1903 = vld [vmem:[#allocation15 + $0x858] sm:$0xff]
        %v1904 = vld [vmem:[#allocation15 + $0x860] sm:$0xff]
        %v1905 = vld [vmem:[#allocation15 + $0x868] sm:$0xff]
        %v1906 = vld [vmem:[#allocation15 + $0x870] sm:$0xff]
        %v1907 = vld [vmem:[#allocation15 + $0x878] sm:$0xff]
        %v1908 = vld [vmem:[#allocation15 + $0x880] sm:$0xff]
        %v1909 = vld [vmem:[#allocation15 + $0x888] sm:$0xff]
        %v1910 = vld [vmem:[#allocation15 + $0x890] sm:$0xff]
        %v1911 = vld [vmem:[#allocation15 + $0x898] sm:$0xff]
        %v1912 = vld [vmem:[#allocation15 + $0x8a0] sm:$0xff]
        %v1913 = vld [vmem:[#allocation15 + $0x8a8] sm:$0xff]
        %v1914 = vld [vmem:[#allocation15 + $0x8b0] sm:$0xff]
        %v1915 = vld [vmem:[#allocation15 + $0x8b8] sm:$0xff]
        %v1916 = vld [vmem:[#allocation15 + $0x8c0] sm:$0xff]
        %v1917 = vld [vmem:[#allocation15 + $0x8c8] sm:$0xff]
        %v1918 = vld [vmem:[#allocation15 + $0x8d0] sm:$0xff]
        %v1919 = vld [vmem:[#allocation15 + $0x8d8] sm:$0xff]
        %v1920 = vld [vmem:[#allocation15 + $0x8e0] sm:$0xff]
        %v1921 = vld [vmem:[#allocation15 + $0x8e8] sm:$0xff]
        %v1922 = vld [vmem:[#allocation15 + $0x8f0] sm:$0xff]
        %v1923 = vld [vmem:[#allocation15 + $0x8f8] sm:$0xff]
        %v1924 = vld [vmem:[#allocation15 + $0x900] sm:$0xff]
        %v1925 = vld [vmem:[#allocation15 + $0x908] sm:$0xff]
        %v1926 = vld [vmem:[#allocation15 + $0x910] sm:$0xff]
        %v1927 = vld [vmem:[#allocation15 + $0x918] sm:$0xff]
        %v1928 = vld [vmem:[#allocation15 + $0x920] sm:$0xff]
        %v1929 = vld [vmem:[#allocation15 + $0x928] sm:$0xff]
        %v1930 = vld [vmem:[#allocation15 + $0x930] sm:$0xff]
        %v1931 = vld [vmem:[#allocation15 + $0x938] sm:$0xff]
        %v1932 = vld [vmem:[#allocation15 + $0x940] sm:$0xff]
        %v1933 = vld [vmem:[#allocation15 + $0x948] sm:$0xff]
        %v1934 = vld [vmem:[#allocation15 + $0x950] sm:$0xff]
        %v1935 = vld [vmem:[#allocation15 + $0x958] sm:$0xff]
        %v1936 = vld [vmem:[#allocation15 + $0x960] sm:$0xff]
        %v1937 = vld [vmem:[#allocation15 + $0x968] sm:$0xff]
        %v1938 = vld [vmem:[#allocation15 + $0x970] sm:$0xff]
        %v1939 = vld [vmem:[#allocation15 + $0x978] sm:$0xff]
        %v1940 = vld [vmem:[#allocation15 + $0x980] sm:$0xff]
        %v1941 = vld [vmem:[#allocation15 + $0x988] sm:$0xff]
        %v1942 = vld [vmem:[#allocation15 + $0x990] sm:$0xff]
        %v1943 = vld [vmem:[#allocation15 + $0x998] sm:$0xff]
        %v1944 = vld [vmem:[#allocation15 + $0x9a0] sm:$0xff]
        %v1945 = vld [vmem:[#allocation15 + $0x9a8] sm:$0xff]
        %v1946 = vld [vmem:[#allocation15 + $0x9b0] sm:$0xff]
        %v1947 = vld [vmem:[#allocation15 + $0x9b8] sm:$0xff]
        %v1948 = vld [vmem:[#allocation15 + $0x9c0] sm:$0xff]
        %v1949 = vld [vmem:[#allocation15 + $0x9c8] sm:$0xff]
        %v1950 = vld [vmem:[#allocation15 + $0x9d0] sm:$0xff]
        %v1951 = vld [vmem:[#allocation15 + $0x9d8] sm:$0xff]
        %v1952 = vld [vmem:[#allocation15 + $0x9e0] sm:$0xff]
        %v1953 = vld [vmem:[#allocation15 + $0x9e8] sm:$0xff]
        %v1954 = vld [vmem:[#allocation15 + $0x9f0] sm:$0xff]
        %v1955 = vld [vmem:[#allocation15 + $0x9f8] sm:$0xff]
        %v1956 = vld [vmem:[#allocation15 + $0xa00] sm:$0xff]
        %v1957 = vld [vmem:[#allocation15 + $0xa08] sm:$0xff]
        %v1958 = vld [vmem:[#allocation15 + $0xa10] sm:$0xff]
        %v1959 = vld [vmem:[#allocation15 + $0xa18] sm:$0xff]
        %v1960 = vld [vmem:[#allocation15 + $0xa20] sm:$0xff]
        %v1961 = vld [vmem:[#allocation15 + $0xa28] sm:$0xff]
        %v1962 = vld [vmem:[#allocation15 + $0xa30] sm:$0xff]
        %v1963 = vld [vmem:[#allocation15 + $0xa38] sm:$0xff]
        %v1964 = vld [vmem:[#allocation15 + $0xa40] sm:$0xff]
        %v1965 = vld [vmem:[#allocation15 + $0xa48] sm:$0xff]
        %v1966 = vld [vmem:[#allocation15 + $0xa50] sm:$0xff]
        %v1967 = vld [vmem:[#allocation15 + $0xa58] sm:$0xff]
        %v1968 = vld [vmem:[#allocation15 + $0xa60] sm:$0xff]
        %v1969 = vld [vmem:[#allocation15 + $0xa68] sm:$0xff]
        %v1970 = vld [vmem:[#allocation15 + $0xa70] sm:$0xff]
        %v1971 = vld [vmem:[#allocation15 + $0xa78] sm:$0xff]
        %v1972 = vld [vmem:[#allocation15 + $0xa80] sm:$0xff]
        %v1973 = vld [vmem:[#allocation15 + $0xa88] sm:$0xff]
        %v1974 = vld [vmem:[#allocation15 + $0xa90] sm:$0xff]
        %v1975 = vld [vmem:[#allocation15 + $0xa98] sm:$0xff]
        %v1976 = vld [vmem:[#allocation15 + $0xaa0] sm:$0xff]
        %v1977 = vld [vmem:[#allocation15 + $0xaa8] sm:$0xff]
        %v1978 = vld [vmem:[#allocation15 + $0xab0] sm:$0xff]
        %v1979 = vld [vmem:[#allocation15 + $0xab8] sm:$0xff]
        %v1980 = vld [vmem:[#allocation15 + $0xac0] sm:$0xff]
        %v1981 = vld [vmem:[#allocation15 + $0xac8] sm:$0xff]
        %v1982 = vld [vmem:[#allocation15 + $0xad0] sm:$0xff]
        %v1983 = vld [vmem:[#allocation15 + $0xad8] sm:$0xff]
        %v1984 = vld [vmem:[#allocation15 + $0xae0] sm:$0xff]
        %v1985 = vld [vmem:[#allocation15 + $0xae8] sm:$0xff]
        %v1986 = vld [vmem:[#allocation15 + $0xaf0] sm:$0xff]
        %v1987 = vld [vmem:[#allocation15 + $0xaf8] sm:$0xff]
        %v1988 = vld [vmem:[#allocation15 + $0xb00] sm:$0xff]
        %v1989 = vld [vmem:[#allocation15 + $0xb08] sm:$0xff]
        %v1990 = vld [vmem:[#allocation15 + $0xb10] sm:$0xff]
        %v1991 = vld [vmem:[#allocation15 + $0xb18] sm:$0xff]
        %v1992 = vld [vmem:[#allocation15 + $0xb20] sm:$0xff]
        %v1993 = vld [vmem:[#allocation15 + $0xb28] sm:$0xff]
        %v1994 = vld [vmem:[#allocation15 + $0xb30] sm:$0xff]
        %v1995 = vld [vmem:[#allocation15 + $0xb38] sm:$0xff]
        %v1996 = vld [vmem:[#allocation15 + $0xb40] sm:$0xff]
        %v1997 = vld [vmem:[#allocation15 + $0xb48] sm:$0xff]
        %v1998 = vld [vmem:[#allocation15 + $0xb50] sm:$0xff]
        %v1999 = vld [vmem:[#allocation15 + $0xb58] sm:$0xff]
        %v2000 = vld [vmem:[#allocation15 + $0xb60] sm:$0xff]
        %v2001 = vld [vmem:[#allocation15 + $0xb68] sm:$0xff]
        %v2002 = vld [vmem:[#allocation15 + $0xb70] sm:$0xff]
        %v2003 = vld [vmem:[#allocation15 + $0xb78] sm:$0xff]
        %v2004 = vld [vmem:[#allocation15 + $0xb80] sm:$0xff]
        %v2005 = vld [vmem:[#allocation15 + $0xb88] sm:$0xff]
        %v2006 = vld [vmem:[#allocation15 + $0xb90] sm:$0xff]
        %v2007 = vld [vmem:[#allocation15 + $0xb98] sm:$0xff]
        %v2008 = vld [vmem:[#allocation15 + $0xba0] sm:$0xff]
        %v2009 = vld [vmem:[#allocation15 + $0xba8] sm:$0xff]
        %v2010 = vld [vmem:[#allocation15 + $0xbb0] sm:$0xff]
        %v2011 = vld [vmem:[#allocation15 + $0xbb8] sm:$0xff]
        %v2012 = vld [vmem:[#allocation15 + $0xbc0] sm:$0xff]
        %v2013 = vld [vmem:[#allocation15 + $0xbc8] sm:$0xff]
        %v2014 = vld [vmem:[#allocation15 + $0xbd0] sm:$0xff]
        %v2015 = vld [vmem:[#allocation15 + $0xbd8] sm:$0xff]
        %v2016 = vld [vmem:[#allocation15 + $0xbe0] sm:$0xff]
        %v2017 = vld [vmem:[#allocation15 + $0xbe8] sm:$0xff]
        %v2018 = vld [vmem:[#allocation15 + $0xbf0] sm:$0xff]
        %v2019 = vld [vmem:[#allocation15 + $0xbf8] sm:$0xff]
        %v2020 = vld [vmem:[#allocation17] sm:$0xff]
        %v2022 = vlaneseq
        %v2023 = vshrl.u32 %v2022, 7
        %v2024 = vsub.s32 0, %v2023
        %v2025 = vrot.slane %v2020, %v2024
        %v2026 = vlaneseq
        %v2027 = vshrl.u32 %v2026, 7
        %v2028 = vsub.s32 1, %v2027
        %v2029 = vrot.slane %v2020, %v2028
        %v2030 = vlaneseq
        %v2031 = vshrl.u32 %v2030, 7
        %v2032 = vsub.s32 2, %v2031
        %v2033 = vrot.slane %v2020, %v2032
        %v2034 = vlaneseq
        %v2035 = vshrl.u32 %v2034, 7
        %v2036 = vsub.s32 3, %v2035
        %v2037 = vrot.slane %v2020, %v2036
        %v2038 = vlaneseq
        %v2039 = vshrl.u32 %v2038, 7
        %v2040 = vsub.s32 4, %v2039
        %v2041 = vrot.slane %v2020, %v2040
        %v2042 = vlaneseq
        %v2043 = vshrl.u32 %v2042, 7
        %v2044 = vsub.s32 5, %v2043
        %v2045 = vrot.slane %v2020, %v2044
        %v2046 = vlaneseq
        %v2047 = vshrl.u32 %v2046, 7
        %v2048 = vsub.s32 6, %v2047
        %v2049 = vrot.slane %v2020, %v2048
        %v2050 = vlaneseq
        %v2051 = vshrl.u32 %v2050, 7
        %v2052 = vsub.s32 7, %v2051
        %v2053 = vrot.slane %v2020, %v2052
        %2062 = vmatprep.subr.mxu0 %v1757
        %2063 = vmatpush1.msra.mxu0 %v1756
        %2064 = vmatprep.subr.mxu0 %v1749
        %2065 = vmatpush1.msra.mxu0 %v1748
        %2066 = vmatprep.subr.mxu0 %v1741
        %2067 = vmatpush1.msra.mxu0 %v1740
        %2068 = vmatprep.subr.mxu0 %v1733
        %2069 = vmatpush1.msra.mxu0 %v1732
        %2070 = vmatprep.subr.mxu0 %v1725
        %2071 = vmatpush1.msra.mxu0 %v1724
        %2072 = vmatprep.subr.mxu0 %v1717
        %2073 = vmatpush1.msra.mxu0 %v1716
        %2074 = vmatprep.subr.mxu0 %v1709
        %2075 = vmatpush1.msra.mxu0 %v1708
        %2076 = vmatprep.subr.mxu0 %v1701
        %2077 = vmatpush1.msra.mxu0 %v1700
        %2078 = vmatprep.subr.mxu0 %v1693
        %2079 = vmatpush1.msra.mxu0 %v1692
        %2080 = vmatprep.subr.mxu0 %v1685
        %2081 = vmatpush1.msra.mxu0 %v1684
        %2082 = vmatprep.subr.mxu0 %v1677
        %2083 = vmatpush1.msra.mxu0 %v1676
        %2084 = vmatprep.subr.mxu0 %v1669
        %2085 = vmatpush1.msra.mxu0 %v1668
        %2086 = vmatprep.subr.mxu0 %v1661
        %2087 = vmatpush1.msra.mxu0 %v1660
        %2088 = vmatprep.subr.mxu0 %v1653
        %2089 = vmatpush1.msra.mxu0 %v1652
        %2090 = vmatprep.subr.mxu0 %v1645
        %2091 = vmatpush1.msra.mxu0 %v1644
        %2092 = vmatprep.subr.mxu0 %v1637
        %2093 = vmatpush1.msra.mxu0 %v1636
        %2094 = vmatprep.subr.mxu0 %v1885
        %2095 = vmatpush2.msra.mxu0 %v1884
        %2096 = vmatprep.subr.mxu0 %v1877
        %2097 = vmatpush2.msra.mxu0 %v1876
        %2098 = vmatprep.subr.mxu0 %v1869
        %2099 = vmatpush2.msra.mxu0 %v1868
        %2100 = vmatprep.subr.mxu0 %v1861
        %2101 = vmatpush2.msra.mxu0 %v1860
        %2102 = vmatprep.subr.mxu0 %v1853
        %2103 = vmatpush2.msra.mxu0 %v1852
        %2104 = vmatprep.subr.mxu0 %v1845
        %2105 = vmatpush2.msra.mxu0 %v1844
        %2106 = vmatprep.subr.mxu0 %v1837
        %2107 = vmatpush2.msra.mxu0 %v1836
        %2108 = vmatprep.subr.mxu0 %v1829
        %2109 = vmatpush2.msra.mxu0 %v1828
        %2110 = vmatprep.subr.mxu0 %v1821
        %2111 = vmatpush2.msra.mxu0 %v1820
        %2112 = vmatprep.subr.mxu0 %v1813
        %2113 = vmatpush2.msra.mxu0 %v1812
        %2114 = vmatprep.subr.mxu0 %v1805
        %2115 = vmatpush2.msra.mxu0 %v1804
        %2116 = vmatprep.subr.mxu0 %v1797
        %2117 = vmatpush2.msra.mxu0 %v1796
        %2118 = vmatprep.subr.mxu0 %v1789
        %2119 = vmatpush2.msra.mxu0 %v1788
        %2120 = vmatprep.subr.mxu0 %v1781
        %2121 = vmatpush2.msra.mxu0 %v1780
        %2122 = vmatprep.subr.mxu0 %v1773
        %2123 = vmatpush2.msra.mxu0 %v1772
        %2124 = vmatprep.subr.mxu0 %v1765
        %2125 = vmatpush2.msra.mxu0 %v1764
        %2126 = vmatprep.mubr.f32.mxu0 %v632
        %2127 = vmatmul.mubr.f32.gmra.mxu0 %v631
        %v2128 = vpop.f32.mrf.mxu0
        %v2129 = vadd.f32 %v2025, %v2128
        %v2130 = vpop.f32.mrf.mxu0
        %v2131 = vadd.f32 %v2029, %v2130
        %2132 = vdwg.mxu0
        %2133 = vmatprep.subr.mxu0 %v2013
        %2134 = vmatpush1.msra.mxu0 %v2012
        %2135 = vmatprep.subr.mxu0 %v2005
        %2136 = vmatpush1.msra.mxu0 %v2004
        %2137 = vmatprep.subr.mxu0 %v1997
        %2138 = vmatpush1.msra.mxu0 %v1996
        %2139 = vmatprep.subr.mxu0 %v1989
        %2140 = vmatpush1.msra.mxu0 %v1988
        %2141 = vmatprep.subr.mxu0 %v1981
        %2142 = vmatpush1.msra.mxu0 %v1980
        %2143 = vmatprep.subr.mxu0 %v1973
        %2144 = vmatpush1.msra.mxu0 %v1972
        %2145 = vmatprep.subr.mxu0 %v1965
        %2146 = vmatpush1.msra.mxu0 %v1964
        %2147 = vmatprep.subr.mxu0 %v1957
        %2148 = vmatpush1.msra.mxu0 %v1956
        %2149 = vmatprep.subr.mxu0 %v1949
        %2150 = vmatpush1.msra.mxu0 %v1948
        %2151 = vmatprep.subr.mxu0 %v1941
        %2152 = vmatpush1.msra.mxu0 %v1940
        %2153 = vmatprep.subr.mxu0 %v1933
        %2154 = vmatpush1.msra.mxu0 %v1932
        %2155 = vmatprep.subr.mxu0 %v1925
        %2156 = vmatpush1.msra.mxu0 %v1924
        %2157 = vmatprep.subr.mxu0 %v1917
        %2158 = vmatpush1.msra.mxu0 %v1916
        %2159 = vmatprep.subr.mxu0 %v1909
        %2160 = vmatpush1.msra.mxu0 %v1908
        %2161 = vmatprep.subr.mxu0 %v1901
        %2162 = vmatpush1.msra.mxu0 %v1900
        %2163 = vmatprep.subr.mxu0 %v1893
        %2164 = vmatpush1.msra.mxu0 %v1892
        %2165 = vmatprep.subr.mxu0 0.0
        %2166 = vmatpush2.msra.mxu0 0.0
        %2167 = vmatprep.subr.mxu0 0.0
        %2168 = vmatpush2.msra.mxu0 0.0
        %2169 = vmatprep.subr.mxu0 0.0
        %2170 = vmatpush2.msra.mxu0 0.0
        %2171 = vmatprep.subr.mxu0 0.0
        %2172 = vmatpush2.msra.mxu0 0.0
        %2173 = vmatprep.subr.mxu0 0.0
        %2174 = vmatpush2.msra.mxu0 0.0
        %2175 = vmatprep.subr.mxu0 0.0
        %2176 = vmatpush2.msra.mxu0 0.0
        %2177 = vmatprep.subr.mxu0 0.0
        %2178 = vmatpush2.msra.mxu0 0.0
        %2179 = vmatprep.subr.mxu0 0.0
        %2180 = vmatpush2.msra.mxu0 0.0
        %2181 = vmatprep.subr.mxu0 0.0
        %2182 = vmatpush2.msra.mxu0 0.0
        %2183 = vmatprep.subr.mxu0 0.0
        %2184 = vmatpush2.msra.mxu0 0.0
        %2185 = vmatprep.subr.mxu0 0.0
        %2186 = vmatpush2.msra.mxu0 0.0
        %2187 = vmatprep.subr.mxu0 0.0
        %2188 = vmatpush2.msra.mxu0 0.0
        %2189 = vmatprep.subr.mxu0 0.0
        %2190 = vmatpush2.msra.mxu0 0.0
        %2191 = vmatprep.subr.mxu0 0.0
        %2192 = vmatpush2.msra.mxu0 0.0
        %2193 = vmatprep.subr.mxu0 0.0
        %2194 = vmatpush2.msra.mxu0 0.0
        %2195 = vmatprep.subr.mxu0 0.0
        %2196 = vmatpush2.msra.mxu0 0.0
        %2197 = vmatprep.mubr.f32.mxu0 0.0
        %2198 = vmatmul.mubr.f32.gmra.mxu0 %v633
        %v2199 = vpop.f32.mrf.mxu0
        %v2200 = vadd.f32 %v2129, %v2199
        %v2201 = vpop.f32.mrf.mxu0
        %v2202 = vadd.f32 %v2131, %v2201
        %2203 = vdwg.mxu0
        %2204 = vmatprep.subr.mxu0 %v1759
        %2205 = vmatpush1.msra.mxu0 %v1758
        %2206 = vmatprep.subr.mxu0 %v1751
        %2207 = vmatpush1.msra.mxu0 %v1750
        %2208 = vmatprep.subr.mxu0 %v1743
        %2209 = vmatpush1.msra.mxu0 %v1742
        %2210 = vmatprep.subr.mxu0 %v1735
        %2211 = vmatpush1.msra.mxu0 %v1734
        %2212 = vmatprep.subr.mxu0 %v1727
        %2213 = vmatpush1.msra.mxu0 %v1726
        %2214 = vmatprep.subr.mxu0 %v1719
        %2215 = vmatpush1.msra.mxu0 %v1718
        %2216 = vmatprep.subr.mxu0 %v1711
        %2217 = vmatpush1.msra.mxu0 %v1710
        %2218 = vmatprep.subr.mxu0 %v1703
        %2219 = vmatpush1.msra.mxu0 %v1702
        %2220 = vmatprep.subr.mxu0 %v1695
        %2221 = vmatpush1.msra.mxu0 %v1694
        %2222 = vmatprep.subr.mxu0 %v1687
        %2223 = vmatpush1.msra.mxu0 %v1686
        %2224 = vmatprep.subr.mxu0 %v1679
        %2225 = vmatpush1.msra.mxu0 %v1678
        %2226 = vmatprep.subr.mxu0 %v1671
        %2227 = vmatpush1.msra.mxu0 %v1670
        %2228 = vmatprep.subr.mxu0 %v1663
        %2229 = vmatpush1.msra.mxu0 %v1662
        %2230 = vmatprep.subr.mxu0 %v1655
        %2231 = vmatpush1.msra.mxu0 %v1654
        %2232 = vmatprep.subr.mxu0 %v1647
        %2233 = vmatpush1.msra.mxu0 %v1646
        %2234 = vmatprep.subr.mxu0 %v1639
        %2235 = vmatpush1.msra.mxu0 %v1638
        %2236 = vmatprep.subr.mxu0 %v1887
        %2237 = vmatpush2.msra.mxu0 %v1886
        %2238 = vmatprep.subr.mxu0 %v1879
        %2239 = vmatpush2.msra.mxu0 %v1878
        %2240 = vmatprep.subr.mxu0 %v1871
        %2241 = vmatpush2.msra.mxu0 %v1870
        %2242 = vmatprep.subr.mxu0 %v1863
        %2243 = vmatpush2.msra.mxu0 %v1862
        %2244 = vmatprep.subr.mxu0 %v1855
        %2245 = vmatpush2.msra.mxu0 %v1854
        %2246 = vmatprep.subr.mxu0 %v1847
        %2247 = vmatpush2.msra.mxu0 %v1846
        %2248 = vmatprep.subr.mxu0 %v1839
        %2249 = vmatpush2.msra.mxu0 %v1838
        %2250 = vmatprep.subr.mxu0 %v1831
        %2251 = vmatpush2.msra.mxu0 %v1830
        %2252 = vmatprep.subr.mxu0 %v1823
        %2253 = vmatpush2.msra.mxu0 %v1822
        %2254 = vmatprep.subr.mxu0 %v1815
        %2255 = vmatpush2.msra.mxu0 %v1814
        %2256 = vmatprep.subr.mxu0 %v1807
        %2257 = vmatpush2.msra.mxu0 %v1806
        %2258 = vmatprep.subr.mxu0 %v1799
        %2259 = vmatpush2.msra.mxu0 %v1798
        %2260 = vmatprep.subr.mxu0 %v1791
        %2261 = vmatpush2.msra.mxu0 %v1790
        %2262 = vmatprep.subr.mxu0 %v1783
        %2263 = vmatpush2.msra.mxu0 %v1782
        %2264 = vmatprep.subr.mxu0 %v1775
        %2265 = vmatpush2.msra.mxu0 %v1774
        %2266 = vmatprep.subr.mxu0 %v1767
        %2267 = vmatpush2.msra.mxu0 %v1766
        %2268 = vmatprep.mubr.f32.mxu0 %v632
        %2269 = vmatmul.mubr.f32.gmra.mxu0 %v631
        %v2270 = vpop.f32.mrf.mxu0
        %v2271 = vadd.f32 %v2033, %v2270
        %v2272 = vpop.f32.mrf.mxu0
        %v2273 = vadd.f32 %v2037, %v2272
        %2274 = vdwg.mxu0
        %2275 = vmatprep.subr.mxu0 %v2015
        %2276 = vmatpush1.msra.mxu0 %v2014
        %2277 = vmatprep.subr.mxu0 %v2007
        %2278 = vmatpush1.msra.mxu0 %v2006
        %2279 = vmatprep.subr.mxu0 %v1999
        %2280 = vmatpush1.msra.mxu0 %v1998
        %2281 = vmatprep.subr.mxu0 %v1991
        %2282 = vmatpush1.msra.mxu0 %v1990
        %2283 = vmatprep.subr.mxu0 %v1983
        %2284 = vmatpush1.msra.mxu0 %v1982
        %2285 = vmatprep.subr.mxu0 %v1975
        %2286 = vmatpush1.msra.mxu0 %v1974
        %2287 = vmatprep.subr.mxu0 %v1967
        %2288 = vmatpush1.msra.mxu0 %v1966
        %2289 = vmatprep.subr.mxu0 %v1959
        %2290 = vmatpush1.msra.mxu0 %v1958
        %2291 = vmatprep.subr.mxu0 %v1951
        %2292 = vmatpush1.msra.mxu0 %v1950
        %2293 = vmatprep.subr.mxu0 %v1943
        %2294 = vmatpush1.msra.mxu0 %v1942
        %2295 = vmatprep.subr.mxu0 %v1935
        %2296 = vmatpush1.msra.mxu0 %v1934
        %2297 = vmatprep.subr.mxu0 %v1927
        %2298 = vmatpush1.msra.mxu0 %v1926
        %2299 = vmatprep.subr.mxu0 %v1919
        %2300 = vmatpush1.msra.mxu0 %v1918
        %2301 = vmatprep.subr.mxu0 %v1911
        %2302 = vmatpush1.msra.mxu0 %v1910
        %2303 = vmatprep.subr.mxu0 %v1903
        %2304 = vmatpush1.msra.mxu0 %v1902
        %2305 = vmatprep.subr.mxu0 %v1895
        %2306 = vmatpush1.msra.mxu0 %v1894
        %2307 = vmatprep.subr.mxu0 0.0
        %2308 = vmatpush2.msra.mxu0 0.0
        %2309 = vmatprep.subr.mxu0 0.0
        %2310 = vmatpush2.msra.mxu0 0.0
        %2311 = vmatprep.subr.mxu0 0.0
        %2312 = vmatpush2.msra.mxu0 0.0
        %2313 = vmatprep.subr.mxu0 0.0
        %2314 = vmatpush2.msra.mxu0 0.0
        %2315 = vmatprep.subr.mxu0 0.0
        %2316 = vmatpush2.msra.mxu0 0.0
        %2317 = vmatprep.subr.mxu0 0.0
        %2318 = vmatpush2.msra.mxu0 0.0
        %2319 = vmatprep.subr.mxu0 0.0
        %2320 = vmatpush2.msra.mxu0 0.0
        %2321 = vmatprep.subr.mxu0 0.0
        %2322 = vmatpush2.msra.mxu0 0.0
        %2323 = vmatprep.subr.mxu0 0.0
        %2324 = vmatpush2.msra.mxu0 0.0
        %2325 = vmatprep.subr.mxu0 0.0
        %2326 = vmatpush2.msra.mxu0 0.0
        %2327 = vmatprep.subr.mxu0 0.0
        %2328 = vmatpush2.msra.mxu0 0.0
        %2329 = vmatprep.subr.mxu0 0.0
        %2330 = vmatpush2.msra.mxu0 0.0
        %2331 = vmatprep.subr.mxu0 0.0
        %2332 = vmatpush2.msra.mxu0 0.0
        %2333 = vmatprep.subr.mxu0 0.0
        %2334 = vmatpush2.msra.mxu0 0.0
        %2335 = vmatprep.subr.mxu0 0.0
        %2336 = vmatpush2.msra.mxu0 0.0
        %2337 = vmatprep.subr.mxu0 0.0
        %2338 = vmatpush2.msra.mxu0 0.0
        %2339 = vmatprep.mubr.f32.mxu0 0.0
        %2340 = vmatmul.mubr.f32.gmra.mxu0 %v633
        %v2341 = vpop.f32.mrf.mxu0
        %v2342 = vadd.f32 %v2271, %v2341
        %v2343 = vpop.f32.mrf.mxu0
        %v2344 = vadd.f32 %v2273, %v2343
        %2345 = vdwg.mxu0
        %2346 = vmatprep.subr.mxu0 %v1761
        %2347 = vmatpush1.msra.mxu0 %v1760
        %2348 = vmatprep.subr.mxu0 %v1753
        %2349 = vmatpush1.msra.mxu0 %v1752
        %2350 = vmatprep.subr.mxu0 %v1745
        %2351 = vmatpush1.msra.mxu0 %v1744
        %2352 = vmatprep.subr.mxu0 %v1737
        %2353 = vmatpush1.msra.mxu0 %v1736
        %2354 = vmatprep.subr.mxu0 %v1729
        %2355 = vmatpush1.msra.mxu0 %v1728
        %2356 = vmatprep.subr.mxu0 %v1721
        %2357 = vmatpush1.msra.mxu0 %v1720
        %2358 = vmatprep.subr.mxu0 %v1713
        %2359 = vmatpush1.msra.mxu0 %v1712
        %2360 = vmatprep.subr.mxu0 %v1705
        %2361 = vmatpush1.msra.mxu0 %v1704
        %2362 = vmatprep.subr.mxu0 %v1697
        %2363 = vmatpush1.msra.mxu0 %v1696
        %2364 = vmatprep.subr.mxu0 %v1689
        %2365 = vmatpush1.msra.mxu0 %v1688
        %2366 = vmatprep.subr.mxu0 %v1681
        %2367 = vmatpush1.msra.mxu0 %v1680
        %2368 = vmatprep.subr.mxu0 %v1673
        %2369 = vmatpush1.msra.mxu0 %v1672
        %2370 = vmatprep.subr.mxu0 %v1665
        %2371 = vmatpush1.msra.mxu0 %v1664
        %2372 = vmatprep.subr.mxu0 %v1657
        %2373 = vmatpush1.msra.mxu0 %v1656
        %2374 = vmatprep.subr.mxu0 %v1649
        %2375 = vmatpush1.msra.mxu0 %v1648
        %2376 = vmatprep.subr.mxu0 %v1641
        %2377 = vmatpush1.msra.mxu0 %v1640
        %2378 = vmatprep.subr.mxu0 %v1889
        %2379 = vmatpush2.msra.mxu0 %v1888
        %2380 = vmatprep.subr.mxu0 %v1881
        %2381 = vmatpush2.msra.mxu0 %v1880
        %2382 = vmatprep.subr.mxu0 %v1873
        %2383 = vmatpush2.msra.mxu0 %v1872
        %2384 = vmatprep.subr.mxu0 %v1865
        %2385 = vmatpush2.msra.mxu0 %v1864
        %2386 = vmatprep.subr.mxu0 %v1857
        %2387 = vmatpush2.msra.mxu0 %v1856
        %2388 = vmatprep.subr.mxu0 %v1849
        %2389 = vmatpush2.msra.mxu0 %v1848
        %2390 = vmatprep.subr.mxu0 %v1841
        %2391 = vmatpush2.msra.mxu0 %v1840
        %2392 = vmatprep.subr.mxu0 %v1833
        %2393 = vmatpush2.msra.mxu0 %v1832
        %2394 = vmatprep.subr.mxu0 %v1825
        %2395 = vmatpush2.msra.mxu0 %v1824
        %2396 = vmatprep.subr.mxu0 %v1817
        %2397 = vmatpush2.msra.mxu0 %v1816
        %2398 = vmatprep.subr.mxu0 %v1809
        %2399 = vmatpush2.msra.mxu0 %v1808
        %2400 = vmatprep.subr.mxu0 %v1801
        %2401 = vmatpush2.msra.mxu0 %v1800
        %2402 = vmatprep.subr.mxu0 %v1793
        %2403 = vmatpush2.msra.mxu0 %v1792
        %2404 = vmatprep.subr.mxu0 %v1785
        %2405 = vmatpush2.msra.mxu0 %v1784
        %2406 = vmatprep.subr.mxu0 %v1777
        %2407 = vmatpush2.msra.mxu0 %v1776
        %2408 = vmatprep.subr.mxu0 %v1769
        %2409 = vmatpush2.msra.mxu0 %v1768
        %2410 = vmatprep.mubr.f32.mxu0 %v632
        %2411 = vmatmul.mubr.f32.gmra.mxu0 %v631
        %v2412 = vpop.f32.mrf.mxu0
        %v2413 = vadd.f32 %v2041, %v2412
        %v2414 = vpop.f32.mrf.mxu0
        %v2415 = vadd.f32 %v2045, %v2414
        %2416 = vdwg.mxu0
        %2417 = vmatprep.subr.mxu0 %v2017
        %2418 = vmatpush1.msra.mxu0 %v2016
        %2419 = vmatprep.subr.mxu0 %v2009
        %2420 = vmatpush1.msra.mxu0 %v2008
        %2421 = vmatprep.subr.mxu0 %v2001
        %2422 = vmatpush1.msra.mxu0 %v2000
        %2423 = vmatprep.subr.mxu0 %v1993
        %2424 = vmatpush1.msra.mxu0 %v1992
        %2425 = vmatprep.subr.mxu0 %v1985
        %2426 = vmatpush1.msra.mxu0 %v1984
        %2427 = vmatprep.subr.mxu0 %v1977
        %2428 = vmatpush1.msra.mxu0 %v1976
        %2429 = vmatprep.subr.mxu0 %v1969
        %2430 = vmatpush1.msra.mxu0 %v1968
        %2431 = vmatprep.subr.mxu0 %v1961
        %2432 = vmatpush1.msra.mxu0 %v1960
        %2433 = vmatprep.subr.mxu0 %v1953
        %2434 = vmatpush1.msra.mxu0 %v1952
        %2435 = vmatprep.subr.mxu0 %v1945
        %2436 = vmatpush1.msra.mxu0 %v1944
        %2437 = vmatprep.subr.mxu0 %v1937
        %2438 = vmatpush1.msra.mxu0 %v1936
        %2439 = vmatprep.subr.mxu0 %v1929
        %2440 = vmatpush1.msra.mxu0 %v1928
        %2441 = vmatprep.subr.mxu0 %v1921
        %2442 = vmatpush1.msra.mxu0 %v1920
        %2443 = vmatprep.subr.mxu0 %v1913
        %2444 = vmatpush1.msra.mxu0 %v1912
        %2445 = vmatprep.subr.mxu0 %v1905
        %2446 = vmatpush1.msra.mxu0 %v1904
        %2447 = vmatprep.subr.mxu0 %v1897
        %2448 = vmatpush1.msra.mxu0 %v1896
        %2449 = vmatprep.subr.mxu0 0.0
        %2450 = vmatpush2.msra.mxu0 0.0
        %2451 = vmatprep.subr.mxu0 0.0
        %2452 = vmatpush2.msra.mxu0 0.0
        %2453 = vmatprep.subr.mxu0 0.0
        %2454 = vmatpush2.msra.mxu0 0.0
        %2455 = vmatprep.subr.mxu0 0.0
        %2456 = vmatpush2.msra.mxu0 0.0
        %2457 = vmatprep.subr.mxu0 0.0
        %2458 = vmatpush2.msra.mxu0 0.0
        %2459 = vmatprep.subr.mxu0 0.0
        %2460 = vmatpush2.msra.mxu0 0.0
        %2461 = vmatprep.subr.mxu0 0.0
        %2462 = vmatpush2.msra.mxu0 0.0
        %2463 = vmatprep.subr.mxu0 0.0
        %2464 = vmatpush2.msra.mxu0 0.0
        %2465 = vmatprep.subr.mxu0 0.0
        %2466 = vmatpush2.msra.mxu0 0.0
        %2467 = vmatprep.subr.mxu0 0.0
        %2468 = vmatpush2.msra.mxu0 0.0
        %2469 = vmatprep.subr.mxu0 0.0
        %2470 = vmatpush2.msra.mxu0 0.0
        %2471 = vmatprep.subr.mxu0 0.0
        %2472 = vmatpush2.msra.mxu0 0.0
        %2473 = vmatprep.subr.mxu0 0.0
        %2474 = vmatpush2.msra.mxu0 0.0
        %2475 = vmatprep.subr.mxu0 0.0
        %2476 = vmatpush2.msra.mxu0 0.0
        %2477 = vmatprep.subr.mxu0 0.0
        %2478 = vmatpush2.msra.mxu0 0.0
        %2479 = vmatprep.subr.mxu0 0.0
        %2480 = vmatpush2.msra.mxu0 0.0
        %2481 = vmatprep.mubr.f32.mxu0 0.0
        %2482 = vmatmul.mubr.f32.gmra.mxu0 %v633
        %v2483 = vpop.f32.mrf.mxu0
        %v2484 = vadd.f32 %v2413, %v2483
        %v2485 = vpop.f32.mrf.mxu0
        %v2486 = vadd.f32 %v2415, %v2485
        %2487 = vdwg.mxu0
        %2488 = vmatprep.subr.mxu0 %v1763
        %2489 = vmatpush1.msra.mxu0 %v1762
        %2490 = vmatprep.subr.mxu0 %v1755
        %2491 = vmatpush1.msra.mxu0 %v1754
        %2492 = vmatprep.subr.mxu0 %v1747
        %2493 = vmatpush1.msra.mxu0 %v1746
        %2494 = vmatprep.subr.mxu0 %v1739
        %2495 = vmatpush1.msra.mxu0 %v1738
        %2496 = vmatprep.subr.mxu0 %v1731
        %2497 = vmatpush1.msra.mxu0 %v1730
        %2498 = vmatprep.subr.mxu0 %v1723
        %2499 = vmatpush1.msra.mxu0 %v1722
        %2500 = vmatprep.subr.mxu0 %v1715
        %2501 = vmatpush1.msra.mxu0 %v1714
        %2502 = vmatprep.subr.mxu0 %v1707
        %2503 = vmatpush1.msra.mxu0 %v1706
        %2504 = vmatprep.subr.mxu0 %v1699
        %2505 = vmatpush1.msra.mxu0 %v1698
        %2506 = vmatprep.subr.mxu0 %v1691
        %2507 = vmatpush1.msra.mxu0 %v1690
        %2508 = vmatprep.subr.mxu0 %v1683
        %2509 = vmatpush1.msra.mxu0 %v1682
        %2510 = vmatprep.subr.mxu0 %v1675
        %2511 = vmatpush1.msra.mxu0 %v1674
        %2512 = vmatprep.subr.mxu0 %v1667
        %2513 = vmatpush1.msra.mxu0 %v1666
        %2514 = vmatprep.subr.mxu0 %v1659
        %2515 = vmatpush1.msra.mxu0 %v1658
        %2516 = vmatprep.subr.mxu0 %v1651
        %2517 = vmatpush1.msra.mxu0 %v1650
        %2518 = vmatprep.subr.mxu0 %v1643
        %2519 = vmatpush1.msra.mxu0 %v1642
        %2520 = vmatprep.subr.mxu0 %v1891
        %2521 = vmatpush2.msra.mxu0 %v1890
        %2522 = vmatprep.subr.mxu0 %v1883
        %2523 = vmatpush2.msra.mxu0 %v1882
        %2524 = vmatprep.subr.mxu0 %v1875
        %2525 = vmatpush2.msra.mxu0 %v1874
        %2526 = vmatprep.subr.mxu0 %v1867
        %2527 = vmatpush2.msra.mxu0 %v1866
        %2528 = vmatprep.subr.mxu0 %v1859
        %2529 = vmatpush2.msra.mxu0 %v1858
        %2530 = vmatprep.subr.mxu0 %v1851
        %2531 = vmatpush2.msra.mxu0 %v1850
        %2532 = vmatprep.subr.mxu0 %v1843
        %2533 = vmatpush2.msra.mxu0 %v1842
        %2534 = vmatprep.subr.mxu0 %v1835
        %2535 = vmatpush2.msra.mxu0 %v1834
        %2536 = vmatprep.subr.mxu0 %v1827
        %2537 = vmatpush2.msra.mxu0 %v1826
        %2538 = vmatprep.subr.mxu0 %v1819
        %2539 = vmatpush2.msra.mxu0 %v1818
        %2540 = vmatprep.subr.mxu0 %v1811
        %2541 = vmatpush2.msra.mxu0 %v1810
        %2542 = vmatprep.subr.mxu0 %v1803
        %2543 = vmatpush2.msra.mxu0 %v1802
        %2544 = vmatprep.subr.mxu0 %v1795
        %2545 = vmatpush2.msra.mxu0 %v1794
        %2546 = vmatprep.subr.mxu0 %v1787
        %2547 = vmatpush2.msra.mxu0 %v1786
        %2548 = vmatprep.subr.mxu0 %v1779
        %2549 = vmatpush2.msra.mxu0 %v1778
        %2550 = vmatprep.subr.mxu0 %v1771
        %2551 = vmatpush2.msra.mxu0 %v1770
        %2552 = vmatprep.mubr.f32.mxu0 %v632
        %2553 = vmatmul.mubr.f32.gmra.mxu0 %v631
        %v2554 = vpop.f32.mrf.mxu0
        %v2555 = vadd.f32 %v2049, %v2554
        %v2556 = vpop.f32.mrf.mxu0
        %v2557 = vadd.f32 %v2053, %v2556
        %2558 = vdwg.mxu0
        %2559 = vmatprep.subr.mxu0 %v2019
        %2560 = vmatpush1.msra.mxu0 %v2018
        %2561 = vmatprep.subr.mxu0 %v2011
        %2562 = vmatpush1.msra.mxu0 %v2010
        %2563 = vmatprep.subr.mxu0 %v2003
        %2564 = vmatpush1.msra.mxu0 %v2002
        %2565 = vmatprep.subr.mxu0 %v1995
        %2566 = vmatpush1.msra.mxu0 %v1994
        %2567 = vmatprep.subr.mxu0 %v1987
        %2568 = vmatpush1.msra.mxu0 %v1986
        %2569 = vmatprep.subr.mxu0 %v1979
        %2570 = vmatpush1.msra.mxu0 %v1978
        %2571 = vmatprep.subr.mxu0 %v1971
        %2572 = vmatpush1.msra.mxu0 %v1970
        %2573 = vmatprep.subr.mxu0 %v1963
        %2574 = vmatpush1.msra.mxu0 %v1962
        %2575 = vmatprep.subr.mxu0 %v1955
        %2576 = vmatpush1.msra.mxu0 %v1954
        %2577 = vmatprep.subr.mxu0 %v1947
        %2578 = vmatpush1.msra.mxu0 %v1946
        %2579 = vmatprep.subr.mxu0 %v1939
        %2580 = vmatpush1.msra.mxu0 %v1938
        %2581 = vmatprep.subr.mxu0 %v1931
        %2582 = vmatpush1.msra.mxu0 %v1930
        %2583 = vmatprep.subr.mxu0 %v1923
        %2584 = vmatpush1.msra.mxu0 %v1922
        %2585 = vmatprep.subr.mxu0 %v1915
        %2586 = vmatpush1.msra.mxu0 %v1914
        %2587 = vmatprep.subr.mxu0 %v1907
        %2588 = vmatpush1.msra.mxu0 %v1906
        %2589 = vmatprep.subr.mxu0 %v1899
        %2590 = vmatpush1.msra.mxu0 %v1898
        %2591 = vmatprep.subr.mxu0 0.0
        %2592 = vmatpush2.msra.mxu0 0.0
        %2593 = vmatprep.subr.mxu0 0.0
        %2594 = vmatpush2.msra.mxu0 0.0
        %2595 = vmatprep.subr.mxu0 0.0
        %2596 = vmatpush2.msra.mxu0 0.0
        %2597 = vmatprep.subr.mxu0 0.0
        %2598 = vmatpush2.msra.mxu0 0.0
        %2599 = vmatprep.subr.mxu0 0.0
        %2600 = vmatpush2.msra.mxu0 0.0
        %2601 = vmatprep.subr.mxu0 0.0
        %2602 = vmatpush2.msra.mxu0 0.0
        %2603 = vmatprep.subr.mxu0 0.0
        %2604 = vmatpush2.msra.mxu0 0.0
        %2605 = vmatprep.subr.mxu0 0.0
        %2606 = vmatpush2.msra.mxu0 0.0
        %2607 = vmatprep.subr.mxu0 0.0
        %2608 = vmatpush2.msra.mxu0 0.0
        %2609 = vmatprep.subr.mxu0 0.0
        %2610 = vmatpush2.msra.mxu0 0.0
        %2611 = vmatprep.subr.mxu0 0.0
        %2612 = vmatpush2.msra.mxu0 0.0
        %2613 = vmatprep.subr.mxu0 0.0
        %2614 = vmatpush2.msra.mxu0 0.0
        %2615 = vmatprep.subr.mxu0 0.0
        %2616 = vmatpush2.msra.mxu0 0.0
        %2617 = vmatprep.subr.mxu0 0.0
        %2618 = vmatpush2.msra.mxu0 0.0
        %2619 = vmatprep.subr.mxu0 0.0
        %2620 = vmatpush2.msra.mxu0 0.0
        %2621 = vmatprep.subr.mxu0 0.0
        %2622 = vmatpush2.msra.mxu0 0.0
        %2623 = vmatprep.mubr.f32.mxu0 0.0
        %2624 = vmatmul.mubr.f32.gmra.mxu0 %v633
        %v2625 = vpop.f32.mrf.mxu0
        %v2626 = vadd.f32 %v2555, %v2625
        %v2627 = vpop.f32.mrf.mxu0
        %v2628 = vadd.f32 %v2557, %v2627
        %2629 = vdwg.mxu0
        %2630 = vst [vmem:[#allocation2 + $0x40] sm:$0xff] %v2200
        %2631 = vst [vmem:[#allocation2 + $0x48] sm:$0xff] %v2202
        %2632 = vst [vmem:[#allocation2 + $0x50] sm:$0xff] %v2342
        %2633 = vst [vmem:[#allocation2 + $0x58] sm:$0xff] %v2344
        %2634 = vst [vmem:[#allocation2 + $0x60] sm:$0xff] %v2484
        %2635 = vst [vmem:[#allocation2 + $0x68] sm:$0xff] %v2486
        %2636 = vst [vmem:[#allocation2 + $0x70] sm:$0xff] %v2626
        %2637 = vst [vmem:[#allocation2 + $0x78] sm:$0xff] %v2628
        %v2638 = vld [vmem:[#allocation2] sm:$0xff]
        %v2639 = vld [vmem:[#allocation2 + $0x8] sm:$0xff]
        %v2640 = vld [vmem:[#allocation2 + $0x10] sm:$0xff]
        %v2641 = vld [vmem:[#allocation2 + $0x18] sm:$0xff]
        %v2642 = vld [vmem:[#allocation2 + $0x20] sm:$0xff]
        %v2643 = vld [vmem:[#allocation2 + $0x28] sm:$0xff]
        %v2644 = vld [vmem:[#allocation2 + $0x30] sm:$0xff]
        %v2645 = vld [vmem:[#allocation2 + $0x38] sm:$0xff]
        %v2646 = vld [vmem:[#allocation2 + $0x40] sm:$0xff]
        %v2647 = vld [vmem:[#allocation2 + $0x48] sm:$0xff]
        %v2648 = vld [vmem:[#allocation2 + $0x50] sm:$0xff]
        %v2649 = vld [vmem:[#allocation2 + $0x58] sm:$0xff]
        %v2650 = vld [vmem:[#allocation2 + $0x60] sm:$0xff]
        %v2651 = vld [vmem:[#allocation2 + $0x68] sm:$0xff]
        %v2652 = vld [vmem:[#allocation2 + $0x70] sm:$0xff]
        %v2653 = vld [vmem:[#allocation2 + $0x78] sm:$0xff]
        %v2654 = vand.u32 2147483647, %v2638
        %v2655 = vand.u32 2147483647, %v2639
        %v2656 = vand.u32 2147483647, %v2640
        %v2657 = vand.u32 2147483647, %v2641
        %v2658 = vand.u32 2147483647, %v2646
        %v2659 = vand.u32 2147483647, %v2647
        %v2660 = vand.u32 2147483647, %v2648
        %v2661 = vand.u32 2147483647, %v2649
        %v2662 = vmul.f32 %v2638, 0.5
        %v2663 = vmul.f32 %v2639, 0.5
        %v2664 = vmul.f32 %v2640, 0.5
        %v2665 = vmul.f32 %v2641, 0.5
        %v2666 = vmul.f32 %v2646, 0.5
        %v2667 = vmul.f32 %v2647, 0.5
        %v2668 = vmul.f32 %v2648, 0.5
        %v2669 = vmul.f32 %v2649, 0.5
        %v2670 = vmul.f32 %v2654, 0.5
        %v2671 = vmul.f32 %v2655, 0.5
        %v2672 = vmul.f32 %v2656, 0.5
        %v2673 = vmul.f32 %v2657, 0.5
        %v2674 = vmul.f32 %v2658, 0.5
        %v2675 = vmul.f32 %v2659, 0.5
        %v2676 = vmul.f32 %v2660, 0.5
        %v2677 = vmul.f32 %v2661, 0.5
        %v2678 = vmul.f32 %v2654, 0.70710677
        %v2679 = vmul.f32 %v2655, 0.70710677
        %v2680 = vmul.f32 %v2656, 0.70710677
        %v2681 = vmul.f32 %v2657, 0.70710677
        %v2682 = vmul.f32 %v2658, 0.70710677
        %v2683 = vmul.f32 %v2659, 0.70710677
        %v2684 = vmul.f32 %v2660, 0.70710677
        %v2685 = vmul.f32 %v2661, 0.70710677
        %v2686 = vmul.f32 %v2678, 0.47047
        %v2687 = vmul.f32 %v2679, 0.47047
        %v2688 = vmul.f32 %v2680, 0.47047
        %v2689 = vmul.f32 %v2681, 0.47047
        %v2690 = vmul.f32 %v2682, 0.47047
        %v2691 = vmul.f32 %v2683, 0.47047
        %v2692 = vmul.f32 %v2684, 0.47047
        %v2693 = vmul.f32 %v2685, 0.47047
        %v2694 = vadd.f32 %v2686, 1.0
        %v2695 = vadd.f32 %v2687, 1.0
        %v2696 = vadd.f32 %v2688, 1.0
        %v2697 = vadd.f32 %v2689, 1.0
        %v2698 = vadd.f32 %v2690, 1.0
        %v2699 = vadd.f32 %v2691, 1.0
        %v2700 = vadd.f32 %v2692, 1.0
        %v2701 = vadd.f32 %v2693, 1.0
        %v2702 = vrcp.pop %v2694
        %v2703 = vrcp.pop %v2695
        %v2704 = vrcp.pop %v2696
        %v2705 = vrcp.pop %v2697
        %v2706 = vrcp.pop %v2698
        %v2707 = vrcp.pop %v2699
        %v2708 = vrcp.pop %v2700
        %v2709 = vrcp.pop %v2701
        %v2710 = vmul.f32 %v2694, %v2702
        %v2711 = vmul.f32 %v2695, %v2703
        %v2712 = vmul.f32 %v2696, %v2704
        %v2713 = vmul.f32 %v2697, %v2705
        %v2714 = vmul.f32 %v2698, %v2706
        %v2715 = vmul.f32 %v2699, %v2707
        %v2716 = vmul.f32 %v2700, %v2708
        %v2717 = vmul.f32 %v2701, %v2709
        %v2718 = vsub.f32 2.0, %v2710
        %v2719 = vsub.f32 2.0, %v2711
        %v2720 = vsub.f32 2.0, %v2712
        %v2721 = vsub.f32 2.0, %v2713
        %v2722 = vsub.f32 2.0, %v2714
        %v2723 = vsub.f32 2.0, %v2715
        %v2724 = vsub.f32 2.0, %v2716
        %v2725 = vsub.f32 2.0, %v2717
        %v2726 = vmul.f32 %v2702, %v2718
        %v2727 = vmul.f32 %v2703, %v2719
        %v2728 = vmul.f32 %v2704, %v2720
        %v2729 = vmul.f32 %v2705, %v2721
        %v2730 = vmul.f32 %v2706, %v2722
        %v2731 = vmul.f32 %v2707, %v2723
        %v2732 = vmul.f32 %v2708, %v2724
        %v2733 = vmul.f32 %v2709, %v2725
        %v2734 = vmul.f32 %v2726, 0.7478556
        %v2735 = vmul.f32 %v2727, 0.7478556
        %v2736 = vmul.f32 %v2728, 0.7478556
        %v2737 = vmul.f32 %v2729, 0.7478556
        %v2738 = vmul.f32 %v2730, 0.7478556
        %v2739 = vmul.f32 %v2731, 0.7478556
        %v2740 = vmul.f32 %v2732, 0.7478556
        %v2741 = vmul.f32 %v2733, 0.7478556
        %v2742 = vadd.f32 %v2734, -0.0958798
        %v2743 = vadd.f32 %v2735, -0.0958798
        %v2744 = vadd.f32 %v2736, -0.0958798
        %v2745 = vadd.f32 %v2737, -0.0958798
        %v2746 = vadd.f32 %v2738, -0.0958798
        %v2747 = vadd.f32 %v2739, -0.0958798
        %v2748 = vadd.f32 %v2740, -0.0958798
        %v2749 = vadd.f32 %v2741, -0.0958798
        %v2750 = vmul.f32 %v2742, %v2726
        %v2751 = vmul.f32 %v2743, %v2727
        %v2752 = vmul.f32 %v2744, %v2728
        %v2753 = vmul.f32 %v2745, %v2729
        %v2754 = vmul.f32 %v2746, %v2730
        %v2755 = vmul.f32 %v2747, %v2731
        %v2756 = vmul.f32 %v2748, %v2732
        %v2757 = vmul.f32 %v2749, %v2733
        %v2758 = vadd.f32 %v2750, 0.3480242
        %v2759 = vadd.f32 %v2751, 0.3480242
        %v2760 = vadd.f32 %v2752, 0.3480242
        %v2761 = vadd.f32 %v2753, 0.3480242
        %v2762 = vadd.f32 %v2754, 0.3480242
        %v2763 = vadd.f32 %v2755, 0.3480242
        %v2764 = vadd.f32 %v2756, 0.3480242
        %v2765 = vadd.f32 %v2757, 0.3480242
        %v2766 = vmul.f32 %v2758, %v2726
        %v2767 = vmul.f32 %v2759, %v2727
        %v2768 = vmul.f32 %v2760, %v2728
        %v2769 = vmul.f32 %v2761, %v2729
        %v2770 = vmul.f32 %v2762, %v2730
        %v2771 = vmul.f32 %v2763, %v2731
        %v2772 = vmul.f32 %v2764, %v2732
        %v2773 = vmul.f32 %v2765, %v2733
        %v2774 = vsub.f32 0.0, %v2678
        %v2775 = vsub.f32 0.0, %v2679
        %v2776 = vsub.f32 0.0, %v2680
        %v2777 = vsub.f32 0.0, %v2681
        %v2778 = vsub.f32 0.0, %v2682
        %v2779 = vsub.f32 0.0, %v2683
        %v2780 = vsub.f32 0.0, %v2684
        %v2781 = vsub.f32 0.0, %v2685
        %v2782 = vmul.f32 %v2774, %v2678
        %v2783 = vmul.f32 %v2775, %v2679
        %v2784 = vmul.f32 %v2776, %v2680
        %v2785 = vmul.f32 %v2777, %v2681
        %v2786 = vmul.f32 %v2778, %v2682
        %v2787 = vmul.f32 %v2779, %v2683
        %v2788 = vmul.f32 %v2780, %v2684
        %v2789 = vmul.f32 %v2781, %v2685
        %v2790 = vmul.f32 %v2782, 1.442695
        %v2791 = vpow.pop %v2790
        %v2792 = vmul.f32 %v2783, 1.442695
        %v2793 = vpow.pop %v2792
        %v2794 = vmul.f32 %v2784, 1.442695
        %v2795 = vpow.pop %v2794
        %v2796 = vmul.f32 %v2785, 1.442695
        %v2797 = vpow.pop %v2796
        %v2798 = vmul.f32 %v2786, 1.442695
        %v2799 = vpow.pop %v2798
        %v2800 = vmul.f32 %v2787, 1.442695
        %v2801 = vpow.pop %v2800
        %v2802 = vmul.f32 %v2788, 1.442695
        %v2803 = vpow.pop %v2802
        %v2804 = vmul.f32 %v2789, 1.442695
        %v2805 = vpow.pop %v2804
        %v2806 = vmul.f32 %v2766, %v2791
        %v2807 = vmul.f32 %v2767, %v2793
        %v2808 = vmul.f32 %v2768, %v2795
        %v2809 = vmul.f32 %v2769, %v2797
        %v2810 = vmul.f32 %v2770, %v2799
        %v2811 = vmul.f32 %v2771, %v2801
        %v2812 = vmul.f32 %v2772, %v2803
        %v2813 = vmul.f32 %v2773, %v2805
        %v2814 = vsub.f32 1.0, %v2806
        %v2815 = vsub.f32 1.0, %v2807
        %v2816 = vsub.f32 1.0, %v2808
        %v2817 = vsub.f32 1.0, %v2809
        %v2818 = vsub.f32 1.0, %v2810
        %v2819 = vsub.f32 1.0, %v2811
        %v2820 = vsub.f32 1.0, %v2812
        %v2821 = vsub.f32 1.0, %v2813
        %v2822 = vmul.f32 %v2670, %v2814
        %v2823 = vmul.f32 %v2671, %v2815
        %v2824 = vmul.f32 %v2672, %v2816
        %v2825 = vmul.f32 %v2673, %v2817
        %v2826 = vmul.f32 %v2674, %v2818
        %v2827 = vmul.f32 %v2675, %v2819
        %v2828 = vmul.f32 %v2676, %v2820
        %v2829 = vmul.f32 %v2677, %v2821
        %v2830 = vadd.f32 %v2662, %v2822
        %v2831 = vadd.f32 %v2663, %v2823
        %v2832 = vadd.f32 %v2664, %v2824
        %v2833 = vadd.f32 %v2665, %v2825
        %v2834 = vadd.f32 %v2666, %v2826
        %v2835 = vadd.f32 %v2667, %v2827
        %v2836 = vadd.f32 %v2668, %v2828
        %v2837 = vadd.f32 %v2669, %v2829
        %v2838 = vmul.f32 %v2642, 0.5
        %v2839 = vmul.f32 %v2643, 0.5
        %v2840 = vmul.f32 %v2644, 0.5
        %v2841 = vmul.f32 %v2645, 0.5
        %v2842 = vmul.f32 %v2650, 0.5
        %v2843 = vmul.f32 %v2651, 0.5
        %v2844 = vmul.f32 %v2652, 0.5
        %v2845 = vmul.f32 %v2653, 0.5
        %v2846 = vtanh.pop %v2838
        %v2847 = vtanh.pop %v2839
        %v2848 = vtanh.pop %v2840
        %v2849 = vtanh.pop %v2841
        %v2850 = vtanh.pop %v2842
        %v2851 = vtanh.pop %v2843
        %v2852 = vtanh.pop %v2844
        %v2853 = vtanh.pop %v2845
        %v2854 = vadd.f32 %v2846, 1.0
        %v2855 = vadd.f32 %v2847, 1.0
        %v2856 = vadd.f32 %v2848, 1.0
        %v2857 = vadd.f32 %v2849, 1.0
        %v2858 = vadd.f32 %v2850, 1.0
        %v2859 = vadd.f32 %v2851, 1.0
        %v2860 = vadd.f32 %v2852, 1.0
        %v2861 = vadd.f32 %v2853, 1.0
        %v2862 = vmul.f32 %v2854, 0.5
        %v2863 = vmul.f32 %v2855, 0.5
        %v2864 = vmul.f32 %v2856, 0.5
        %v2865 = vmul.f32 %v2857, 0.5
        %v2866 = vmul.f32 %v2858, 0.5
        %v2867 = vmul.f32 %v2859, 0.5
        %v2868 = vmul.f32 %v2860, 0.5
        %v2869 = vmul.f32 %v2861, 0.5
        %v2870 = vmul.f32 %v2830, %v2862
        %v2871 = vmul.f32 %v2831, %v2863
        %v2872 = vmul.f32 %v2832, %v2864
        %v2873 = vmul.f32 %v2833, %v2865
        %v2874 = vmul.f32 %v2834, %v2866
        %v2875 = vmul.f32 %v2835, %v2867
        %v2876 = vmul.f32 %v2836, %v2868
        %v2877 = vmul.f32 %v2837, %v2869
        %v2878 = vld [vmem:[#allocation12] sm:$0xff]
        %v2879 = vld [vmem:[#allocation12 + $0x8] sm:$0xff]
        %v2880 = vld [vmem:[#allocation12 + $0x10] sm:$0xff]
        %v2881 = vld [vmem:[#allocation12 + $0x18] sm:$0xff]
        %v2882 = vld [vmem:[#allocation12 + $0x20] sm:$0xff]
        %v2883 = vld [vmem:[#allocation12 + $0x28] sm:$0xff]
        %v2884 = vld [vmem:[#allocation12 + $0x30] sm:$0xff]
        %v2885 = vld [vmem:[#allocation12 + $0x38] sm:$0xff]
        %v2886 = vld [vmem:[#allocation12 + $0x40] sm:$0xff]
        %v2887 = vld [vmem:[#allocation12 + $0x48] sm:$0xff]
        %v2888 = vld [vmem:[#allocation12 + $0x50] sm:$0xff]
        %v2889 = vld [vmem:[#allocation12 + $0x58] sm:$0xff]
        %v2890 = vld [vmem:[#allocation12 + $0x60] sm:$0xff]
        %v2891 = vld [vmem:[#allocation12 + $0x68] sm:$0xff]
        %v2892 = vld [vmem:[#allocation12 + $0x70] sm:$0xff]
        %v2893 = vld [vmem:[#allocation12 + $0x78] sm:$0xff]
        %v2894 = vld [vmem:[#allocation12 + $0x80] sm:$0xff]
        %v2895 = vld [vmem:[#allocation12 + $0x88] sm:$0xff]
        %v2896 = vld [vmem:[#allocation12 + $0x90] sm:$0xff]
        %v2897 = vld [vmem:[#allocation12 + $0x98] sm:$0xff]
        %v2898 = vld [vmem:[#allocation12 + $0xa0] sm:$0xff]
        %v2899 = vld [vmem:[#allocation12 + $0xa8] sm:$0xff]
        %v2900 = vld [vmem:[#allocation12 + $0xb0] sm:$0xff]
        %v2901 = vld [vmem:[#allocation12 + $0xb8] sm:$0xff]
        %v2902 = vld [vmem:[#allocation12 + $0xc0] sm:$0xff]
        %v2903 = vld [vmem:[#allocation12 + $0xc8] sm:$0xff]
        %v2904 = vld [vmem:[#allocation12 + $0xd0] sm:$0xff]
        %v2905 = vld [vmem:[#allocation12 + $0xd8] sm:$0xff]
        %v2906 = vld [vmem:[#allocation12 + $0xe0] sm:$0xff]
        %v2907 = vld [vmem:[#allocation12 + $0xe8] sm:$0xff]
        %v2908 = vld [vmem:[#allocation12 + $0xf0] sm:$0xff]
        %v2909 = vld [vmem:[#allocation12 + $0xf8] sm:$0xff]
        %v2910 = vld [vmem:[#allocation12 + $0x100] sm:$0xff]
        %v2911 = vld [vmem:[#allocation12 + $0x108] sm:$0xff]
        %v2912 = vld [vmem:[#allocation12 + $0x110] sm:$0xff]
        %v2913 = vld [vmem:[#allocation12 + $0x118] sm:$0xff]
        %v2914 = vld [vmem:[#allocation12 + $0x120] sm:$0xff]
        %v2915 = vld [vmem:[#allocation12 + $0x128] sm:$0xff]
        %v2916 = vld [vmem:[#allocation12 + $0x130] sm:$0xff]
        %v2917 = vld [vmem:[#allocation12 + $0x138] sm:$0xff]
        %v2918 = vld [vmem:[#allocation12 + $0x140] sm:$0xff]
        %v2919 = vld [vmem:[#allocation12 + $0x148] sm:$0xff]
        %v2920 = vld [vmem:[#allocation12 + $0x150] sm:$0xff]
        %v2921 = vld [vmem:[#allocation12 + $0x158] sm:$0xff]
        %v2922 = vld [vmem:[#allocation12 + $0x160] sm:$0xff]
        %v2923 = vld [vmem:[#allocation12 + $0x168] sm:$0xff]
        %v2924 = vld [vmem:[#allocation12 + $0x170] sm:$0xff]
        %v2925 = vld [vmem:[#allocation12 + $0x178] sm:$0xff]
        %v2926 = vld [vmem:[#allocation12 + $0x180] sm:$0xff]
        %v2927 = vld [vmem:[#allocation12 + $0x188] sm:$0xff]
        %v2928 = vld [vmem:[#allocation12 + $0x190] sm:$0xff]
        %v2929 = vld [vmem:[#allocation12 + $0x198] sm:$0xff]
        %v2930 = vld [vmem:[#allocation12 + $0x1a0] sm:$0xff]
        %v2931 = vld [vmem:[#allocation12 + $0x1a8] sm:$0xff]
        %v2932 = vld [vmem:[#allocation12 + $0x1b0] sm:$0xff]
        %v2933 = vld [vmem:[#allocation12 + $0x1b8] sm:$0xff]
        %v2934 = vld [vmem:[#allocation12 + $0x1c0] sm:$0xff]
        %v2935 = vld [vmem:[#allocation12 + $0x1c8] sm:$0xff]
        %v2936 = vld [vmem:[#allocation12 + $0x1d0] sm:$0xff]
        %v2937 = vld [vmem:[#allocation12 + $0x1d8] sm:$0xff]
        %v2938 = vld [vmem:[#allocation12 + $0x1e0] sm:$0xff]
        %v2939 = vld [vmem:[#allocation12 + $0x1e8] sm:$0xff]
        %v2940 = vld [vmem:[#allocation12 + $0x1f0] sm:$0xff]
        %v2941 = vld [vmem:[#allocation12 + $0x1f8] sm:$0xff]
        %v2942 = vld [vmem:[#allocation12 + $0x200] sm:$0xff]
        %v2943 = vld [vmem:[#allocation12 + $0x208] sm:$0xff]
        %v2944 = vld [vmem:[#allocation12 + $0x210] sm:$0xff]
        %v2945 = vld [vmem:[#allocation12 + $0x218] sm:$0xff]
        %v2946 = vld [vmem:[#allocation12 + $0x220] sm:$0xff]
        %v2947 = vld [vmem:[#allocation12 + $0x228] sm:$0xff]
        %v2948 = vld [vmem:[#allocation12 + $0x230] sm:$0xff]
        %v2949 = vld [vmem:[#allocation12 + $0x238] sm:$0xff]
        %v2950 = vld [vmem:[#allocation12 + $0x240] sm:$0xff]
        %v2951 = vld [vmem:[#allocation12 + $0x248] sm:$0xff]
        %v2952 = vld [vmem:[#allocation12 + $0x250] sm:$0xff]
        %v2953 = vld [vmem:[#allocation12 + $0x258] sm:$0xff]
        %v2954 = vld [vmem:[#allocation12 + $0x260] sm:$0xff]
        %v2955 = vld [vmem:[#allocation12 + $0x268] sm:$0xff]
        %v2956 = vld [vmem:[#allocation12 + $0x270] sm:$0xff]
        %v2957 = vld [vmem:[#allocation12 + $0x278] sm:$0xff]
        %v2958 = vld [vmem:[#allocation12 + $0x280] sm:$0xff]
        %v2959 = vld [vmem:[#allocation12 + $0x288] sm:$0xff]
        %v2960 = vld [vmem:[#allocation12 + $0x290] sm:$0xff]
        %v2961 = vld [vmem:[#allocation12 + $0x298] sm:$0xff]
        %v2962 = vld [vmem:[#allocation12 + $0x2a0] sm:$0xff]
        %v2963 = vld [vmem:[#allocation12 + $0x2a8] sm:$0xff]
        %v2964 = vld [vmem:[#allocation12 + $0x2b0] sm:$0xff]
        %v2965 = vld [vmem:[#allocation12 + $0x2b8] sm:$0xff]
        %v2966 = vld [vmem:[#allocation12 + $0x2c0] sm:$0xff]
        %v2967 = vld [vmem:[#allocation12 + $0x2c8] sm:$0xff]
        %v2968 = vld [vmem:[#allocation12 + $0x2d0] sm:$0xff]
        %v2969 = vld [vmem:[#allocation12 + $0x2d8] sm:$0xff]
        %v2970 = vld [vmem:[#allocation12 + $0x2e0] sm:$0xff]
        %v2971 = vld [vmem:[#allocation12 + $0x2e8] sm:$0xff]
        %v2972 = vld [vmem:[#allocation12 + $0x2f0] sm:$0xff]
        %v2973 = vld [vmem:[#allocation12 + $0x2f8] sm:$0xff]
        %v2974 = vld [vmem:[#allocation12 + $0x300] sm:$0xff]
        %v2975 = vld [vmem:[#allocation12 + $0x308] sm:$0xff]
        %v2976 = vld [vmem:[#allocation12 + $0x310] sm:$0xff]
        %v2977 = vld [vmem:[#allocation12 + $0x318] sm:$0xff]
        %v2978 = vld [vmem:[#allocation12 + $0x320] sm:$0xff]
        %v2979 = vld [vmem:[#allocation12 + $0x328] sm:$0xff]
        %v2980 = vld [vmem:[#allocation12 + $0x330] sm:$0xff]
        %v2981 = vld [vmem:[#allocation12 + $0x338] sm:$0xff]
        %v2982 = vld [vmem:[#allocation12 + $0x340] sm:$0xff]
        %v2983 = vld [vmem:[#allocation12 + $0x348] sm:$0xff]
        %v2984 = vld [vmem:[#allocation12 + $0x350] sm:$0xff]
        %v2985 = vld [vmem:[#allocation12 + $0x358] sm:$0xff]
        %v2986 = vld [vmem:[#allocation12 + $0x360] sm:$0xff]
        %v2987 = vld [vmem:[#allocation12 + $0x368] sm:$0xff]
        %v2988 = vld [vmem:[#allocation12 + $0x370] sm:$0xff]
        %v2989 = vld [vmem:[#allocation12 + $0x378] sm:$0xff]
        %v2990 = vld [vmem:[#allocation12 + $0x380] sm:$0xff]
        %v2991 = vld [vmem:[#allocation12 + $0x388] sm:$0xff]
        %v2992 = vld [vmem:[#allocation12 + $0x390] sm:$0xff]
        %v2993 = vld [vmem:[#allocation12 + $0x398] sm:$0xff]
        %v2994 = vld [vmem:[#allocation12 + $0x3a0] sm:$0xff]
        %v2995 = vld [vmem:[#allocation12 + $0x3a8] sm:$0xff]
        %v2996 = vld [vmem:[#allocation12 + $0x3b0] sm:$0xff]
        %v2997 = vld [vmem:[#allocation12 + $0x3b8] sm:$0xff]
        %v2998 = vld [vmem:[#allocation12 + $0x3c0] sm:$0xff]
        %v2999 = vld [vmem:[#allocation12 + $0x3c8] sm:$0xff]
        %v3000 = vld [vmem:[#allocation12 + $0x3d0] sm:$0xff]
        %v3001 = vld [vmem:[#allocation12 + $0x3d8] sm:$0xff]
        %v3002 = vld [vmem:[#allocation12 + $0x3e0] sm:$0xff]
        %v3003 = vld [vmem:[#allocation12 + $0x3e8] sm:$0xff]
        %v3004 = vld [vmem:[#allocation12 + $0x3f0] sm:$0xff]
        %v3005 = vld [vmem:[#allocation12 + $0x3f8] sm:$0xff]
        %v3006 = vld [vmem:[#allocation12 + $0x400] sm:$0xff]
        %v3007 = vld [vmem:[#allocation12 + $0x408] sm:$0xff]
        %v3008 = vld [vmem:[#allocation12 + $0x410] sm:$0xff]
        %v3009 = vld [vmem:[#allocation12 + $0x418] sm:$0xff]
        %v3010 = vld [vmem:[#allocation12 + $0x420] sm:$0xff]
        %v3011 = vld [vmem:[#allocation12 + $0x428] sm:$0xff]
        %v3012 = vld [vmem:[#allocation12 + $0x430] sm:$0xff]
        %v3013 = vld [vmem:[#allocation12 + $0x438] sm:$0xff]
        %v3014 = vld [vmem:[#allocation12 + $0x440] sm:$0xff]
        %v3015 = vld [vmem:[#allocation12 + $0x448] sm:$0xff]
        %v3016 = vld [vmem:[#allocation12 + $0x450] sm:$0xff]
        %v3017 = vld [vmem:[#allocation12 + $0x458] sm:$0xff]
        %v3018 = vld [vmem:[#allocation12 + $0x460] sm:$0xff]
        %v3019 = vld [vmem:[#allocation12 + $0x468] sm:$0xff]
        %v3020 = vld [vmem:[#allocation12 + $0x470] sm:$0xff]
        %v3021 = vld [vmem:[#allocation12 + $0x478] sm:$0xff]
        %v3022 = vld [vmem:[#allocation12 + $0x480] sm:$0xff]
        %v3023 = vld [vmem:[#allocation12 + $0x488] sm:$0xff]
        %v3024 = vld [vmem:[#allocation12 + $0x490] sm:$0xff]
        %v3025 = vld [vmem:[#allocation12 + $0x498] sm:$0xff]
        %v3026 = vld [vmem:[#allocation12 + $0x4a0] sm:$0xff]
        %v3027 = vld [vmem:[#allocation12 + $0x4a8] sm:$0xff]
        %v3028 = vld [vmem:[#allocation12 + $0x4b0] sm:$0xff]
        %v3029 = vld [vmem:[#allocation12 + $0x4b8] sm:$0xff]
        %v3030 = vld [vmem:[#allocation12 + $0x4c0] sm:$0xff]
        %v3031 = vld [vmem:[#allocation12 + $0x4c8] sm:$0xff]
        %v3032 = vld [vmem:[#allocation12 + $0x4d0] sm:$0xff]
        %v3033 = vld [vmem:[#allocation12 + $0x4d8] sm:$0xff]
        %v3034 = vld [vmem:[#allocation12 + $0x4e0] sm:$0xff]
        %v3035 = vld [vmem:[#allocation12 + $0x4e8] sm:$0xff]
        %v3036 = vld [vmem:[#allocation12 + $0x4f0] sm:$0xff]
        %v3037 = vld [vmem:[#allocation12 + $0x4f8] sm:$0xff]
        %v3038 = vld [vmem:[#allocation12 + $0x500] sm:$0xff]
        %v3039 = vld [vmem:[#allocation12 + $0x508] sm:$0xff]
        %v3040 = vld [vmem:[#allocation12 + $0x510] sm:$0xff]
        %v3041 = vld [vmem:[#allocation12 + $0x518] sm:$0xff]
        %v3042 = vld [vmem:[#allocation12 + $0x520] sm:$0xff]
        %v3043 = vld [vmem:[#allocation12 + $0x528] sm:$0xff]
        %v3044 = vld [vmem:[#allocation12 + $0x530] sm:$0xff]
        %v3045 = vld [vmem:[#allocation12 + $0x538] sm:$0xff]
        %v3046 = vld [vmem:[#allocation12 + $0x540] sm:$0xff]
        %v3047 = vld [vmem:[#allocation12 + $0x548] sm:$0xff]
        %v3048 = vld [vmem:[#allocation12 + $0x550] sm:$0xff]
        %v3049 = vld [vmem:[#allocation12 + $0x558] sm:$0xff]
        %v3050 = vld [vmem:[#allocation12 + $0x560] sm:$0xff]
        %v3051 = vld [vmem:[#allocation12 + $0x568] sm:$0xff]
        %v3052 = vld [vmem:[#allocation12 + $0x570] sm:$0xff]
        %v3053 = vld [vmem:[#allocation12 + $0x578] sm:$0xff]
        %v3054 = vld [vmem:[#allocation12 + $0x580] sm:$0xff]
        %v3055 = vld [vmem:[#allocation12 + $0x588] sm:$0xff]
        %v3056 = vld [vmem:[#allocation12 + $0x590] sm:$0xff]
        %v3057 = vld [vmem:[#allocation12 + $0x598] sm:$0xff]
        %v3058 = vld [vmem:[#allocation12 + $0x5a0] sm:$0xff]
        %v3059 = vld [vmem:[#allocation12 + $0x5a8] sm:$0xff]
        %v3060 = vld [vmem:[#allocation12 + $0x5b0] sm:$0xff]
        %v3061 = vld [vmem:[#allocation12 + $0x5b8] sm:$0xff]
        %v3062 = vld [vmem:[#allocation12 + $0x5c0] sm:$0xff]
        %v3063 = vld [vmem:[#allocation12 + $0x5c8] sm:$0xff]
        %v3064 = vld [vmem:[#allocation12 + $0x5d0] sm:$0xff]
        %v3065 = vld [vmem:[#allocation12 + $0x5d8] sm:$0xff]
        %v3066 = vld [vmem:[#allocation12 + $0x5e0] sm:$0xff]
        %v3067 = vld [vmem:[#allocation12 + $0x5e8] sm:$0xff]
        %v3068 = vld [vmem:[#allocation12 + $0x5f0] sm:$0xff]
        %v3069 = vld [vmem:[#allocation12 + $0x5f8] sm:$0xff]
        %v3070 = vld [vmem:[#allocation14] sm:$0x7]
        %v3072 = vlaneseq
        %v3073 = vshrl.u32 %v3072, 7
        %v3074 = vsub.s32 0, %v3073
        %v3075 = vrot.slane %v3070, %v3074
        %v3076 = vlaneseq
        %v3077 = vshrl.u32 %v3076, 7
        %v3078 = vsub.s32 1, %v3077
        %v3079 = vrot.slane %v3070, %v3078
        %v3080 = vlaneseq
        %v3081 = vshrl.u32 %v3080, 7
        %v3082 = vsub.s32 2, %v3081
        %v3083 = vrot.slane %v3070, %v3082
        %3087 = vmatprep.subr.mxu0 %v2924
        %3088 = vmatpush1.msra.mxu0 %v2923
        %3089 = vmatprep.subr.mxu0 %v2921
        %3090 = vmatpush1.msra.mxu0 %v2920
        %3091 = vmatprep.subr.mxu0 %v2918
        %3092 = vmatpush1.msra.mxu0 %v2917
        %3093 = vmatprep.subr.mxu0 %v2915
        %3094 = vmatpush1.msra.mxu0 %v2914
        %3095 = vmatprep.subr.mxu0 %v2912
        %3096 = vmatpush1.msra.mxu0 %v2911
        %3097 = vmatprep.subr.mxu0 %v2909
        %3098 = vmatpush1.msra.mxu0 %v2908
        %3099 = vmatprep.subr.mxu0 %v2906
        %3100 = vmatpush1.msra.mxu0 %v2905
        %3101 = vmatprep.subr.mxu0 %v2903
        %3102 = vmatpush1.msra.mxu0 %v2902
        %3103 = vmatprep.subr.mxu0 %v2900
        %3104 = vmatpush1.msra.mxu0 %v2899
        %3105 = vmatprep.subr.mxu0 %v2897
        %3106 = vmatpush1.msra.mxu0 %v2896
        %3107 = vmatprep.subr.mxu0 %v2894
        %3108 = vmatpush1.msra.mxu0 %v2893
        %3109 = vmatprep.subr.mxu0 %v2891
        %3110 = vmatpush1.msra.mxu0 %v2890
        %3111 = vmatprep.subr.mxu0 %v2888
        %3112 = vmatpush1.msra.mxu0 %v2887
        %3113 = vmatprep.subr.mxu0 %v2885
        %3114 = vmatpush1.msra.mxu0 %v2884
        %3115 = vmatprep.subr.mxu0 %v2882
        %3116 = vmatpush1.msra.mxu0 %v2881
        %3117 = vmatprep.subr.mxu0 %v2879
        %3118 = vmatpush1.msra.mxu0 %v2878
        %3119 = vmatprep.subr.mxu0 %v2972
        %3120 = vmatpush2.msra.mxu0 %v2971
        %3121 = vmatprep.subr.mxu0 %v2969
        %3122 = vmatpush2.msra.mxu0 %v2968
        %3123 = vmatprep.subr.mxu0 %v2966
        %3124 = vmatpush2.msra.mxu0 %v2965
        %3125 = vmatprep.subr.mxu0 %v2963
        %3126 = vmatpush2.msra.mxu0 %v2962
        %3127 = vmatprep.subr.mxu0 %v2960
        %3128 = vmatpush2.msra.mxu0 %v2959
        %3129 = vmatprep.subr.mxu0 %v2957
        %3130 = vmatpush2.msra.mxu0 %v2956
        %3131 = vmatprep.subr.mxu0 %v2954
        %3132 = vmatpush2.msra.mxu0 %v2953
        %3133 = vmatprep.subr.mxu0 %v2951
        %3134 = vmatpush2.msra.mxu0 %v2950
        %3135 = vmatprep.subr.mxu0 %v2948
        %3136 = vmatpush2.msra.mxu0 %v2947
        %3137 = vmatprep.subr.mxu0 %v2945
        %3138 = vmatpush2.msra.mxu0 %v2944
        %3139 = vmatprep.subr.mxu0 %v2942
        %3140 = vmatpush2.msra.mxu0 %v2941
        %3141 = vmatprep.subr.mxu0 %v2939
        %3142 = vmatpush2.msra.mxu0 %v2938
        %3143 = vmatprep.subr.mxu0 %v2936
        %3144 = vmatpush2.msra.mxu0 %v2935
        %3145 = vmatprep.subr.mxu0 %v2933
        %3146 = vmatpush2.msra.mxu0 %v2932
        %3147 = vmatprep.subr.mxu0 %v2930
        %3148 = vmatpush2.msra.mxu0 %v2929
        %3149 = vmatprep.subr.mxu0 %v2927
        %3150 = vmatpush2.msra.mxu0 %v2926
        %3151 = vmatprep.mubr.f32.mxu0 %v2871
        %3152 = vmatmul.mubr.f32.gmra.mxu0 %v2870
        %v3153 = vpop.f32.mrf.mxu0
        %v3154 = vadd.f32 %v3075, %v3153
        %v3155 = vpop.f32.mrf.mxu0
        %v3156 = vadd.f32 %v3079, %v3155
        %3157 = vdwg.mxu0
        %3158 = vmatprep.subr.mxu0 %v3020
        %3159 = vmatpush1.msra.mxu0 %v3019
        %3160 = vmatprep.subr.mxu0 %v3017
        %3161 = vmatpush1.msra.mxu0 %v3016
        %3162 = vmatprep.subr.mxu0 %v3014
        %3163 = vmatpush1.msra.mxu0 %v3013
        %3164 = vmatprep.subr.mxu0 %v3011
        %3165 = vmatpush1.msra.mxu0 %v3010
        %3166 = vmatprep.subr.mxu0 %v3008
        %3167 = vmatpush1.msra.mxu0 %v3007
        %3168 = vmatprep.subr.mxu0 %v3005
        %3169 = vmatpush1.msra.mxu0 %v3004
        %3170 = vmatprep.subr.mxu0 %v3002
        %3171 = vmatpush1.msra.mxu0 %v3001
        %3172 = vmatprep.subr.mxu0 %v2999
        %3173 = vmatpush1.msra.mxu0 %v2998
        %3174 = vmatprep.subr.mxu0 %v2996
        %3175 = vmatpush1.msra.mxu0 %v2995
        %3176 = vmatprep.subr.mxu0 %v2993
        %3177 = vmatpush1.msra.mxu0 %v2992
        %3178 = vmatprep.subr.mxu0 %v2990
        %3179 = vmatpush1.msra.mxu0 %v2989
        %3180 = vmatprep.subr.mxu0 %v2987
        %3181 = vmatpush1.msra.mxu0 %v2986
        %3182 = vmatprep.subr.mxu0 %v2984
        %3183 = vmatpush1.msra.mxu0 %v2983
        %3184 = vmatprep.subr.mxu0 %v2981
        %3185 = vmatpush1.msra.mxu0 %v2980
        %3186 = vmatprep.subr.mxu0 %v2978
        %3187 = vmatpush1.msra.mxu0 %v2977
        %3188 = vmatprep.subr.mxu0 %v2975
        %3189 = vmatpush1.msra.mxu0 %v2974
        %3190 = vmatprep.subr.mxu0 %v3068
        %3191 = vmatpush2.msra.mxu0 %v3067
        %3192 = vmatprep.subr.mxu0 %v3065
        %3193 = vmatpush2.msra.mxu0 %v3064
        %3194 = vmatprep.subr.mxu0 %v3062
        %3195 = vmatpush2.msra.mxu0 %v3061
        %3196 = vmatprep.subr.mxu0 %v3059
        %3197 = vmatpush2.msra.mxu0 %v3058
        %3198 = vmatprep.subr.mxu0 %v3056
        %3199 = vmatpush2.msra.mxu0 %v3055
        %3200 = vmatprep.subr.mxu0 %v3053
        %3201 = vmatpush2.msra.mxu0 %v3052
        %3202 = vmatprep.subr.mxu0 %v3050
        %3203 = vmatpush2.msra.mxu0 %v3049
        %3204 = vmatprep.subr.mxu0 %v3047
        %3205 = vmatpush2.msra.mxu0 %v3046
        %3206 = vmatprep.subr.mxu0 %v3044
        %3207 = vmatpush2.msra.mxu0 %v3043
        %3208 = vmatprep.subr.mxu0 %v3041
        %3209 = vmatpush2.msra.mxu0 %v3040
        %3210 = vmatprep.subr.mxu0 %v3038
        %3211 = vmatpush2.msra.mxu0 %v3037
        %3212 = vmatprep.subr.mxu0 %v3035
        %3213 = vmatpush2.msra.mxu0 %v3034
        %3214 = vmatprep.subr.mxu0 %v3032
        %3215 = vmatpush2.msra.mxu0 %v3031
        %3216 = vmatprep.subr.mxu0 %v3029
        %3217 = vmatpush2.msra.mxu0 %v3028
        %3218 = vmatprep.subr.mxu0 %v3026
        %3219 = vmatpush2.msra.mxu0 %v3025
        %3220 = vmatprep.subr.mxu0 %v3023
        %3221 = vmatpush2.msra.mxu0 %v3022
        %3222 = vmatprep.mubr.f32.mxu0 %v2873
        %3223 = vmatmul.mubr.f32.gmra.mxu0 %v2872
        %v3224 = vpop.f32.mrf.mxu0
        %v3225 = vadd.f32 %v3154, %v3224
        %v3226 = vpop.f32.mrf.mxu0
        %v3227 = vadd.f32 %v3156, %v3226
        %3228 = vdwg.mxu0
        %3229 = vmatprep.subr.mxu0 0.0
        %3230 = vmatpush1.msra.mxu0 %v2925
        %3231 = vmatprep.subr.mxu0 0.0
        %3232 = vmatpush1.msra.mxu0 %v2922
        %3233 = vmatprep.subr.mxu0 0.0
        %3234 = vmatpush1.msra.mxu0 %v2919
        %3235 = vmatprep.subr.mxu0 0.0
        %3236 = vmatpush1.msra.mxu0 %v2916
        %3237 = vmatprep.subr.mxu0 0.0
        %3238 = vmatpush1.msra.mxu0 %v2913
        %3239 = vmatprep.subr.mxu0 0.0
        %3240 = vmatpush1.msra.mxu0 %v2910
        %3241 = vmatprep.subr.mxu0 0.0
        %3242 = vmatpush1.msra.mxu0 %v2907
        %3243 = vmatprep.subr.mxu0 0.0
        %3244 = vmatpush1.msra.mxu0 %v2904
        %3245 = vmatprep.subr.mxu0 0.0
        %3246 = vmatpush1.msra.mxu0 %v2901
        %3247 = vmatprep.subr.mxu0 0.0
        %3248 = vmatpush1.msra.mxu0 %v2898
        %3249 = vmatprep.subr.mxu0 0.0
        %3250 = vmatpush1.msra.mxu0 %v2895
        %3251 = vmatprep.subr.mxu0 0.0
        %3252 = vmatpush1.msra.mxu0 %v2892
        %3253 = vmatprep.subr.mxu0 0.0
        %3254 = vmatpush1.msra.mxu0 %v2889
        %3255 = vmatprep.subr.mxu0 0.0
        %3256 = vmatpush1.msra.mxu0 %v2886
        %3257 = vmatprep.subr.mxu0 0.0
        %3258 = vmatpush1.msra.mxu0 %v2883
        %3259 = vmatprep.subr.mxu0 0.0
        %3260 = vmatpush1.msra.mxu0 %v2880
        %3261 = vmatprep.subr.mxu0 0.0
        %3262 = vmatpush2.msra.mxu0 %v2973
        %3263 = vmatprep.subr.mxu0 0.0
        %3264 = vmatpush2.msra.mxu0 %v2970
        %3265 = vmatprep.subr.mxu0 0.0
        %3266 = vmatpush2.msra.mxu0 %v2967
        %3267 = vmatprep.subr.mxu0 0.0
        %3268 = vmatpush2.msra.mxu0 %v2964
        %3269 = vmatprep.subr.mxu0 0.0
        %3270 = vmatpush2.msra.mxu0 %v2961
        %3271 = vmatprep.subr.mxu0 0.0
        %3272 = vmatpush2.msra.mxu0 %v2958
        %3273 = vmatprep.subr.mxu0 0.0
        %3274 = vmatpush2.msra.mxu0 %v2955
        %3275 = vmatprep.subr.mxu0 0.0
        %3276 = vmatpush2.msra.mxu0 %v2952
        %3277 = vmatprep.subr.mxu0 0.0
        %3278 = vmatpush2.msra.mxu0 %v2949
        %3279 = vmatprep.subr.mxu0 0.0
        %3280 = vmatpush2.msra.mxu0 %v2946
        %3281 = vmatprep.subr.mxu0 0.0
        %3282 = vmatpush2.msra.mxu0 %v2943
        %3283 = vmatprep.subr.mxu0 0.0
        %3284 = vmatpush2.msra.mxu0 %v2940
        %3285 = vmatprep.subr.mxu0 0.0
        %3286 = vmatpush2.msra.mxu0 %v2937
        %3287 = vmatprep.subr.mxu0 0.0
        %3288 = vmatpush2.msra.mxu0 %v2934
        %3289 = vmatprep.subr.mxu0 0.0
        %3290 = vmatpush2.msra.mxu0 %v2931
        %3291 = vmatprep.subr.mxu0 0.0
        %3292 = vmatpush2.msra.mxu0 %v2928
        %3293 = vmatprep.mubr.f32.mxu0 %v2871
        %3294 = vmatmul.mubr.f32.gmra.mxu0 %v2870
        %v3295 = vpop.f32.mrf.mxu0
        %v3296 = vadd.f32 %v3083, %v3295
        %v3297 = vpop.f32.mrf.mxu0
        %3298 = vdwg.mxu0
        %3299 = vmatprep.subr.mxu0 0.0
        %3300 = vmatpush1.msra.mxu0 %v3021
        %3301 = vmatprep.subr.mxu0 0.0
        %3302 = vmatpush1.msra.mxu0 %v3018
        %3303 = vmatprep.subr.mxu0 0.0
        %3304 = vmatpush1.msra.mxu0 %v3015
        %3305 = vmatprep.subr.mxu0 0.0
        %3306 = vmatpush1.msra.mxu0 %v3012
        %3307 = vmatprep.subr.mxu0 0.0
        %3308 = vmatpush1.msra.mxu0 %v3009
        %3309 = vmatprep.subr.mxu0 0.0
        %3310 = vmatpush1.msra.mxu0 %v3006
        %3311 = vmatprep.subr.mxu0 0.0
        %3312 = vmatpush1.msra.mxu0 %v3003
        %3313 = vmatprep.subr.mxu0 0.0
        %3314 = vmatpush1.msra.mxu0 %v3000
        %3315 = vmatprep.subr.mxu0 0.0
        %3316 = vmatpush1.msra.mxu0 %v2997
        %3317 = vmatprep.subr.mxu0 0.0
        %3318 = vmatpush1.msra.mxu0 %v2994
        %3319 = vmatprep.subr.mxu0 0.0
        %3320 = vmatpush1.msra.mxu0 %v2991
        %3321 = vmatprep.subr.mxu0 0.0
        %3322 = vmatpush1.msra.mxu0 %v2988
        %3323 = vmatprep.subr.mxu0 0.0
        %3324 = vmatpush1.msra.mxu0 %v2985
        %3325 = vmatprep.subr.mxu0 0.0
        %3326 = vmatpush1.msra.mxu0 %v2982
        %3327 = vmatprep.subr.mxu0 0.0
        %3328 = vmatpush1.msra.mxu0 %v2979
        %3329 = vmatprep.subr.mxu0 0.0
        %3330 = vmatpush1.msra.mxu0 %v2976
        %3331 = vmatprep.subr.mxu0 0.0
        %3332 = vmatpush2.msra.mxu0 %v3069
        %3333 = vmatprep.subr.mxu0 0.0
        %3334 = vmatpush2.msra.mxu0 %v3066
        %3335 = vmatprep.subr.mxu0 0.0
        %3336 = vmatpush2.msra.mxu0 %v3063
        %3337 = vmatprep.subr.mxu0 0.0
        %3338 = vmatpush2.msra.mxu0 %v3060
        %3339 = vmatprep.subr.mxu0 0.0
        %3340 = vmatpush2.msra.mxu0 %v3057
        %3341 = vmatprep.subr.mxu0 0.0
        %3342 = vmatpush2.msra.mxu0 %v3054
        %3343 = vmatprep.subr.mxu0 0.0
        %3344 = vmatpush2.msra.mxu0 %v3051
        %3345 = vmatprep.subr.mxu0 0.0
        %3346 = vmatpush2.msra.mxu0 %v3048
        %3347 = vmatprep.subr.mxu0 0.0
        %3348 = vmatpush2.msra.mxu0 %v3045
        %3349 = vmatprep.subr.mxu0 0.0
        %3350 = vmatpush2.msra.mxu0 %v3042
        %3351 = vmatprep.subr.mxu0 0.0
        %3352 = vmatpush2.msra.mxu0 %v3039
        %3353 = vmatprep.subr.mxu0 0.0
        %3354 = vmatpush2.msra.mxu0 %v3036
        %3355 = vmatprep.subr.mxu0 0.0
        %3356 = vmatpush2.msra.mxu0 %v3033
        %3357 = vmatprep.subr.mxu0 0.0
        %3358 = vmatpush2.msra.mxu0 %v3030
        %3359 = vmatprep.subr.mxu0 0.0
        %3360 = vmatpush2.msra.mxu0 %v3027
        %3361 = vmatprep.subr.mxu0 0.0
        %3362 = vmatpush2.msra.mxu0 %v3024
        %3363 = vmatprep.mubr.f32.mxu0 %v2873
        %3364 = vmatmul.mubr.f32.gmra.mxu0 %v2872
        %v3365 = vpop.f32.mrf.mxu0
        %v3366 = vadd.f32 %v3296, %v3365
        %v3367 = vpop.f32.mrf.mxu0
        %3368 = vdwg.mxu0
        %3369 = vst [vmem:[%s614] sm:$0xff] %v3225
        %3370 = vst [vmem:[%s614 + $0x8] sm:$0xff] %v3227
        %3371 = vst [vmem:[%s614 + $0x10] sm:$0xff] %v3366
        %v3372 = vld [vmem:[#allocation18] sm:$0xff]
        %v3373 = vld [vmem:[#allocation18 + $0x8] sm:$0xff]
        %v3374 = vld [vmem:[#allocation18 + $0x10] sm:$0xff]
        %v3375 = vld [vmem:[#allocation18 + $0x18] sm:$0xff]
        %v3376 = vld [vmem:[#allocation18 + $0x20] sm:$0xff]
        %v3377 = vld [vmem:[#allocation18 + $0x28] sm:$0xff]
        %v3378 = vld [vmem:[#allocation18 + $0x30] sm:$0xff]
        %v3379 = vld [vmem:[#allocation18 + $0x38] sm:$0xff]
        %v3380 = vld [vmem:[#allocation18 + $0x40] sm:$0xff]
        %v3381 = vld [vmem:[#allocation18 + $0x48] sm:$0xff]
        %v3382 = vld [vmem:[#allocation18 + $0x50] sm:$0xff]
        %v3383 = vld [vmem:[#allocation18 + $0x58] sm:$0xff]
        %v3384 = vld [vmem:[#allocation18 + $0x60] sm:$0xff]
        %v3385 = vld [vmem:[#allocation18 + $0x68] sm:$0xff]
        %v3386 = vld [vmem:[#allocation18 + $0x70] sm:$0xff]
        %v3387 = vld [vmem:[#allocation18 + $0x78] sm:$0xff]
        %v3388 = vld [vmem:[#allocation18 + $0x80] sm:$0xff]
        %v3389 = vld [vmem:[#allocation18 + $0x88] sm:$0xff]
        %v3390 = vld [vmem:[#allocation18 + $0x90] sm:$0xff]
        %v3391 = vld [vmem:[#allocation18 + $0x98] sm:$0xff]
        %v3392 = vld [vmem:[#allocation18 + $0xa0] sm:$0xff]
        %v3393 = vld [vmem:[#allocation18 + $0xa8] sm:$0xff]
        %v3394 = vld [vmem:[#allocation18 + $0xb0] sm:$0xff]
        %v3395 = vld [vmem:[#allocation18 + $0xb8] sm:$0xff]
        %v3396 = vld [vmem:[#allocation18 + $0xc0] sm:$0xff]
        %v3397 = vld [vmem:[#allocation18 + $0xc8] sm:$0xff]
        %v3398 = vld [vmem:[#allocation18 + $0xd0] sm:$0xff]
        %v3399 = vld [vmem:[#allocation18 + $0xd8] sm:$0xff]
        %v3400 = vld [vmem:[#allocation18 + $0xe0] sm:$0xff]
        %v3401 = vld [vmem:[#allocation18 + $0xe8] sm:$0xff]
        %v3402 = vld [vmem:[#allocation18 + $0xf0] sm:$0xff]
        %v3403 = vld [vmem:[#allocation18 + $0xf8] sm:$0xff]
        %v3404 = vld [vmem:[#allocation18 + $0x100] sm:$0xff]
        %v3405 = vld [vmem:[#allocation18 + $0x108] sm:$0xff]
        %v3406 = vld [vmem:[#allocation18 + $0x110] sm:$0xff]
        %v3407 = vld [vmem:[#allocation18 + $0x118] sm:$0xff]
        %v3408 = vld [vmem:[#allocation18 + $0x120] sm:$0xff]
        %v3409 = vld [vmem:[#allocation18 + $0x128] sm:$0xff]
        %v3410 = vld [vmem:[#allocation18 + $0x130] sm:$0xff]
        %v3411 = vld [vmem:[#allocation18 + $0x138] sm:$0xff]
        %v3412 = vld [vmem:[#allocation18 + $0x140] sm:$0xff]
        %v3413 = vld [vmem:[#allocation18 + $0x148] sm:$0xff]
        %v3414 = vld [vmem:[#allocation18 + $0x150] sm:$0xff]
        %v3415 = vld [vmem:[#allocation18 + $0x158] sm:$0xff]
        %v3416 = vld [vmem:[#allocation18 + $0x160] sm:$0xff]
        %v3417 = vld [vmem:[#allocation18 + $0x168] sm:$0xff]
        %v3418 = vld [vmem:[#allocation18 + $0x170] sm:$0xff]
        %v3419 = vld [vmem:[#allocation18 + $0x178] sm:$0xff]
        %v3420 = vld [vmem:[#allocation18 + $0x180] sm:$0xff]
        %v3421 = vld [vmem:[#allocation18 + $0x188] sm:$0xff]
        %v3422 = vld [vmem:[#allocation18 + $0x190] sm:$0xff]
        %v3423 = vld [vmem:[#allocation18 + $0x198] sm:$0xff]
        %v3424 = vld [vmem:[#allocation18 + $0x1a0] sm:$0xff]
        %v3425 = vld [vmem:[#allocation18 + $0x1a8] sm:$0xff]
        %v3426 = vld [vmem:[#allocation18 + $0x1b0] sm:$0xff]
        %v3427 = vld [vmem:[#allocation18 + $0x1b8] sm:$0xff]
        %v3428 = vld [vmem:[#allocation18 + $0x1c0] sm:$0xff]
        %v3429 = vld [vmem:[#allocation18 + $0x1c8] sm:$0xff]
        %v3430 = vld [vmem:[#allocation18 + $0x1d0] sm:$0xff]
        %v3431 = vld [vmem:[#allocation18 + $0x1d8] sm:$0xff]
        %v3432 = vld [vmem:[#allocation18 + $0x1e0] sm:$0xff]
        %v3433 = vld [vmem:[#allocation18 + $0x1e8] sm:$0xff]
        %v3434 = vld [vmem:[#allocation18 + $0x1f0] sm:$0xff]
        %v3435 = vld [vmem:[#allocation18 + $0x1f8] sm:$0xff]
        %v3436 = vld [vmem:[#allocation18 + $0x200] sm:$0xff]
        %v3437 = vld [vmem:[#allocation18 + $0x208] sm:$0xff]
        %v3438 = vld [vmem:[#allocation18 + $0x210] sm:$0xff]
        %v3439 = vld [vmem:[#allocation18 + $0x218] sm:$0xff]
        %v3440 = vld [vmem:[#allocation18 + $0x220] sm:$0xff]
        %v3441 = vld [vmem:[#allocation18 + $0x228] sm:$0xff]
        %v3442 = vld [vmem:[#allocation18 + $0x230] sm:$0xff]
        %v3443 = vld [vmem:[#allocation18 + $0x238] sm:$0xff]
        %v3444 = vld [vmem:[#allocation18 + $0x240] sm:$0xff]
        %v3445 = vld [vmem:[#allocation18 + $0x248] sm:$0xff]
        %v3446 = vld [vmem:[#allocation18 + $0x250] sm:$0xff]
        %v3447 = vld [vmem:[#allocation18 + $0x258] sm:$0xff]
        %v3448 = vld [vmem:[#allocation18 + $0x260] sm:$0xff]
        %v3449 = vld [vmem:[#allocation18 + $0x268] sm:$0xff]
        %v3450 = vld [vmem:[#allocation18 + $0x270] sm:$0xff]
        %v3451 = vld [vmem:[#allocation18 + $0x278] sm:$0xff]
        %v3452 = vld [vmem:[#allocation18 + $0x280] sm:$0xff]
        %v3453 = vld [vmem:[#allocation18 + $0x288] sm:$0xff]
        %v3454 = vld [vmem:[#allocation18 + $0x290] sm:$0xff]
        %v3455 = vld [vmem:[#allocation18 + $0x298] sm:$0xff]
        %v3456 = vld [vmem:[#allocation18 + $0x2a0] sm:$0xff]
        %v3457 = vld [vmem:[#allocation18 + $0x2a8] sm:$0xff]
        %v3458 = vld [vmem:[#allocation18 + $0x2b0] sm:$0xff]
        %v3459 = vld [vmem:[#allocation18 + $0x2b8] sm:$0xff]
        %v3460 = vld [vmem:[#allocation18 + $0x2c0] sm:$0xff]
        %v3461 = vld [vmem:[#allocation18 + $0x2c8] sm:$0xff]
        %v3462 = vld [vmem:[#allocation18 + $0x2d0] sm:$0xff]
        %v3463 = vld [vmem:[#allocation18 + $0x2d8] sm:$0xff]
        %v3464 = vld [vmem:[#allocation18 + $0x2e0] sm:$0xff]
        %v3465 = vld [vmem:[#allocation18 + $0x2e8] sm:$0xff]
        %v3466 = vld [vmem:[#allocation18 + $0x2f0] sm:$0xff]
        %v3467 = vld [vmem:[#allocation18 + $0x2f8] sm:$0xff]
        %v3468 = vld [vmem:[#allocation18 + $0x300] sm:$0xff]
        %v3469 = vld [vmem:[#allocation18 + $0x308] sm:$0xff]
        %v3470 = vld [vmem:[#allocation18 + $0x310] sm:$0xff]
        %v3471 = vld [vmem:[#allocation18 + $0x318] sm:$0xff]
        %v3472 = vld [vmem:[#allocation18 + $0x320] sm:$0xff]
        %v3473 = vld [vmem:[#allocation18 + $0x328] sm:$0xff]
        %v3474 = vld [vmem:[#allocation18 + $0x330] sm:$0xff]
        %v3475 = vld [vmem:[#allocation18 + $0x338] sm:$0xff]
        %v3476 = vld [vmem:[#allocation18 + $0x340] sm:$0xff]
        %v3477 = vld [vmem:[#allocation18 + $0x348] sm:$0xff]
        %v3478 = vld [vmem:[#allocation18 + $0x350] sm:$0xff]
        %v3479 = vld [vmem:[#allocation18 + $0x358] sm:$0xff]
        %v3480 = vld [vmem:[#allocation18 + $0x360] sm:$0xff]
        %v3481 = vld [vmem:[#allocation18 + $0x368] sm:$0xff]
        %v3482 = vld [vmem:[#allocation18 + $0x370] sm:$0xff]
        %v3483 = vld [vmem:[#allocation18 + $0x378] sm:$0xff]
        %v3484 = vld [vmem:[#allocation18 + $0x380] sm:$0xff]
        %v3485 = vld [vmem:[#allocation18 + $0x388] sm:$0xff]
        %v3486 = vld [vmem:[#allocation18 + $0x390] sm:$0xff]
        %v3487 = vld [vmem:[#allocation18 + $0x398] sm:$0xff]
        %v3488 = vld [vmem:[#allocation18 + $0x3a0] sm:$0xff]
        %v3489 = vld [vmem:[#allocation18 + $0x3a8] sm:$0xff]
        %v3490 = vld [vmem:[#allocation18 + $0x3b0] sm:$0xff]
        %v3491 = vld [vmem:[#allocation18 + $0x3b8] sm:$0xff]
        %v3492 = vld [vmem:[#allocation18 + $0x3c0] sm:$0xff]
        %v3493 = vld [vmem:[#allocation18 + $0x3c8] sm:$0xff]
        %v3494 = vld [vmem:[#allocation18 + $0x3d0] sm:$0xff]
        %v3495 = vld [vmem:[#allocation18 + $0x3d8] sm:$0xff]
        %v3496 = vld [vmem:[#allocation18 + $0x3e0] sm:$0xff]
        %v3497 = vld [vmem:[#allocation18 + $0x3e8] sm:$0xff]
        %v3498 = vld [vmem:[#allocation18 + $0x3f0] sm:$0xff]
        %v3499 = vld [vmem:[#allocation18 + $0x3f8] sm:$0xff]
        %v3500 = vld [vmem:[#allocation18 + $0x400] sm:$0xff]
        %v3501 = vld [vmem:[#allocation18 + $0x408] sm:$0xff]
        %v3502 = vld [vmem:[#allocation18 + $0x410] sm:$0xff]
        %v3503 = vld [vmem:[#allocation18 + $0x418] sm:$0xff]
        %v3504 = vld [vmem:[#allocation18 + $0x420] sm:$0xff]
        %v3505 = vld [vmem:[#allocation18 + $0x428] sm:$0xff]
        %v3506 = vld [vmem:[#allocation18 + $0x430] sm:$0xff]
        %v3507 = vld [vmem:[#allocation18 + $0x438] sm:$0xff]
        %v3508 = vld [vmem:[#allocation18 + $0x440] sm:$0xff]
        %v3509 = vld [vmem:[#allocation18 + $0x448] sm:$0xff]
        %v3510 = vld [vmem:[#allocation18 + $0x450] sm:$0xff]
        %v3511 = vld [vmem:[#allocation18 + $0x458] sm:$0xff]
        %v3512 = vld [vmem:[#allocation18 + $0x460] sm:$0xff]
        %v3513 = vld [vmem:[#allocation18 + $0x468] sm:$0xff]
        %v3514 = vld [vmem:[#allocation18 + $0x470] sm:$0xff]
        %v3515 = vld [vmem:[#allocation18 + $0x478] sm:$0xff]
        %v3516 = vld [vmem:[#allocation18 + $0x480] sm:$0xff]
        %v3517 = vld [vmem:[#allocation18 + $0x488] sm:$0xff]
        %v3518 = vld [vmem:[#allocation18 + $0x490] sm:$0xff]
        %v3519 = vld [vmem:[#allocation18 + $0x498] sm:$0xff]
        %v3520 = vld [vmem:[#allocation18 + $0x4a0] sm:$0xff]
        %v3521 = vld [vmem:[#allocation18 + $0x4a8] sm:$0xff]
        %v3522 = vld [vmem:[#allocation18 + $0x4b0] sm:$0xff]
        %v3523 = vld [vmem:[#allocation18 + $0x4b8] sm:$0xff]
        %v3524 = vld [vmem:[#allocation18 + $0x4c0] sm:$0xff]
        %v3525 = vld [vmem:[#allocation18 + $0x4c8] sm:$0xff]
        %v3526 = vld [vmem:[#allocation18 + $0x4d0] sm:$0xff]
        %v3527 = vld [vmem:[#allocation18 + $0x4d8] sm:$0xff]
        %v3528 = vld [vmem:[#allocation18 + $0x4e0] sm:$0xff]
        %v3529 = vld [vmem:[#allocation18 + $0x4e8] sm:$0xff]
        %v3530 = vld [vmem:[#allocation18 + $0x4f0] sm:$0xff]
        %v3531 = vld [vmem:[#allocation18 + $0x4f8] sm:$0xff]
        %v3532 = vld [vmem:[#allocation18 + $0x500] sm:$0xff]
        %v3533 = vld [vmem:[#allocation18 + $0x508] sm:$0xff]
        %v3534 = vld [vmem:[#allocation18 + $0x510] sm:$0xff]
        %v3535 = vld [vmem:[#allocation18 + $0x518] sm:$0xff]
        %v3536 = vld [vmem:[#allocation18 + $0x520] sm:$0xff]
        %v3537 = vld [vmem:[#allocation18 + $0x528] sm:$0xff]
        %v3538 = vld [vmem:[#allocation18 + $0x530] sm:$0xff]
        %v3539 = vld [vmem:[#allocation18 + $0x538] sm:$0xff]
        %v3540 = vld [vmem:[#allocation18 + $0x540] sm:$0xff]
        %v3541 = vld [vmem:[#allocation18 + $0x548] sm:$0xff]
        %v3542 = vld [vmem:[#allocation18 + $0x550] sm:$0xff]
        %v3543 = vld [vmem:[#allocation18 + $0x558] sm:$0xff]
        %v3544 = vld [vmem:[#allocation18 + $0x560] sm:$0xff]
        %v3545 = vld [vmem:[#allocation18 + $0x568] sm:$0xff]
        %v3546 = vld [vmem:[#allocation18 + $0x570] sm:$0xff]
        %v3547 = vld [vmem:[#allocation18 + $0x578] sm:$0xff]
        %v3548 = vld [vmem:[#allocation18 + $0x580] sm:$0xff]
        %v3549 = vld [vmem:[#allocation18 + $0x588] sm:$0xff]
        %v3550 = vld [vmem:[#allocation18 + $0x590] sm:$0xff]
        %v3551 = vld [vmem:[#allocation18 + $0x598] sm:$0xff]
        %v3552 = vld [vmem:[#allocation18 + $0x5a0] sm:$0xff]
        %v3553 = vld [vmem:[#allocation18 + $0x5a8] sm:$0xff]
        %v3554 = vld [vmem:[#allocation18 + $0x5b0] sm:$0xff]
        %v3555 = vld [vmem:[#allocation18 + $0x5b8] sm:$0xff]
        %v3556 = vld [vmem:[#allocation18 + $0x5c0] sm:$0xff]
        %v3557 = vld [vmem:[#allocation18 + $0x5c8] sm:$0xff]
        %v3558 = vld [vmem:[#allocation18 + $0x5d0] sm:$0xff]
        %v3559 = vld [vmem:[#allocation18 + $0x5d8] sm:$0xff]
        %v3560 = vld [vmem:[#allocation18 + $0x5e0] sm:$0xff]
        %v3561 = vld [vmem:[#allocation18 + $0x5e8] sm:$0xff]
        %v3562 = vld [vmem:[#allocation18 + $0x5f0] sm:$0xff]
        %v3563 = vld [vmem:[#allocation18 + $0x5f8] sm:$0xff]
        %v3564 = vld [vmem:[#allocation20] sm:$0x7]
        %v3566 = vlaneseq
        %v3567 = vshrl.u32 %v3566, 7
        %v3568 = vsub.s32 0, %v3567
        %v3569 = vrot.slane %v3564, %v3568
        %v3570 = vlaneseq
        %v3571 = vshrl.u32 %v3570, 7
        %v3572 = vsub.s32 1, %v3571
        %v3573 = vrot.slane %v3564, %v3572
        %v3574 = vlaneseq
        %v3575 = vshrl.u32 %v3574, 7
        %v3576 = vsub.s32 2, %v3575
        %v3577 = vrot.slane %v3564, %v3576
        %3581 = vmatprep.subr.mxu0 %v3418
        %3582 = vmatpush1.msra.mxu0 %v3417
        %3583 = vmatprep.subr.mxu0 %v3415
        %3584 = vmatpush1.msra.mxu0 %v3414
        %3585 = vmatprep.subr.mxu0 %v3412
        %3586 = vmatpush1.msra.mxu0 %v3411
        %3587 = vmatprep.subr.mxu0 %v3409
        %3588 = vmatpush1.msra.mxu0 %v3408
        %3589 = vmatprep.subr.mxu0 %v3406
        %3590 = vmatpush1.msra.mxu0 %v3405
        %3591 = vmatprep.subr.mxu0 %v3403
        %3592 = vmatpush1.msra.mxu0 %v3402
        %3593 = vmatprep.subr.mxu0 %v3400
        %3594 = vmatpush1.msra.mxu0 %v3399
        %3595 = vmatprep.subr.mxu0 %v3397
        %3596 = vmatpush1.msra.mxu0 %v3396
        %3597 = vmatprep.subr.mxu0 %v3394
        %3598 = vmatpush1.msra.mxu0 %v3393
        %3599 = vmatprep.subr.mxu0 %v3391
        %3600 = vmatpush1.msra.mxu0 %v3390
        %3601 = vmatprep.subr.mxu0 %v3388
        %3602 = vmatpush1.msra.mxu0 %v3387
        %3603 = vmatprep.subr.mxu0 %v3385
        %3604 = vmatpush1.msra.mxu0 %v3384
        %3605 = vmatprep.subr.mxu0 %v3382
        %3606 = vmatpush1.msra.mxu0 %v3381
        %3607 = vmatprep.subr.mxu0 %v3379
        %3608 = vmatpush1.msra.mxu0 %v3378
        %3609 = vmatprep.subr.mxu0 %v3376
        %3610 = vmatpush1.msra.mxu0 %v3375
        %3611 = vmatprep.subr.mxu0 %v3373
        %3612 = vmatpush1.msra.mxu0 %v3372
        %3613 = vmatprep.subr.mxu0 %v3466
        %3614 = vmatpush2.msra.mxu0 %v3465
        %3615 = vmatprep.subr.mxu0 %v3463
        %3616 = vmatpush2.msra.mxu0 %v3462
        %3617 = vmatprep.subr.mxu0 %v3460
        %3618 = vmatpush2.msra.mxu0 %v3459
        %3619 = vmatprep.subr.mxu0 %v3457
        %3620 = vmatpush2.msra.mxu0 %v3456
        %3621 = vmatprep.subr.mxu0 %v3454
        %3622 = vmatpush2.msra.mxu0 %v3453
        %3623 = vmatprep.subr.mxu0 %v3451
        %3624 = vmatpush2.msra.mxu0 %v3450
        %3625 = vmatprep.subr.mxu0 %v3448
        %3626 = vmatpush2.msra.mxu0 %v3447
        %3627 = vmatprep.subr.mxu0 %v3445
        %3628 = vmatpush2.msra.mxu0 %v3444
        %3629 = vmatprep.subr.mxu0 %v3442
        %3630 = vmatpush2.msra.mxu0 %v3441
        %3631 = vmatprep.subr.mxu0 %v3439
        %3632 = vmatpush2.msra.mxu0 %v3438
        %3633 = vmatprep.subr.mxu0 %v3436
        %3634 = vmatpush2.msra.mxu0 %v3435
        %3635 = vmatprep.subr.mxu0 %v3433
        %3636 = vmatpush2.msra.mxu0 %v3432
        %3637 = vmatprep.subr.mxu0 %v3430
        %3638 = vmatpush2.msra.mxu0 %v3429
        %3639 = vmatprep.subr.mxu0 %v3427
        %3640 = vmatpush2.msra.mxu0 %v3426
        %3641 = vmatprep.subr.mxu0 %v3424
        %3642 = vmatpush2.msra.mxu0 %v3423
        %3643 = vmatprep.subr.mxu0 %v3421
        %3644 = vmatpush2.msra.mxu0 %v3420
        %3645 = vmatprep.mubr.f32.mxu0 %v2875
        %3646 = vmatmul.mubr.f32.gmra.mxu0 %v2874
        %v3647 = vpop.f32.mrf.mxu0
        %v3648 = vadd.f32 %v3569, %v3647
        %v3649 = vpop.f32.mrf.mxu0
        %v3650 = vadd.f32 %v3573, %v3649
        %3651 = vdwg.mxu0
        %3652 = vmatprep.subr.mxu0 %v3514
        %3653 = vmatpush1.msra.mxu0 %v3513
        %3654 = vmatprep.subr.mxu0 %v3511
        %3655 = vmatpush1.msra.mxu0 %v3510
        %3656 = vmatprep.subr.mxu0 %v3508
        %3657 = vmatpush1.msra.mxu0 %v3507
        %3658 = vmatprep.subr.mxu0 %v3505
        %3659 = vmatpush1.msra.mxu0 %v3504
        %3660 = vmatprep.subr.mxu0 %v3502
        %3661 = vmatpush1.msra.mxu0 %v3501
        %3662 = vmatprep.subr.mxu0 %v3499
        %3663 = vmatpush1.msra.mxu0 %v3498
        %3664 = vmatprep.subr.mxu0 %v3496
        %3665 = vmatpush1.msra.mxu0 %v3495
        %3666 = vmatprep.subr.mxu0 %v3493
        %3667 = vmatpush1.msra.mxu0 %v3492
        %3668 = vmatprep.subr.mxu0 %v3490
        %3669 = vmatpush1.msra.mxu0 %v3489
        %3670 = vmatprep.subr.mxu0 %v3487
        %3671 = vmatpush1.msra.mxu0 %v3486
        %3672 = vmatprep.subr.mxu0 %v3484
        %3673 = vmatpush1.msra.mxu0 %v3483
        %3674 = vmatprep.subr.mxu0 %v3481
        %3675 = vmatpush1.msra.mxu0 %v3480
        %3676 = vmatprep.subr.mxu0 %v3478
        %3677 = vmatpush1.msra.mxu0 %v3477
        %3678 = vmatprep.subr.mxu0 %v3475
        %3679 = vmatpush1.msra.mxu0 %v3474
        %3680 = vmatprep.subr.mxu0 %v3472
        %3681 = vmatpush1.msra.mxu0 %v3471
        %3682 = vmatprep.subr.mxu0 %v3469
        %3683 = vmatpush1.msra.mxu0 %v3468
        %3684 = vmatprep.subr.mxu0 %v3562
        %3685 = vmatpush2.msra.mxu0 %v3561
        %3686 = vmatprep.subr.mxu0 %v3559
        %3687 = vmatpush2.msra.mxu0 %v3558
        %3688 = vmatprep.subr.mxu0 %v3556
        %3689 = vmatpush2.msra.mxu0 %v3555
        %3690 = vmatprep.subr.mxu0 %v3553
        %3691 = vmatpush2.msra.mxu0 %v3552
        %3692 = vmatprep.subr.mxu0 %v3550
        %3693 = vmatpush2.msra.mxu0 %v3549
        %3694 = vmatprep.subr.mxu0 %v3547
        %3695 = vmatpush2.msra.mxu0 %v3546
        %3696 = vmatprep.subr.mxu0 %v3544
        %3697 = vmatpush2.msra.mxu0 %v3543
        %3698 = vmatprep.subr.mxu0 %v3541
        %3699 = vmatpush2.msra.mxu0 %v3540
        %3700 = vmatprep.subr.mxu0 %v3538
        %3701 = vmatpush2.msra.mxu0 %v3537
        %3702 = vmatprep.subr.mxu0 %v3535
        %3703 = vmatpush2.msra.mxu0 %v3534
        %3704 = vmatprep.subr.mxu0 %v3532
        %3705 = vmatpush2.msra.mxu0 %v3531
        %3706 = vmatprep.subr.mxu0 %v3529
        %3707 = vmatpush2.msra.mxu0 %v3528
        %3708 = vmatprep.subr.mxu0 %v3526
        %3709 = vmatpush2.msra.mxu0 %v3525
        %3710 = vmatprep.subr.mxu0 %v3523
        %3711 = vmatpush2.msra.mxu0 %v3522
        %3712 = vmatprep.subr.mxu0 %v3520
        %3713 = vmatpush2.msra.mxu0 %v3519
        %3714 = vmatprep.subr.mxu0 %v3517
        %3715 = vmatpush2.msra.mxu0 %v3516
        %3716 = vmatprep.mubr.f32.mxu0 %v2877
        %3717 = vmatmul.mubr.f32.gmra.mxu0 %v2876
        %v3718 = vpop.f32.mrf.mxu0
        %v3719 = vadd.f32 %v3648, %v3718
        %v3720 = vpop.f32.mrf.mxu0
        %v3721 = vadd.f32 %v3650, %v3720
        %3722 = vdwg.mxu0
        %3723 = vmatprep.subr.mxu0 0.0
        %3724 = vmatpush1.msra.mxu0 %v3419
        %3725 = vmatprep.subr.mxu0 0.0
        %3726 = vmatpush1.msra.mxu0 %v3416
        %3727 = vmatprep.subr.mxu0 0.0
        %3728 = vmatpush1.msra.mxu0 %v3413
        %3729 = vmatprep.subr.mxu0 0.0
        %3730 = vmatpush1.msra.mxu0 %v3410
        %3731 = vmatprep.subr.mxu0 0.0
        %3732 = vmatpush1.msra.mxu0 %v3407
        %3733 = vmatprep.subr.mxu0 0.0
        %3734 = vmatpush1.msra.mxu0 %v3404
        %3735 = vmatprep.subr.mxu0 0.0
        %3736 = vmatpush1.msra.mxu0 %v3401
        %3737 = vmatprep.subr.mxu0 0.0
        %3738 = vmatpush1.msra.mxu0 %v3398
        %3739 = vmatprep.subr.mxu0 0.0
        %3740 = vmatpush1.msra.mxu0 %v3395
        %3741 = vmatprep.subr.mxu0 0.0
        %3742 = vmatpush1.msra.mxu0 %v3392
        %3743 = vmatprep.subr.mxu0 0.0
        %3744 = vmatpush1.msra.mxu0 %v3389
        %3745 = vmatprep.subr.mxu0 0.0
        %3746 = vmatpush1.msra.mxu0 %v3386
        %3747 = vmatprep.subr.mxu0 0.0
        %3748 = vmatpush1.msra.mxu0 %v3383
        %3749 = vmatprep.subr.mxu0 0.0
        %3750 = vmatpush1.msra.mxu0 %v3380
        %3751 = vmatprep.subr.mxu0 0.0
        %3752 = vmatpush1.msra.mxu0 %v3377
        %3753 = vmatprep.subr.mxu0 0.0
        %3754 = vmatpush1.msra.mxu0 %v3374
        %3755 = vmatprep.subr.mxu0 0.0
        %3756 = vmatpush2.msra.mxu0 %v3467
        %3757 = vmatprep.subr.mxu0 0.0
        %3758 = vmatpush2.msra.mxu0 %v3464
        %3759 = vmatprep.subr.mxu0 0.0
        %3760 = vmatpush2.msra.mxu0 %v3461
        %3761 = vmatprep.subr.mxu0 0.0
        %3762 = vmatpush2.msra.mxu0 %v3458
        %3763 = vmatprep.subr.mxu0 0.0
        %3764 = vmatpush2.msra.mxu0 %v3455
        %3765 = vmatprep.subr.mxu0 0.0
        %3766 = vmatpush2.msra.mxu0 %v3452
        %3767 = vmatprep.subr.mxu0 0.0
        %3768 = vmatpush2.msra.mxu0 %v3449
        %3769 = vmatprep.subr.mxu0 0.0
        %3770 = vmatpush2.msra.mxu0 %v3446
        %3771 = vmatprep.subr.mxu0 0.0
        %3772 = vmatpush2.msra.mxu0 %v3443
        %3773 = vmatprep.subr.mxu0 0.0
        %3774 = vmatpush2.msra.mxu0 %v3440
        %3775 = vmatprep.subr.mxu0 0.0
        %3776 = vmatpush2.msra.mxu0 %v3437
        %3777 = vmatprep.subr.mxu0 0.0
        %3778 = vmatpush2.msra.mxu0 %v3434
        %3779 = vmatprep.subr.mxu0 0.0
        %3780 = vmatpush2.msra.mxu0 %v3431
        %3781 = vmatprep.subr.mxu0 0.0
        %3782 = vmatpush2.msra.mxu0 %v3428
        %3783 = vmatprep.subr.mxu0 0.0
        %3784 = vmatpush2.msra.mxu0 %v3425
        %3785 = vmatprep.subr.mxu0 0.0
        %3786 = vmatpush2.msra.mxu0 %v3422
        %3787 = vmatprep.mubr.f32.mxu0 %v2875
        %3788 = vmatmul.mubr.f32.gmra.mxu0 %v2874
        %v3789 = vpop.f32.mrf.mxu0
        %v3790 = vadd.f32 %v3577, %v3789
        %v3791 = vpop.f32.mrf.mxu0
        %3792 = vdwg.mxu0
        %3793 = vmatprep.subr.mxu0 0.0
        %3794 = vmatpush1.msra.mxu0 %v3515
        %3795 = vmatprep.subr.mxu0 0.0
        %3796 = vmatpush1.msra.mxu0 %v3512
        %3797 = vmatprep.subr.mxu0 0.0
        %3798 = vmatpush1.msra.mxu0 %v3509
        %3799 = vmatprep.subr.mxu0 0.0
        %3800 = vmatpush1.msra.mxu0 %v3506
        %3801 = vmatprep.subr.mxu0 0.0
        %3802 = vmatpush1.msra.mxu0 %v3503
        %3803 = vmatprep.subr.mxu0 0.0
        %3804 = vmatpush1.msra.mxu0 %v3500
        %3805 = vmatprep.subr.mxu0 0.0
        %3806 = vmatpush1.msra.mxu0 %v3497
        %3807 = vmatprep.subr.mxu0 0.0
        %3808 = vmatpush1.msra.mxu0 %v3494
        %3809 = vmatprep.subr.mxu0 0.0
        %3810 = vmatpush1.msra.mxu0 %v3491
        %3811 = vmatprep.subr.mxu0 0.0
        %3812 = vmatpush1.msra.mxu0 %v3488
        %3813 = vmatprep.subr.mxu0 0.0
        %3814 = vmatpush1.msra.mxu0 %v3485
        %3815 = vmatprep.subr.mxu0 0.0
        %3816 = vmatpush1.msra.mxu0 %v3482
        %3817 = vmatprep.subr.mxu0 0.0
        %3818 = vmatpush1.msra.mxu0 %v3479
        %3819 = vmatprep.subr.mxu0 0.0
        %3820 = vmatpush1.msra.mxu0 %v3476
        %3821 = vmatprep.subr.mxu0 0.0
        %3822 = vmatpush1.msra.mxu0 %v3473
        %3823 = vmatprep.subr.mxu0 0.0
        %3824 = vmatpush1.msra.mxu0 %v3470
        %3825 = vmatprep.subr.mxu0 0.0
        %3826 = vmatpush2.msra.mxu0 %v3563
        %3827 = vmatprep.subr.mxu0 0.0
        %3828 = vmatpush2.msra.mxu0 %v3560
        %3829 = vmatprep.subr.mxu0 0.0
        %3830 = vmatpush2.msra.mxu0 %v3557
        %3831 = vmatprep.subr.mxu0 0.0
        %3832 = vmatpush2.msra.mxu0 %v3554
        %3833 = vmatprep.subr.mxu0 0.0
        %3834 = vmatpush2.msra.mxu0 %v3551
        %3835 = vmatprep.subr.mxu0 0.0
        %3836 = vmatpush2.msra.mxu0 %v3548
        %3837 = vmatprep.subr.mxu0 0.0
        %3838 = vmatpush2.msra.mxu0 %v3545
        %3839 = vmatprep.subr.mxu0 0.0
        %3840 = vmatpush2.msra.mxu0 %v3542
        %3841 = vmatprep.subr.mxu0 0.0
        %3842 = vmatpush2.msra.mxu0 %v3539
        %3843 = vmatprep.subr.mxu0 0.0
        %3844 = vmatpush2.msra.mxu0 %v3536
        %3845 = vmatprep.subr.mxu0 0.0
        %3846 = vmatpush2.msra.mxu0 %v3533
        %3847 = vmatprep.subr.mxu0 0.0
        %3848 = vmatpush2.msra.mxu0 %v3530
        %3849 = vmatprep.subr.mxu0 0.0
        %3850 = vmatpush2.msra.mxu0 %v3527
        %3851 = vmatprep.subr.mxu0 0.0
        %3852 = vmatpush2.msra.mxu0 %v3524
        %3853 = vmatprep.subr.mxu0 0.0
        %3854 = vmatpush2.msra.mxu0 %v3521
        %3855 = vmatprep.subr.mxu0 0.0
        %3856 = vmatpush2.msra.mxu0 %v3518
        %3857 = vmatprep.mubr.f32.mxu0 %v2877
        %3858 = vmatmul.mubr.f32.gmra.mxu0 %v2876
        %v3859 = vpop.f32.mrf.mxu0
        %v3860 = vadd.f32 %v3790, %v3859
        %v3861 = vpop.f32.mrf.mxu0
        %3862 = vdwg.mxu0
        %3863 = vst [vmem:[%s621] sm:$0xff] %v3719
        %3864 = vst [vmem:[%s621 + $0x8] sm:$0xff] %v3721
        %3865 = vst [vmem:[%s621 + $0x10] sm:$0xff] %v3860
        %s3866 = sand.u32 %s294, 1
        %s3867 = scalar_lea.sflag [#allocation5], %s3866
        %s3868 = sand.u32 %s294, 1
        %s3869 = smul.addr %s3868, 24
        %s3870 = scalar_lea.vmem [#allocation21], %s3869
        %s3871 = sand.u32 %s320, 1
        %s3872 = scalar_lea.sflag [#allocation23], %s3871
        %s3873 = sand.u32 %s320, 1
        %s3874 = smul.addr %s3873, 24
        %s3875 = scalar_lea.vmem [#allocation22], %s3874
        // Predicated region
        $region109: #{tpu_custom_call.1} parent=63 // pred_check
          %p3876 = pneg %p304
        $region110: #{tpu_custom_call.1} parent=63 // pred_check_branch
          %3878 = sbr.rel (%p3876) target = $region112
        $region111: #{tpu_custom_call.1} parent=63 // pred_region
          %s3880 = ssub.s32 384, 384
          %3881 = vsyncadd %s3867, %s3880
          %s3882 = smul.addr %s40, 3
          %s3883 = smul.addr %s3882, 128
          %s3884 = scalar_lea.hbm %s11, %s3883
          %s3886 = sshll.u32 %s3870, 4
          %s3887 = int_to_ptr.vmem [resolvable:$true] %s3886
          %3889 = dma.vmem_to_hbm [thread:$0]  %s3887, 384, %s3884, %s3867
        $region112: #{tpu_custom_call.1} parent=63 // pred_fallthru
          _
        // Predicated region
        $region113: #{tpu_custom_call.1} parent=63 // pred_check
          %p3890 = pneg %p330
        $region114: #{tpu_custom_call.1} parent=63 // pred_check_branch
          %3892 = sbr.rel (%p3890) target = $region116
        $region115: #{tpu_custom_call.1} parent=63 // pred_region
          %s3894 = ssub.s32 384, 384
          %3895 = vsyncadd %s3872, %s3894
          %s3896 = smul.addr %s40, 3
          %s3897 = smul.addr %s3896, 128
          %s3898 = scalar_lea.hbm %s12, %s3897
          %s3900 = sshll.u32 %s3875, 4
          %s3901 = int_to_ptr.vmem [resolvable:$true] %s3900
          %3903 = dma.vmem_to_hbm [thread:$0]  %s3901, 384, %s3898, %s3872
        $region116: #{tpu_custom_call.1} parent=63 // pred_fallthru
          _
      $region64: #{tpu_custom_call.1} parent=5 // pred_fallthru
        _
      %p3904 = scmp.le.s32.totalorder 2, %s35
      // Predicated region
      $region117: #{tpu_custom_call.1} parent=5 // pred_check
        %p3905 = pneg %p3904
      $region118: #{tpu_custom_call.1} parent=5 // pred_check_branch
        %3907 = sbr.rel (%p3905) target = $region120
      $region119: #{tpu_custom_call.1} parent=5 // pred_region
        %s3908 = ssub.s32 %s35, 2
        // Predicated region
        $region121: #{tpu_custom_call.1} parent=119 // pred_check
          %p3909 = pneg %p310
        $region122: #{tpu_custom_call.1} parent=119 // pred_check_branch
          %3911 = sbr.rel (%p3909) target = $region124
        $region123: #{tpu_custom_call.1} parent=119 // pred_region
          %s3912 = sand.u32 %s295, 1
          %s3913 = scalar_lea.sflag [#allocation5], %s3912
          %s3914 = sand.u32 %s295, 1
          %s3915 = smul.addr %s3914, 24
          %s3916 = scalar_lea.vmem [#allocation21], %s3915
          %3917 = dma.done %s3913, 384
        $region124: #{tpu_custom_call.1} parent=119 // pred_fallthru
          _
        // Predicated region
        $region125: #{tpu_custom_call.1} parent=119 // pred_check
          %p3918 = pneg %p336
        $region126: #{tpu_custom_call.1} parent=119 // pred_check_branch
          %3920 = sbr.rel (%p3918) target = $region128
        $region127: #{tpu_custom_call.1} parent=119 // pred_region
          %s3921 = sand.u32 %s321, 1
          %s3922 = scalar_lea.sflag [#allocation23], %s3921
          %s3923 = sand.u32 %s321, 1
          %s3924 = smul.addr %s3923, 24
          %s3925 = scalar_lea.vmem [#allocation22], %s3924
          %3926 = dma.done %s3922, 384
        $region128: #{tpu_custom_call.1} parent=119 // pred_fallthru
          _
      $region120: #{tpu_custom_call.1} parent=5 // pred_fallthru
        _
    $region6: #{tpu_custom_call.1} parent=1 // loop_footer
      %s39 = sadd.s32 1, %s35
    $region7: #{tpu_custom_call.1} parent=1 // loop_footer_branch
      %34 = sbr.rel target = $region3
    $region8: #{tpu_custom_call.1} parent=1 // loop_exit
      _
    %3927 = vsyncpa [#allocation4], 1
    %s3928 = scalar_lea.sflag [#allocation4], 1
    %3929 = vsyncpa %s3928, 1
    %3930 = vsyncpa [#allocation7], 1
    %s3931 = scalar_lea.sflag [#allocation7], 1
    %3932 = vsyncpa %s3931, 1
    %3933 = vsyncpa [#allocation10], 1
    %3934 = vsyncpa [#allocation13], 1
    %3935 = vsyncpa [#allocation16], 1
    %3936 = vsyncpa [#allocation19], 1
    %3937 = vsyncpa [#allocation5], 1
    %s3938 = scalar_lea.sflag [#allocation5], 1
    %3939 = vsyncpa %s3938, 1
    %3940 = vsyncpa [#allocation23], 1
    %s3941 = scalar_lea.sflag [#allocation23], 1
    %3942 = vsyncpa %s3941, 1

// kernel: tpu_custom_call.1
$region0: #{tpu_custom_call.1}
  #allocation0 [shape = 'u32[]', space=smem, size = 0x4, offset = 0x4, fixed_abs, tag = 'smem constant byte address 0x4 - core index']
  #allocation1 [shape = 'u32[144,128]{1,0:T(1,128)}', space=vmem, size = 0x12000, scoped, tag = 'internal scratch']
  #allocation2 [shape = 'f32[16,1024]{1,0:T(8,128)}', space=vmem, size = 0x10000, scoped, tag = 'scratch operand']
  %s0 = inlined_call_operand.hbm [shape: f32[16,384], index: 0, kind: input, shape index: {}]
  %s1 = inlined_call_operand.hbm [shape: f32[16,384], index: 1, kind: input, shape index: {}]
  %s2 = inlined_call_operand.hbm [shape: f32[16,384], index: 2, kind: input, shape index: {}]
  %s3 = inlined_call_operand.hbm [shape: f32[384,1024], index: 3, kind: input, shape index: {}]
  %s4 = inlined_call_operand.hbm [shape: f32[1,1024], index: 4, kind: input, shape index: {}]
  %s5 = inlined_call_operand.hbm [shape: f32[512,384], index: 5, kind: input, shape index: {}]
  %s6 = inlined_call_operand.hbm [shape: f32[1,384], index: 6, kind: input, shape index: {}]
  %s7 = inlined_call_operand.hbm [shape: f32[384,1024], index: 7, kind: input, shape index: {}]
  %s8 = inlined_call_operand.hbm [shape: f32[1,1024], index: 8, kind: input, shape index: {}]
  %s9 = inlined_call_operand.hbm [shape: f32[512,384], index: 9, kind: input, shape index: {}]
  %s10 = inlined_call_operand.hbm [shape: f32[1,384], index: 10, kind: input, shape index: {}]
  %s11 = inlined_call_operand.hbm [shape: f32[16,384], index: 11, kind: output, shape index: {0}]
  %s12 = inlined_call_operand.hbm [shape: f32[16,384], index: 12, kind: output, shape index: {1}]
  %13 = xla_tuple %s11, %s12
  %s14 = sld [smem:[#allocation0]]
  $region129: #{tpu_custom_call.1} parent=0
    _
  %s16 = ssub.s32 1, %s14
  %s17 = scalar_select 0, %s16, %s14
  $region1: #{tpu_custom_call.1} parent=0
    #allocation3 [shape = 'u8[24576]{0}', space=vmem, size = 0x6000, scoped, tag = 'input window, operand 0']
    #allocation4 [shape = 's32[2]{0}', space=sflag, size = 0x8, scoped, tag = 'scoped memory for tpu_custom_call.1']
    #allocation5 [shape = 's32[2]{0}', space=sflag, size = 0x8, scoped, tag = 'scoped memory for tpu_custom_call.1']
    #allocation6 [shape = 'u8[24576]{0}', space=vmem, size = 0x6000, scoped, tag = 'input window, operand 1']
    #allocation7 [shape = 's32[2]{0}', space=sflag, size = 0x8, scoped, tag = 'scoped memory for tpu_custom_call.1']
    #allocation8 [shape = 'u8[24576]{0}', space=vmem, size = 0x6000, scoped, tag = 'input window, operand 2']
    #allocation9 [shape = 'u8[1572864]{0}', space=vmem, size = 0x180000, scoped, tag = 'input window, operand 3, single buffered']
    #allocation10 [shape = 's32[1]{0}', space=sflag, size = 0x4, scoped, tag = 'scoped memory for tpu_custom_call.1']
    #allocation11 [shape = 'u8[4096]{0}', space=vmem, size = 0x1000, scoped, tag = 'input window, operand 4, single buffered']
    #allocation12 [shape = 'u8[786432]{0}', space=vmem, size = 0xc0000, scoped, tag = 'input window, operand 5, single buffered']
    #allocation13 [shape = 's32[1]{0}', space=sflag, size = 0x4, scoped, tag = 'scoped memory for tpu_custom_call.1']
    #allocation14 [shape = 'u8[1536]{0}', space=vmem, size = 0x800, scoped, tag = 'input window, operand 6, single buffered']
    #allocation15 [shape = 'u8[1572864]{0}', space=vmem, size = 0x180000, scoped, tag = 'input window, operand 7, single buffered']
    #allocation16 [shape = 's32[1]{0}', space=sflag, size = 0x4, scoped, tag = 'scoped memory for tpu_custom_call.1']
    #allocation17 [shape = 'u8[4096]{0}', space=vmem, size = 0x1000, scoped, tag = 'input window, operand 8, single buffered']
    #allocation18 [shape = 'u8[786432]{0}', space=vmem, size = 0xc0000, scoped, tag = 'input window, operand 9, single buffered']
    #allocation19 [shape = 's32[1]{0}', space=sflag, size = 0x4, scoped, tag = 'scoped memory for tpu_custom_call.1']
    #allocation20 [shape = 'u8[1536]{0}', space=vmem, size = 0x800, scoped, tag = 'input window, operand 10, single buffered']
    #allocation21 [shape = 'u8[24576]{0}', space=vmem, size = 0x6000, scoped, tag = 'output window, operand 0']
    #allocation22 [shape = 'u8[24576]{0}', space=vmem, size = 0x6000, scoped, tag = 'output window, operand 1']
    #allocation23 [shape = 's32[2]{0}', space=sflag, size = 0x8, scoped, tag = 'scoped memory for tpu_custom_call.1']
    %18 = vsyncpa [#allocation4], 0
    %s19 = scalar_lea.sflag [#allocation4], 1
    %20 = vsyncpa %s19, 0
    %21 = vsyncpa [#allocation7], 0
    %s22 = scalar_lea.sflag [#allocation7], 1
    %23 = vsyncpa %s22, 0
    %24 = vsyncpa [#allocation10], 0
    %25 = vsyncpa [#allocation13], 0
    %26 = vsyncpa [#allocation16], 0
    %27 = vsyncpa [#allocation19], 0
    %28 = vsyncpa [#allocation5], 0
    %s29 = scalar_lea.sflag [#allocation5], 1
    %30 = vsyncpa %s29, 0
    %31 = vsyncpa [#allocation23], 0
    %s32 = scalar_lea.sflag [#allocation23], 1
    %33 = vsyncpa %s32, 0
    loop: start=0, step=1, limit=4
    $region2: #{tpu_custom_call.1} parent=1 // loop_pre_header
      _
    $region3: #{tpu_custom_call.1} parent=1 // loop_header
      %s35 = sphi 0, %s39
      %p36 = scmp.ge.s32.totalorder %s35, 4
      %s45 = sphi 0, %s47
      %s48 = sphi 0, %s45
      %s49 = sphi 0, %s48
      %s65 = sphi 0, %s49
      %s71 = sphi 0, %s73
      %s74 = sphi 0, %s71
      %s75 = sphi 0, %s74
      %s91 = sphi 0, %s75
      %s97 = sphi 0, %s99
      %s100 = sphi 0, %s97
      %s101 = sphi 0, %s100
      %s117 = sphi 0, %s101
      %s121 = sphi 0, %s121
      %s123 = sphi 0, %s121
      %s124 = sphi 0, %s123
      %s138 = sphi 0, %s124
      %s142 = sphi 0, %s142
      %s144 = sphi 0, %s142
      %s145 = sphi 0, %s144
      %s159 = sphi 0, %s145
      %s163 = sphi 0, %s163
      %s165 = sphi 0, %s163
      %s166 = sphi 0, %s165
      %s180 = sphi 0, %s166
      %s184 = sphi 0, %s184
      %s186 = sphi 0, %s184
      %s187 = sphi 0, %s186
      %s201 = sphi 0, %s187
      %s205 = sphi 0, %s205
      %s207 = sphi 0, %s205
      %s208 = sphi 0, %s207
      %s222 = sphi 0, %s208
      %s226 = sphi 0, %s226
      %s228 = sphi 0, %s226
      %s229 = sphi 0, %s228
      %s243 = sphi 0, %s229
      %s247 = sphi 0, %s247
      %s249 = sphi 0, %s247
      %s250 = sphi 0, %s249
      %s264 = sphi 0, %s250
      %s268 = sphi 0, %s268
      %s270 = sphi 0, %s268
      %s271 = sphi 0, %s270
      %s285 = sphi 0, %s271
      %s291 = sphi 0, %s293
      %s294 = sphi 0, %s291
      %s295 = sphi 0, %s294
      %s311 = sphi 0, %s295
      %s317 = sphi 0, %s319
      %s320 = sphi 0, %s317
      %s321 = sphi 0, %s320
      %s337 = sphi 0, %s321
    $region4: #{tpu_custom_call.1} parent=1 // loop_header_branch
      %38 = sbr.rel (%p36) target = $region8
    $region5: #{tpu_custom_call.1} parent=1 // loop_body
      %s40 = ssub.s32 %s35, 1
      %s41 = ssub.s32 %s35, 2
      %s42 = sadd.s32 %s35, 1
      %s43 = ssub.s32 %s35, %s42
      %p44 = scmp.eq.s32.totalorder %s43, 0
      %s46 = sadd.s32 %s45, 1
      %s47 = scalar_select %p44, %s45, %s46
      %p50 = pneg %p44
      %p51 = scmp.eq.s32.totalorder %s35, 1
      %p52 = por %p50, %p51
      %p53 = scmp.ne.s32.totalorder %s45, %s48
      %p54 = scmp.eq.s32.totalorder %s35, 0
      %p55 = por %p53, %p54
      %p56 = scmp.ne.s32.totalorder %s45, %s48
      %p57 = scmp.eq.s32.totalorder %s40, 1
      %p58 = por %p56, %p57
      %p59 = scmp.ne.s32.totalorder %s48, %s49
      %p60 = scmp.eq.s32.totalorder %s40, 0
      %p61 = por %p59, %p60
      %p62 = scmp.ne.s32.totalorder %s48, %s49
      %p63 = scmp.eq.s32.totalorder %s41, 1
      %p64 = por %p62, %p63
      %p66 = scmp.ne.s32.totalorder %s49, %s65
      %p67 = scmp.eq.s32.totalorder %s41, 0
      %p68 = por %p66, %p67
      %s69 = ssub.s32 %s35, %s42
      %p70 = scmp.eq.s32.totalorder %s69, 0
      %s72 = sadd.s32 %s71, 1
      %s73 = scalar_select %p70, %s71, %s72
      %p76 = pneg %p70
      %p77 = scmp.eq.s32.totalorder %s35, 1
      %p78 = por %p76, %p77
      %p79 = scmp.ne.s32.totalorder %s71, %s74
      %p80 = scmp.eq.s32.totalorder %s35, 0
      %p81 = por %p79, %p80
      %p82 = scmp.ne.s32.totalorder %s71, %s74
      %p83 = scmp.eq.s32.totalorder %s40, 1
      %p84 = por %p82, %p83
      %p85 = scmp.ne.s32.totalorder %s74, %s75
      %p86 = scmp.eq.s32.totalorder %s40, 0
      %p87 = por %p85, %p86
      %p88 = scmp.ne.s32.totalorder %s74, %s75
      %p89 = scmp.eq.s32.totalorder %s41, 1
      %p90 = por %p88, %p89
      %p92 = scmp.ne.s32.totalorder %s75, %s91
      %p93 = scmp.eq.s32.totalorder %s41, 0
      %p94 = por %p92, %p93
      %s95 = ssub.s32 %s35, %s42
      %p96 = scmp.eq.s32.totalorder %s95, 0
      %s98 = sadd.s32 %s97, 1
      %s99 = scalar_select %p96, %s97, %s98
      %p102 = pneg %p96
      %p103 = scmp.eq.s32.totalorder %s35, 1
      %p104 = por %p102, %p103
      %p105 = scmp.ne.s32.totalorder %s97, %s100
      %p106 = scmp.eq.s32.totalorder %s35, 0
      %p107 = por %p105, %p106
      %p108 = scmp.ne.s32.totalorder %s97, %s100
      %p109 = scmp.eq.s32.totalorder %s40, 1
      %p110 = por %p108, %p109
      %p111 = scmp.ne.s32.totalorder %s100, %s101
      %p112 = scmp.eq.s32.totalorder %s40, 0
      %p113 = por %p111, %p112
      %p114 = scmp.ne.s32.totalorder %s100, %s101
      %p115 = scmp.eq.s32.totalorder %s41, 1
      %p116 = por %p114, %p115
      %p118 = scmp.ne.s32.totalorder %s101, %s117
      %p119 = scmp.eq.s32.totalorder %s41, 0
      %p120 = por %p118, %p119
      %s122 = sadd.s32 %s121, 1
      %p125 = scmp.eq.s32.totalorder %s35, 1
      %p126 = scmp.ne.s32.totalorder %s121, %s123
      %p127 = scmp.eq.s32.totalorder %s35, 0
      %p128 = por %p126, %p127
      %p129 = scmp.ne.s32.totalorder %s121, %s123
      %p130 = scmp.eq.s32.totalorder %s40, 1
      %p131 = por %p129, %p130
      %p132 = scmp.ne.s32.totalorder %s123, %s124
      %p133 = scmp.eq.s32.totalorder %s40, 0
      %p134 = por %p132, %p133
      %p135 = scmp.ne.s32.totalorder %s123, %s124
      %p136 = scmp.eq.s32.totalorder %s41, 1
      %p137 = por %p135, %p136
      %p139 = scmp.ne.s32.totalorder %s124, %s138
      %p140 = scmp.eq.s32.totalorder %s41, 0
      %p141 = por %p139, %p140
      %s143 = sadd.s32 %s142, 1
      %p146 = scmp.eq.s32.totalorder %s35, 1
      %p147 = scmp.ne.s32.totalorder %s142, %s144
      %p148 = scmp.eq.s32.totalorder %s35, 0
      %p149 = por %p147, %p148
      %p150 = scmp.ne.s32.totalorder %s142, %s144
      %p151 = scmp.eq.s32.totalorder %s40, 1
      %p152 = por %p150, %p151
      %p153 = scmp.ne.s32.totalorder %s144, %s145
      %p154 = scmp.eq.s32.totalorder %s40, 0
      %p155 = por %p153, %p154
      %p156 = scmp.ne.s32.totalorder %s144, %s145
      %p157 = scmp.eq.s32.totalorder %s41, 1
      %p158 = por %p156, %p157
      %p160 = scmp.ne.s32.totalorder %s145, %s159
      %p161 = scmp.eq.s32.totalorder %s41, 0
      %p162 = por %p160, %p161
      %s164 = sadd.s32 %s163, 1
      %p167 = scmp.eq.s32.totalorder %s35, 1
      %p168 = scmp.ne.s32.totalorder %s163, %s165
      %p169 = scmp.eq.s32.totalorder %s35, 0
      %p170 = por %p168, %p169
      %p171 = scmp.ne.s32.totalorder %s163, %s165
      %p172 = scmp.eq.s32.totalorder %s40, 1
      %p173 = por %p171, %p172
      %p174 = scmp.ne.s32.totalorder %s165, %s166
      %p175 = scmp.eq.s32.totalorder %s40, 0
      %p176 = por %p174, %p175
      %p177 = scmp.ne.s32.totalorder %s165, %s166
      %p178 = scmp.eq.s32.totalorder %s41, 1
      %p179 = por %p177, %p178
      %p181 = scmp.ne.s32.totalorder %s166, %s180
      %p182 = scmp.eq.s32.totalorder %s41, 0
      %p183 = por %p181, %p182
      %s185 = sadd.s32 %s184, 1
      %p188 = scmp.eq.s32.totalorder %s35, 1
      %p189 = scmp.ne.s32.totalorder %s184, %s186
      %p190 = scmp.eq.s32.totalorder %s35, 0
      %p191 = por %p189, %p190
      %p192 = scmp.ne.s32.totalorder %s184, %s186
      %p193 = scmp.eq.s32.totalorder %s40, 1
      %p194 = por %p192, %p193
      %p195 = scmp.ne.s32.totalorder %s186, %s187
      %p196 = scmp.eq.s32.totalorder %s40, 0
      %p197 = por %p195, %p196
      %p198 = scmp.ne.s32.totalorder %s186, %s187
      %p199 = scmp.eq.s32.totalorder %s41, 1
      %p200 = por %p198, %p199
      %p202 = scmp.ne.s32.totalorder %s187, %s201
      %p203 = scmp.eq.s32.totalorder %s41, 0
      %p204 = por %p202, %p203
      %s206 = sadd.s32 %s205, 1
      %p209 = scmp.eq.s32.totalorder %s35, 1
      %p210 = scmp.ne.s32.totalorder %s205, %s207
      %p211 = scmp.eq.s32.totalorder %s35, 0
      %p212 = por %p210, %p211
      %p213 = scmp.ne.s32.totalorder %s205, %s207
      %p214 = scmp.eq.s32.totalorder %s40, 1
      %p215 = por %p213, %p214
      %p216 = scmp.ne.s32.totalorder %s207, %s208
      %p217 = scmp.eq.s32.totalorder %s40, 0
      %p218 = por %p216, %p217
      %p219 = scmp.ne.s32.totalorder %s207, %s208
      %p220 = scmp.eq.s32.totalorder %s41, 1
      %p221 = por %p219, %p220
      %p223 = scmp.ne.s32.totalorder %s208, %s222
      %p224 = scmp.eq.s32.totalorder %s41, 0
      %p225 = por %p223, %p224
      %s227 = sadd.s32 %s226, 1
      %p230 = scmp.eq.s32.totalorder %s35, 1
      %p231 = scmp.ne.s32.totalorder %s226, %s228
      %p232 = scmp.eq.s32.totalorder %s35, 0
      %p233 = por %p231, %p232
      %p234 = scmp.ne.s32.totalorder %s226, %s228
      %p235 = scmp.eq.s32.totalorder %s40, 1
      %p236 = por %p234, %p235
      %p237 = scmp.ne.s32.totalorder %s228, %s229
      %p238 = scmp.eq.s32.totalorder %s40, 0
      %p239 = por %p237, %p238
      %p240 = scmp.ne.s32.totalorder %s228, %s229
      %p241 = scmp.eq.s32.totalorder %s41, 1
      %p242 = por %p240, %p241
      %p244 = scmp.ne.s32.totalorder %s229, %s243
      %p245 = scmp.eq.s32.totalorder %s41, 0
      %p246 = por %p244, %p245
      %s248 = sadd.s32 %s247, 1
      %p251 = scmp.eq.s32.totalorder %s35, 1
      %p252 = scmp.ne.s32.totalorder %s247, %s249
      %p253 = scmp.eq.s32.totalorder %s35, 0
      %p254 = por %p252, %p253
      %p255 = scmp.ne.s32.totalorder %s247, %s249
      %p256 = scmp.eq.s32.totalorder %s40, 1
      %p257 = por %p255, %p256
      %p258 = scmp.ne.s32.totalorder %s249, %s250
      %p259 = scmp.eq.s32.totalorder %s40, 0
      %p260 = por %p258, %p259
      %p261 = scmp.ne.s32.totalorder %s249, %s250
      %p262 = scmp.eq.s32.totalorder %s41, 1
      %p263 = por %p261, %p262
      %p265 = scmp.ne.s32.totalorder %s250, %s264
      %p266 = scmp.eq.s32.totalorder %s41, 0
      %p267 = por %p265, %p266
      %s269 = sadd.s32 %s268, 1
      %p272 = scmp.eq.s32.totalorder %s35, 1
      %p273 = scmp.ne.s32.totalorder %s268, %s270
      %p274 = scmp.eq.s32.totalorder %s35, 0
      %p275 = por %p273, %p274
      %p276 = scmp.ne.s32.totalorder %s268, %s270
      %p277 = scmp.eq.s32.totalorder %s40, 1
      %p278 = por %p276, %p277
      %p279 = scmp.ne.s32.totalorder %s270, %s271
      %p280 = scmp.eq.s32.totalorder %s40, 0
      %p281 = por %p279, %p280
      %p282 = scmp.ne.s32.totalorder %s270, %s271
      %p283 = scmp.eq.s32.totalorder %s41, 1
      %p284 = por %p282, %p283
      %p286 = scmp.ne.s32.totalorder %s271, %s285
      %p287 = scmp.eq.s32.totalorder %s41, 0
      %p288 = por %p286, %p287
      %s289 = ssub.s32 %s35, %s42
      %p290 = scmp.eq.s32.totalorder %s289, 0
      %s292 = sadd.s32 %s291, 1
      %s293 = scalar_select %p290, %s291, %s292
      %p296 = pneg %p290
      %p297 = scmp.eq.s32.totalorder %s35, 1
      %p298 = por %p296, %p297
      %p299 = scmp.ne.s32.totalorder %s291, %s294
      %p300 = scmp.eq.s32.totalorder %s35, 0
      %p301 = por %p299, %p300
      %p302 = scmp.ne.s32.totalorder %s291, %s294
      %p303 = scmp.eq.s32.totalorder %s40, 1
      %p304 = por %p302, %p303
      %p305 = scmp.ne.s32.totalorder %s294, %s295
      %p306 = scmp.eq.s32.totalorder %s40, 0
      %p307 = por %p305, %p306
      %p308 = scmp.ne.s32.totalorder %s294, %s295
      %p309 = scmp.eq.s32.totalorder %s41, 1
      %p310 = por %p308, %p309
      %p312 = scmp.ne.s32.totalorder %s295, %s311
      %p313 = scmp.eq.s32.totalorder %s41, 0
      %p314 = por %p312, %p313
      %s315 = ssub.s32 %s35, %s42
      %p316 = scmp.eq.s32.totalorder %s315, 0
      %s318 = sadd.s32 %s317, 1
      %s319 = scalar_select %p316, %s317, %s318
      %p322 = pneg %p316
      %p323 = scmp.eq.s32.totalorder %s35, 1
      %p324 = por %p322, %p323
      %p325 = scmp.ne.s32.totalorder %s317, %s320
      %p326 = scmp.eq.s32.totalorder %s35, 0
      %p327 = por %p325, %p326
      %p328 = scmp.ne.s32.totalorder %s317, %s320
      %p329 = scmp.eq.s32.totalorder %s40, 1
      %p330 = por %p328, %p329
      %p331 = scmp.ne.s32.totalorder %s320, %s321
      %p332 = scmp.eq.s32.totalorder %s40, 0
      %p333 = por %p331, %p332
      %p334 = scmp.ne.s32.totalorder %s320, %s321
      %p335 = scmp.eq.s32.totalorder %s41, 1
      %p336 = por %p334, %p335
      %p338 = scmp.ne.s32.totalorder %s321, %s337
      %p339 = scmp.eq.s32.totalorder %s41, 0
      %p340 = por %p338, %p339
      %p341 = scmp.le.s32.totalorder 1, %s35
      %p342 = scmp.lt.s32.totalorder %s35, 3
      %p343 = pnand %p341, %p342
      %p344 = pneg %p343
      // Predicated region
      $region9: #{tpu_custom_call.1} parent=5 // pred_check
        _
      $region10: #{tpu_custom_call.1} parent=5 // pred_check_branch
        %346 = sbr.rel (%p343) target = $region12
      $region11: #{tpu_custom_call.1} parent=5 // pred_region
        %s347 = ssub.s32 %s35, 1
        // Predicated region
        $region13: #{tpu_custom_call.1} parent=11 // pred_check
          %p348 = pneg %p134
        $region14: #{tpu_custom_call.1} parent=11 // pred_check_branch
          %350 = sbr.rel (%p348) target = $region16
        $region15: #{tpu_custom_call.1} parent=11 // pred_region
          %s352 = ssub.s32 49152, 49152
          %353 = vsyncadd [#allocation10], %s352
          %s354 = sshll.u32 [#allocation9], 4
          %s355 = int_to_ptr.vmem [resolvable:$true] %s354
          %360 = dma.hbm_to_vmem [thread:$0]  %s3, 49152, %s355, [#allocation10], 1024, 1024, 64
        $region16: #{tpu_custom_call.1} parent=11 // pred_fallthru
          _
        // Predicated region
        $region17: #{tpu_custom_call.1} parent=11 // pred_check
          %p361 = pneg %p155
        $region18: #{tpu_custom_call.1} parent=11 // pred_check_branch
          %363 = sbr.rel (%p361) target = $region20
        $region19: #{tpu_custom_call.1} parent=11 // pred_region
          %s365 = ssub.s32 128, 128
          %366 = vsyncadd [#allocation10], %s365
          %s368 = sshll.u32 [#allocation11], 4
          %s369 = int_to_ptr.vmem [resolvable:$true] %s368
          %371 = dma.hbm_to_vmem [thread:$0]  %s4, 128, %s369, [#allocation10]
        $region20: #{tpu_custom_call.1} parent=11 // pred_fallthru
          _
        // Predicated region
        $region21: #{tpu_custom_call.1} parent=11 // pred_check
          %p372 = pneg %p176
        $region22: #{tpu_custom_call.1} parent=11 // pred_check_branch
          %374 = sbr.rel (%p372) target = $region24
        $region23: #{tpu_custom_call.1} parent=11 // pred_region
          %s376 = ssub.s32 24576, 24576
          %377 = vsyncadd [#allocation13], %s376
          %s378 = sshll.u32 [#allocation12], 4
          %s379 = int_to_ptr.vmem [resolvable:$true] %s378
          %384 = dma.hbm_to_vmem [thread:$0]  %s5, 24576, %s379, [#allocation13], 384, 384, 24
        $region24: #{tpu_custom_call.1} parent=11 // pred_fallthru
          _
        // Predicated region
        $region25: #{tpu_custom_call.1} parent=11 // pred_check
          %p385 = pneg %p197
        $region26: #{tpu_custom_call.1} parent=11 // pred_check_branch
          %387 = sbr.rel (%p385) target = $region28
        $region27: #{tpu_custom_call.1} parent=11 // pred_region
          %s389 = ssub.s32 48, 48
          %390 = vsyncadd [#allocation13], %s389
          %s392 = sshll.u32 [#allocation14], 4
          %s393 = int_to_ptr.vmem [resolvable:$true] %s392
          %395 = dma.hbm_to_vmem [thread:$0]  %s6, 48, %s393, [#allocation13]
        $region28: #{tpu_custom_call.1} parent=11 // pred_fallthru
          _
        // Predicated region
        $region29: #{tpu_custom_call.1} parent=11 // pred_check
          %p396 = pneg %p218
        $region30: #{tpu_custom_call.1} parent=11 // pred_check_branch
          %398 = sbr.rel (%p396) target = $region32
        $region31: #{tpu_custom_call.1} parent=11 // pred_region
          %s400 = ssub.s32 49152, 49152
          %401 = vsyncadd [#allocation16], %s400
          %s402 = sshll.u32 [#allocation15], 4
          %s403 = int_to_ptr.vmem [resolvable:$true] %s402
          %408 = dma.hbm_to_vmem [thread:$0]  %s7, 49152, %s403, [#allocation16], 1024, 1024, 64
        $region32: #{tpu_custom_call.1} parent=11 // pred_fallthru
          _
        // Predicated region
        $region33: #{tpu_custom_call.1} parent=11 // pred_check
          %p409 = pneg %p239
        $region34: #{tpu_custom_call.1} parent=11 // pred_check_branch
          %411 = sbr.rel (%p409) target = $region36
        $region35: #{tpu_custom_call.1} parent=11 // pred_region
          %s413 = ssub.s32 128, 128
          %414 = vsyncadd [#allocation16], %s413
          %s416 = sshll.u32 [#allocation17], 4
          %s417 = int_to_ptr.vmem [resolvable:$true] %s416
          %419 = dma.hbm_to_vmem [thread:$0]  %s8, 128, %s417, [#allocation16]
        $region36: #{tpu_custom_call.1} parent=11 // pred_fallthru
          _
        // Predicated region
        $region37: #{tpu_custom_call.1} parent=11 // pred_check
          %p420 = pneg %p260
        $region38: #{tpu_custom_call.1} parent=11 // pred_check_branch
          %422 = sbr.rel (%p420) target = $region40
        $region39: #{tpu_custom_call.1} parent=11 // pred_region
          %s424 = ssub.s32 24576, 24576
          %425 = vsyncadd [#allocation19], %s424
          %s426 = sshll.u32 [#allocation18], 4
          %s427 = int_to_ptr.vmem [resolvable:$true] %s426
          %432 = dma.hbm_to_vmem [thread:$0]  %s9, 24576, %s427, [#allocation19], 384, 384, 24
        $region40: #{tpu_custom_call.1} parent=11 // pred_fallthru
          _
        // Predicated region
        $region41: #{tpu_custom_call.1} parent=11 // pred_check
          %p433 = pneg %p281
        $region42: #{tpu_custom_call.1} parent=11 // pred_check_branch
          %435 = sbr.rel (%p433) target = $region44
        $region43: #{tpu_custom_call.1} parent=11 // pred_region
          %s437 = ssub.s32 48, 48
          %438 = vsyncadd [#allocation19], %s437
          %s440 = sshll.u32 [#allocation20], 4
          %s441 = int_to_ptr.vmem [resolvable:$true] %s440
          %443 = dma.hbm_to_vmem [thread:$0]  %s10, 48, %s441, [#allocation19]
        $region44: #{tpu_custom_call.1} parent=11 // pred_fallthru
          _
      $region12: #{tpu_custom_call.1} parent=5 // pred_fallthru
        _
      %p444 = scmp.lt.s32.totalorder %s35, 2
      // Predicated region
      $region45: #{tpu_custom_call.1} parent=5 // pred_check
        %p445 = pneg %p444
      $region46: #{tpu_custom_call.1} parent=5 // pred_check_branch
        %447 = sbr.rel (%p445) target = $region48
      $region47: #{tpu_custom_call.1} parent=5 // pred_region
        // Predicated region
        $region49: #{tpu_custom_call.1} parent=47 // pred_check
          %p448 = pneg %p55
        $region50: #{tpu_custom_call.1} parent=47 // pred_check_branch
          %450 = sbr.rel (%p448) target = $region52
        $region51: #{tpu_custom_call.1} parent=47 // pred_region
          %s451 = sand.u32 %s45, 1
          %s452 = scalar_lea.sflag [#allocation4], %s451
          %s453 = sand.u32 %s45, 1
          %s454 = smul.addr %s453, 24
          %s455 = scalar_lea.vmem [#allocation3], %s454
          %s457 = ssub.s32 384, 384
          %458 = vsyncadd %s452, %s457
          %s459 = smul.addr %s35, 3
          %s460 = smul.addr %s459, 128
          %s461 = scalar_lea.hbm %s0, %s460
          %s463 = sshll.u32 %s455, 4
          %s464 = int_to_ptr.vmem [resolvable:$true] %s463
          %466 = dma.hbm_to_vmem [thread:$0]  %s461, 384, %s464, %s452
        $region52: #{tpu_custom_call.1} parent=47 // pred_fallthru
          _
        // Predicated region
        $region53: #{tpu_custom_call.1} parent=47 // pred_check
          %p467 = pneg %p81
        $region54: #{tpu_custom_call.1} parent=47 // pred_check_branch
          %469 = sbr.rel (%p467) target = $region56
        $region55: #{tpu_custom_call.1} parent=47 // pred_region
          %s470 = sand.u32 %s35, 1
          %s471 = scalar_lea.sflag [#allocation7], %s470
          %s472 = sand.u32 %s71, 1
          %s473 = smul.addr %s472, 24
          %s474 = scalar_lea.vmem [#allocation6], %s473
          %s476 = ssub.s32 384, 384
          %477 = vsyncadd %s471, %s476
          %s478 = smul.addr %s35, 3
          %s479 = smul.addr %s478, 128
          %s480 = scalar_lea.hbm %s1, %s479
          %s482 = sshll.u32 %s474, 4
          %s483 = int_to_ptr.vmem [resolvable:$true] %s482
          %485 = dma.hbm_to_vmem [thread:$0]  %s480, 384, %s483, %s471
        $region56: #{tpu_custom_call.1} parent=47 // pred_fallthru
          _
        // Predicated region
        $region57: #{tpu_custom_call.1} parent=47 // pred_check
          %p486 = pneg %p107
        $region58: #{tpu_custom_call.1} parent=47 // pred_check_branch
          %488 = sbr.rel (%p486) target = $region60
        $region59: #{tpu_custom_call.1} parent=47 // pred_region
          %s489 = sand.u32 %s35, 1
          %s490 = scalar_lea.sflag [#allocation7], %s489
          %s491 = sand.u32 %s97, 1
          %s492 = smul.addr %s491, 24
          %s493 = scalar_lea.vmem [#allocation8], %s492
          %s495 = ssub.s32 384, 384
          %496 = vsyncadd %s490, %s495
          %s497 = smul.addr %s35, 3
          %s498 = smul.addr %s497, 128
          %s499 = scalar_lea.hbm %s2, %s498
          %s501 = sshll.u32 %s493, 4
          %s502 = int_to_ptr.vmem [resolvable:$true] %s501
          %504 = dma.hbm_to_vmem [thread:$0]  %s499, 384, %s502, %s490
        $region60: #{tpu_custom_call.1} parent=47 // pred_fallthru
          _
      $region48: #{tpu_custom_call.1} parent=5 // pred_fallthru
        _
      %p505 = scmp.le.s32.totalorder 1, %s35
      %p506 = scmp.lt.s32.totalorder %s35, 3
      %p507 = pnand %p505, %p506
      %p508 = pneg %p507
      // Predicated region
      $region61: #{tpu_custom_call.1} parent=5 // pred_check
        _
      $region62: #{tpu_custom_call.1} parent=5 // pred_check_branch
        %510 = sbr.rel (%p507) target = $region64
      $region63: #{tpu_custom_call.1} parent=5 // pred_region
        %s511 = ssub.s32 %s35, 1
        %s512 = sand.u32 %s48, 1
        %s513 = scalar_lea.sflag [#allocation4], %s512
        %s514 = sand.u32 %s48, 1
        %s515 = smul.addr %s514, 24
        %s516 = scalar_lea.vmem [#allocation3], %s515
        // Predicated region
        $region65: #{tpu_custom_call.1} parent=63 // pred_check
          %p517 = pneg %p61
        $region66: #{tpu_custom_call.1} parent=63 // pred_check_branch
          %519 = sbr.rel (%p517) target = $region68
        $region67: #{tpu_custom_call.1} parent=63 // pred_region
          %520 = dma.done %s513, 384
        $region68: #{tpu_custom_call.1} parent=63 // pred_fallthru
          _
        %s521 = sand.u32 %s40, 1
        %s522 = scalar_lea.sflag [#allocation7], %s521
        %s523 = sand.u32 %s74, 1
        %s524 = smul.addr %s523, 24
        %s525 = scalar_lea.vmem [#allocation6], %s524
        // Predicated region
        $region69: #{tpu_custom_call.1} parent=63 // pred_check
          %p526 = pneg %p87
        $region70: #{tpu_custom_call.1} parent=63 // pred_check_branch
          %528 = sbr.rel (%p526) target = $region72
        $region71: #{tpu_custom_call.1} parent=63 // pred_region
          %529 = dma.done %s522, 384
        $region72: #{tpu_custom_call.1} parent=63 // pred_fallthru
          _
        %s530 = sand.u32 %s40, 1
        %s531 = scalar_lea.sflag [#allocation7], %s530
        %s532 = sand.u32 %s100, 1
        %s533 = smul.addr %s532, 24
        %s534 = scalar_lea.vmem [#allocation8], %s533
        // Predicated region
        $region73: #{tpu_custom_call.1} parent=63 // pred_check
          %p535 = pneg %p113
        $region74: #{tpu_custom_call.1} parent=63 // pred_check_branch
          %537 = sbr.rel (%p535) target = $region76
        $region75: #{tpu_custom_call.1} parent=63 // pred_region
          %538 = dma.done %s531, 384
        $region76: #{tpu_custom_call.1} parent=63 // pred_fallthru
          _
        // Predicated region
        $region77: #{tpu_custom_call.1} parent=63 // pred_check
          %p539 = pneg %p134
        $region78: #{tpu_custom_call.1} parent=63 // pred_check_branch
          %541 = sbr.rel (%p539) target = $region80
        $region79: #{tpu_custom_call.1} parent=63 // pred_region
          %542 = dma.done [#allocation10], 49152
        $region80: #{tpu_custom_call.1} parent=63 // pred_fallthru
          _
        // Predicated region
        $region81: #{tpu_custom_call.1} parent=63 // pred_check
          %p543 = pneg %p155
        $region82: #{tpu_custom_call.1} parent=63 // pred_check_branch
          %545 = sbr.rel (%p543) target = $region84
        $region83: #{tpu_custom_call.1} parent=63 // pred_region
          %546 = dma.done [#allocation10], 128
        $region84: #{tpu_custom_call.1} parent=63 // pred_fallthru
          _
        // Predicated region
        $region85: #{tpu_custom_call.1} parent=63 // pred_check
          %p547 = pneg %p176
        $region86: #{tpu_custom_call.1} parent=63 // pred_check_branch
          %549 = sbr.rel (%p547) target = $region88
        $region87: #{tpu_custom_call.1} parent=63 // pred_region
          %550 = dma.done [#allocation13], 24576
        $region88: #{tpu_custom_call.1} parent=63 // pred_fallthru
          _
        // Predicated region
        $region89: #{tpu_custom_call.1} parent=63 // pred_check
          %p551 = pneg %p197
        $region90: #{tpu_custom_call.1} parent=63 // pred_check_branch
          %553 = sbr.rel (%p551) target = $region92
        $region91: #{tpu_custom_call.1} parent=63 // pred_region
          %554 = dma.done [#allocation13], 48
        $region92: #{tpu_custom_call.1} parent=63 // pred_fallthru
          _
        // Predicated region
        $region93: #{tpu_custom_call.1} parent=63 // pred_check
          %p555 = pneg %p218
        $region94: #{tpu_custom_call.1} parent=63 // pred_check_branch
          %557 = sbr.rel (%p555) target = $region96
        $region95: #{tpu_custom_call.1} parent=63 // pred_region
          %558 = dma.done [#allocation16], 49152
        $region96: #{tpu_custom_call.1} parent=63 // pred_fallthru
          _
        // Predicated region
        $region97: #{tpu_custom_call.1} parent=63 // pred_check
          %p559 = pneg %p239
        $region98: #{tpu_custom_call.1} parent=63 // pred_check_branch
          %561 = sbr.rel (%p559) target = $region100
        $region99: #{tpu_custom_call.1} parent=63 // pred_region
          %562 = dma.done [#allocation16], 128
        $region100: #{tpu_custom_call.1} parent=63 // pred_fallthru
          _
        // Predicated region
        $region101: #{tpu_custom_call.1} parent=63 // pred_check
          %p563 = pneg %p260
        $region102: #{tpu_custom_call.1} parent=63 // pred_check_branch
          %565 = sbr.rel (%p563) target = $region104
        $region103: #{tpu_custom_call.1} parent=63 // pred_region
          %566 = dma.done [#allocation19], 24576
        $region104: #{tpu_custom_call.1} parent=63 // pred_fallthru
          _
        // Predicated region
        $region105: #{tpu_custom_call.1} parent=63 // pred_check
          %p567 = pneg %p281
        $region106: #{tpu_custom_call.1} parent=63 // pred_check_branch
          %569 = sbr.rel (%p567) target = $region108
        $region107: #{tpu_custom_call.1} parent=63 // pred_region
          %570 = dma.done [#allocation19], 48
        $region108: #{tpu_custom_call.1} parent=63 // pred_fallthru
          _
        %s571 = sand.u32 %s48, 1
        %s572 = scalar_lea.sflag [#allocation4], %s571
        %s573 = sand.u32 %s48, 1
        %s574 = smul.addr %s573, 24
        %s575 = scalar_lea.vmem [#allocation3], %s574
        %p576 = pneg %p61
        %p577 = pneg %p58
        %s578 = sand.u32 %s40, 1
        %s579 = scalar_lea.sflag [#allocation7], %s578
        %s580 = sand.u32 %s74, 1
        %s581 = smul.addr %s580, 24
        %s582 = scalar_lea.vmem [#allocation6], %s581
        %p583 = pneg %p87
        %p584 = pneg %p84
        %s585 = sand.u32 %s40, 1
        %s586 = scalar_lea.sflag [#allocation7], %s585
        %s587 = sand.u32 %s100, 1
        %s588 = smul.addr %s587, 24
        %s589 = scalar_lea.vmem [#allocation8], %s588
        %p590 = pneg %p113
        %p591 = pneg %p110
        %p592 = pneg %p134
        %p593 = pneg %p131
        %p594 = pneg %p155
        %p595 = pneg %p152
        %p596 = pneg %p176
        %p597 = pneg %p173
        %p598 = pneg %p197
        %p599 = pneg %p194
        %p600 = pneg %p218
        %p601 = pneg %p215
        %p602 = pneg %p239
        %p603 = pneg %p236
        %p604 = pneg %p260
        %p605 = pneg %p257
        %p606 = pneg %p281
        %p607 = pneg %p278
        %p608 = pneg %p307
        %p609 = pneg %p304
        %s610 = sand.u32 %s294, 1
        %s611 = scalar_lea.sflag [#allocation5], %s610
        %s612 = sand.u32 %s294, 1
        %s613 = smul.addr %s612, 24
        %s614 = scalar_lea.vmem [#allocation21], %s613
        %p615 = pneg %p333
        %p616 = pneg %p330
        %s617 = sand.u32 %s320, 1
        %s618 = scalar_lea.sflag [#allocation23], %s617
        %s619 = sand.u32 %s320, 1
        %s620 = smul.addr %s619, 24
        %s621 = scalar_lea.vmem [#allocation22], %s620
        %v622 = vld [vmem:[%s516] sm:$0xff]
        %v623 = vld [vmem:[%s516 + $0x8] sm:$0xff]
        %v624 = vld [vmem:[%s516 + $0x10] sm:$0xff]
        %v625 = vld [vmem:[%s525] sm:$0xff]
        %v626 = vld [vmem:[%s525 + $0x8] sm:$0xff]
        %v627 = vld [vmem:[%s525 + $0x10] sm:$0xff]
        %v628 = vadd.f32 %v622, %v625
        %v629 = vadd.f32 %v623, %v626
        %v630 = vadd.f32 %v624, %v627
        %v631 = vld [vmem:[%s534] sm:$0xff]
        %v632 = vld [vmem:[%s534 + $0x8] sm:$0xff]
        %v633 = vld [vmem:[%s534 + $0x10] sm:$0xff]
        %v634 = vld [vmem:[#allocation9] sm:$0xff]
        %v635 = vld [vmem:[#allocation9 + $0x8] sm:$0xff]
        %v636 = vld [vmem:[#allocation9 + $0x10] sm:$0xff]
        %v637 = vld [vmem:[#allocation9 + $0x18] sm:$0xff]
        %v638 = vld [vmem:[#allocation9 + $0x20] sm:$0xff]
        %v639 = vld [vmem:[#allocation9 + $0x28] sm:$0xff]
        %v640 = vld [vmem:[#allocation9 + $0x30] sm:$0xff]
        %v641 = vld [vmem:[#allocation9 + $0x38] sm:$0xff]
        %v642 = vld [vmem:[#allocation9 + $0x40] sm:$0xff]
        %v643 = vld [vmem:[#allocation9 + $0x48] sm:$0xff]
        %v644 = vld [vmem:[#allocation9 + $0x50] sm:$0xff]
        %v645 = vld [vmem:[#allocation9 + $0x58] sm:$0xff]
        %v646 = vld [vmem:[#allocation9 + $0x60] sm:$0xff]
        %v647 = vld [vmem:[#allocation9 + $0x68] sm:$0xff]
        %v648 = vld [vmem:[#allocation9 + $0x70] sm:$0xff]
        %v649 = vld [vmem:[#allocation9 + $0x78] sm:$0xff]
        %v650 = vld [vmem:[#allocation9 + $0x80] sm:$0xff]
        %v651 = vld [vmem:[#allocation9 + $0x88] sm:$0xff]
        %v652 = vld [vmem:[#allocation9 + $0x90] sm:$0xff]
        %v653 = vld [vmem:[#allocation9 + $0x98] sm:$0xff]
        %v654 = vld [vmem:[#allocation9 + $0xa0] sm:$0xff]
        %v655 = vld [vmem:[#allocation9 + $0xa8] sm:$0xff]
        %v656 = vld [vmem:[#allocation9 + $0xb0] sm:$0xff]
        %v657 = vld [vmem:[#allocation9 + $0xb8] sm:$0xff]
        %v658 = vld [vmem:[#allocation9 + $0xc0] sm:$0xff]
        %v659 = vld [vmem:[#allocation9 + $0xc8] sm:$0xff]
        %v660 = vld [vmem:[#allocation9 + $0xd0] sm:$0xff]
        %v661 = vld [vmem:[#allocation9 + $0xd8] sm:$0xff]
        %v662 = vld [vmem:[#allocation9 + $0xe0] sm:$0xff]
        %v663 = vld [vmem:[#allocation9 + $0xe8] sm:$0xff]
        %v664 = vld [vmem:[#allocation9 + $0xf0] sm:$0xff]
        %v665 = vld [vmem:[#allocation9 + $0xf8] sm:$0xff]
        %v666 = vld [vmem:[#allocation9 + $0x100] sm:$0xff]
        %v667 = vld [vmem:[#allocation9 + $0x108] sm:$0xff]
        %v668 = vld [vmem:[#allocation9 + $0x110] sm:$0xff]
        %v669 = vld [vmem:[#allocation9 + $0x118] sm:$0xff]
        %v670 = vld [vmem:[#allocation9 + $0x120] sm:$0xff]
        %v671 = vld [vmem:[#allocation9 + $0x128] sm:$0xff]
        %v672 = vld [vmem:[#allocation9 + $0x130] sm:$0xff]
        %v673 = vld [vmem:[#allocation9 + $0x138] sm:$0xff]
        %v674 = vld [vmem:[#allocation9 + $0x140] sm:$0xff]
        %v675 = vld [vmem:[#allocation9 + $0x148] sm:$0xff]
        %v676 = vld [vmem:[#allocation9 + $0x150] sm:$0xff]
        %v677 = vld [vmem:[#allocation9 + $0x158] sm:$0xff]
        %v678 = vld [vmem:[#allocation9 + $0x160] sm:$0xff]
        %v679 = vld [vmem:[#allocation9 + $0x168] sm:$0xff]
        %v680 = vld [vmem:[#allocation9 + $0x170] sm:$0xff]
        %v681 = vld [vmem:[#allocation9 + $0x178] sm:$0xff]
        %v682 = vld [vmem:[#allocation9 + $0x180] sm:$0xff]
        %v683 = vld [vmem:[#allocation9 + $0x188] sm:$0xff]
        %v684 = vld [vmem:[#allocation9 + $0x190] sm:$0xff]
        %v685 = vld [vmem:[#allocation9 + $0x198] sm:$0xff]
        %v686 = vld [vmem:[#allocation9 + $0x1a0] sm:$0xff]
        %v687 = vld [vmem:[#allocation9 + $0x1a8] sm:$0xff]
        %v688 = vld [vmem:[#allocation9 + $0x1b0] sm:$0xff]
        %v689 = vld [vmem:[#allocation9 + $0x1b8] sm:$0xff]
        %v690 = vld [vmem:[#allocation9 + $0x1c0] sm:$0xff]
        %v691 = vld [vmem:[#allocation9 + $0x1c8] sm:$0xff]
        %v692 = vld [vmem:[#allocation9 + $0x1d0] sm:$0xff]
        %v693 = vld [vmem:[#allocation9 + $0x1d8] sm:$0xff]
        %v694 = vld [vmem:[#allocation9 + $0x1e0] sm:$0xff]
        %v695 = vld [vmem:[#allocation9 + $0x1e8] sm:$0xff]
        %v696 = vld [vmem:[#allocation9 + $0x1f0] sm:$0xff]
        %v697 = vld [vmem:[#allocation9 + $0x1f8] sm:$0xff]
        %v698 = vld [vmem:[#allocation9 + $0x200] sm:$0xff]
        %v699 = vld [vmem:[#allocation9 + $0x208] sm:$0xff]
        %v700 = vld [vmem:[#allocation9 + $0x210] sm:$0xff]
        %v701 = vld [vmem:[#allocation9 + $0x218] sm:$0xff]
        %v702 = vld [vmem:[#allocation9 + $0x220] sm:$0xff]
        %v703 = vld [vmem:[#allocation9 + $0x228] sm:$0xff]
        %v704 = vld [vmem:[#allocation9 + $0x230] sm:$0xff]
        %v705 = vld [vmem:[#allocation9 + $0x238] sm:$0xff]
        %v706 = vld [vmem:[#allocation9 + $0x240] sm:$0xff]
        %v707 = vld [vmem:[#allocation9 + $0x248] sm:$0xff]
        %v708 = vld [vmem:[#allocation9 + $0x250] sm:$0xff]
        %v709 = vld [vmem:[#allocation9 + $0x258] sm:$0xff]
        %v710 = vld [vmem:[#allocation9 + $0x260] sm:$0xff]
        %v711 = vld [vmem:[#allocation9 + $0x268] sm:$0xff]
        %v712 = vld [vmem:[#allocation9 + $0x270] sm:$0xff]
        %v713 = vld [vmem:[#allocation9 + $0x278] sm:$0xff]
        %v714 = vld [vmem:[#allocation9 + $0x280] sm:$0xff]
        %v715 = vld [vmem:[#allocation9 + $0x288] sm:$0xff]
        %v716 = vld [vmem:[#allocation9 + $0x290] sm:$0xff]
        %v717 = vld [vmem:[#allocation9 + $0x298] sm:$0xff]
        %v718 = vld [vmem:[#allocation9 + $0x2a0] sm:$0xff]
        %v719 = vld [vmem:[#allocation9 + $0x2a8] sm:$0xff]
        %v720 = vld [vmem:[#allocation9 + $0x2b0] sm:$0xff]
        %v721 = vld [vmem:[#allocation9 + $0x2b8] sm:$0xff]
        %v722 = vld [vmem:[#allocation9 + $0x2c0] sm:$0xff]
        %v723 = vld [vmem:[#allocation9 + $0x2c8] sm:$0xff]
        %v724 = vld [vmem:[#allocation9 + $0x2d0] sm:$0xff]
        %v725 = vld [vmem:[#allocation9 + $0x2d8] sm:$0xff]
        %v726 = vld [vmem:[#allocation9 + $0x2e0] sm:$0xff]
        %v727 = vld [vmem:[#allocation9 + $0x2e8] sm:$0xff]
        %v728 = vld [vmem:[#allocation9 + $0x2f0] sm:$0xff]
        %v729 = vld [vmem:[#allocation9 + $0x2f8] sm:$0xff]
        %v730 = vld [vmem:[#allocation9 + $0x300] sm:$0xff]
        %v731 = vld [vmem:[#allocation9 + $0x308] sm:$0xff]
        %v732 = vld [vmem:[#allocation9 + $0x310] sm:$0xff]
        %v733 = vld [vmem:[#allocation9 + $0x318] sm:$0xff]
        %v734 = vld [vmem:[#allocation9 + $0x320] sm:$0xff]
        %v735 = vld [vmem:[#allocation9 + $0x328] sm:$0xff]
        %v736 = vld [vmem:[#allocation9 + $0x330] sm:$0xff]
        %v737 = vld [vmem:[#allocation9 + $0x338] sm:$0xff]
        %v738 = vld [vmem:[#allocation9 + $0x340] sm:$0xff]
        %v739 = vld [vmem:[#allocation9 + $0x348] sm:$0xff]
        %v740 = vld [vmem:[#allocation9 + $0x350] sm:$0xff]
        %v741 = vld [vmem:[#allocation9 + $0x358] sm:$0xff]
        %v742 = vld [vmem:[#allocation9 + $0x360] sm:$0xff]
        %v743 = vld [vmem:[#allocation9 + $0x368] sm:$0xff]
        %v744 = vld [vmem:[#allocation9 + $0x370] sm:$0xff]
        %v745 = vld [vmem:[#allocation9 + $0x378] sm:$0xff]
        %v746 = vld [vmem:[#allocation9 + $0x380] sm:$0xff]
        %v747 = vld [vmem:[#allocation9 + $0x388] sm:$0xff]
        %v748 = vld [vmem:[#allocation9 + $0x390] sm:$0xff]
        %v749 = vld [vmem:[#allocation9 + $0x398] sm:$0xff]
        %v750 = vld [vmem:[#allocation9 + $0x3a0] sm:$0xff]
        %v751 = vld [vmem:[#allocation9 + $0x3a8] sm:$0xff]
        %v752 = vld [vmem:[#allocation9 + $0x3b0] sm:$0xff]
        %v753 = vld [vmem:[#allocation9 + $0x3b8] sm:$0xff]
        %v754 = vld [vmem:[#allocation9 + $0x3c0] sm:$0xff]
        %v755 = vld [vmem:[#allocation9 + $0x3c8] sm:$0xff]
        %v756 = vld [vmem:[#allocation9 + $0x3d0] sm:$0xff]
        %v757 = vld [vmem:[#allocation9 + $0x3d8] sm:$0xff]
        %v758 = vld [vmem:[#allocation9 + $0x3e0] sm:$0xff]
        %v759 = vld [vmem:[#allocation9 + $0x3e8] sm:$0xff]
        %v760 = vld [vmem:[#allocation9 + $0x3f0] sm:$0xff]
        %v761 = vld [vmem:[#allocation9 + $0x3f8] sm:$0xff]
        %v762 = vld [vmem:[#allocation9 + $0x400] sm:$0xff]
        %v763 = vld [vmem:[#allocation9 + $0x408] sm:$0xff]
        %v764 = vld [vmem:[#allocation9 + $0x410] sm:$0xff]
        %v765 = vld [vmem:[#allocation9 + $0x418] sm:$0xff]
        %v766 = vld [vmem:[#allocation9 + $0x420] sm:$0xff]
        %v767 = vld [vmem:[#allocation9 + $0x428] sm:$0xff]
        %v768 = vld [vmem:[#allocation9 + $0x430] sm:$0xff]
        %v769 = vld [vmem:[#allocation9 + $0x438] sm:$0xff]
        %v770 = vld [vmem:[#allocation9 + $0x440] sm:$0xff]
        %v771 = vld [vmem:[#allocation9 + $0x448] sm:$0xff]
        %v772 = vld [vmem:[#allocation9 + $0x450] sm:$0xff]
        %v773 = vld [vmem:[#allocation9 + $0x458] sm:$0xff]
        %v774 = vld [vmem:[#allocation9 + $0x460] sm:$0xff]
        %v775 = vld [vmem:[#allocation9 + $0x468] sm:$0xff]
        %v776 = vld [vmem:[#allocation9 + $0x470] sm:$0xff]
        %v777 = vld [vmem:[#allocation9 + $0x478] sm:$0xff]
        %v778 = vld [vmem:[#allocation9 + $0x480] sm:$0xff]
        %v779 = vld [vmem:[#allocation9 + $0x488] sm:$0xff]
        %v780 = vld [vmem:[#allocation9 + $0x490] sm:$0xff]
        %v781 = vld [vmem:[#allocation9 + $0x498] sm:$0xff]
        %v782 = vld [vmem:[#allocation9 + $0x4a0] sm:$0xff]
        %v783 = vld [vmem:[#allocation9 + $0x4a8] sm:$0xff]
        %v784 = vld [vmem:[#allocation9 + $0x4b0] sm:$0xff]
        %v785 = vld [vmem:[#allocation9 + $0x4b8] sm:$0xff]
        %v786 = vld [vmem:[#allocation9 + $0x4c0] sm:$0xff]
        %v787 = vld [vmem:[#allocation9 + $0x4c8] sm:$0xff]
        %v788 = vld [vmem:[#allocation9 + $0x4d0] sm:$0xff]
        %v789 = vld [vmem:[#allocation9 + $0x4d8] sm:$0xff]
        %v790 = vld [vmem:[#allocation9 + $0x4e0] sm:$0xff]
        %v791 = vld [vmem:[#allocation9 + $0x4e8] sm:$0xff]
        %v792 = vld [vmem:[#allocation9 + $0x4f0] sm:$0xff]
        %v793 = vld [vmem:[#allocation9 + $0x4f8] sm:$0xff]
        %v794 = vld [vmem:[#allocation9 + $0x500] sm:$0xff]
        %v795 = vld [vmem:[#allocation9 + $0x508] sm:$0xff]
        %v796 = vld [vmem:[#allocation9 + $0x510] sm:$0xff]
        %v797 = vld [vmem:[#allocation9 + $0x518] sm:$0xff]
        %v798 = vld [vmem:[#allocation9 + $0x520] sm:$0xff]
        %v799 = vld [vmem:[#allocation9 + $0x528] sm:$0xff]
        %v800 = vld [vmem:[#allocation9 + $0x530] sm:$0xff]
        %v801 = vld [vmem:[#allocation9 + $0x538] sm:$0xff]
        %v802 = vld [vmem:[#allocation9 + $0x540] sm:$0xff]
        %v803 = vld [vmem:[#allocation9 + $0x548] sm:$0xff]
        %v804 = vld [vmem:[#allocation9 + $0x550] sm:$0xff]
        %v805 = vld [vmem:[#allocation9 + $0x558] sm:$0xff]
        %v806 = vld [vmem:[#allocation9 + $0x560] sm:$0xff]
        %v807 = vld [vmem:[#allocation9 + $0x568] sm:$0xff]
        %v808 = vld [vmem:[#allocation9 + $0x570] sm:$0xff]
        %v809 = vld [vmem:[#allocation9 + $0x578] sm:$0xff]
        %v810 = vld [vmem:[#allocation9 + $0x580] sm:$0xff]
        %v811 = vld [vmem:[#allocation9 + $0x588] sm:$0xff]
        %v812 = vld [vmem:[#allocation9 + $0x590] sm:$0xff]
        %v813 = vld [vmem:[#allocation9 + $0x598] sm:$0xff]
        %v814 = vld [vmem:[#allocation9 + $0x5a0] sm:$0xff]
        %v815 = vld [vmem:[#allocation9 + $0x5a8] sm:$0xff]
        %v816 = vld [vmem:[#allocation9 + $0x5b0] sm:$0xff]
        %v817 = vld [vmem:[#allocation9 + $0x5b8] sm:$0xff]
        %v818 = vld [vmem:[#allocation9 + $0x5c0] sm:$0xff]
        %v819 = vld [vmem:[#allocation9 + $0x5c8] sm:$0xff]
        %v820 = vld [vmem:[#allocation9 + $0x5d0] sm:$0xff]
        %v821 = vld [vmem:[#allocation9 + $0x5d8] sm:$0xff]
        %v822 = vld [vmem:[#allocation9 + $0x5e0] sm:$0xff]
        %v823 = vld [vmem:[#allocation9 + $0x5e8] sm:$0xff]
        %v824 = vld [vmem:[#allocation9 + $0x5f0] sm:$0xff]
        %v825 = vld [vmem:[#allocation9 + $0x5f8] sm:$0xff]
        %v826 = vld [vmem:[#allocation9 + $0x600] sm:$0xff]
        %v827 = vld [vmem:[#allocation9 + $0x608] sm:$0xff]
        %v828 = vld [vmem:[#allocation9 + $0x610] sm:$0xff]
        %v829 = vld [vmem:[#allocation9 + $0x618] sm:$0xff]
        %v830 = vld [vmem:[#allocation9 + $0x620] sm:$0xff]
        %v831 = vld [vmem:[#allocation9 + $0x628] sm:$0xff]
        %v832 = vld [vmem:[#allocation9 + $0x630] sm:$0xff]
        %v833 = vld [vmem:[#allocation9 + $0x638] sm:$0xff]
        %v834 = vld [vmem:[#allocation9 + $0x640] sm:$0xff]
        %v835 = vld [vmem:[#allocation9 + $0x648] sm:$0xff]
        %v836 = vld [vmem:[#allocation9 + $0x650] sm:$0xff]
        %v837 = vld [vmem:[#allocation9 + $0x658] sm:$0xff]
        %v838 = vld [vmem:[#allocation9 + $0x660] sm:$0xff]
        %v839 = vld [vmem:[#allocation9 + $0x668] sm:$0xff]
        %v840 = vld [vmem:[#allocation9 + $0x670] sm:$0xff]
        %v841 = vld [vmem:[#allocation9 + $0x678] sm:$0xff]
        %v842 = vld [vmem:[#allocation9 + $0x680] sm:$0xff]
        %v843 = vld [vmem:[#allocation9 + $0x688] sm:$0xff]
        %v844 = vld [vmem:[#allocation9 + $0x690] sm:$0xff]
        %v845 = vld [vmem:[#allocation9 + $0x698] sm:$0xff]
        %v846 = vld [vmem:[#allocation9 + $0x6a0] sm:$0xff]
        %v847 = vld [vmem:[#allocation9 + $0x6a8] sm:$0xff]
        %v848 = vld [vmem:[#allocation9 + $0x6b0] sm:$0xff]
        %v849 = vld [vmem:[#allocation9 + $0x6b8] sm:$0xff]
        %v850 = vld [vmem:[#allocation9 + $0x6c0] sm:$0xff]
        %v851 = vld [vmem:[#allocation9 + $0x6c8] sm:$0xff]
        %v852 = vld [vmem:[#allocation9 + $0x6d0] sm:$0xff]
        %v853 = vld [vmem:[#allocation9 + $0x6d8] sm:$0xff]
        %v854 = vld [vmem:[#allocation9 + $0x6e0] sm:$0xff]
        %v855 = vld [vmem:[#allocation9 + $0x6e8] sm:$0xff]
        %v856 = vld [vmem:[#allocation9 + $0x6f0] sm:$0xff]
        %v857 = vld [vmem:[#allocation9 + $0x6f8] sm:$0xff]
        %v858 = vld [vmem:[#allocation9 + $0x700] sm:$0xff]
        %v859 = vld [vmem:[#allocation9 + $0x708] sm:$0xff]
        %v860 = vld [vmem:[#allocation9 + $0x710] sm:$0xff]
        %v861 = vld [vmem:[#allocation9 + $0x718] sm:$0xff]
        %v862 = vld [vmem:[#allocation9 + $0x720] sm:$0xff]
        %v863 = vld [vmem:[#allocation9 + $0x728] sm:$0xff]
        %v864 = vld [vmem:[#allocation9 + $0x730] sm:$0xff]
        %v865 = vld [vmem:[#allocation9 + $0x738] sm:$0xff]
        %v866 = vld [vmem:[#allocation9 + $0x740] sm:$0xff]
        %v867 = vld [vmem:[#allocation9 + $0x748] sm:$0xff]
        %v868 = vld [vmem:[#allocation9 + $0x750] sm:$0xff]
        %v869 = vld [vmem:[#allocation9 + $0x758] sm:$0xff]
        %v870 = vld [vmem:[#allocation9 + $0x760] sm:$0xff]
        %v871 = vld [vmem:[#allocation9 + $0x768] sm:$0xff]
        %v872 = vld [vmem:[#allocation9 + $0x770] sm:$0xff]
        %v873 = vld [vmem:[#allocation9 + $0x778] sm:$0xff]
        %v874 = vld [vmem:[#allocation9 + $0x780] sm:$0xff]
        %v875 = vld [vmem:[#allocation9 + $0x788] sm:$0xff]
        %v876 = vld [vmem:[#allocation9 + $0x790] sm:$0xff]
        %v877 = vld [vmem:[#allocation9 + $0x798] sm:$0xff]
        %v878 = vld [vmem:[#allocation9 + $0x7a0] sm:$0xff]
        %v879 = vld [vmem:[#allocation9 + $0x7a8] sm:$0xff]
        %v880 = vld [vmem:[#allocation9 + $0x7b0] sm:$0xff]
        %v881 = vld [vmem:[#allocation9 + $0x7b8] sm:$0xff]
        %v882 = vld [vmem:[#allocation9 + $0x7c0] sm:$0xff]
        %v883 = vld [vmem:[#allocation9 + $0x7c8] sm:$0xff]
        %v884 = vld [vmem:[#allocation9 + $0x7d0] sm:$0xff]
        %v885 = vld [vmem:[#allocation9 + $0x7d8] sm:$0xff]
        %v886 = vld [vmem:[#allocation9 + $0x7e0] sm:$0xff]
        %v887 = vld [vmem:[#allocation9 + $0x7e8] sm:$0xff]
        %v888 = vld [vmem:[#allocation9 + $0x7f0] sm:$0xff]
        %v889 = vld [vmem:[#allocation9 + $0x7f8] sm:$0xff]
        %v890 = vld [vmem:[#allocation9 + $0x800] sm:$0xff]
        %v891 = vld [vmem:[#allocation9 + $0x808] sm:$0xff]
        %v892 = vld [vmem:[#allocation9 + $0x810] sm:$0xff]
        %v893 = vld [vmem:[#allocation9 + $0x818] sm:$0xff]
        %v894 = vld [vmem:[#allocation9 + $0x820] sm:$0xff]
        %v895 = vld [vmem:[#allocation9 + $0x828] sm:$0xff]
        %v896 = vld [vmem:[#allocation9 + $0x830] sm:$0xff]
        %v897 = vld [vmem:[#allocation9 + $0x838] sm:$0xff]
        %v898 = vld [vmem:[#allocation9 + $0x840] sm:$0xff]
        %v899 = vld [vmem:[#allocation9 + $0x848] sm:$0xff]
        %v900 = vld [vmem:[#allocation9 + $0x850] sm:$0xff]
        %v901 = vld [vmem:[#allocation9 + $0x858] sm:$0xff]
        %v902 = vld [vmem:[#allocation9 + $0x860] sm:$0xff]
        %v903 = vld [vmem:[#allocation9 + $0x868] sm:$0xff]
        %v904 = vld [vmem:[#allocation9 + $0x870] sm:$0xff]
        %v905 = vld [vmem:[#allocation9 + $0x878] sm:$0xff]
        %v906 = vld [vmem:[#allocation9 + $0x880] sm:$0xff]
        %v907 = vld [vmem:[#allocation9 + $0x888] sm:$0xff]
        %v908 = vld [vmem:[#allocation9 + $0x890] sm:$0xff]
        %v909 = vld [vmem:[#allocation9 + $0x898] sm:$0xff]
        %v910 = vld [vmem:[#allocation9 + $0x8a0] sm:$0xff]
        %v911 = vld [vmem:[#allocation9 + $0x8a8] sm:$0xff]
        %v912 = vld [vmem:[#allocation9 + $0x8b0] sm:$0xff]
        %v913 = vld [vmem:[#allocation9 + $0x8b8] sm:$0xff]
        %v914 = vld [vmem:[#allocation9 + $0x8c0] sm:$0xff]
        %v915 = vld [vmem:[#allocation9 + $0x8c8] sm:$0xff]
        %v916 = vld [vmem:[#allocation9 + $0x8d0] sm:$0xff]
        %v917 = vld [vmem:[#allocation9 + $0x8d8] sm:$0xff]
        %v918 = vld [vmem:[#allocation9 + $0x8e0] sm:$0xff]
        %v919 = vld [vmem:[#allocation9 + $0x8e8] sm:$0xff]
        %v920 = vld [vmem:[#allocation9 + $0x8f0] sm:$0xff]
        %v921 = vld [vmem:[#allocation9 + $0x8f8] sm:$0xff]
        %v922 = vld [vmem:[#allocation9 + $0x900] sm:$0xff]
        %v923 = vld [vmem:[#allocation9 + $0x908] sm:$0xff]
        %v924 = vld [vmem:[#allocation9 + $0x910] sm:$0xff]
        %v925 = vld [vmem:[#allocation9 + $0x918] sm:$0xff]
        %v926 = vld [vmem:[#allocation9 + $0x920] sm:$0xff]
        %v927 = vld [vmem:[#allocation9 + $0x928] sm:$0xff]
        %v928 = vld [vmem:[#allocation9 + $0x930] sm:$0xff]
        %v929 = vld [vmem:[#allocation9 + $0x938] sm:$0xff]
        %v930 = vld [vmem:[#allocation9 + $0x940] sm:$0xff]
        %v931 = vld [vmem:[#allocation9 + $0x948] sm:$0xff]
        %v932 = vld [vmem:[#allocation9 + $0x950] sm:$0xff]
        %v933 = vld [vmem:[#allocation9 + $0x958] sm:$0xff]
        %v934 = vld [vmem:[#allocation9 + $0x960] sm:$0xff]
        %v935 = vld [vmem:[#allocation9 + $0x968] sm:$0xff]
        %v936 = vld [vmem:[#allocation9 + $0x970] sm:$0xff]
        %v937 = vld [vmem:[#allocation9 + $0x978] sm:$0xff]
        %v938 = vld [vmem:[#allocation9 + $0x980] sm:$0xff]
        %v939 = vld [vmem:[#allocation9 + $0x988] sm:$0xff]
        %v940 = vld [vmem:[#allocation9 + $0x990] sm:$0xff]
        %v941 = vld [vmem:[#allocation9 + $0x998] sm:$0xff]
        %v942 = vld [vmem:[#allocation9 + $0x9a0] sm:$0xff]
        %v943 = vld [vmem:[#allocation9 + $0x9a8] sm:$0xff]
        %v944 = vld [vmem:[#allocation9 + $0x9b0] sm:$0xff]
        %v945 = vld [vmem:[#allocation9 + $0x9b8] sm:$0xff]
        %v946 = vld [vmem:[#allocation9 + $0x9c0] sm:$0xff]
        %v947 = vld [vmem:[#allocation9 + $0x9c8] sm:$0xff]
        %v948 = vld [vmem:[#allocation9 + $0x9d0] sm:$0xff]
        %v949 = vld [vmem:[#allocation9 + $0x9d8] sm:$0xff]
        %v950 = vld [vmem:[#allocation9 + $0x9e0] sm:$0xff]
        %v951 = vld [vmem:[#allocation9 + $0x9e8] sm:$0xff]
        %v952 = vld [vmem:[#allocation9 + $0x9f0] sm:$0xff]
        %v953 = vld [vmem:[#allocation9 + $0x9f8] sm:$0xff]
        %v954 = vld [vmem:[#allocation9 + $0xa00] sm:$0xff]
        %v955 = vld [vmem:[#allocation9 + $0xa08] sm:$0xff]
        %v956 = vld [vmem:[#allocation9 + $0xa10] sm:$0xff]
        %v957 = vld [vmem:[#allocation9 + $0xa18] sm:$0xff]
        %v958 = vld [vmem:[#allocation9 + $0xa20] sm:$0xff]
        %v959 = vld [vmem:[#allocation9 + $0xa28] sm:$0xff]
        %v960 = vld [vmem:[#allocation9 + $0xa30] sm:$0xff]
        %v961 = vld [vmem:[#allocation9 + $0xa38] sm:$0xff]
        %v962 = vld [vmem:[#allocation9 + $0xa40] sm:$0xff]
        %v963 = vld [vmem:[#allocation9 + $0xa48] sm:$0xff]
        %v964 = vld [vmem:[#allocation9 + $0xa50] sm:$0xff]
        %v965 = vld [vmem:[#allocation9 + $0xa58] sm:$0xff]
        %v966 = vld [vmem:[#allocation9 + $0xa60] sm:$0xff]
        %v967 = vld [vmem:[#allocation9 + $0xa68] sm:$0xff]
        %v968 = vld [vmem:[#allocation9 + $0xa70] sm:$0xff]
        %v969 = vld [vmem:[#allocation9 + $0xa78] sm:$0xff]
        %v970 = vld [vmem:[#allocation9 + $0xa80] sm:$0xff]
        %v971 = vld [vmem:[#allocation9 + $0xa88] sm:$0xff]
        %v972 = vld [vmem:[#allocation9 + $0xa90] sm:$0xff]
        %v973 = vld [vmem:[#allocation9 + $0xa98] sm:$0xff]
        %v974 = vld [vmem:[#allocation9 + $0xaa0] sm:$0xff]
        %v975 = vld [vmem:[#allocation9 + $0xaa8] sm:$0xff]
        %v976 = vld [vmem:[#allocation9 + $0xab0] sm:$0xff]
        %v977 = vld [vmem:[#allocation9 + $0xab8] sm:$0xff]
        %v978 = vld [vmem:[#allocation9 + $0xac0] sm:$0xff]
        %v979 = vld [vmem:[#allocation9 + $0xac8] sm:$0xff]
        %v980 = vld [vmem:[#allocation9 + $0xad0] sm:$0xff]
        %v981 = vld [vmem:[#allocation9 + $0xad8] sm:$0xff]
        %v982 = vld [vmem:[#allocation9 + $0xae0] sm:$0xff]
        %v983 = vld [vmem:[#allocation9 + $0xae8] sm:$0xff]
        %v984 = vld [vmem:[#allocation9 + $0xaf0] sm:$0xff]
        %v985 = vld [vmem:[#allocation9 + $0xaf8] sm:$0xff]
        %v986 = vld [vmem:[#allocation9 + $0xb00] sm:$0xff]
        %v987 = vld [vmem:[#allocation9 + $0xb08] sm:$0xff]
        %v988 = vld [vmem:[#allocation9 + $0xb10] sm:$0xff]
        %v989 = vld [vmem:[#allocation9 + $0xb18] sm:$0xff]
        %v990 = vld [vmem:[#allocation9 + $0xb20] sm:$0xff]
        %v991 = vld [vmem:[#allocation9 + $0xb28] sm:$0xff]
        %v992 = vld [vmem:[#allocation9 + $0xb30] sm:$0xff]
        %v993 = vld [vmem:[#allocation9 + $0xb38] sm:$0xff]
        %v994 = vld [vmem:[#allocation9 + $0xb40] sm:$0xff]
        %v995 = vld [vmem:[#allocation9 + $0xb48] sm:$0xff]
        %v996 = vld [vmem:[#allocation9 + $0xb50] sm:$0xff]
        %v997 = vld [vmem:[#allocation9 + $0xb58] sm:$0xff]
        %v998 = vld [vmem:[#allocation9 + $0xb60] sm:$0xff]
        %v999 = vld [vmem:[#allocation9 + $0xb68] sm:$0xff]
        %v1000 = vld [vmem:[#allocation9 + $0xb70] sm:$0xff]
        %v1001 = vld [vmem:[#allocation9 + $0xb78] sm:$0xff]
        %v1002 = vld [vmem:[#allocation9 + $0xb80] sm:$0xff]
        %v1003 = vld [vmem:[#allocation9 + $0xb88] sm:$0xff]
        %v1004 = vld [vmem:[#allocation9 + $0xb90] sm:$0xff]
        %v1005 = vld [vmem:[#allocation9 + $0xb98] sm:$0xff]
        %v1006 = vld [vmem:[#allocation9 + $0xba0] sm:$0xff]
        %v1007 = vld [vmem:[#allocation9 + $0xba8] sm:$0xff]
        %v1008 = vld [vmem:[#allocation9 + $0xbb0] sm:$0xff]
        %v1009 = vld [vmem:[#allocation9 + $0xbb8] sm:$0xff]
        %v1010 = vld [vmem:[#allocation9 + $0xbc0] sm:$0xff]
        %v1011 = vld [vmem:[#allocation9 + $0xbc8] sm:$0xff]
        %v1012 = vld [vmem:[#allocation9 + $0xbd0] sm:$0xff]
        %v1013 = vld [vmem:[#allocation9 + $0xbd8] sm:$0xff]
        %v1014 = vld [vmem:[#allocation9 + $0xbe0] sm:$0xff]
        %v1015 = vld [vmem:[#allocation9 + $0xbe8] sm:$0xff]
        %v1016 = vld [vmem:[#allocation9 + $0xbf0] sm:$0xff]
        %v1017 = vld [vmem:[#allocation9 + $0xbf8] sm:$0xff]
        %v1018 = vld [vmem:[#allocation11] sm:$0xff]
        %v1020 = vlaneseq
        %v1021 = vshrl.u32 %v1020, 7
        %v1022 = vsub.s32 0, %v1021
        %v1023 = vrot.slane %v1018, %v1022
        %v1024 = vlaneseq
        %v1025 = vshrl.u32 %v1024, 7
        %v1026 = vsub.s32 1, %v1025
        %v1027 = vrot.slane %v1018, %v1026
        %v1028 = vlaneseq
        %v1029 = vshrl.u32 %v1028, 7
        %v1030 = vsub.s32 2, %v1029
        %v1031 = vrot.slane %v1018, %v1030
        %v1032 = vlaneseq
        %v1033 = vshrl.u32 %v1032, 7
        %v1034 = vsub.s32 3, %v1033
        %v1035 = vrot.slane %v1018, %v1034
        %v1036 = vlaneseq
        %v1037 = vshrl.u32 %v1036, 7
        %v1038 = vsub.s32 4, %v1037
        %v1039 = vrot.slane %v1018, %v1038
        %v1040 = vlaneseq
        %v1041 = vshrl.u32 %v1040, 7
        %v1042 = vsub.s32 5, %v1041
        %v1043 = vrot.slane %v1018, %v1042
        %v1044 = vlaneseq
        %v1045 = vshrl.u32 %v1044, 7
        %v1046 = vsub.s32 6, %v1045
        %v1047 = vrot.slane %v1018, %v1046
        %v1048 = vlaneseq
        %v1049 = vshrl.u32 %v1048, 7
        %v1050 = vsub.s32 7, %v1049
        %v1051 = vrot.slane %v1018, %v1050
        %1060 = vmatprep.subr.mxu0 %v755
        %1061 = vmatpush1.msra.mxu0 %v754
        %1062 = vmatprep.subr.mxu0 %v747
        %1063 = vmatpush1.msra.mxu0 %v746
        %1064 = vmatprep.subr.mxu0 %v739
        %1065 = vmatpush1.msra.mxu0 %v738
        %1066 = vmatprep.subr.mxu0 %v731
        %1067 = vmatpush1.msra.mxu0 %v730
        %1068 = vmatprep.subr.mxu0 %v723
        %1069 = vmatpush1.msra.mxu0 %v722
        %1070 = vmatprep.subr.mxu0 %v715
        %1071 = vmatpush1.msra.mxu0 %v714
        %1072 = vmatprep.subr.mxu0 %v707
        %1073 = vmatpush1.msra.mxu0 %v706
        %1074 = vmatprep.subr.mxu0 %v699
        %1075 = vmatpush1.msra.mxu0 %v698
        %1076 = vmatprep.subr.mxu0 %v691
        %1077 = vmatpush1.msra.mxu0 %v690
        %1078 = vmatprep.subr.mxu0 %v683
        %1079 = vmatpush1.msra.mxu0 %v682
        %1080 = vmatprep.subr.mxu0 %v675
        %1081 = vmatpush1.msra.mxu0 %v674
        %1082 = vmatprep.subr.mxu0 %v667
        %1083 = vmatpush1.msra.mxu0 %v666
        %1084 = vmatprep.subr.mxu0 %v659
        %1085 = vmatpush1.msra.mxu0 %v658
        %1086 = vmatprep.subr.mxu0 %v651
        %1087 = vmatpush1.msra.mxu0 %v650
        %1088 = vmatprep.subr.mxu0 %v643
        %1089 = vmatpush1.msra.mxu0 %v642
        %1090 = vmatprep.subr.mxu0 %v635
        %1091 = vmatpush1.msra.mxu0 %v634
        %1092 = vmatprep.subr.mxu0 %v883
        %1093 = vmatpush2.msra.mxu0 %v882
        %1094 = vmatprep.subr.mxu0 %v875
        %1095 = vmatpush2.msra.mxu0 %v874
        %1096 = vmatprep.subr.mxu0 %v867
        %1097 = vmatpush2.msra.mxu0 %v866
        %1098 = vmatprep.subr.mxu0 %v859
        %1099 = vmatpush2.msra.mxu0 %v858
        %1100 = vmatprep.subr.mxu0 %v851
        %1101 = vmatpush2.msra.mxu0 %v850
        %1102 = vmatprep.subr.mxu0 %v843
        %1103 = vmatpush2.msra.mxu0 %v842
        %1104 = vmatprep.subr.mxu0 %v835
        %1105 = vmatpush2.msra.mxu0 %v834
        %1106 = vmatprep.subr.mxu0 %v827
        %1107 = vmatpush2.msra.mxu0 %v826
        %1108 = vmatprep.subr.mxu0 %v819
        %1109 = vmatpush2.msra.mxu0 %v818
        %1110 = vmatprep.subr.mxu0 %v811
        %1111 = vmatpush2.msra.mxu0 %v810
        %1112 = vmatprep.subr.mxu0 %v803
        %1113 = vmatpush2.msra.mxu0 %v802
        %1114 = vmatprep.subr.mxu0 %v795
        %1115 = vmatpush2.msra.mxu0 %v794
        %1116 = vmatprep.subr.mxu0 %v787
        %1117 = vmatpush2.msra.mxu0 %v786
        %1118 = vmatprep.subr.mxu0 %v779
        %1119 = vmatpush2.msra.mxu0 %v778
        %1120 = vmatprep.subr.mxu0 %v771
        %1121 = vmatpush2.msra.mxu0 %v770
        %1122 = vmatprep.subr.mxu0 %v763
        %1123 = vmatpush2.msra.mxu0 %v762
        %1124 = vmatprep.mubr.f32.mxu0 %v629
        %1125 = vmatmul.mubr.f32.gmra.mxu0 %v628
        %v1126 = vpop.f32.mrf.mxu0
        %v1127 = vadd.f32 %v1023, %v1126
        %v1128 = vpop.f32.mrf.mxu0
        %v1129 = vadd.f32 %v1027, %v1128
        %1130 = vdwg.mxu0
        %1131 = vmatprep.subr.mxu0 %v1011
        %1132 = vmatpush1.msra.mxu0 %v1010
        %1133 = vmatprep.subr.mxu0 %v1003
        %1134 = vmatpush1.msra.mxu0 %v1002
        %1135 = vmatprep.subr.mxu0 %v995
        %1136 = vmatpush1.msra.mxu0 %v994
        %1137 = vmatprep.subr.mxu0 %v987
        %1138 = vmatpush1.msra.mxu0 %v986
        %1139 = vmatprep.subr.mxu0 %v979
        %1140 = vmatpush1.msra.mxu0 %v978
        %1141 = vmatprep.subr.mxu0 %v971
        %1142 = vmatpush1.msra.mxu0 %v970
        %1143 = vmatprep.subr.mxu0 %v963
        %1144 = vmatpush1.msra.mxu0 %v962
        %1145 = vmatprep.subr.mxu0 %v955
        %1146 = vmatpush1.msra.mxu0 %v954
        %1147 = vmatprep.subr.mxu0 %v947
        %1148 = vmatpush1.msra.mxu0 %v946
        %1149 = vmatprep.subr.mxu0 %v939
        %1150 = vmatpush1.msra.mxu0 %v938
        %1151 = vmatprep.subr.mxu0 %v931
        %1152 = vmatpush1.msra.mxu0 %v930
        %1153 = vmatprep.subr.mxu0 %v923
        %1154 = vmatpush1.msra.mxu0 %v922
        %1155 = vmatprep.subr.mxu0 %v915
        %1156 = vmatpush1.msra.mxu0 %v914
        %1157 = vmatprep.subr.mxu0 %v907
        %1158 = vmatpush1.msra.mxu0 %v906
        %1159 = vmatprep.subr.mxu0 %v899
        %1160 = vmatpush1.msra.mxu0 %v898
        %1161 = vmatprep.subr.mxu0 %v891
        %1162 = vmatpush1.msra.mxu0 %v890
        %1163 = vmatprep.subr.mxu0 0.0
        %1164 = vmatpush2.msra.mxu0 0.0
        %1165 = vmatprep.subr.mxu0 0.0
        %1166 = vmatpush2.msra.mxu0 0.0
        %1167 = vmatprep.subr.mxu0 0.0
        %1168 = vmatpush2.msra.mxu0 0.0
        %1169 = vmatprep.subr.mxu0 0.0
        %1170 = vmatpush2.msra.mxu0 0.0
        %1171 = vmatprep.subr.mxu0 0.0
        %1172 = vmatpush2.msra.mxu0 0.0
        %1173 = vmatprep.subr.mxu0 0.0
        %1174 = vmatpush2.msra.mxu0 0.0
        %1175 = vmatprep.subr.mxu0 0.0
        %1176 = vmatpush2.msra.mxu0 0.0
        %1177 = vmatprep.subr.mxu0 0.0
        %1178 = vmatpush2.msra.mxu0 0.0
        %1179 = vmatprep.subr.mxu0 0.0
        %1180 = vmatpush2.msra.mxu0 0.0
        %1181 = vmatprep.subr.mxu0 0.0
        %1182 = vmatpush2.msra.mxu0 0.0
        %1183 = vmatprep.subr.mxu0 0.0
        %1184 = vmatpush2.msra.mxu0 0.0
        %1185 = vmatprep.subr.mxu0 0.0
        %1186 = vmatpush2.msra.mxu0 0.0
        %1187 = vmatprep.subr.mxu0 0.0
        %1188 = vmatpush2.msra.mxu0 0.0
        %1189 = vmatprep.subr.mxu0 0.0
        %1190 = vmatpush2.msra.mxu0 0.0
        %1191 = vmatprep.subr.mxu0 0.0
        %1192 = vmatpush2.msra.mxu0 0.0
        %1193 = vmatprep.subr.mxu0 0.0
        %1194 = vmatpush2.msra.mxu0 0.0
        %1195 = vmatprep.mubr.f32.mxu0 0.0
        %1196 = vmatmul.mubr.f32.gmra.mxu0 %v630
        %v1197 = vpop.f32.mrf.mxu0
        %v1198 = vadd.f32 %v1127, %v1197
        %v1199 = vpop.f32.mrf.mxu0
        %v1200 = vadd.f32 %v1129, %v1199
        %1201 = vdwg.mxu0
        %1202 = vmatprep.subr.mxu0 %v757
        %1203 = vmatpush1.msra.mxu0 %v756
        %1204 = vmatprep.subr.mxu0 %v749
        %1205 = vmatpush1.msra.mxu0 %v748
        %1206 = vmatprep.subr.mxu0 %v741
        %1207 = vmatpush1.msra.mxu0 %v740
        %1208 = vmatprep.subr.mxu0 %v733
        %1209 = vmatpush1.msra.mxu0 %v732
        %1210 = vmatprep.subr.mxu0 %v725
        %1211 = vmatpush1.msra.mxu0 %v724
        %1212 = vmatprep.subr.mxu0 %v717
        %1213 = vmatpush1.msra.mxu0 %v716
        %1214 = vmatprep.subr.mxu0 %v709
        %1215 = vmatpush1.msra.mxu0 %v708
        %1216 = vmatprep.subr.mxu0 %v701
        %1217 = vmatpush1.msra.mxu0 %v700
        %1218 = vmatprep.subr.mxu0 %v693
        %1219 = vmatpush1.msra.mxu0 %v692
        %1220 = vmatprep.subr.mxu0 %v685
        %1221 = vmatpush1.msra.mxu0 %v684
        %1222 = vmatprep.subr.mxu0 %v677
        %1223 = vmatpush1.msra.mxu0 %v676
        %1224 = vmatprep.subr.mxu0 %v669
        %1225 = vmatpush1.msra.mxu0 %v668
        %1226 = vmatprep.subr.mxu0 %v661
        %1227 = vmatpush1.msra.mxu0 %v660
        %1228 = vmatprep.subr.mxu0 %v653
        %1229 = vmatpush1.msra.mxu0 %v652
        %1230 = vmatprep.subr.mxu0 %v645
        %1231 = vmatpush1.msra.mxu0 %v644
        %1232 = vmatprep.subr.mxu0 %v637
        %1233 = vmatpush1.msra.mxu0 %v636
        %1234 = vmatprep.subr.mxu0 %v885
        %1235 = vmatpush2.msra.mxu0 %v884
        %1236 = vmatprep.subr.mxu0 %v877
        %1237 = vmatpush2.msra.mxu0 %v876
        %1238 = vmatprep.subr.mxu0 %v869
        %1239 = vmatpush2.msra.mxu0 %v868
        %1240 = vmatprep.subr.mxu0 %v861
        %1241 = vmatpush2.msra.mxu0 %v860
        %1242 = vmatprep.subr.mxu0 %v853
        %1243 = vmatpush2.msra.mxu0 %v852
        %1244 = vmatprep.subr.mxu0 %v845
        %1245 = vmatpush2.msra.mxu0 %v844
        %1246 = vmatprep.subr.mxu0 %v837
        %1247 = vmatpush2.msra.mxu0 %v836
        %1248 = vmatprep.subr.mxu0 %v829
        %1249 = vmatpush2.msra.mxu0 %v828
        %1250 = vmatprep.subr.mxu0 %v821
        %1251 = vmatpush2.msra.mxu0 %v820
        %1252 = vmatprep.subr.mxu0 %v813
        %1253 = vmatpush2.msra.mxu0 %v812
        %1254 = vmatprep.subr.mxu0 %v805
        %1255 = vmatpush2.msra.mxu0 %v804
        %1256 = vmatprep.subr.mxu0 %v797
        %1257 = vmatpush2.msra.mxu0 %v796
        %1258 = vmatprep.subr.mxu0 %v789
        %1259 = vmatpush2.msra.mxu0 %v788
        %1260 = vmatprep.subr.mxu0 %v781
        %1261 = vmatpush2.msra.mxu0 %v780
        %1262 = vmatprep.subr.mxu0 %v773
        %1263 = vmatpush2.msra.mxu0 %v772
        %1264 = vmatprep.subr.mxu0 %v765
        %1265 = vmatpush2.msra.mxu0 %v764
        %1266 = vmatprep.mubr.f32.mxu0 %v629
        %1267 = vmatmul.mubr.f32.gmra.mxu0 %v628
        %v1268 = vpop.f32.mrf.mxu0
        %v1269 = vadd.f32 %v1031, %v1268
        %v1270 = vpop.f32.mrf.mxu0
        %v1271 = vadd.f32 %v1035, %v1270
        %1272 = vdwg.mxu0
        %1273 = vmatprep.subr.mxu0 %v1013
        %1274 = vmatpush1.msra.mxu0 %v1012
        %1275 = vmatprep.subr.mxu0 %v1005
        %1276 = vmatpush1.msra.mxu0 %v1004
        %1277 = vmatprep.subr.mxu0 %v997
        %1278 = vmatpush1.msra.mxu0 %v996
        %1279 = vmatprep.subr.mxu0 %v989
        %1280 = vmatpush1.msra.mxu0 %v988
        %1281 = vmatprep.subr.mxu0 %v981
        %1282 = vmatpush1.msra.mxu0 %v980
        %1283 = vmatprep.subr.mxu0 %v973
        %1284 = vmatpush1.msra.mxu0 %v972
        %1285 = vmatprep.subr.mxu0 %v965
        %1286 = vmatpush1.msra.mxu0 %v964
        %1287 = vmatprep.subr.mxu0 %v957
        %1288 = vmatpush1.msra.mxu0 %v956
        %1289 = vmatprep.subr.mxu0 %v949
        %1290 = vmatpush1.msra.mxu0 %v948
        %1291 = vmatprep.subr.mxu0 %v941
        %1292 = vmatpush1.msra.mxu0 %v940
        %1293 = vmatprep.subr.mxu0 %v933
        %1294 = vmatpush1.msra.mxu0 %v932
        %1295 = vmatprep.subr.mxu0 %v925
        %1296 = vmatpush1.msra.mxu0 %v924
        %1297 = vmatprep.subr.mxu0 %v917
        %1298 = vmatpush1.msra.mxu0 %v916
        %1299 = vmatprep.subr.mxu0 %v909
        %1300 = vmatpush1.msra.mxu0 %v908
        %1301 = vmatprep.subr.mxu0 %v901
        %1302 = vmatpush1.msra.mxu0 %v900
        %1303 = vmatprep.subr.mxu0 %v893
        %1304 = vmatpush1.msra.mxu0 %v892
        %1305 = vmatprep.subr.mxu0 0.0
        %1306 = vmatpush2.msra.mxu0 0.0
        %1307 = vmatprep.subr.mxu0 0.0
        %1308 = vmatpush2.msra.mxu0 0.0
        %1309 = vmatprep.subr.mxu0 0.0
        %1310 = vmatpush2.msra.mxu0 0.0
        %1311 = vmatprep.subr.mxu0 0.0
        %1312 = vmatpush2.msra.mxu0 0.0
        %1313 = vmatprep.subr.mxu0 0.0
        %1314 = vmatpush2.msra.mxu0 0.0
        %1315 = vmatprep.subr.mxu0 0.0
        %1316 = vmatpush2.msra.mxu0 0.0
        %1317 = vmatprep.subr.mxu0 0.0
        %1318 = vmatpush2.msra.mxu0 0.0
        %1319 = vmatprep.subr.mxu0 0.0
        %1320 = vmatpush2.msra.mxu0 0.0
        %1321 = vmatprep.subr.mxu0 0.0
        %1322 = vmatpush2.msra.mxu0 0.0
        %1323 = vmatprep.subr.mxu0 0.0
        %1324 = vmatpush2.msra.mxu0 0.0
        %1325 = vmatprep.subr.mxu0 0.0
        %1326 = vmatpush2.msra.mxu0 0.0
        %1327 = vmatprep.subr.mxu0 0.0
        %1328 = vmatpush2.msra.mxu0 0.0
        %1329 = vmatprep.subr.mxu0 0.0
        %1330 = vmatpush2.msra.mxu0 0.0
        %1331 = vmatprep.subr.mxu0 0.0
        %1332 = vmatpush2.msra.mxu0 0.0
        %1333 = vmatprep.subr.mxu0 0.0
        %1334 = vmatpush2.msra.mxu0 0.0
        %1335 = vmatprep.subr.mxu0 0.0
        %1336 = vmatpush2.msra.mxu0 0.0
        %1337 = vmatprep.mubr.f32.mxu0 0.0
        %1338 = vmatmul.mubr.f32.gmra.mxu0 %v630
        %v1339 = vpop.f32.mrf.mxu0
        %v1340 = vadd.f32 %v1269, %v1339
        %v1341 = vpop.f32.mrf.mxu0
        %v1342 = vadd.f32 %v1271, %v1341
        %1343 = vdwg.mxu0
        %1344 = vmatprep.subr.mxu0 %v759
        %1345 = vmatpush1.msra.mxu0 %v758
        %1346 = vmatprep.subr.mxu0 %v751
        %1347 = vmatpush1.msra.mxu0 %v750
        %1348 = vmatprep.subr.mxu0 %v743
        %1349 = vmatpush1.msra.mxu0 %v742
        %1350 = vmatprep.subr.mxu0 %v735
        %1351 = vmatpush1.msra.mxu0 %v734
        %1352 = vmatprep.subr.mxu0 %v727
        %1353 = vmatpush1.msra.mxu0 %v726
        %1354 = vmatprep.subr.mxu0 %v719
        %1355 = vmatpush1.msra.mxu0 %v718
        %1356 = vmatprep.subr.mxu0 %v711
        %1357 = vmatpush1.msra.mxu0 %v710
        %1358 = vmatprep.subr.mxu0 %v703
        %1359 = vmatpush1.msra.mxu0 %v702
        %1360 = vmatprep.subr.mxu0 %v695
        %1361 = vmatpush1.msra.mxu0 %v694
        %1362 = vmatprep.subr.mxu0 %v687
        %1363 = vmatpush1.msra.mxu0 %v686
        %1364 = vmatprep.subr.mxu0 %v679
        %1365 = vmatpush1.msra.mxu0 %v678
        %1366 = vmatprep.subr.mxu0 %v671
        %1367 = vmatpush1.msra.mxu0 %v670
        %1368 = vmatprep.subr.mxu0 %v663
        %1369 = vmatpush1.msra.mxu0 %v662
        %1370 = vmatprep.subr.mxu0 %v655
        %1371 = vmatpush1.msra.mxu0 %v654
        %1372 = vmatprep.subr.mxu0 %v647
        %1373 = vmatpush1.msra.mxu0 %v646
        %1374 = vmatprep.subr.mxu0 %v639
        %1375 = vmatpush1.msra.mxu0 %v638
        %1376 = vmatprep.subr.mxu0 %v887
        %1377 = vmatpush2.msra.mxu0 %v886
        %1378 = vmatprep.subr.mxu0 %v879
        %1379 = vmatpush2.msra.mxu0 %v878
        %1380 = vmatprep.subr.mxu0 %v871
        %1381 = vmatpush2.msra.mxu0 %v870
        %1382 = vmatprep.subr.mxu0 %v863
        %1383 = vmatpush2.msra.mxu0 %v862
        %1384 = vmatprep.subr.mxu0 %v855
        %1385 = vmatpush2.msra.mxu0 %v854
        %1386 = vmatprep.subr.mxu0 %v847
        %1387 = vmatpush2.msra.mxu0 %v846
        %1388 = vmatprep.subr.mxu0 %v839
        %1389 = vmatpush2.msra.mxu0 %v838
        %1390 = vmatprep.subr.mxu0 %v831
        %1391 = vmatpush2.msra.mxu0 %v830
        %1392 = vmatprep.subr.mxu0 %v823
        %1393 = vmatpush2.msra.mxu0 %v822
        %1394 = vmatprep.subr.mxu0 %v815
        %1395 = vmatpush2.msra.mxu0 %v814
        %1396 = vmatprep.subr.mxu0 %v807
        %1397 = vmatpush2.msra.mxu0 %v806
        %1398 = vmatprep.subr.mxu0 %v799
        %1399 = vmatpush2.msra.mxu0 %v798
        %1400 = vmatprep.subr.mxu0 %v791
        %1401 = vmatpush2.msra.mxu0 %v790
        %1402 = vmatprep.subr.mxu0 %v783
        %1403 = vmatpush2.msra.mxu0 %v782
        %1404 = vmatprep.subr.mxu0 %v775
        %1405 = vmatpush2.msra.mxu0 %v774
        %1406 = vmatprep.subr.mxu0 %v767
        %1407 = vmatpush2.msra.mxu0 %v766
        %1408 = vmatprep.mubr.f32.mxu0 %v629
        %1409 = vmatmul.mubr.f32.gmra.mxu0 %v628
        %v1410 = vpop.f32.mrf.mxu0
        %v1411 = vadd.f32 %v1039, %v1410
        %v1412 = vpop.f32.mrf.mxu0
        %v1413 = vadd.f32 %v1043, %v1412
        %1414 = vdwg.mxu0
        %1415 = vmatprep.subr.mxu0 %v1015
        %1416 = vmatpush1.msra.mxu0 %v1014
        %1417 = vmatprep.subr.mxu0 %v1007
        %1418 = vmatpush1.msra.mxu0 %v1006
        %1419 = vmatprep.subr.mxu0 %v999
        %1420 = vmatpush1.msra.mxu0 %v998
        %1421 = vmatprep.subr.mxu0 %v991
        %1422 = vmatpush1.msra.mxu0 %v990
        %1423 = vmatprep.subr.mxu0 %v983
        %1424 = vmatpush1.msra.mxu0 %v982
        %1425 = vmatprep.subr.mxu0 %v975
        %1426 = vmatpush1.msra.mxu0 %v974
        %1427 = vmatprep.subr.mxu0 %v967
        %1428 = vmatpush1.msra.mxu0 %v966
        %1429 = vmatprep.subr.mxu0 %v959
        %1430 = vmatpush1.msra.mxu0 %v958
        %1431 = vmatprep.subr.mxu0 %v951
        %1432 = vmatpush1.msra.mxu0 %v950
        %1433 = vmatprep.subr.mxu0 %v943
        %1434 = vmatpush1.msra.mxu0 %v942
        %1435 = vmatprep.subr.mxu0 %v935
        %1436 = vmatpush1.msra.mxu0 %v934
        %1437 = vmatprep.subr.mxu0 %v927
        %1438 = vmatpush1.msra.mxu0 %v926
        %1439 = vmatprep.subr.mxu0 %v919
        %1440 = vmatpush1.msra.mxu0 %v918
        %1441 = vmatprep.subr.mxu0 %v911
        %1442 = vmatpush1.msra.mxu0 %v910
        %1443 = vmatprep.subr.mxu0 %v903
        %1444 = vmatpush1.msra.mxu0 %v902
        %1445 = vmatprep.subr.mxu0 %v895
        %1446 = vmatpush1.msra.mxu0 %v894
        %1447 = vmatprep.subr.mxu0 0.0
        %1448 = vmatpush2.msra.mxu0 0.0
        %1449 = vmatprep.subr.mxu0 0.0
        %1450 = vmatpush2.msra.mxu0 0.0
        %1451 = vmatprep.subr.mxu0 0.0
        %1452 = vmatpush2.msra.mxu0 0.0
        %1453 = vmatprep.subr.mxu0 0.0
        %1454 = vmatpush2.msra.mxu0 0.0
        %1455 = vmatprep.subr.mxu0 0.0
        %1456 = vmatpush2.msra.mxu0 0.0
        %1457 = vmatprep.subr.mxu0 0.0
        %1458 = vmatpush2.msra.mxu0 0.0
        %1459 = vmatprep.subr.mxu0 0.0
        %1460 = vmatpush2.msra.mxu0 0.0
        %1461 = vmatprep.subr.mxu0 0.0
        %1462 = vmatpush2.msra.mxu0 0.0
        %1463 = vmatprep.subr.mxu0 0.0
        %1464 = vmatpush2.msra.mxu0 0.0
        %1465 = vmatprep.subr.mxu0 0.0
        %1466 = vmatpush2.msra.mxu0 0.0
        %1467 = vmatprep.subr.mxu0 0.0
        %1468 = vmatpush2.msra.mxu0 0.0
        %1469 = vmatprep.subr.mxu0 0.0
        %1470 = vmatpush2.msra.mxu0 0.0
        %1471 = vmatprep.subr.mxu0 0.0
        %1472 = vmatpush2.msra.mxu0 0.0
        %1473 = vmatprep.subr.mxu0 0.0
        %1474 = vmatpush2.msra.mxu0 0.0
        %1475 = vmatprep.subr.mxu0 0.0
        %1476 = vmatpush2.msra.mxu0 0.0
        %1477 = vmatprep.subr.mxu0 0.0
        %1478 = vmatpush2.msra.mxu0 0.0
        %1479 = vmatprep.mubr.f32.mxu0 0.0
        %1480 = vmatmul.mubr.f32.gmra.mxu0 %v630
        %v1481 = vpop.f32.mrf.mxu0
        %v1482 = vadd.f32 %v1411, %v1481
        %v1483 = vpop.f32.mrf.mxu0
        %v1484 = vadd.f32 %v1413, %v1483
        %1485 = vdwg.mxu0
        %1486 = vmatprep.subr.mxu0 %v761
        %1487 = vmatpush1.msra.mxu0 %v760
        %1488 = vmatprep.subr.mxu0 %v753
        %1489 = vmatpush1.msra.mxu0 %v752
        %1490 = vmatprep.subr.mxu0 %v745
        %1491 = vmatpush1.msra.mxu0 %v744
        %1492 = vmatprep.subr.mxu0 %v737
        %1493 = vmatpush1.msra.mxu0 %v736
        %1494 = vmatprep.subr.mxu0 %v729
        %1495 = vmatpush1.msra.mxu0 %v728
        %1496 = vmatprep.subr.mxu0 %v721
        %1497 = vmatpush1.msra.mxu0 %v720
        %1498 = vmatprep.subr.mxu0 %v713
        %1499 = vmatpush1.msra.mxu0 %v712
        %1500 = vmatprep.subr.mxu0 %v705
        %1501 = vmatpush1.msra.mxu0 %v704
        %1502 = vmatprep.subr.mxu0 %v697
        %1503 = vmatpush1.msra.mxu0 %v696
        %1504 = vmatprep.subr.mxu0 %v689
        %1505 = vmatpush1.msra.mxu0 %v688
        %1506 = vmatprep.subr.mxu0 %v681
        %1507 = vmatpush1.msra.mxu0 %v680
        %1508 = vmatprep.subr.mxu0 %v673
        %1509 = vmatpush1.msra.mxu0 %v672
        %1510 = vmatprep.subr.mxu0 %v665
        %1511 = vmatpush1.msra.mxu0 %v664
        %1512 = vmatprep.subr.mxu0 %v657
        %1513 = vmatpush1.msra.mxu0 %v656
        %1514 = vmatprep.subr.mxu0 %v649
        %1515 = vmatpush1.msra.mxu0 %v648
        %1516 = vmatprep.subr.mxu0 %v641
        %1517 = vmatpush1.msra.mxu0 %v640
        %1518 = vmatprep.subr.mxu0 %v889
        %1519 = vmatpush2.msra.mxu0 %v888
        %1520 = vmatprep.subr.mxu0 %v881
        %1521 = vmatpush2.msra.mxu0 %v880
        %1522 = vmatprep.subr.mxu0 %v873
        %1523 = vmatpush2.msra.mxu0 %v872
        %1524 = vmatprep.subr.mxu0 %v865
        %1525 = vmatpush2.msra.mxu0 %v864
        %1526 = vmatprep.subr.mxu0 %v857
        %1527 = vmatpush2.msra.mxu0 %v856
        %1528 = vmatprep.subr.mxu0 %v849
        %1529 = vmatpush2.msra.mxu0 %v848
        %1530 = vmatprep.subr.mxu0 %v841
        %1531 = vmatpush2.msra.mxu0 %v840
        %1532 = vmatprep.subr.mxu0 %v833
        %1533 = vmatpush2.msra.mxu0 %v832
        %1534 = vmatprep.subr.mxu0 %v825
        %1535 = vmatpush2.msra.mxu0 %v824
        %1536 = vmatprep.subr.mxu0 %v817
        %1537 = vmatpush2.msra.mxu0 %v816
        %1538 = vmatprep.subr.mxu0 %v809
        %1539 = vmatpush2.msra.mxu0 %v808
        %1540 = vmatprep.subr.mxu0 %v801
        %1541 = vmatpush2.msra.mxu0 %v800
        %1542 = vmatprep.subr.mxu0 %v793
        %1543 = vmatpush2.msra.mxu0 %v792
        %1544 = vmatprep.subr.mxu0 %v785
        %1545 = vmatpush2.msra.mxu0 %v784
        %1546 = vmatprep.subr.mxu0 %v777
        %1547 = vmatpush2.msra.mxu0 %v776
        %1548 = vmatprep.subr.mxu0 %v769
        %1549 = vmatpush2.msra.mxu0 %v768
        %1550 = vmatprep.mubr.f32.mxu0 %v629
        %1551 = vmatmul.mubr.f32.gmra.mxu0 %v628
        %v1552 = vpop.f32.mrf.mxu0
        %v1553 = vadd.f32 %v1047, %v1552
        %v1554 = vpop.f32.mrf.mxu0
        %v1555 = vadd.f32 %v1051, %v1554
        %1556 = vdwg.mxu0
        %1557 = vmatprep.subr.mxu0 %v1017
        %1558 = vmatpush1.msra.mxu0 %v1016
        %1559 = vmatprep.subr.mxu0 %v1009
        %1560 = vmatpush1.msra.mxu0 %v1008
        %1561 = vmatprep.subr.mxu0 %v1001
        %1562 = vmatpush1.msra.mxu0 %v1000
        %1563 = vmatprep.subr.mxu0 %v993
        %1564 = vmatpush1.msra.mxu0 %v992
        %1565 = vmatprep.subr.mxu0 %v985
        %1566 = vmatpush1.msra.mxu0 %v984
        %1567 = vmatprep.subr.mxu0 %v977
        %1568 = vmatpush1.msra.mxu0 %v976
        %1569 = vmatprep.subr.mxu0 %v969
        %1570 = vmatpush1.msra.mxu0 %v968
        %1571 = vmatprep.subr.mxu0 %v961
        %1572 = vmatpush1.msra.mxu0 %v960
        %1573 = vmatprep.subr.mxu0 %v953
        %1574 = vmatpush1.msra.mxu0 %v952
        %1575 = vmatprep.subr.mxu0 %v945
        %1576 = vmatpush1.msra.mxu0 %v944
        %1577 = vmatprep.subr.mxu0 %v937
        %1578 = vmatpush1.msra.mxu0 %v936
        %1579 = vmatprep.subr.mxu0 %v929
        %1580 = vmatpush1.msra.mxu0 %v928
        %1581 = vmatprep.subr.mxu0 %v921
        %1582 = vmatpush1.msra.mxu0 %v920
        %1583 = vmatprep.subr.mxu0 %v913
        %1584 = vmatpush1.msra.mxu0 %v912
        %1585 = vmatprep.subr.mxu0 %v905
        %1586 = vmatpush1.msra.mxu0 %v904
        %1587 = vmatprep.subr.mxu0 %v897
        %1588 = vmatpush1.msra.mxu0 %v896
        %1589 = vmatprep.subr.mxu0 0.0
        %1590 = vmatpush2.msra.mxu0 0.0
        %1591 = vmatprep.subr.mxu0 0.0
        %1592 = vmatpush2.msra.mxu0 0.0
        %1593 = vmatprep.subr.mxu0 0.0
        %1594 = vmatpush2.msra.mxu0 0.0
        %1595 = vmatprep.subr.mxu0 0.0
        %1596 = vmatpush2.msra.mxu0 0.0
        %1597 = vmatprep.subr.mxu0 0.0
        %1598 = vmatpush2.msra.mxu0 0.0
        %1599 = vmatprep.subr.mxu0 0.0
        %1600 = vmatpush2.msra.mxu0 0.0
        %1601 = vmatprep.subr.mxu0 0.0
        %1602 = vmatpush2.msra.mxu0 0.0
        %1603 = vmatprep.subr.mxu0 0.0
        %1604 = vmatpush2.msra.mxu0 0.0
        %1605 = vmatprep.subr.mxu0 0.0
        %1606 = vmatpush2.msra.mxu0 0.0
        %1607 = vmatprep.subr.mxu0 0.0
        %1608 = vmatpush2.msra.mxu0 0.0
        %1609 = vmatprep.subr.mxu0 0.0
        %1610 = vmatpush2.msra.mxu0 0.0
        %1611 = vmatprep.subr.mxu0 0.0
        %1612 = vmatpush2.msra.mxu0 0.0
        %1613 = vmatprep.subr.mxu0 0.0
        %1614 = vmatpush2.msra.mxu0 0.0
        %1615 = vmatprep.subr.mxu0 0.0
        %1616 = vmatpush2.msra.mxu0 0.0
        %1617 = vmatprep.subr.mxu0 0.0
        %1618 = vmatpush2.msra.mxu0 0.0
        %1619 = vmatprep.subr.mxu0 0.0
        %1620 = vmatpush2.msra.mxu0 0.0
        %1621 = vmatprep.mubr.f32.mxu0 0.0
        %1622 = vmatmul.mubr.f32.gmra.mxu0 %v630
        %v1623 = vpop.f32.mrf.mxu0
        %v1624 = vadd.f32 %v1553, %v1623
        %v1625 = vpop.f32.mrf.mxu0
        %v1626 = vadd.f32 %v1555, %v1625
        %1627 = vdwg.mxu0
        %1628 = vst [vmem:[#allocation2] sm:$0xff] %v1198
        %1629 = vst [vmem:[#allocation2 + $0x8] sm:$0xff] %v1200
        %1630 = vst [vmem:[#allocation2 + $0x10] sm:$0xff] %v1340
        %1631 = vst [vmem:[#allocation2 + $0x18] sm:$0xff] %v1342
        %1632 = vst [vmem:[#allocation2 + $0x20] sm:$0xff] %v1482
        %1633 = vst [vmem:[#allocation2 + $0x28] sm:$0xff] %v1484
        %1634 = vst [vmem:[#allocation2 + $0x30] sm:$0xff] %v1624
        %1635 = vst [vmem:[#allocation2 + $0x38] sm:$0xff] %v1626
        %v1636 = vld [vmem:[#allocation15] sm:$0xff]
        %v1637 = vld [vmem:[#allocation15 + $0x8] sm:$0xff]
        %v1638 = vld [vmem:[#allocation15 + $0x10] sm:$0xff]
        %v1639 = vld [vmem:[#allocation15 + $0x18] sm:$0xff]
        %v1640 = vld [vmem:[#allocation15 + $0x20] sm:$0xff]
        %v1641 = vld [vmem:[#allocation15 + $0x28] sm:$0xff]
        %v1642 = vld [vmem:[#allocation15 + $0x30] sm:$0xff]
        %v1643 = vld [vmem:[#allocation15 + $0x38] sm:$0xff]
        %v1644 = vld [vmem:[#allocation15 + $0x40] sm:$0xff]
        %v1645 = vld [vmem:[#allocation15 + $0x48] sm:$0xff]
        %v1646 = vld [vmem:[#allocation15 + $0x50] sm:$0xff]
        %v1647 = vld [vmem:[#allocation15 + $0x58] sm:$0xff]
        %v1648 = vld [vmem:[#allocation15 + $0x60] sm:$0xff]
        %v1649 = vld [vmem:[#allocation15 + $0x68] sm:$0xff]
        %v1650 = vld [vmem:[#allocation15 + $0x70] sm:$0xff]
        %v1651 = vld [vmem:[#allocation15 + $0x78] sm:$0xff]
        %v1652 = vld [vmem:[#allocation15 + $0x80] sm:$0xff]
        %v1653 = vld [vmem:[#allocation15 + $0x88] sm:$0xff]
        %v1654 = vld [vmem:[#allocation15 + $0x90] sm:$0xff]
        %v1655 = vld [vmem:[#allocation15 + $0x98] sm:$0xff]
        %v1656 = vld [vmem:[#allocation15 + $0xa0] sm:$0xff]
        %v1657 = vld [vmem:[#allocation15 + $0xa8] sm:$0xff]
        %v1658 = vld [vmem:[#allocation15 + $0xb0] sm:$0xff]
        %v1659 = vld [vmem:[#allocation15 + $0xb8] sm:$0xff]
        %v1660 = vld [vmem:[#allocation15 + $0xc0] sm:$0xff]
        %v1661 = vld [vmem:[#allocation15 + $0xc8] sm:$0xff]
        %v1662 = vld [vmem:[#allocation15 + $0xd0] sm:$0xff]
        %v1663 = vld [vmem:[#allocation15 + $0xd8] sm:$0xff]
        %v1664 = vld [vmem:[#allocation15 + $0xe0] sm:$0xff]
        %v1665 = vld [vmem:[#allocation15 + $0xe8] sm:$0xff]
        %v1666 = vld [vmem:[#allocation15 + $0xf0] sm:$0xff]
        %v1667 = vld [vmem:[#allocation15 + $0xf8] sm:$0xff]
        %v1668 = vld [vmem:[#allocation15 + $0x100] sm:$0xff]
        %v1669 = vld [vmem:[#allocation15 + $0x108] sm:$0xff]
        %v1670 = vld [vmem:[#allocation15 + $0x110] sm:$0xff]
        %v1671 = vld [vmem:[#allocation15 + $0x118] sm:$0xff]
        %v1672 = vld [vmem:[#allocation15 + $0x120] sm:$0xff]
        %v1673 = vld [vmem:[#allocation15 + $0x128] sm:$0xff]
        %v1674 = vld [vmem:[#allocation15 + $0x130] sm:$0xff]
        %v1675 = vld [vmem:[#allocation15 + $0x138] sm:$0xff]
        %v1676 = vld [vmem:[#allocation15 + $0x140] sm:$0xff]
        %v1677 = vld [vmem:[#allocation15 + $0x148] sm:$0xff]
        %v1678 = vld [vmem:[#allocation15 + $0x150] sm:$0xff]
        %v1679 = vld [vmem:[#allocation15 + $0x158] sm:$0xff]
        %v1680 = vld [vmem:[#allocation15 + $0x160] sm:$0xff]
        %v1681 = vld [vmem:[#allocation15 + $0x168] sm:$0xff]
        %v1682 = vld [vmem:[#allocation15 + $0x170] sm:$0xff]
        %v1683 = vld [vmem:[#allocation15 + $0x178] sm:$0xff]
        %v1684 = vld [vmem:[#allocation15 + $0x180] sm:$0xff]
        %v1685 = vld [vmem:[#allocation15 + $0x188] sm:$0xff]
        %v1686 = vld [vmem:[#allocation15 + $0x190] sm:$0xff]
        %v1687 = vld [vmem:[#allocation15 + $0x198] sm:$0xff]
        %v1688 = vld [vmem:[#allocation15 + $0x1a0] sm:$0xff]
        %v1689 = vld [vmem:[#allocation15 + $0x1a8] sm:$0xff]
        %v1690 = vld [vmem:[#allocation15 + $0x1b0] sm:$0xff]
        %v1691 = vld [vmem:[#allocation15 + $0x1b8] sm:$0xff]
        %v1692 = vld [vmem:[#allocation15 + $0x1c0] sm:$0xff]
        %v1693 = vld [vmem:[#allocation15 + $0x1c8] sm:$0xff]
        %v1694 = vld [vmem:[#allocation15 + $0x1d0] sm:$0xff]
        %v1695 = vld [vmem:[#allocation15 + $0x1d8] sm:$0xff]
        %v1696 = vld [vmem:[#allocation15 + $0x1e0] sm:$0xff]
        %v1697 = vld [vmem:[#allocation15 + $0x1e8] sm:$0xff]
        %v1698 = vld [vmem:[#allocation15 + $0x1f0] sm:$0xff]
        %v1699 = vld [vmem:[#allocation15 + $0x1f8] sm:$0xff]
        %v1700 = vld [vmem:[#allocation15 + $0x200] sm:$0xff]
        %v1701 = vld [vmem:[#allocation15 + $0x208] sm:$0xff]
        %v1702 = vld [vmem:[#allocation15 + $0x210] sm:$0xff]
        %v1703 = vld [vmem:[#allocation15 + $0x218] sm:$0xff]
        %v1704 = vld [vmem:[#allocation15 + $0x220] sm:$0xff]
        %v1705 = vld [vmem:[#allocation15 + $0x228] sm:$0xff]
        %v1706 = vld [vmem:[#allocation15 + $0x230] sm:$0xff]
        %v1707 = vld [vmem:[#allocation15 + $0x238] sm:$0xff]
        %v1708 = vld [vmem:[#allocation15 + $0x240] sm:$0xff]
        %v1709 = vld [vmem:[#allocation15 + $0x248] sm:$0xff]
        %v1710 = vld [vmem:[#allocation15 + $0x250] sm:$0xff]
        %v1711 = vld [vmem:[#allocation15 + $0x258] sm:$0xff]
        %v1712 = vld [vmem:[#allocation15 + $0x260] sm:$0xff]
        %v1713 = vld [vmem:[#allocation15 + $0x268] sm:$0xff]
        %v1714 = vld [vmem:[#allocation15 + $0x270] sm:$0xff]
        %v1715 = vld [vmem:[#allocation15 + $0x278] sm:$0xff]
        %v1716 = vld [vmem:[#allocation15 + $0x280] sm:$0xff]
        %v1717 = vld [vmem:[#allocation15 + $0x288] sm:$0xff]
        %v1718 = vld [vmem:[#allocation15 + $0x290] sm:$0xff]
        %v1719 = vld [vmem:[#allocation15 + $0x298] sm:$0xff]
        %v1720 = vld [vmem:[#allocation15 + $0x2a0] sm:$0xff]
        %v1721 = vld [vmem:[#allocation15 + $0x2a8] sm:$0xff]
        %v1722 = vld [vmem:[#allocation15 + $0x2b0] sm:$0xff]
        %v1723 = vld [vmem:[#allocation15 + $0x2b8] sm:$0xff]
        %v1724 = vld [vmem:[#allocation15 + $0x2c0] sm:$0xff]
        %v1725 = vld [vmem:[#allocation15 + $0x2c8] sm:$0xff]
        %v1726 = vld [vmem:[#allocation15 + $0x2d0] sm:$0xff]
        %v1727 = vld [vmem:[#allocation15 + $0x2d8] sm:$0xff]
        %v1728 = vld [vmem:[#allocation15 + $0x2e0] sm:$0xff]
        %v1729 = vld [vmem:[#allocation15 + $0x2e8] sm:$0xff]
        %v1730 = vld [vmem:[#allocation15 + $0x2f0] sm:$0xff]
        %v1731 = vld [vmem:[#allocation15 + $0x2f8] sm:$0xff]
        %v1732 = vld [vmem:[#allocation15 + $0x300] sm:$0xff]
        %v1733 = vld [vmem:[#allocation15 + $0x308] sm:$0xff]
        %v1734 = vld [vmem:[#allocation15 + $0x310] sm:$0xff]
        %v1735 = vld [vmem:[#allocation15 + $0x318] sm:$0xff]
        %v1736 = vld [vmem:[#allocation15 + $0x320] sm:$0xff]
        %v1737 = vld [vmem:[#allocation15 + $0x328] sm:$0xff]
        %v1738 = vld [vmem:[#allocation15 + $0x330] sm:$0xff]
        %v1739 = vld [vmem:[#allocation15 + $0x338] sm:$0xff]
        %v1740 = vld [vmem:[#allocation15 + $0x340] sm:$0xff]
        %v1741 = vld [vmem:[#allocation15 + $0x348] sm:$0xff]
        %v1742 = vld [vmem:[#allocation15 + $0x350] sm:$0xff]
        %v1743 = vld [vmem:[#allocation15 + $0x358] sm:$0xff]
        %v1744 = vld [vmem:[#allocation15 + $0x360] sm:$0xff]
        %v1745 = vld [vmem:[#allocation15 + $0x368] sm:$0xff]
        %v1746 = vld [vmem:[#allocation15 + $0x370] sm:$0xff]
        %v1747 = vld [vmem:[#allocation15 + $0x378] sm:$0xff]
        %v1748 = vld [vmem:[#allocation15 + $0x380] sm:$0xff]
        %v1749 = vld [vmem:[#allocation15 + $0x388] sm:$0xff]
        %v1750 = vld [vmem:[#allocation15 + $0x390] sm:$0xff]
        %v1751 = vld [vmem:[#allocation15 + $0x398] sm:$0xff]
        %v1752 = vld [vmem:[#allocation15 + $0x3a0] sm:$0xff]
        %v1753 = vld [vmem:[#allocation15 + $0x3a8] sm:$0xff]
        %v1754 = vld [vmem:[#allocation15 + $0x3b0] sm:$0xff]
        %v1755 = vld [vmem:[#allocation15 + $0x3b8] sm:$0xff]
        %v1756 = vld [vmem:[#allocation15 + $0x3c0] sm:$0xff]
        %v1757 = vld [vmem:[#allocation15 + $0x3c8] sm:$0xff]
        %v1758 = vld [vmem:[#allocation15 + $0x3d0] sm:$0xff]
        %v1759 = vld [vmem:[#allocation15 + $0x3d8] sm:$0xff]
        %v1760 = vld [vmem:[#allocation15 + $0x3e0] sm:$0xff]
        %v1761 = vld [vmem:[#allocation15 + $0x3e8] sm:$0xff]
        %v1762 = vld [vmem:[#allocation15 + $0x3f0] sm:$0xff]
        %v1763 = vld [vmem:[#allocation15 + $0x3f8] sm:$0xff]
        %v1764 = vld [vmem:[#allocation15 + $0x400] sm:$0xff]
        %v1765 = vld [vmem:[#allocation15 + $0x408] sm:$0xff]
        %v1766 = vld [vmem:[#allocation15 + $0x410] sm:$0xff]
        %v1767 = vld [vmem:[#allocation15 + $0x418] sm:$0xff]
        %v1768 = vld [vmem:[#allocation15 + $0x420] sm:$0xff]
        %v1769 = vld [vmem:[#allocation15 + $0x428] sm:$0xff]
        %v1770 = vld [vmem:[#allocation15 + $0x430] sm:$0xff]
        %v1771 = vld [vmem:[#allocation15 + $0x438] sm:$0xff]
        %v1772 = vld [vmem:[#allocation15 + $0x440] sm:$0xff]
        %v1773 = vld [vmem:[#allocation15 + $0x448] sm:$0xff]
        %v1774 = vld [vmem:[#allocation15 + $0x450] sm:$0xff]
        %v1775 = vld [vmem:[#allocation15 + $0x458] sm:$0xff]
        %v1776 = vld [vmem:[#allocation15 + $0x460] sm:$0xff]
        %v1777 = vld [vmem:[#allocation15 + $0x468] sm:$0xff]
        %v1778 = vld [vmem:[#allocation15 + $0x470] sm:$0xff]
        %v1779 = vld [vmem:[#allocation15 + $0x478] sm:$0xff]
        %v1780 = vld [vmem:[#allocation15 + $0x480] sm:$0xff]
        %v1781 = vld [vmem:[#allocation15 + $0x488] sm:$0xff]
        %v1782 = vld [vmem:[#allocation15 + $0x490] sm:$0xff]
        %v1783 = vld [vmem:[#allocation15 + $0x498] sm:$0xff]
        %v1784 = vld [vmem:[#allocation15 + $0x4a0] sm:$0xff]
        %v1785 = vld [vmem:[#allocation15 + $0x4a8] sm:$0xff]
        %v1786 = vld [vmem:[#allocation15 + $0x4b0] sm:$0xff]
        %v1787 = vld [vmem:[#allocation15 + $0x4b8] sm:$0xff]
        %v1788 = vld [vmem:[#allocation15 + $0x4c0] sm:$0xff]
        %v1789 = vld [vmem:[#allocation15 + $0x4c8] sm:$0xff]
        %v1790 = vld [vmem:[#allocation15 + $0x4d0] sm:$0xff]
        %v1791 = vld [vmem:[#allocation15 + $0x4d8] sm:$0xff]
        %v1792 = vld [vmem:[#allocation15 + $0x4e0] sm:$0xff]
        %v1793 = vld [vmem:[#allocation15 + $0x4e8] sm:$0xff]
        %v1794 = vld [vmem:[#allocation15 + $0x4f0] sm:$0xff]
        %v1795 = vld [vmem:[#allocation15 + $0x4f8] sm:$0xff]
        %v1796 = vld [vmem:[#allocation15 + $0x500] sm:$0xff]
        %v1797 = vld [vmem:[#allocation15 + $0x508] sm:$0xff]
        %v1798 = vld [vmem:[#allocation15 + $0x510] sm:$0xff]
        %v1799 = vld [vmem:[#allocation15 + $0x518] sm:$0xff]
        %v1800 = vld [vmem:[#allocation15 + $0x520] sm:$0xff]
        %v1801 = vld [vmem:[#allocation15 + $0x528] sm:$0xff]
        %v1802 = vld [vmem:[#allocation15 + $0x530] sm:$0xff]
        %v1803 = vld [vmem:[#allocation15 + $0x538] sm:$0xff]
        %v1804 = vld [vmem:[#allocation15 + $0x540] sm:$0xff]
        %v1805 = vld [vmem:[#allocation15 + $0x548] sm:$0xff]
        %v1806 = vld [vmem:[#allocation15 + $0x550] sm:$0xff]
        %v1807 = vld [vmem:[#allocation15 + $0x558] sm:$0xff]
        %v1808 = vld [vmem:[#allocation15 + $0x560] sm:$0xff]
        %v1809 = vld [vmem:[#allocation15 + $0x568] sm:$0xff]
        %v1810 = vld [vmem:[#allocation15 + $0x570] sm:$0xff]
        %v1811 = vld [vmem:[#allocation15 + $0x578] sm:$0xff]
        %v1812 = vld [vmem:[#allocation15 + $0x580] sm:$0xff]
        %v1813 = vld [vmem:[#allocation15 + $0x588] sm:$0xff]
        %v1814 = vld [vmem:[#allocation15 + $0x590] sm:$0xff]
        %v1815 = vld [vmem:[#allocation15 + $0x598] sm:$0xff]
        %v1816 = vld [vmem:[#allocation15 + $0x5a0] sm:$0xff]
        %v1817 = vld [vmem:[#allocation15 + $0x5a8] sm:$0xff]
        %v1818 = vld [vmem:[#allocation15 + $0x5b0] sm:$0xff]
        %v1819 = vld [vmem:[#allocation15 + $0x5b8] sm:$0xff]
        %v1820 = vld [vmem:[#allocation15 + $0x5c0] sm:$0xff]
        %v1821 = vld [vmem:[#allocation15 + $0x5c8] sm:$0xff]
        %v1822 = vld [vmem:[#allocation15 + $0x5d0] sm:$0xff]
        %v1823 = vld [vmem:[#allocation15 + $0x5d8] sm:$0xff]
        %v1824 = vld [vmem:[#allocation15 + $0x5e0] sm:$0xff]
        %v1825 = vld [vmem:[#allocation15 + $0x5e8] sm:$0xff]
        %v1826 = vld [vmem:[#allocation15 + $0x5f0] sm:$0xff]
        %v1827 = vld [vmem:[#allocation15 + $0x5f8] sm:$0xff]
        %v1828 = vld [vmem:[#allocation15 + $0x600] sm:$0xff]
        %v1829 = vld [vmem:[#allocation15 + $0x608] sm:$0xff]
        %v1830 = vld [vmem:[#allocation15 + $0x610] sm:$0xff]
        %v1831 = vld [vmem:[#allocation15 + $0x618] sm:$0xff]
        %v1832 = vld [vmem:[#allocation15 + $0x620] sm:$0xff]
        %v1833 = vld [vmem:[#allocation15 + $0x628] sm:$0xff]
        %v1834 = vld [vmem:[#allocation15 + $0x630] sm:$0xff]
        %v1835 = vld [vmem:[#allocation15 + $0x638] sm:$0xff]
        %v1836 = vld [vmem:[#allocation15 + $0x640] sm:$0xff]
        %v1837 = vld [vmem:[#allocation15 + $0x648] sm:$0xff]
        %v1838 = vld [vmem:[#allocation15 + $0x650] sm:$0xff]
        %v1839 = vld [vmem:[#allocation15 + $0x658] sm:$0xff]
        %v1840 = vld [vmem:[#allocation15 + $0x660] sm:$0xff]
        %v1841 = vld [vmem:[#allocation15 + $0x668] sm:$0xff]
        %v1842 = vld [vmem:[#allocation15 + $0x670] sm:$0xff]
        %v1843 = vld [vmem:[#allocation15 + $0x678] sm:$0xff]
        %v1844 = vld [vmem:[#allocation15 + $0x680] sm:$0xff]
        %v1845 = vld [vmem:[#allocation15 + $0x688] sm:$0xff]
        %v1846 = vld [vmem:[#allocation15 + $0x690] sm:$0xff]
        %v1847 = vld [vmem:[#allocation15 + $0x698] sm:$0xff]
        %v1848 = vld [vmem:[#allocation15 + $0x6a0] sm:$0xff]
        %v1849 = vld [vmem:[#allocation15 + $0x6a8] sm:$0xff]
        %v1850 = vld [vmem:[#allocation15 + $0x6b0] sm:$0xff]
        %v1851 = vld [vmem:[#allocation15 + $0x6b8] sm:$0xff]
        %v1852 = vld [vmem:[#allocation15 + $0x6c0] sm:$0xff]
        %v1853 = vld [vmem:[#allocation15 + $0x6c8] sm:$0xff]
        %v1854 = vld [vmem:[#allocation15 + $0x6d0] sm:$0xff]
        %v1855 = vld [vmem:[#allocation15 + $0x6d8] sm:$0xff]
        %v1856 = vld [vmem:[#allocation15 + $0x6e0] sm:$0xff]
        %v1857 = vld [vmem:[#allocation15 + $0x6e8] sm:$0xff]
        %v1858 = vld [vmem:[#allocation15 + $0x6f0] sm:$0xff]
        %v1859 = vld [vmem:[#allocation15 + $0x6f8] sm:$0xff]
        %v1860 = vld [vmem:[#allocation15 + $0x700] sm:$0xff]
        %v1861 = vld [vmem:[#allocation15 + $0x708] sm:$0xff]
        %v1862 = vld [vmem:[#allocation15 + $0x710] sm:$0xff]
        %v1863 = vld [vmem:[#allocation15 + $0x718] sm:$0xff]
        %v1864 = vld [vmem:[#allocation15 + $0x720] sm:$0xff]
        %v1865 = vld [vmem:[#allocation15 + $0x728] sm:$0xff]
        %v1866 = vld [vmem:[#allocation15 + $0x730] sm:$0xff]
        %v1867 = vld [vmem:[#allocation15 + $0x738] sm:$0xff]
        %v1868 = vld [vmem:[#allocation15 + $0x740] sm:$0xff]
        %v1869 = vld [vmem:[#allocation15 + $0x748] sm:$0xff]
        %v1870 = vld [vmem:[#allocation15 + $0x750] sm:$0xff]
        %v1871 = vld [vmem:[#allocation15 + $0x758] sm:$0xff]
        %v1872 = vld [vmem:[#allocation15 + $0x760] sm:$0xff]
        %v1873 = vld [vmem:[#allocation15 + $0x768] sm:$0xff]
        %v1874 = vld [vmem:[#allocation15 + $0x770] sm:$0xff]
        %v1875 = vld [vmem:[#allocation15 + $0x778] sm:$0xff]
        %v1876 = vld [vmem:[#allocation15 + $0x780] sm:$0xff]
        %v1877 = vld [vmem:[#allocation15 + $0x788] sm:$0xff]
        %v1878 = vld [vmem:[#allocation15 + $0x790] sm:$0xff]
        %v1879 = vld [vmem:[#allocation15 + $0x798] sm:$0xff]
        %v1880 = vld [vmem:[#allocation15 + $0x7a0] sm:$0xff]
        %v1881 = vld [vmem:[#allocation15 + $0x7a8] sm:$0xff]
        %v1882 = vld [vmem:[#allocation15 + $0x7b0] sm:$0xff]
        %v1883 = vld [vmem:[#allocation15 + $0x7b8] sm:$0xff]
        %v1884 = vld [vmem:[#allocation15 + $0x7c0] sm:$0xff]
        %v1885 = vld [vmem:[#allocation15 + $0x7c8] sm:$0xff]
        %v1886 = vld [vmem:[#allocation15 + $0x7d0] sm:$0xff]
        %v1887 = vld [vmem:[#allocation15 + $0x7d8] sm:$0xff]
        %v1888 = vld [vmem:[#allocation15 + $0x7e0] sm:$0xff]
        %v1889 = vld [vmem:[#allocation15 + $0x7e8] sm:$0xff]
        %v1890 = vld [vmem:[#allocation15 + $0x7f0] sm:$0xff]
        %v1891 = vld [vmem:[#allocation15 + $0x7f8] sm:$0xff]
        %v1892 = vld [vmem:[#allocation15 + $0x800] sm:$0xff]
        %v1893 = vld [vmem:[#allocation15 + $0x808] sm:$0xff]
        %v1894 = vld [vmem:[#allocation15 + $0x810] sm:$0xff]
        %v1895 = vld [vmem:[#allocation15 + $0x818] sm:$0xff]
        %v1896 = vld [vmem:[#allocation15 + $0x820] sm:$0xff]
        %v1897 = vld [vmem:[#allocation15 + $0x828] sm:$0xff]
        %v1898 = vld [vmem:[#allocation15 + $0x830] sm:$0xff]
        %v1899 = vld [vmem:[#allocation15 + $0x838] sm:$0xff]
        %v1900 = vld [vmem:[#allocation15 + $0x840] sm:$0xff]
        %v1901 = vld [vmem:[#allocation15 + $0x848] sm:$0xff]
        %v1902 = vld [vmem:[#allocation15 + $0x850] sm:$0xff]
        %v1903 = vld [vmem:[#allocation15 + $0x858] sm:$0xff]
        %v1904 = vld [vmem:[#allocation15 + $0x860] sm:$0xff]
        %v1905 = vld [vmem:[#allocation15 + $0x868] sm:$0xff]
        %v1906 = vld [vmem:[#allocation15 + $0x870] sm:$0xff]
        %v1907 = vld [vmem:[#allocation15 + $0x878] sm:$0xff]
        %v1908 = vld [vmem:[#allocation15 + $0x880] sm:$0xff]
        %v1909 = vld [vmem:[#allocation15 + $0x888] sm:$0xff]
        %v1910 = vld [vmem:[#allocation15 + $0x890] sm:$0xff]
        %v1911 = vld [vmem:[#allocation15 + $0x898] sm:$0xff]
        %v1912 = vld [vmem:[#allocation15 + $0x8a0] sm:$0xff]
        %v1913 = vld [vmem:[#allocation15 + $0x8a8] sm:$0xff]
        %v1914 = vld [vmem:[#allocation15 + $0x8b0] sm:$0xff]
        %v1915 = vld [vmem:[#allocation15 + $0x8b8] sm:$0xff]
        %v1916 = vld [vmem:[#allocation15 + $0x8c0] sm:$0xff]
        %v1917 = vld [vmem:[#allocation15 + $0x8c8] sm:$0xff]
        %v1918 = vld [vmem:[#allocation15 + $0x8d0] sm:$0xff]
        %v1919 = vld [vmem:[#allocation15 + $0x8d8] sm:$0xff]
        %v1920 = vld [vmem:[#allocation15 + $0x8e0] sm:$0xff]
        %v1921 = vld [vmem:[#allocation15 + $0x8e8] sm:$0xff]
        %v1922 = vld [vmem:[#allocation15 + $0x8f0] sm:$0xff]
        %v1923 = vld [vmem:[#allocation15 + $0x8f8] sm:$0xff]
        %v1924 = vld [vmem:[#allocation15 + $0x900] sm:$0xff]
        %v1925 = vld [vmem:[#allocation15 + $0x908] sm:$0xff]
        %v1926 = vld [vmem:[#allocation15 + $0x910] sm:$0xff]
        %v1927 = vld [vmem:[#allocation15 + $0x918] sm:$0xff]
        %v1928 = vld [vmem:[#allocation15 + $0x920] sm:$0xff]
        %v1929 = vld [vmem:[#allocation15 + $0x928] sm:$0xff]
        %v1930 = vld [vmem:[#allocation15 + $0x930] sm:$0xff]
        %v1931 = vld [vmem:[#allocation15 + $0x938] sm:$0xff]
        %v1932 = vld [vmem:[#allocation15 + $0x940] sm:$0xff]
        %v1933 = vld [vmem:[#allocation15 + $0x948] sm:$0xff]
        %v1934 = vld [vmem:[#allocation15 + $0x950] sm:$0xff]
        %v1935 = vld [vmem:[#allocation15 + $0x958] sm:$0xff]
        %v1936 = vld [vmem:[#allocation15 + $0x960] sm:$0xff]
        %v1937 = vld [vmem:[#allocation15 + $0x968] sm:$0xff]
        %v1938 = vld [vmem:[#allocation15 + $0x970] sm:$0xff]
        %v1939 = vld [vmem:[#allocation15 + $0x978] sm:$0xff]
        %v1940 = vld [vmem:[#allocation15 + $0x980] sm:$0xff]
        %v1941 = vld [vmem:[#allocation15 + $0x988] sm:$0xff]
        %v1942 = vld [vmem:[#allocation15 + $0x990] sm:$0xff]
        %v1943 = vld [vmem:[#allocation15 + $0x998] sm:$0xff]
        %v1944 = vld [vmem:[#allocation15 + $0x9a0] sm:$0xff]
        %v1945 = vld [vmem:[#allocation15 + $0x9a8] sm:$0xff]
        %v1946 = vld [vmem:[#allocation15 + $0x9b0] sm:$0xff]
        %v1947 = vld [vmem:[#allocation15 + $0x9b8] sm:$0xff]
        %v1948 = vld [vmem:[#allocation15 + $0x9c0] sm:$0xff]
        %v1949 = vld [vmem:[#allocation15 + $0x9c8] sm:$0xff]
        %v1950 = vld [vmem:[#allocation15 + $0x9d0] sm:$0xff]
        %v1951 = vld [vmem:[#allocation15 + $0x9d8] sm:$0xff]
        %v1952 = vld [vmem:[#allocation15 + $0x9e0] sm:$0xff]
        %v1953 = vld [vmem:[#allocation15 + $0x9e8] sm:$0xff]
        %v1954 = vld [vmem:[#allocation15 + $0x9f0] sm:$0xff]
        %v1955 = vld [vmem:[#allocation15 + $0x9f8] sm:$0xff]
        %v1956 = vld [vmem:[#allocation15 + $0xa00] sm:$0xff]
        %v1957 = vld [vmem:[#allocation15 + $0xa08] sm:$0xff]
        %v1958 = vld [vmem:[#allocation15 + $0xa10] sm:$0xff]
        %v1959 = vld [vmem:[#allocation15 + $0xa18] sm:$0xff]
        %v1960 = vld [vmem:[#allocation15 + $0xa20] sm:$0xff]
        %v1961 = vld [vmem:[#allocation15 + $0xa28] sm:$0xff]
        %v1962 = vld [vmem:[#allocation15 + $0xa30] sm:$0xff]
        %v1963 = vld [vmem:[#allocation15 + $0xa38] sm:$0xff]
        %v1964 = vld [vmem:[#allocation15 + $0xa40] sm:$0xff]
        %v1965 = vld [vmem:[#allocation15 + $0xa48] sm:$0xff]
        %v1966 = vld [vmem:[#allocation15 + $0xa50] sm:$0xff]
        %v1967 = vld [vmem:[#allocation15 + $0xa58] sm:$0xff]
        %v1968 = vld [vmem:[#allocation15 + $0xa60] sm:$0xff]
        %v1969 = vld [vmem:[#allocation15 + $0xa68] sm:$0xff]
        %v1970 = vld [vmem:[#allocation15 + $0xa70] sm:$0xff]
        %v1971 = vld [vmem:[#allocation15 + $0xa78] sm:$0xff]
        %v1972 = vld [vmem:[#allocation15 + $0xa80] sm:$0xff]
        %v1973 = vld [vmem:[#allocation15 + $0xa88] sm:$0xff]
        %v1974 = vld [vmem:[#allocation15 + $0xa90] sm:$0xff]
        %v1975 = vld [vmem:[#allocation15 + $0xa98] sm:$0xff]
        %v1976 = vld [vmem:[#allocation15 + $0xaa0] sm:$0xff]
        %v1977 = vld [vmem:[#allocation15 + $0xaa8] sm:$0xff]
        %v1978 = vld [vmem:[#allocation15 + $0xab0] sm:$0xff]
        %v1979 = vld [vmem:[#allocation15 + $0xab8] sm:$0xff]
        %v1980 = vld [vmem:[#allocation15 + $0xac0] sm:$0xff]
        %v1981 = vld [vmem:[#allocation15 + $0xac8] sm:$0xff]
        %v1982 = vld [vmem:[#allocation15 + $0xad0] sm:$0xff]
        %v1983 = vld [vmem:[#allocation15 + $0xad8] sm:$0xff]
        %v1984 = vld [vmem:[#allocation15 + $0xae0] sm:$0xff]
        %v1985 = vld [vmem:[#allocation15 + $0xae8] sm:$0xff]
        %v1986 = vld [vmem:[#allocation15 + $0xaf0] sm:$0xff]
        %v1987 = vld [vmem:[#allocation15 + $0xaf8] sm:$0xff]
        %v1988 = vld [vmem:[#allocation15 + $0xb00] sm:$0xff]
        %v1989 = vld [vmem:[#allocation15 + $0xb08] sm:$0xff]
        %v1990 = vld [vmem:[#allocation15 + $0xb10] sm:$0xff]
        %v1991 = vld [vmem:[#allocation15 + $0xb18] sm:$0xff]
        %v1992 = vld [vmem:[#allocation15 + $0xb20] sm:$0xff]
        %v1993 = vld [vmem:[#allocation15 + $0xb28] sm:$0xff]
        %v1994 = vld [vmem:[#allocation15 + $0xb30] sm:$0xff]
        %v1995 = vld [vmem:[#allocation15 + $0xb38] sm:$0xff]
        %v1996 = vld [vmem:[#allocation15 + $0xb40] sm:$0xff]
        %v1997 = vld [vmem:[#allocation15 + $0xb48] sm:$0xff]
        %v1998 = vld [vmem:[#allocation15 + $0xb50] sm:$0xff]
        %v1999 = vld [vmem:[#allocation15 + $0xb58] sm:$0xff]
        %v2000 = vld [vmem:[#allocation15 + $0xb60] sm:$0xff]
        %v2001 = vld [vmem:[#allocation15 + $0xb68] sm:$0xff]
        %v2002 = vld [vmem:[#allocation15 + $0xb70] sm:$0xff]
        %v2003 = vld [vmem:[#allocation15 + $0xb78] sm:$0xff]
        %v2004 = vld [vmem:[#allocation15 + $0xb80] sm:$0xff]
        %v2005 = vld [vmem:[#allocation15 + $0xb88] sm:$0xff]
        %v2006 = vld [vmem:[#allocation15 + $0xb90] sm:$0xff]
        %v2007 = vld [vmem:[#allocation15 + $0xb98] sm:$0xff]
        %v2008 = vld [vmem:[#allocation15 + $0xba0] sm:$0xff]
        %v2009 = vld [vmem:[#allocation15 + $0xba8] sm:$0xff]
        %v2010 = vld [vmem:[#allocation15 + $0xbb0] sm:$0xff]
        %v2011 = vld [vmem:[#allocation15 + $0xbb8] sm:$0xff]
        %v2012 = vld [vmem:[#allocation15 + $0xbc0] sm:$0xff]
        %v2013 = vld [vmem:[#allocation15 + $0xbc8] sm:$0xff]
        %v2014 = vld [vmem:[#allocation15 + $0xbd0] sm:$0xff]
        %v2015 = vld [vmem:[#allocation15 + $0xbd8] sm:$0xff]
        %v2016 = vld [vmem:[#allocation15 + $0xbe0] sm:$0xff]
        %v2017 = vld [vmem:[#allocation15 + $0xbe8] sm:$0xff]
        %v2018 = vld [vmem:[#allocation15 + $0xbf0] sm:$0xff]
        %v2019 = vld [vmem:[#allocation15 + $0xbf8] sm:$0xff]
        %v2020 = vld [vmem:[#allocation17] sm:$0xff]
        %v2022 = vlaneseq
        %v2023 = vshrl.u32 %v2022, 7
        %v2024 = vsub.s32 0, %v2023
        %v2025 = vrot.slane %v2020, %v2024
        %v2026 = vlaneseq
        %v2027 = vshrl.u32 %v2026, 7
        %v2028 = vsub.s32 1, %v2027
        %v2029 = vrot.slane %v2020, %v2028
        %v2030 = vlaneseq
        %v2031 = vshrl.u32 %v2030, 7
        %v2032 = vsub.s32 2, %v2031
        %v2033 = vrot.slane %v2020, %v2032
        %v2034 = vlaneseq
        %v2035 = vshrl.u32 %v2034, 7
        %v2036 = vsub.s32 3, %v2035
        %v2037 = vrot.slane %v2020, %v2036
        %v2038 = vlaneseq
        %v2039 = vshrl.u32 %v2038, 7
        %v2040 = vsub.s32 4, %v2039
        %v2041 = vrot.slane %v2020, %v2040
        %v2042 = vlaneseq
        %v2043 = vshrl.u32 %v2042, 7
        %v2044 = vsub.s32 5, %v2043
        %v2045 = vrot.slane %v2020, %v2044
        %v2046 = vlaneseq
        %v2047 = vshrl.u32 %v2046, 7
        %v2048 = vsub.s32 6, %v2047
        %v2049 = vrot.slane %v2020, %v2048
        %v2050 = vlaneseq
        %v2051 = vshrl.u32 %v2050, 7
        %v2052 = vsub.s32 7, %v2051
        %v2053 = vrot.slane %v2020, %v2052
        %2062 = vmatprep.subr.mxu0 %v1757
        %2063 = vmatpush1.msra.mxu0 %v1756
        %2064 = vmatprep.subr.mxu0 %v1749
        %2065 = vmatpush1.msra.mxu0 %v1748
        %2066 = vmatprep.subr.mxu0 %v1741
        %2067 = vmatpush1.msra.mxu0 %v1740
        %2068 = vmatprep.subr.mxu0 %v1733
        %2069 = vmatpush1.msra.mxu0 %v1732
        %2070 = vmatprep.subr.mxu0 %v1725
        %2071 = vmatpush1.msra.mxu0 %v1724
        %2072 = vmatprep.subr.mxu0 %v1717
        %2073 = vmatpush1.msra.mxu0 %v1716
        %2074 = vmatprep.subr.mxu0 %v1709
        %2075 = vmatpush1.msra.mxu0 %v1708
        %2076 = vmatprep.subr.mxu0 %v1701
        %2077 = vmatpush1.msra.mxu0 %v1700
        %2078 = vmatprep.subr.mxu0 %v1693
        %2079 = vmatpush1.msra.mxu0 %v1692
        %2080 = vmatprep.subr.mxu0 %v1685
        %2081 = vmatpush1.msra.mxu0 %v1684
        %2082 = vmatprep.subr.mxu0 %v1677
        %2083 = vmatpush1.msra.mxu0 %v1676
        %2084 = vmatprep.subr.mxu0 %v1669
        %2085 = vmatpush1.msra.mxu0 %v1668
        %2086 = vmatprep.subr.mxu0 %v1661
        %2087 = vmatpush1.msra.mxu0 %v1660
        %2088 = vmatprep.subr.mxu0 %v1653
        %2089 = vmatpush1.msra.mxu0 %v1652
        %2090 = vmatprep.subr.mxu0 %v1645
        %2091 = vmatpush1.msra.mxu0 %v1644
        %2092 = vmatprep.subr.mxu0 %v1637
        %2093 = vmatpush1.msra.mxu0 %v1636
        %2094 = vmatprep.subr.mxu0 %v1885
        %2095 = vmatpush2.msra.mxu0 %v1884
        %2096 = vmatprep.subr.mxu0 %v1877
        %2097 = vmatpush2.msra.mxu0 %v1876
        %2098 = vmatprep.subr.mxu0 %v1869
        %2099 = vmatpush2.msra.mxu0 %v1868
        %2100 = vmatprep.subr.mxu0 %v1861
        %2101 = vmatpush2.msra.mxu0 %v1860
        %2102 = vmatprep.subr.mxu0 %v1853
        %2103 = vmatpush2.msra.mxu0 %v1852
        %2104 = vmatprep.subr.mxu0 %v1845
        %2105 = vmatpush2.msra.mxu0 %v1844
        %2106 = vmatprep.subr.mxu0 %v1837
        %2107 = vmatpush2.msra.mxu0 %v1836
        %2108 = vmatprep.subr.mxu0 %v1829
        %2109 = vmatpush2.msra.mxu0 %v1828
        %2110 = vmatprep.subr.mxu0 %v1821
        %2111 = vmatpush2.msra.mxu0 %v1820
        %2112 = vmatprep.subr.mxu0 %v1813
        %2113 = vmatpush2.msra.mxu0 %v1812
        %2114 = vmatprep.subr.mxu0 %v1805
        %2115 = vmatpush2.msra.mxu0 %v1804
        %2116 = vmatprep.subr.mxu0 %v1797
        %2117 = vmatpush2.msra.mxu0 %v1796
        %2118 = vmatprep.subr.mxu0 %v1789
        %2119 = vmatpush2.msra.mxu0 %v1788
        %2120 = vmatprep.subr.mxu0 %v1781
        %2121 = vmatpush2.msra.mxu0 %v1780
        %2122 = vmatprep.subr.mxu0 %v1773
        %2123 = vmatpush2.msra.mxu0 %v1772
        %2124 = vmatprep.subr.mxu0 %v1765
        %2125 = vmatpush2.msra.mxu0 %v1764
        %2126 = vmatprep.mubr.f32.mxu0 %v632
        %2127 = vmatmul.mubr.f32.gmra.mxu0 %v631
        %v2128 = vpop.f32.mrf.mxu0
        %v2129 = vadd.f32 %v2025, %v2128
        %v2130 = vpop.f32.mrf.mxu0
        %v2131 = vadd.f32 %v2029, %v2130
        %2132 = vdwg.mxu0
        %2133 = vmatprep.subr.mxu0 %v2013
        %2134 = vmatpush1.msra.mxu0 %v2012
        %2135 = vmatprep.subr.mxu0 %v2005
        %2136 = vmatpush1.msra.mxu0 %v2004
        %2137 = vmatprep.subr.mxu0 %v1997
        %2138 = vmatpush1.msra.mxu0 %v1996
        %2139 = vmatprep.subr.mxu0 %v1989
        %2140 = vmatpush1.msra.mxu0 %v1988
        %2141 = vmatprep.subr.mxu0 %v1981
        %2142 = vmatpush1.msra.mxu0 %v1980
        %2143 = vmatprep.subr.mxu0 %v1973
        %2144 = vmatpush1.msra.mxu0 %v1972
        %2145 = vmatprep.subr.mxu0 %v1965
        %2146 = vmatpush1.msra.mxu0 %v1964
        %2147 = vmatprep.subr.mxu0 %v1957
        %2148 = vmatpush1.msra.mxu0 %v1956
        %2149 = vmatprep.subr.mxu0 %v1949
        %2150 = vmatpush1.msra.mxu0 %v1948
        %2151 = vmatprep.subr.mxu0 %v1941
        %2152 = vmatpush1.msra.mxu0 %v1940
        %2153 = vmatprep.subr.mxu0 %v1933
        %2154 = vmatpush1.msra.mxu0 %v1932
        %2155 = vmatprep.subr.mxu0 %v1925
        %2156 = vmatpush1.msra.mxu0 %v1924
        %2157 = vmatprep.subr.mxu0 %v1917
        %2158 = vmatpush1.msra.mxu0 %v1916
        %2159 = vmatprep.subr.mxu0 %v1909
        %2160 = vmatpush1.msra.mxu0 %v1908
        %2161 = vmatprep.subr.mxu0 %v1901
        %2162 = vmatpush1.msra.mxu0 %v1900
        %2163 = vmatprep.subr.mxu0 %v1893
        %2164 = vmatpush1.msra.mxu0 %v1892
        %2165 = vmatprep.subr.mxu0 0.0
        %2166 = vmatpush2.msra.mxu0 0.0
        %2167 = vmatprep.subr.mxu0 0.0
        %2168 = vmatpush2.msra.mxu0 0.0
        %2169 = vmatprep.subr.mxu0 0.0
        %2170 = vmatpush2.msra.mxu0 0.0
        %2171 = vmatprep.subr.mxu0 0.0
        %2172 = vmatpush2.msra.mxu0 0.0
        %2173 = vmatprep.subr.mxu0 0.0
        %2174 = vmatpush2.msra.mxu0 0.0
        %2175 = vmatprep.subr.mxu0 0.0
        %2176 = vmatpush2.msra.mxu0 0.0
        %2177 = vmatprep.subr.mxu0 0.0
        %2178 = vmatpush2.msra.mxu0 0.0
        %2179 = vmatprep.subr.mxu0 0.0
        %2180 = vmatpush2.msra.mxu0 0.0
        %2181 = vmatprep.subr.mxu0 0.0
        %2182 = vmatpush2.msra.mxu0 0.0
        %2183 = vmatprep.subr.mxu0 0.0
        %2184 = vmatpush2.msra.mxu0 0.0
        %2185 = vmatprep.subr.mxu0 0.0
        %2186 = vmatpush2.msra.mxu0 0.0
        %2187 = vmatprep.subr.mxu0 0.0
        %2188 = vmatpush2.msra.mxu0 0.0
        %2189 = vmatprep.subr.mxu0 0.0
        %2190 = vmatpush2.msra.mxu0 0.0
        %2191 = vmatprep.subr.mxu0 0.0
        %2192 = vmatpush2.msra.mxu0 0.0
        %2193 = vmatprep.subr.mxu0 0.0
        %2194 = vmatpush2.msra.mxu0 0.0
        %2195 = vmatprep.subr.mxu0 0.0
        %2196 = vmatpush2.msra.mxu0 0.0
        %2197 = vmatprep.mubr.f32.mxu0 0.0
        %2198 = vmatmul.mubr.f32.gmra.mxu0 %v633
        %v2199 = vpop.f32.mrf.mxu0
        %v2200 = vadd.f32 %v2129, %v2199
        %v2201 = vpop.f32.mrf.mxu0
        %v2202 = vadd.f32 %v2131, %v2201
        %2203 = vdwg.mxu0
        %2204 = vmatprep.subr.mxu0 %v1759
        %2205 = vmatpush1.msra.mxu0 %v1758
        %2206 = vmatprep.subr.mxu0 %v1751
        %2207 = vmatpush1.msra.mxu0 %v1750
        %2208 = vmatprep.subr.mxu0 %v1743
        %2209 = vmatpush1.msra.mxu0 %v1742
        %2210 = vmatprep.subr.mxu0 %v1735
        %2211 = vmatpush1.msra.mxu0 %v1734
        %2212 = vmatprep.subr.mxu0 %v1727
        %2213 = vmatpush1.msra.mxu0 %v1726
        %2214 = vmatprep.subr.mxu0 %v1719
        %2215 = vmatpush1.msra.mxu0 %v1718
        %2216 = vmatprep.subr.mxu0 %v1711
        %2217 = vmatpush1.msra.mxu0 %v1710
        %2218 = vmatprep.subr.mxu0 %v1703
        %2219 = vmatpush1.msra.mxu0 %v1702
        %2220 = vmatprep.subr.mxu0 %v1695
        %2221 = vmatpush1.msra.mxu0 %v1694
        %2222 = vmatprep.subr.mxu0 %v1687
        %2223 = vmatpush1.msra.mxu0 %v1686
        %2224 = vmatprep.subr.mxu0 %v1679
        %2225 = vmatpush1.msra.mxu0 %v1678
        %2226 = vmatprep.subr.mxu0 %v1671
        %2227 = vmatpush1.msra.mxu0 %v1670
        %2228 = vmatprep.subr.mxu0 %v1663
        %2229 = vmatpush1.msra.mxu0 %v1662
        %2230 = vmatprep.subr.mxu0 %v1655
        %2231 = vmatpush1.msra.mxu0 %v1654
        %2232 = vmatprep.subr.mxu0 %v1647
        %2233 = vmatpush1.msra.mxu0 %v1646
        %2234 = vmatprep.subr.mxu0 %v1639
        %2235 = vmatpush1.msra.mxu0 %v1638
        %2236 = vmatprep.subr.mxu0 %v1887
        %2237 = vmatpush2.msra.mxu0 %v1886
        %2238 = vmatprep.subr.mxu0 %v1879
        %2239 = vmatpush2.msra.mxu0 %v1878
        %2240 = vmatprep.subr.mxu0 %v1871
        %2241 = vmatpush2.msra.mxu0 %v1870
        %2242 = vmatprep.subr.mxu0 %v1863
        %2243 = vmatpush2.msra.mxu0 %v1862
        %2244 = vmatprep.subr.mxu0 %v1855
        %2245 = vmatpush2.msra.mxu0 %v1854
        %2246 = vmatprep.subr.mxu0 %v1847
        %2247 = vmatpush2.msra.mxu0 %v1846
        %2248 = vmatprep.subr.mxu0 %v1839
        %2249 = vmatpush2.msra.mxu0 %v1838
        %2250 = vmatprep.subr.mxu0 %v1831
        %2251 = vmatpush2.msra.mxu0 %v1830
        %2252 = vmatprep.subr.mxu0 %v1823
        %2253 = vmatpush2.msra.mxu0 %v1822
        %2254 = vmatprep.subr.mxu0 %v1815
        %2255 = vmatpush2.msra.mxu0 %v1814
        %2256 = vmatprep.subr.mxu0 %v1807
        %2257 = vmatpush2.msra.mxu0 %v1806
        %2258 = vmatprep.subr.mxu0 %v1799
        %2259 = vmatpush2.msra.mxu0 %v1798
        %2260 = vmatprep.subr.mxu0 %v1791
        %2261 = vmatpush2.msra.mxu0 %v1790
        %2262 = vmatprep.subr.mxu0 %v1783
        %2263 = vmatpush2.msra.mxu0 %v1782
        %2264 = vmatprep.subr.mxu0 %v1775
        %2265 = vmatpush2.msra.mxu0 %v1774
        %2266 = vmatprep.subr.mxu0 %v1767
        %2267 = vmatpush2.msra.mxu0 %v1766
        %2268 = vmatprep.mubr.f32.mxu0 %v632
        %2269 = vmatmul.mubr.f32.gmra.mxu0 %v631
        %v2270 = vpop.f32.mrf.mxu0
        %v2271 = vadd.f32 %v2033, %v2270
        %v2272 = vpop.f32.mrf.mxu0
        %v2273 = vadd.f32 %v2037, %v2272
        %2274 = vdwg.mxu0
        %2275 = vmatprep.subr.mxu0 %v2015
        %2276 = vmatpush1.msra.mxu0 %v2014
        %2277 = vmatprep.subr.mxu0 %v2007
        %2278 = vmatpush1.msra.mxu0 %v2006
        %2279 = vmatprep.subr.mxu0 %v1999
        %2280 = vmatpush1.msra.mxu0 %v1998
        %2281 = vmatprep.subr.mxu0 %v1991
        %2282 = vmatpush1.msra.mxu0 %v1990
        %2283 = vmatprep.subr.mxu0 %v1983
        %2284 = vmatpush1.msra.mxu0 %v1982
        %2285 = vmatprep.subr.mxu0 %v1975
        %2286 = vmatpush1.msra.mxu0 %v1974
        %2287 = vmatprep.subr.mxu0 %v1967
        %2288 = vmatpush1.msra.mxu0 %v1966
        %2289 = vmatprep.subr.mxu0 %v1959
        %2290 = vmatpush1.msra.mxu0 %v1958
        %2291 = vmatprep.subr.mxu0 %v1951
        %2292 = vmatpush1.msra.mxu0 %v1950
        %2293 = vmatprep.subr.mxu0 %v1943
        %2294 = vmatpush1.msra.mxu0 %v1942
        %2295 = vmatprep.subr.mxu0 %v1935
        %2296 = vmatpush1.msra.mxu0 %v1934
        %2297 = vmatprep.subr.mxu0 %v1927
        %2298 = vmatpush1.msra.mxu0 %v1926
        %2299 = vmatprep.subr.mxu0 %v1919
        %2300 = vmatpush1.msra.mxu0 %v1918
        %2301 = vmatprep.subr.mxu0 %v1911
        %2302 = vmatpush1.msra.mxu0 %v1910
        %2303 = vmatprep.subr.mxu0 %v1903
        %2304 = vmatpush1.msra.mxu0 %v1902
        %2305 = vmatprep.subr.mxu0 %v1895
        %2306 = vmatpush1.msra.mxu0 %v1894
        %2307 = vmatprep.subr.mxu0 0.0
        %2308 = vmatpush2.msra.mxu0 0.0
        %2309 = vmatprep.subr.mxu0 0.0
        %2310 = vmatpush2.msra.mxu0 0.0
        %2311 = vmatprep.subr.mxu0 0.0
        %2312 = vmatpush2.msra.mxu0 0.0
        %2313 = vmatprep.subr.mxu0 0.0
        %2314 = vmatpush2.msra.mxu0 0.0
        %2315 = vmatprep.subr.mxu0 0.0
        %2316 = vmatpush2.msra.mxu0 0.0
        %2317 = vmatprep.subr.mxu0 0.0
        %2318 = vmatpush2.msra.mxu0 0.0
        %2319 = vmatprep.subr.mxu0 0.0
        %2320 = vmatpush2.msra.mxu0 0.0
        %2321 = vmatprep.subr.mxu0 0.0
        %2322 = vmatpush2.msra.mxu0 0.0
        %2323 = vmatprep.subr.mxu0 0.0
        %2324 = vmatpush2.msra.mxu0 0.0
        %2325 = vmatprep.subr.mxu0 0.0
        %2326 = vmatpush2.msra.mxu0 0.0
        %2327 = vmatprep.subr.mxu0 0.0
        %2328 = vmatpush2.msra.mxu0 0.0
        %2329 = vmatprep.subr.mxu0 0.0
        %2330 = vmatpush2.msra.mxu0 0.0
        %2331 = vmatprep.subr.mxu0 0.0
        %2332 = vmatpush2.msra.mxu0 0.0
        %2333 = vmatprep.subr.mxu0 0.0
        %2334 = vmatpush2.msra.mxu0 0.0
        %2335 = vmatprep.subr.mxu0 0.0
        %2336 = vmatpush2.msra.mxu0 0.0
        %2337 = vmatprep.subr.mxu0 0.0
        %2338 = vmatpush2.msra.mxu0 0.0
        %2339 = vmatprep.mubr.f32.mxu0 0.0
        %2340 = vmatmul.mubr.f32.gmra.mxu0 %v633
        %v2341 = vpop.f32.mrf.mxu0
        %v2342 = vadd.f32 %v2271, %v2341
        %v2343 = vpop.f32.mrf.mxu0
        %v2344 = vadd.f32 %v2273, %v2343
        %2345 = vdwg.mxu0
        %2346 = vmatprep.subr.mxu0 %v1761
        %2347 = vmatpush1.msra.mxu0 %v1760
        %2348 = vmatprep.subr.mxu0 %v1753
        %2349 = vmatpush1.msra.mxu0 %v1752
        %2350 = vmatprep.subr.mxu0 %v1745
        %2351 = vmatpush1.msra.mxu0 %v1744
        %2352 = vmatprep.subr.mxu0 %v1737
        %2353 = vmatpush1.msra.mxu0 %v1736
        %2354 = vmatprep.subr.mxu0 %v1729
        %2355 = vmatpush1.msra.mxu0 %v1728
        %2356 = vmatprep.subr.mxu0 %v1721
        %2357 = vmatpush1.msra.mxu0 %v1720
        %2358 = vmatprep.subr.mxu0 %v1713
        %2359 = vmatpush1.msra.mxu0 %v1712
        %2360 = vmatprep.subr.mxu0 %v1705
        %2361 = vmatpush1.msra.mxu0 %v1704
        %2362 = vmatprep.subr.mxu0 %v1697
        %2363 = vmatpush1.msra.mxu0 %v1696
        %2364 = vmatprep.subr.mxu0 %v1689
        %2365 = vmatpush1.msra.mxu0 %v1688
        %2366 = vmatprep.subr.mxu0 %v1681
        %2367 = vmatpush1.msra.mxu0 %v1680
        %2368 = vmatprep.subr.mxu0 %v1673
        %2369 = vmatpush1.msra.mxu0 %v1672
        %2370 = vmatprep.subr.mxu0 %v1665
        %2371 = vmatpush1.msra.mxu0 %v1664
        %2372 = vmatprep.subr.mxu0 %v1657
        %2373 = vmatpush1.msra.mxu0 %v1656
        %2374 = vmatprep.subr.mxu0 %v1649
        %2375 = vmatpush1.msra.mxu0 %v1648
        %2376 = vmatprep.subr.mxu0 %v1641
        %2377 = vmatpush1.msra.mxu0 %v1640
        %2378 = vmatprep.subr.mxu0 %v1889
        %2379 = vmatpush2.msra.mxu0 %v1888
        %2380 = vmatprep.subr.mxu0 %v1881
        %2381 = vmatpush2.msra.mxu0 %v1880
        %2382 = vmatprep.subr.mxu0 %v1873
        %2383 = vmatpush2.msra.mxu0 %v1872
        %2384 = vmatprep.subr.mxu0 %v1865
        %2385 = vmatpush2.msra.mxu0 %v1864
        %2386 = vmatprep.subr.mxu0 %v1857
        %2387 = vmatpush2.msra.mxu0 %v1856
        %2388 = vmatprep.subr.mxu0 %v1849
        %2389 = vmatpush2.msra.mxu0 %v1848
        %2390 = vmatprep.subr.mxu0 %v1841
        %2391 = vmatpush2.msra.mxu0 %v1840
        %2392 = vmatprep.subr.mxu0 %v1833
        %2393 = vmatpush2.msra.mxu0 %v1832
        %2394 = vmatprep.subr.mxu0 %v1825
        %2395 = vmatpush2.msra.mxu0 %v1824
        %2396 = vmatprep.subr.mxu0 %v1817
        %2397 = vmatpush2.msra.mxu0 %v1816
        %2398 = vmatprep.subr.mxu0 %v1809
        %2399 = vmatpush2.msra.mxu0 %v1808
        %2400 = vmatprep.subr.mxu0 %v1801
        %2401 = vmatpush2.msra.mxu0 %v1800
        %2402 = vmatprep.subr.mxu0 %v1793
        %2403 = vmatpush2.msra.mxu0 %v1792
        %2404 = vmatprep.subr.mxu0 %v1785
        %2405 = vmatpush2.msra.mxu0 %v1784
        %2406 = vmatprep.subr.mxu0 %v1777
        %2407 = vmatpush2.msra.mxu0 %v1776
        %2408 = vmatprep.subr.mxu0 %v1769
        %2409 = vmatpush2.msra.mxu0 %v1768
        %2410 = vmatprep.mubr.f32.mxu0 %v632
        %2411 = vmatmul.mubr.f32.gmra.mxu0 %v631
        %v2412 = vpop.f32.mrf.mxu0
        %v2413 = vadd.f32 %v2041, %v2412
        %v2414 = vpop.f32.mrf.mxu0
        %v2415 = vadd.f32 %v2045, %v2414
        %2416 = vdwg.mxu0
        %2417 = vmatprep.subr.mxu0 %v2017
        %2418 = vmatpush1.msra.mxu0 %v2016
        %2419 = vmatprep.subr.mxu0 %v2009
        %2420 = vmatpush1.msra.mxu0 %v2008
        %2421 = vmatprep.subr.mxu0 %v2001
        %2422 = vmatpush1.msra.mxu0 %v2000
        %2423 = vmatprep.subr.mxu0 %v1993
        %2424 = vmatpush1.msra.mxu0 %v1992
        %2425 = vmatprep.subr.mxu0 %v1985
        %2426 = vmatpush1.msra.mxu0 %v1984
        %2427 = vmatprep.subr.mxu0 %v1977
        %2428 = vmatpush1.msra.mxu0 %v1976
        %2429 = vmatprep.subr.mxu0 %v1969
        %2430 = vmatpush1.msra.mxu0 %v1968
        %2431 = vmatprep.subr.mxu0 %v1961
        %2432 = vmatpush1.msra.mxu0 %v1960
        %2433 = vmatprep.subr.mxu0 %v1953
        %2434 = vmatpush1.msra.mxu0 %v1952
        %2435 = vmatprep.subr.mxu0 %v1945
        %2436 = vmatpush1.msra.mxu0 %v1944
        %2437 = vmatprep.subr.mxu0 %v1937
        %2438 = vmatpush1.msra.mxu0 %v1936
        %2439 = vmatprep.subr.mxu0 %v1929
        %2440 = vmatpush1.msra.mxu0 %v1928
        %2441 = vmatprep.subr.mxu0 %v1921
        %2442 = vmatpush1.msra.mxu0 %v1920
        %2443 = vmatprep.subr.mxu0 %v1913
        %2444 = vmatpush1.msra.mxu0 %v1912
        %2445 = vmatprep.subr.mxu0 %v1905
        %2446 = vmatpush1.msra.mxu0 %v1904
        %2447 = vmatprep.subr.mxu0 %v1897
        %2448 = vmatpush1.msra.mxu0 %v1896
        %2449 = vmatprep.subr.mxu0 0.0
        %2450 = vmatpush2.msra.mxu0 0.0
        %2451 = vmatprep.subr.mxu0 0.0
        %2452 = vmatpush2.msra.mxu0 0.0
        %2453 = vmatprep.subr.mxu0 0.0
        %2454 = vmatpush2.msra.mxu0 0.0
        %2455 = vmatprep.subr.mxu0 0.0
        %2456 = vmatpush2.msra.mxu0 0.0
        %2457 = vmatprep.subr.mxu0 0.0
        %2458 = vmatpush2.msra.mxu0 0.0
        %2459 = vmatprep.subr.mxu0 0.0
        %2460 = vmatpush2.msra.mxu0 0.0
        %2461 = vmatprep.subr.mxu0 0.0
        %2462 = vmatpush2.msra.mxu0 0.0
        %2463 = vmatprep.subr.mxu0 0.0
        %2464 = vmatpush2.msra.mxu0 0.0
        %2465 = vmatprep.subr.mxu0 0.0
        %2466 = vmatpush2.msra.mxu0 0.0
        %2467 = vmatprep.subr.mxu0 0.0
        %2468 = vmatpush2.msra.mxu0 0.0
        %2469 = vmatprep.subr.mxu0 0.0
        %2470 = vmatpush2.msra.mxu0 0.0
        %2471 = vmatprep.subr.mxu0 0.0
        %2472 = vmatpush2.msra.mxu0 0.0
        %2473 = vmatprep.subr.mxu0 0.0
        %2474 = vmatpush2.msra.mxu0 0.0
        %2475 = vmatprep.subr.mxu0 0.0
        %2476 = vmatpush2.msra.mxu0 0.0
        %2477 = vmatprep.subr.mxu0 0.0
        %2478 = vmatpush2.msra.mxu0 0.0
        %2479 = vmatprep.subr.mxu0 0.0
        %2480 = vmatpush2.msra.mxu0 0.0
        %2481 = vmatprep.mubr.f32.mxu0 0.0
        %2482 = vmatmul.mubr.f32.gmra.mxu0 %v633
        %v2483 = vpop.f32.mrf.mxu0
        %v2484 = vadd.f32 %v2413, %v2483
        %v2485 = vpop.f32.mrf.mxu0
        %v2486 = vadd.f32 %v2415, %v2485
        %2487 = vdwg.mxu0
        %2488 = vmatprep.subr.mxu0 %v1763
        %2489 = vmatpush1.msra.mxu0 %v1762
        %2490 = vmatprep.subr.mxu0 %v1755
        %2491 = vmatpush1.msra.mxu0 %v1754
        %2492 = vmatprep.subr.mxu0 %v1747
        %2493 = vmatpush1.msra.mxu0 %v1746
        %2494 = vmatprep.subr.mxu0 %v1739
        %2495 = vmatpush1.msra.mxu0 %v1738
        %2496 = vmatprep.subr.mxu0 %v1731
        %2497 = vmatpush1.msra.mxu0 %v1730
        %2498 = vmatprep.subr.mxu0 %v1723
        %2499 = vmatpush1.msra.mxu0 %v1722
        %2500 = vmatprep.subr.mxu0 %v1715
        %2501 = vmatpush1.msra.mxu0 %v1714
        %2502 = vmatprep.subr.mxu0 %v1707
        %2503 = vmatpush1.msra.mxu0 %v1706
        %2504 = vmatprep.subr.mxu0 %v1699
        %2505 = vmatpush1.msra.mxu0 %v1698
        %2506 = vmatprep.subr.mxu0 %v1691
        %2507 = vmatpush1.msra.mxu0 %v1690
        %2508 = vmatprep.subr.mxu0 %v1683
        %2509 = vmatpush1.msra.mxu0 %v1682
        %2510 = vmatprep.subr.mxu0 %v1675
        %2511 = vmatpush1.msra.mxu0 %v1674
        %2512 = vmatprep.subr.mxu0 %v1667
        %2513 = vmatpush1.msra.mxu0 %v1666
        %2514 = vmatprep.subr.mxu0 %v1659
        %2515 = vmatpush1.msra.mxu0 %v1658
        %2516 = vmatprep.subr.mxu0 %v1651
        %2517 = vmatpush1.msra.mxu0 %v1650
        %2518 = vmatprep.subr.mxu0 %v1643
        %2519 = vmatpush1.msra.mxu0 %v1642
        %2520 = vmatprep.subr.mxu0 %v1891
        %2521 = vmatpush2.msra.mxu0 %v1890
        %2522 = vmatprep.subr.mxu0 %v1883
        %2523 = vmatpush2.msra.mxu0 %v1882
        %2524 = vmatprep.subr.mxu0 %v1875
        %2525 = vmatpush2.msra.mxu0 %v1874
        %2526 = vmatprep.subr.mxu0 %v1867
        %2527 = vmatpush2.msra.mxu0 %v1866
        %2528 = vmatprep.subr.mxu0 %v1859
        %2529 = vmatpush2.msra.mxu0 %v1858
        %2530 = vmatprep.subr.mxu0 %v1851
        %2531 = vmatpush2.msra.mxu0 %v1850
        %2532 = vmatprep.subr.mxu0 %v1843
        %2533 = vmatpush2.msra.mxu0 %v1842
        %2534 = vmatprep.subr.mxu0 %v1835
        %2535 = vmatpush2.msra.mxu0 %v1834
        %2536 = vmatprep.subr.mxu0 %v1827
        %2537 = vmatpush2.msra.mxu0 %v1826
        %2538 = vmatprep.subr.mxu0 %v1819
        %2539 = vmatpush2.msra.mxu0 %v1818
        %2540 = vmatprep.subr.mxu0 %v1811
        %2541 = vmatpush2.msra.mxu0 %v1810
        %2542 = vmatprep.subr.mxu0 %v1803
        %2543 = vmatpush2.msra.mxu0 %v1802
        %2544 = vmatprep.subr.mxu0 %v1795
        %2545 = vmatpush2.msra.mxu0 %v1794
        %2546 = vmatprep.subr.mxu0 %v1787
        %2547 = vmatpush2.msra.mxu0 %v1786
        %2548 = vmatprep.subr.mxu0 %v1779
        %2549 = vmatpush2.msra.mxu0 %v1778
        %2550 = vmatprep.subr.mxu0 %v1771
        %2551 = vmatpush2.msra.mxu0 %v1770
        %2552 = vmatprep.mubr.f32.mxu0 %v632
        %2553 = vmatmul.mubr.f32.gmra.mxu0 %v631
        %v2554 = vpop.f32.mrf.mxu0
        %v2555 = vadd.f32 %v2049, %v2554
        %v2556 = vpop.f32.mrf.mxu0
        %v2557 = vadd.f32 %v2053, %v2556
        %2558 = vdwg.mxu0
        %2559 = vmatprep.subr.mxu0 %v2019
        %2560 = vmatpush1.msra.mxu0 %v2018
        %2561 = vmatprep.subr.mxu0 %v2011
        %2562 = vmatpush1.msra.mxu0 %v2010
        %2563 = vmatprep.subr.mxu0 %v2003
        %2564 = vmatpush1.msra.mxu0 %v2002
        %2565 = vmatprep.subr.mxu0 %v1995
        %2566 = vmatpush1.msra.mxu0 %v1994
        %2567 = vmatprep.subr.mxu0 %v1987
        %2568 = vmatpush1.msra.mxu0 %v1986
        %2569 = vmatprep.subr.mxu0 %v1979
        %2570 = vmatpush1.msra.mxu0 %v1978
        %2571 = vmatprep.subr.mxu0 %v1971
        %2572 = vmatpush1.msra.mxu0 %v1970
        %2573 = vmatprep.subr.mxu0 %v1963
        %2574 = vmatpush1.msra.mxu0 %v1962
        %2575 = vmatprep.subr.mxu0 %v1955
        %2576 = vmatpush1.msra.mxu0 %v1954
        %2577 = vmatprep.subr.mxu0 %v1947
        %2578 = vmatpush1.msra.mxu0 %v1946
        %2579 = vmatprep.subr.mxu0 %v1939
        %2580 = vmatpush1.msra.mxu0 %v1938
        %2581 = vmatprep.subr.mxu0 %v1931
        %2582 = vmatpush1.msra.mxu0 %v1930
        %2583 = vmatprep.subr.mxu0 %v1923
        %2584 = vmatpush1.msra.mxu0 %v1922
        %2585 = vmatprep.subr.mxu0 %v1915
        %2586 = vmatpush1.msra.mxu0 %v1914
        %2587 = vmatprep.subr.mxu0 %v1907
        %2588 = vmatpush1.msra.mxu0 %v1906
        %2589 = vmatprep.subr.mxu0 %v1899
        %2590 = vmatpush1.msra.mxu0 %v1898
        %2591 = vmatprep.subr.mxu0 0.0
        %2592 = vmatpush2.msra.mxu0 0.0
        %2593 = vmatprep.subr.mxu0 0.0
        %2594 = vmatpush2.msra.mxu0 0.0
        %2595 = vmatprep.subr.mxu0 0.0
        %2596 = vmatpush2.msra.mxu0 0.0
        %2597 = vmatprep.subr.mxu0 0.0
        %2598 = vmatpush2.msra.mxu0 0.0
        %2599 = vmatprep.subr.mxu0 0.0
        %2600 = vmatpush2.msra.mxu0 0.0
        %2601 = vmatprep.subr.mxu0 0.0
        %2602 = vmatpush2.msra.mxu0 0.0
        %2603 = vmatprep.subr.mxu0 0.0
        %2604 = vmatpush2.msra.mxu0 0.0
        %2605 = vmatprep.subr.mxu0 0.0
        %2606 = vmatpush2.msra.mxu0 0.0
        %2607 = vmatprep.subr.mxu0 0.0
        %2608 = vmatpush2.msra.mxu0 0.0
        %2609 = vmatprep.subr.mxu0 0.0
        %2610 = vmatpush2.msra.mxu0 0.0
        %2611 = vmatprep.subr.mxu0 0.0
        %2612 = vmatpush2.msra.mxu0 0.0
        %2613 = vmatprep.subr.mxu0 0.0
        %2614 = vmatpush2.msra.mxu0 0.0
        %2615 = vmatprep.subr.mxu0 0.0
        %2616 = vmatpush2.msra.mxu0 0.0
        %2617 = vmatprep.subr.mxu0 0.0
        %2618 = vmatpush2.msra.mxu0 0.0
        %2619 = vmatprep.subr.mxu0 0.0
        %2620 = vmatpush2.msra.mxu0 0.0
        %2621 = vmatprep.subr.mxu0 0.0
        %2622 = vmatpush2.msra.mxu0 0.0
        %2623 = vmatprep.mubr.f32.mxu0 0.0
        %2624 = vmatmul.mubr.f32.gmra.mxu0 %v633
        %v2625 = vpop.f32.mrf.mxu0
        %v2626 = vadd.f32 %v2555, %v2625
        %v2627 = vpop.f32.mrf.mxu0
        %v2628 = vadd.f32 %v2557, %v2627
        %2629 = vdwg.mxu0
        %2630 = vst [vmem:[#allocation2 + $0x40] sm:$0xff] %v2200
        %2631 = vst [vmem:[#allocation2 + $0x48] sm:$0xff] %v2202
        %2632 = vst [vmem:[#allocation2 + $0x50] sm:$0xff] %v2342
        %2633 = vst [vmem:[#allocation2 + $0x58] sm:$0xff] %v2344
        %2634 = vst [vmem:[#allocation2 + $0x60] sm:$0xff] %v2484
        %2635 = vst [vmem:[#allocation2 + $0x68] sm:$0xff] %v2486
        %2636 = vst [vmem:[#allocation2 + $0x70] sm:$0xff] %v2626
        %2637 = vst [vmem:[#allocation2 + $0x78] sm:$0xff] %v2628
        %v2638 = vld [vmem:[#allocation2] sm:$0xff]
        %v2639 = vld [vmem:[#allocation2 + $0x8] sm:$0xff]
        %v2640 = vld [vmem:[#allocation2 + $0x10] sm:$0xff]
        %v2641 = vld [vmem:[#allocation2 + $0x18] sm:$0xff]
        %v2642 = vld [vmem:[#allocation2 + $0x20] sm:$0xff]
        %v2643 = vld [vmem:[#allocation2 + $0x28] sm:$0xff]
        %v2644 = vld [vmem:[#allocation2 + $0x30] sm:$0xff]
        %v2645 = vld [vmem:[#allocation2 + $0x38] sm:$0xff]
        %v2646 = vld [vmem:[#allocation2 + $0x40] sm:$0xff]
        %v2647 = vld [vmem:[#allocation2 + $0x48] sm:$0xff]
        %v2648 = vld [vmem:[#allocation2 + $0x50] sm:$0xff]
        %v2649 = vld [vmem:[#allocation2 + $0x58] sm:$0xff]
        %v2650 = vld [vmem:[#allocation2 + $0x60] sm:$0xff]
        %v2651 = vld [vmem:[#allocation2 + $0x68] sm:$0xff]
        %v2652 = vld [vmem:[#allocation2 + $0x70] sm:$0xff]
        %v2653 = vld [vmem:[#allocation2 + $0x78] sm:$0xff]
        %v2654 = vand.u32 2147483647, %v2638
        %v2655 = vand.u32 2147483647, %v2639
        %v2656 = vand.u32 2147483647, %v2640
        %v2657 = vand.u32 2147483647, %v2641
        %v2658 = vand.u32 2147483647, %v2646
        %v2659 = vand.u32 2147483647, %v2647
        %v2660 = vand.u32 2147483647, %v2648
        %v2661 = vand.u32 2147483647, %v2649
        %v2662 = vmul.f32 %v2638, 0.5
        %v2663 = vmul.f32 %v2639, 0.5
        %v2664 = vmul.f32 %v2640, 0.5
        %v2665 = vmul.f32 %v2641, 0.5
        %v2666 = vmul.f32 %v2646, 0.5
        %v2667 = vmul.f32 %v2647, 0.5
        %v2668 = vmul.f32 %v2648, 0.5
        %v2669 = vmul.f32 %v2649, 0.5
        %v2670 = vmul.f32 %v2654, 0.5
        %v2671 = vmul.f32 %v2655, 0.5
        %v2672 = vmul.f32 %v2656, 0.5
        %v2673 = vmul.f32 %v2657, 0.5
        %v2674 = vmul.f32 %v2658, 0.5
        %v2675 = vmul.f32 %v2659, 0.5
        %v2676 = vmul.f32 %v2660, 0.5
        %v2677 = vmul.f32 %v2661, 0.5
        %v2678 = vmul.f32 %v2654, 0.70710677
        %v2679 = vmul.f32 %v2655, 0.70710677
        %v2680 = vmul.f32 %v2656, 0.70710677
        %v2681 = vmul.f32 %v2657, 0.70710677
        %v2682 = vmul.f32 %v2658, 0.70710677
        %v2683 = vmul.f32 %v2659, 0.70710677
        %v2684 = vmul.f32 %v2660, 0.70710677
        %v2685 = vmul.f32 %v2661, 0.70710677
        %v2686 = vmul.f32 %v2678, 0.47047
        %v2687 = vmul.f32 %v2679, 0.47047
        %v2688 = vmul.f32 %v2680, 0.47047
        %v2689 = vmul.f32 %v2681, 0.47047
        %v2690 = vmul.f32 %v2682, 0.47047
        %v2691 = vmul.f32 %v2683, 0.47047
        %v2692 = vmul.f32 %v2684, 0.47047
        %v2693 = vmul.f32 %v2685, 0.47047
        %v2694 = vadd.f32 %v2686, 1.0
        %v2695 = vadd.f32 %v2687, 1.0
        %v2696 = vadd.f32 %v2688, 1.0
        %v2697 = vadd.f32 %v2689, 1.0
        %v2698 = vadd.f32 %v2690, 1.0
        %v2699 = vadd.f32 %v2691, 1.0
        %v2700 = vadd.f32 %v2692, 1.0
        %v2701 = vadd.f32 %v2693, 1.0
        %v2702 = vrcp.pop %v2694
        %v2703 = vrcp.pop %v2695
        %v2704 = vrcp.pop %v2696
        %v2705 = vrcp.pop %v2697
        %v2706 = vrcp.pop %v2698
        %v2707 = vrcp.pop %v2699
        %v2708 = vrcp.pop %v2700
        %v2709 = vrcp.pop %v2701
        %v2710 = vmul.f32 %v2694, %v2702
        %v2711 = vmul.f32 %v2695, %v2703
        %v2712 = vmul.f32 %v2696, %v2704
        %v2713 = vmul.f32 %v2697, %v2705
        %v2714 = vmul.f32 %v2698, %v2706
        %v2715 = vmul.f32 %v2699, %v2707
        %v2716 = vmul.f32 %v2700, %v2708
        %v2717 = vmul.f32 %v2701, %v2709
        %v2718 = vsub.f32 2.0, %v2710
        %v2719 = vsub.f32 2.0, %v2711
        %v2720 = vsub.f32 2.0, %v2712
        %v2721 = vsub.f32 2.0, %v2713
        %v2722 = vsub.f32 2.0, %v2714
        %v2723 = vsub.f32 2.0, %v2715
        %v2724 = vsub.f32 2.0, %v2716
        %v2725 = vsub.f32 2.0, %v2717
        %v2726 = vmul.f32 %v2702, %v2718
        %v2727 = vmul.f32 %v2703, %v2719
        %v2728 = vmul.f32 %v2704, %v2720
        %v2729 = vmul.f32 %v2705, %v2721
        %v2730 = vmul.f32 %v2706, %v2722
        %v2731 = vmul.f32 %v2707, %v2723
        %v2732 = vmul.f32 %v2708, %v2724
        %v2733 = vmul.f32 %v2709, %v2725
        %v2734 = vmul.f32 %v2726, 0.7478556
        %v2735 = vmul.f32 %v2727, 0.7478556
        %v2736 = vmul.f32 %v2728, 0.7478556
        %v2737 = vmul.f32 %v2729, 0.7478556
        %v2738 = vmul.f32 %v2730, 0.7478556
        %v2739 = vmul.f32 %v2731, 0.7478556
        %v2740 = vmul.f32 %v2732, 0.7478556
        %v2741 = vmul.f32 %v2733, 0.7478556
        %v2742 = vadd.f32 %v2734, -0.0958798
        %v2743 = vadd.f32 %v2735, -0.0958798
        %v2744 = vadd.f32 %v2736, -0.0958798
        %v2745 = vadd.f32 %v2737, -0.0958798
        %v2746 = vadd.f32 %v2738, -0.0958798
        %v2747 = vadd.f32 %v2739, -0.0958798
        %v2748 = vadd.f32 %v2740, -0.0958798
        %v2749 = vadd.f32 %v2741, -0.0958798
        %v2750 = vmul.f32 %v2742, %v2726
        %v2751 = vmul.f32 %v2743, %v2727
        %v2752 = vmul.f32 %v2744, %v2728
        %v2753 = vmul.f32 %v2745, %v2729
        %v2754 = vmul.f32 %v2746, %v2730
        %v2755 = vmul.f32 %v2747, %v2731
        %v2756 = vmul.f32 %v2748, %v2732
        %v2757 = vmul.f32 %v2749, %v2733
        %v2758 = vadd.f32 %v2750, 0.3480242
        %v2759 = vadd.f32 %v2751, 0.3480242
        %v2760 = vadd.f32 %v2752, 0.3480242
        %v2761 = vadd.f32 %v2753, 0.3480242
        %v2762 = vadd.f32 %v2754, 0.3480242
        %v2763 = vadd.f32 %v2755, 0.3480242
        %v2764 = vadd.f32 %v2756, 0.3480242
        %v2765 = vadd.f32 %v2757, 0.3480242
        %v2766 = vmul.f32 %v2758, %v2726
        %v2767 = vmul.f32 %v2759, %v2727
        %v2768 = vmul.f32 %v2760, %v2728
        %v2769 = vmul.f32 %v2761, %v2729
        %v2770 = vmul.f32 %v2762, %v2730
        %v2771 = vmul.f32 %v2763, %v2731
        %v2772 = vmul.f32 %v2764, %v2732
        %v2773 = vmul.f32 %v2765, %v2733
        %v2774 = vsub.f32 0.0, %v2678
        %v2775 = vsub.f32 0.0, %v2679
        %v2776 = vsub.f32 0.0, %v2680
        %v2777 = vsub.f32 0.0, %v2681
        %v2778 = vsub.f32 0.0, %v2682
        %v2779 = vsub.f32 0.0, %v2683
        %v2780 = vsub.f32 0.0, %v2684
        %v2781 = vsub.f32 0.0, %v2685
        %v2782 = vmul.f32 %v2774, %v2678
        %v2783 = vmul.f32 %v2775, %v2679
        %v2784 = vmul.f32 %v2776, %v2680
        %v2785 = vmul.f32 %v2777, %v2681
        %v2786 = vmul.f32 %v2778, %v2682
        %v2787 = vmul.f32 %v2779, %v2683
        %v2788 = vmul.f32 %v2780, %v2684
        %v2789 = vmul.f32 %v2781, %v2685
        %v2790 = vmul.f32 %v2782, 1.442695
        %v2791 = vpow.pop %v2790
        %v2792 = vmul.f32 %v2783, 1.442695
        %v2793 = vpow.pop %v2792
        %v2794 = vmul.f32 %v2784, 1.442695
        %v2795 = vpow.pop %v2794
        %v2796 = vmul.f32 %v2785, 1.442695
        %v2797 = vpow.pop %v2796
        %v2798 = vmul.f32 %v2786, 1.442695
        %v2799 = vpow.pop %v2798
        %v2800 = vmul.f32 %v2787, 1.442695
        %v2801 = vpow.pop %v2800
        %v2802 = vmul.f32 %v2788, 1.442695
        %v2803 = vpow.pop %v2802
        %v2804 = vmul.f32 %v2789, 1.442695
        %v2805 = vpow.pop %v2804
        %v2806 = vmul.f32 %v2766, %v2791
        %v2807 = vmul.f32 %v2767, %v2793
        %v2808 = vmul.f32 %v2768, %v2795
        %v2809 = vmul.f32 %v2769, %v2797
        %v2810 = vmul.f32 %v2770, %v2799
        %v2811 = vmul.f32 %v2771, %v2801
        %v2812 = vmul.f32 %v2772, %v2803
        %v2813 = vmul.f32 %v2773, %v2805
        %v2814 = vsub.f32 1.0, %v2806
        %v2815 = vsub.f32 1.0, %v2807
        %v2816 = vsub.f32 1.0, %v2808
        %v2817 = vsub.f32 1.0, %v2809
        %v2818 = vsub.f32 1.0, %v2810
        %v2819 = vsub.f32 1.0, %v2811
        %v2820 = vsub.f32 1.0, %v2812
        %v2821 = vsub.f32 1.0, %v2813
        %v2822 = vmul.f32 %v2670, %v2814
        %v2823 = vmul.f32 %v2671, %v2815
        %v2824 = vmul.f32 %v2672, %v2816
        %v2825 = vmul.f32 %v2673, %v2817
        %v2826 = vmul.f32 %v2674, %v2818
        %v2827 = vmul.f32 %v2675, %v2819
        %v2828 = vmul.f32 %v2676, %v2820
        %v2829 = vmul.f32 %v2677, %v2821
        %v2830 = vadd.f32 %v2662, %v2822
        %v2831 = vadd.f32 %v2663, %v2823
        %v2832 = vadd.f32 %v2664, %v2824
        %v2833 = vadd.f32 %v2665, %v2825
        %v2834 = vadd.f32 %v2666, %v2826
        %v2835 = vadd.f32 %v2667, %v2827
        %v2836 = vadd.f32 %v2668, %v2828
        %v2837 = vadd.f32 %v2669, %v2829
        %v2838 = vmul.f32 %v2642, 0.5
        %v2839 = vmul.f32 %v2643, 0.5
        %v2840 = vmul.f32 %v2644, 0.5
        %v2841 = vmul.f32 %v2645, 0.5
        %v2842 = vmul.f32 %v2650, 0.5
        %v2843 = vmul.f32 %v2651, 0.5
        %v2844 = vmul.f32 %v2652, 0.5
        %v2845 = vmul.f32 %v2653, 0.5
        %v2846 = vtanh.pop %v2838
        %v2847 = vtanh.pop %v2839
        %v2848 = vtanh.pop %v2840
        %v2849 = vtanh.pop %v2841
        %v2850 = vtanh.pop %v2842
        %v2851 = vtanh.pop %v2843
        %v2852 = vtanh.pop %v2844
        %v2853 = vtanh.pop %v2845
        %v2854 = vadd.f32 %v2846, 1.0
        %v2855 = vadd.f32 %v2847, 1.0
        %v2856 = vadd.f32 %v2848, 1.0
        %v2857 = vadd.f32 %v2849, 1.0
        %v2858 = vadd.f32 %v2850, 1.0
        %v2859 = vadd.f32 %v2851, 1.0
        %v2860 = vadd.f32 %v2852, 1.0
        %v2861 = vadd.f32 %v2853, 1.0
        %v2862 = vmul.f32 %v2854, 0.5
        %v2863 = vmul.f32 %v2855, 0.5
        %v2864 = vmul.f32 %v2856, 0.5
        %v2865 = vmul.f32 %v2857, 0.5
        %v2866 = vmul.f32 %v2858, 0.5
        %v2867 = vmul.f32 %v2859, 0.5
        %v2868 = vmul.f32 %v2860, 0.5
        %v2869 = vmul.f32 %v2861, 0.5
        %v2870 = vmul.f32 %v2830, %v2862
        %v2871 = vmul.f32 %v2831, %v2863
        %v2872 = vmul.f32 %v2832, %v2864
        %v2873 = vmul.f32 %v2833, %v2865
        %v2874 = vmul.f32 %v2834, %v2866
        %v2875 = vmul.f32 %v2835, %v2867
        %v2876 = vmul.f32 %v2836, %v2868
        %v2877 = vmul.f32 %v2837, %v2869
        %v2878 = vld [vmem:[#allocation12] sm:$0xff]
        %v2879 = vld [vmem:[#allocation12 + $0x8] sm:$0xff]
        %v2880 = vld [vmem:[#allocation12 + $0x10] sm:$0xff]
        %v2881 = vld [vmem:[#allocation12 + $0x18] sm:$0xff]
        %v2882 = vld [vmem:[#allocation12 + $0x20] sm:$0xff]
        %v2883 = vld [vmem:[#allocation12 + $0x28] sm:$0xff]
        %v2884 = vld [vmem:[#allocation12 + $0x30] sm:$0xff]
        %v2885 = vld [vmem:[#allocation12 + $0x38] sm:$0xff]
        %v2886 = vld [vmem:[#allocation12 + $0x40] sm:$0xff]
        %v2887 = vld [vmem:[#allocation12 + $0x48] sm:$0xff]
        %v2888 = vld [vmem:[#allocation12 + $0x50] sm:$0xff]
        %v2889 = vld [vmem:[#allocation12 + $0x58] sm:$0xff]
        %v2890 = vld [vmem:[#allocation12 + $0x60] sm:$0xff]
        %v2891 = vld [vmem:[#allocation12 + $0x68] sm:$0xff]
        %v2892 = vld [vmem:[#allocation12 + $0x70] sm:$0xff]
        %v2893 = vld [vmem:[#allocation12 + $0x78] sm:$0xff]
        %v2894 = vld [vmem:[#allocation12 + $0x80] sm:$0xff]
        %v2895 = vld [vmem:[#allocation12 + $0x88] sm:$0xff]
        %v2896 = vld [vmem:[#allocation12 + $0x90] sm:$0xff]
        %v2897 = vld [vmem:[#allocation12 + $0x98] sm:$0xff]
        %v2898 = vld [vmem:[#allocation12 + $0xa0] sm:$0xff]
        %v2899 = vld [vmem:[#allocation12 + $0xa8] sm:$0xff]
        %v2900 = vld [vmem:[#allocation12 + $0xb0] sm:$0xff]
        %v2901 = vld [vmem:[#allocation12 + $0xb8] sm:$0xff]
        %v2902 = vld [vmem:[#allocation12 + $0xc0] sm:$0xff]
        %v2903 = vld [vmem:[#allocation12 + $0xc8] sm:$0xff]
        %v2904 = vld [vmem:[#allocation12 + $0xd0] sm:$0xff]
        %v2905 = vld [vmem:[#allocation12 + $0xd8] sm:$0xff]
        %v2906 = vld [vmem:[#allocation12 + $0xe0] sm:$0xff]
        %v2907 = vld [vmem:[#allocation12 + $0xe8] sm:$0xff]
        %v2908 = vld [vmem:[#allocation12 + $0xf0] sm:$0xff]
        %v2909 = vld [vmem:[#allocation12 + $0xf8] sm:$0xff]
        %v2910 = vld [vmem:[#allocation12 + $0x100] sm:$0xff]
        %v2911 = vld [vmem:[#allocation12 + $0x108] sm:$0xff]
        %v2912 = vld [vmem:[#allocation12 + $0x110] sm:$0xff]
        %v2913 = vld [vmem:[#allocation12 + $0x118] sm:$0xff]
        %v2914 = vld [vmem:[#allocation12 + $0x120] sm:$0xff]
        %v2915 = vld [vmem:[#allocation12 + $0x128] sm:$0xff]
        %v2916 = vld [vmem:[#allocation12 + $0x130] sm:$0xff]
        %v2917 = vld [vmem:[#allocation12 + $0x138] sm:$0xff]
        %v2918 = vld [vmem:[#allocation12 + $0x140] sm:$0xff]
        %v2919 = vld [vmem:[#allocation12 + $0x148] sm:$0xff]
        %v2920 = vld [vmem:[#allocation12 + $0x150] sm:$0xff]
        %v2921 = vld [vmem:[#allocation12 + $0x158] sm:$0xff]
        %v2922 = vld [vmem:[#allocation12 + $0x160] sm:$0xff]
        %v2923 = vld [vmem:[#allocation12 + $0x168] sm:$0xff]
        %v2924 = vld [vmem:[#allocation12 + $0x170] sm:$0xff]
        %v2925 = vld [vmem:[#allocation12 + $0x178] sm:$0xff]
        %v2926 = vld [vmem:[#allocation12 + $0x180] sm:$0xff]
        %v2927 = vld [vmem:[#allocation12 + $0x188] sm:$0xff]
        %v2928 = vld [vmem:[#allocation12 + $0x190] sm:$0xff]
        %v2929 = vld [vmem:[#allocation12 + $0x198] sm:$0xff]
        %v2930 = vld [vmem:[#allocation12 + $0x1a0] sm:$0xff]
        %v2931 = vld [vmem:[#allocation12 + $0x1a8] sm:$0xff]
        %v2932 = vld [vmem:[#allocation12 + $0x1b0] sm:$0xff]
        %v2933 = vld [vmem:[#allocation12 + $0x1b8] sm:$0xff]
        %v2934 = vld [vmem:[#allocation12 + $0x1c0] sm:$0xff]
        %v2935 = vld [vmem:[#allocation12 + $0x1c8] sm:$0xff]
        %v2936 = vld [vmem:[#allocation12 + $0x1d0] sm:$0xff]
        %v2937 = vld [vmem:[#allocation12 + $0x1d8] sm:$0xff]
        %v2938 = vld [vmem:[#allocation12 + $0x1e0] sm:$0xff]
        %v2939 = vld [vmem:[#allocation12 + $0x1e8] sm:$0xff]
        %v2940 = vld [vmem:[#allocation12 + $0x1f0] sm:$0xff]
        %v2941 = vld [vmem:[#allocation12 + $0x1f8] sm:$0xff]
        %v2942 = vld [vmem:[#allocation12 + $0x200] sm:$0xff]
        %v2943 = vld [vmem:[#allocation12 + $0x208] sm:$0xff]
        %v2944 = vld [vmem:[#allocation12 + $0x210] sm:$0xff]
        %v2945 = vld [vmem:[#allocation12 + $0x218] sm:$0xff]
        %v2946 = vld [vmem:[#allocation12 + $0x220] sm:$0xff]
        %v2947 = vld [vmem:[#allocation12 + $0x228] sm:$0xff]
        %v2948 = vld [vmem:[#allocation12 + $0x230] sm:$0xff]
        %v2949 = vld [vmem:[#allocation12 + $0x238] sm:$0xff]
        %v2950 = vld [vmem:[#allocation12 + $0x240] sm:$0xff]
        %v2951 = vld [vmem:[#allocation12 + $0x248] sm:$0xff]
        %v2952 = vld [vmem:[#allocation12 + $0x250] sm:$0xff]
        %v2953 = vld [vmem:[#allocation12 + $0x258] sm:$0xff]
        %v2954 = vld [vmem:[#allocation12 + $0x260] sm:$0xff]
        %v2955 = vld [vmem:[#allocation12 + $0x268] sm:$0xff]
        %v2956 = vld [vmem:[#allocation12 + $0x270] sm:$0xff]
        %v2957 = vld [vmem:[#allocation12 + $0x278] sm:$0xff]
        %v2958 = vld [vmem:[#allocation12 + $0x280] sm:$0xff]
        %v2959 = vld [vmem:[#allocation12 + $0x288] sm:$0xff]
        %v2960 = vld [vmem:[#allocation12 + $0x290] sm:$0xff]
        %v2961 = vld [vmem:[#allocation12 + $0x298] sm:$0xff]
        %v2962 = vld [vmem:[#allocation12 + $0x2a0] sm:$0xff]
        %v2963 = vld [vmem:[#allocation12 + $0x2a8] sm:$0xff]
        %v2964 = vld [vmem:[#allocation12 + $0x2b0] sm:$0xff]
        %v2965 = vld [vmem:[#allocation12 + $0x2b8] sm:$0xff]
        %v2966 = vld [vmem:[#allocation12 + $0x2c0] sm:$0xff]
        %v2967 = vld [vmem:[#allocation12 + $0x2c8] sm:$0xff]
        %v2968 = vld [vmem:[#allocation12 + $0x2d0] sm:$0xff]
        %v2969 = vld [vmem:[#allocation12 + $0x2d8] sm:$0xff]
        %v2970 = vld [vmem:[#allocation12 + $0x2e0] sm:$0xff]
        %v2971 = vld [vmem:[#allocation12 + $0x2e8] sm:$0xff]
        %v2972 = vld [vmem:[#allocation12 + $0x2f0] sm:$0xff]
        %v2973 = vld [vmem:[#allocation12 + $0x2f8] sm:$0xff]
        %v2974 = vld [vmem:[#allocation12 + $0x300] sm:$0xff]
        %v2975 = vld [vmem:[#allocation12 + $0x308] sm:$0xff]
        %v2976 = vld [vmem:[#allocation12 + $0x310] sm:$0xff]
        %v2977 = vld [vmem:[#allocation12 + $0x318] sm:$0xff]
        %v2978 = vld [vmem:[#allocation12 + $0x320] sm:$0xff]
        %v2979 = vld [vmem:[#allocation12 + $0x328] sm:$0xff]
        %v2980 = vld [vmem:[#allocation12 + $0x330] sm:$0xff]
        %v2981 = vld [vmem:[#allocation12 + $0x338] sm:$0xff]
        %v2982 = vld [vmem:[#allocation12 + $0x340] sm:$0xff]
        %v2983 = vld [vmem:[#allocation12 + $0x348] sm:$0xff]
        %v2984 = vld [vmem:[#allocation12 + $0x350] sm:$0xff]
        %v2985 = vld [vmem:[#allocation12 + $0x358] sm:$0xff]
        %v2986 = vld [vmem:[#allocation12 + $0x360] sm:$0xff]
        %v2987 = vld [vmem:[#allocation12 + $0x368] sm:$0xff]
        %v2988 = vld [vmem:[#allocation12 + $0x370] sm:$0xff]
        %v2989 = vld [vmem:[#allocation12 + $0x378] sm:$0xff]
        %v2990 = vld [vmem:[#allocation12 + $0x380] sm:$0xff]
        %v2991 = vld [vmem:[#allocation12 + $0x388] sm:$0xff]
        %v2992 = vld [vmem:[#allocation12 + $0x390] sm:$0xff]
        %v2993 = vld [vmem:[#allocation12 + $0x398] sm:$0xff]
        %v2994 = vld [vmem:[#allocation12 + $0x3a0] sm:$0xff]
        %v2995 = vld [vmem:[#allocation12 + $0x3a8] sm:$0xff]
        %v2996 = vld [vmem:[#allocation12 + $0x3b0] sm:$0xff]
        %v2997 = vld [vmem:[#allocation12 + $0x3b8] sm:$0xff]
        %v2998 = vld [vmem:[#allocation12 + $0x3c0] sm:$0xff]
        %v2999 = vld [vmem:[#allocation12 + $0x3c8] sm:$0xff]
        %v3000 = vld [vmem:[#allocation12 + $0x3d0] sm:$0xff]
        %v3001 = vld [vmem:[#allocation12 + $0x3d8] sm:$0xff]
        %v3002 = vld [vmem:[#allocation12 + $0x3e0] sm:$0xff]
        %v3003 = vld [vmem:[#allocation12 + $0x3e8] sm:$0xff]
        %v3004 = vld [vmem:[#allocation12 + $0x3f0] sm:$0xff]
        %v3005 = vld [vmem:[#allocation12 + $0x3f8] sm:$0xff]
        %v3006 = vld [vmem:[#allocation12 + $0x400] sm:$0xff]
        %v3007 = vld [vmem:[#allocation12 + $0x408] sm:$0xff]
        %v3008 = vld [vmem:[#allocation12 + $0x410] sm:$0xff]
        %v3009 = vld [vmem:[#allocation12 + $0x418] sm:$0xff]
        %v3010 = vld [vmem:[#allocation12 + $0x420] sm:$0xff]
        %v3011 = vld [vmem:[#allocation12 + $0x428] sm:$0xff]
        %v3012 = vld [vmem:[#allocation12 + $0x430] sm:$0xff]
        %v3013 = vld [vmem:[#allocation12 + $0x438] sm:$0xff]
        %v3014 = vld [vmem:[#allocation12 + $0x440] sm:$0xff]
        %v3015 = vld [vmem:[#allocation12 + $0x448] sm:$0xff]
        %v3016 = vld [vmem:[#allocation12 + $0x450] sm:$0xff]
        %v3017 = vld [vmem:[#allocation12 + $0x458] sm:$0xff]
        %v3018 = vld [vmem:[#allocation12 + $0x460] sm:$0xff]
        %v3019 = vld [vmem:[#allocation12 + $0x468] sm:$0xff]
        %v3020 = vld [vmem:[#allocation12 + $0x470] sm:$0xff]
        %v3021 = vld [vmem:[#allocation12 + $0x478] sm:$0xff]
        %v3022 = vld [vmem:[#allocation12 + $0x480] sm:$0xff]
        %v3023 = vld [vmem:[#allocation12 + $0x488] sm:$0xff]
        %v3024 = vld [vmem:[#allocation12 + $0x490] sm:$0xff]
        %v3025 = vld [vmem:[#allocation12 + $0x498] sm:$0xff]
        %v3026 = vld [vmem:[#allocation12 + $0x4a0] sm:$0xff]
        %v3027 = vld [vmem:[#allocation12 + $0x4a8] sm:$0xff]
        %v3028 = vld [vmem:[#allocation12 + $0x4b0] sm:$0xff]
        %v3029 = vld [vmem:[#allocation12 + $0x4b8] sm:$0xff]
        %v3030 = vld [vmem:[#allocation12 + $0x4c0] sm:$0xff]
        %v3031 = vld [vmem:[#allocation12 + $0x4c8] sm:$0xff]
        %v3032 = vld [vmem:[#allocation12 + $0x4d0] sm:$0xff]
        %v3033 = vld [vmem:[#allocation12 + $0x4d8] sm:$0xff]
        %v3034 = vld [vmem:[#allocation12 + $0x4e0] sm:$0xff]
        %v3035 = vld [vmem:[#allocation12 + $0x4e8] sm:$0xff]
        %v3036 = vld [vmem:[#allocation12 + $0x4f0] sm:$0xff]
        %v3037 = vld [vmem:[#allocation12 + $0x4f8] sm:$0xff]
        %v3038 = vld [vmem:[#allocation12 + $0x500] sm:$0xff]
        %v3039 = vld [vmem:[#allocation12 + $0x508] sm:$0xff]
        %v3040 = vld [vmem:[#allocation12 + $0x510] sm:$0xff]
        %v3041 = vld [vmem:[#allocation12 + $0x518] sm:$0xff]
        %v3042 = vld [vmem:[#allocation12 + $0x520] sm:$0xff]
        %v3043 = vld [vmem:[#allocation12 + $0x528] sm:$0xff]
        %v3044 = vld [vmem:[#allocation12 + $0x530] sm:$0xff]
        %v3045 = vld [vmem:[#allocation12 + $0x538] sm:$0xff]
        %v3046 = vld [vmem:[#allocation12 + $0x540] sm:$0xff]
        %v3047 = vld [vmem:[#allocation12 + $0x548] sm:$0xff]
        %v3048 = vld [vmem:[#allocation12 + $0x550] sm:$0xff]
        %v3049 = vld [vmem:[#allocation12 + $0x558] sm:$0xff]
        %v3050 = vld [vmem:[#allocation12 + $0x560] sm:$0xff]
        %v3051 = vld [vmem:[#allocation12 + $0x568] sm:$0xff]
        %v3052 = vld [vmem:[#allocation12 + $0x570] sm:$0xff]
        %v3053 = vld [vmem:[#allocation12 + $0x578] sm:$0xff]
        %v3054 = vld [vmem:[#allocation12 + $0x580] sm:$0xff]
        %v3055 = vld [vmem:[#allocation12 + $0x588] sm:$0xff]
        %v3056 = vld [vmem:[#allocation12 + $0x590] sm:$0xff]
        %v3057 = vld [vmem:[#allocation12 + $0x598] sm:$0xff]
        %v3058 = vld [vmem:[#allocation12 + $0x5a0] sm:$0xff]
        %v3059 = vld [vmem:[#allocation12 + $0x5a8] sm:$0xff]
        %v3060 = vld [vmem:[#allocation12 + $0x5b0] sm:$0xff]
        %v3061 = vld [vmem:[#allocation12 + $0x5b8] sm:$0xff]
        %v3062 = vld [vmem:[#allocation12 + $0x5c0] sm:$0xff]
        %v3063 = vld [vmem:[#allocation12 + $0x5c8] sm:$0xff]
        %v3064 = vld [vmem:[#allocation12 + $0x5d0] sm:$0xff]
        %v3065 = vld [vmem:[#allocation12 + $0x5d8] sm:$0xff]
        %v3066 = vld [vmem:[#allocation12 + $0x5e0] sm:$0xff]
        %v3067 = vld [vmem:[#allocation12 + $0x5e8] sm:$0xff]
        %v3068 = vld [vmem:[#allocation12 + $0x5f0] sm:$0xff]
        %v3069 = vld [vmem:[#allocation12 + $0x5f8] sm:$0xff]
        %v3070 = vld [vmem:[#allocation14] sm:$0x7]
        %v3072 = vlaneseq
        %v3073 = vshrl.u32 %v3072, 7
        %v3074 = vsub.s32 0, %v3073
        %v3075 = vrot.slane %v3070, %v3074
        %v3076 = vlaneseq
        %v3077 = vshrl.u32 %v3076, 7
        %v3078 = vsub.s32 1, %v3077
        %v3079 = vrot.slane %v3070, %v3078
        %v3080 = vlaneseq
        %v3081 = vshrl.u32 %v3080, 7
        %v3082 = vsub.s32 2, %v3081
        %v3083 = vrot.slane %v3070, %v3082
        %3087 = vmatprep.subr.mxu0 %v2924
        %3088 = vmatpush1.msra.mxu0 %v2923
        %3089 = vmatprep.subr.mxu0 %v2921
        %3090 = vmatpush1.msra.mxu0 %v2920
        %3091 = vmatprep.subr.mxu0 %v2918
        %3092 = vmatpush1.msra.mxu0 %v2917
        %3093 = vmatprep.subr.mxu0 %v2915
        %3094 = vmatpush1.msra.mxu0 %v2914
        %3095 = vmatprep.subr.mxu0 %v2912
        %3096 = vmatpush1.msra.mxu0 %v2911
        %3097 = vmatprep.subr.mxu0 %v2909
        %3098 = vmatpush1.msra.mxu0 %v2908
        %3099 = vmatprep.subr.mxu0 %v2906
        %3100 = vmatpush1.msra.mxu0 %v2905
        %3101 = vmatprep.subr.mxu0 %v2903
        %3102 = vmatpush1.msra.mxu0 %v2902
        %3103 = vmatprep.subr.mxu0 %v2900
        %3104 = vmatpush1.msra.mxu0 %v2899
        %3105 = vmatprep.subr.mxu0 %v2897
        %3106 = vmatpush1.msra.mxu0 %v2896
        %3107 = vmatprep.subr.mxu0 %v2894
        %3108 = vmatpush1.msra.mxu0 %v2893
        %3109 = vmatprep.subr.mxu0 %v2891
        %3110 = vmatpush1.msra.mxu0 %v2890
        %3111 = vmatprep.subr.mxu0 %v2888
        %3112 = vmatpush1.msra.mxu0 %v2887
        %3113 = vmatprep.subr.mxu0 %v2885
        %3114 = vmatpush1.msra.mxu0 %v2884
        %3115 = vmatprep.subr.mxu0 %v2882
        %3116 = vmatpush1.msra.mxu0 %v2881
        %3117 = vmatprep.subr.mxu0 %v2879
        %3118 = vmatpush1.msra.mxu0 %v2878
        %3119 = vmatprep.subr.mxu0 %v2972
        %3120 = vmatpush2.msra.mxu0 %v2971
        %3121 = vmatprep.subr.mxu0 %v2969
        %3122 = vmatpush2.msra.mxu0 %v2968
        %3123 = vmatprep.subr.mxu0 %v2966
        %3124 = vmatpush2.msra.mxu0 %v2965
        %3125 = vmatprep.subr.mxu0 %v2963
        %3126 = vmatpush2.msra.mxu0 %v2962
        %3127 = vmatprep.subr.mxu0 %v2960
        %3128 = vmatpush2.msra.mxu0 %v2959
        %3129 = vmatprep.subr.mxu0 %v2957
        %3130 = vmatpush2.msra.mxu0 %v2956
        %3131 = vmatprep.subr.mxu0 %v2954
        %3132 = vmatpush2.msra.mxu0 %v2953
        %3133 = vmatprep.subr.mxu0 %v2951
        %3134 = vmatpush2.msra.mxu0 %v2950
        %3135 = vmatprep.subr.mxu0 %v2948
        %3136 = vmatpush2.msra.mxu0 %v2947
        %3137 = vmatprep.subr.mxu0 %v2945
        %3138 = vmatpush2.msra.mxu0 %v2944
        %3139 = vmatprep.subr.mxu0 %v2942
        %3140 = vmatpush2.msra.mxu0 %v2941
        %3141 = vmatprep.subr.mxu0 %v2939
        %3142 = vmatpush2.msra.mxu0 %v2938
        %3143 = vmatprep.subr.mxu0 %v2936
        %3144 = vmatpush2.msra.mxu0 %v2935
        %3145 = vmatprep.subr.mxu0 %v2933
        %3146 = vmatpush2.msra.mxu0 %v2932
        %3147 = vmatprep.subr.mxu0 %v2930
        %3148 = vmatpush2.msra.mxu0 %v2929
        %3149 = vmatprep.subr.mxu0 %v2927
        %3150 = vmatpush2.msra.mxu0 %v2926
        %3151 = vmatprep.mubr.f32.mxu0 %v2871
        %3152 = vmatmul.mubr.f32.gmra.mxu0 %v2870
        %v3153 = vpop.f32.mrf.mxu0
        %v3154 = vadd.f32 %v3075, %v3153
        %v3155 = vpop.f32.mrf.mxu0
        %v3156 = vadd.f32 %v3079, %v3155
        %3157 = vdwg.mxu0
        %3158 = vmatprep.subr.mxu0 %v3020
        %3159 = vmatpush1.msra.mxu0 %v3019
        %3160 = vmatprep.subr.mxu0 %v3017
        %3161 = vmatpush1.msra.mxu0 %v3016
        %3162 = vmatprep.subr.mxu0 %v3014
        %3163 = vmatpush1.msra.mxu0 %v3013
        %3164 = vmatprep.subr.mxu0 %v3011
        %3165 = vmatpush1.msra.mxu0 %v3010
        %3166 = vmatprep.subr.mxu0 %v3008
        %3167 = vmatpush1.msra.mxu0 %v3007
        %3168 = vmatprep.subr.mxu0 %v3005
        %3169 = vmatpush1.msra.mxu0 %v3004
        %3170 = vmatprep.subr.mxu0 %v3002
        %3171 = vmatpush1.msra.mxu0 %v3001
        %3172 = vmatprep.subr.mxu0 %v2999
        %3173 = vmatpush1.msra.mxu0 %v2998
        %3174 = vmatprep.subr.mxu0 %v2996
        %3175 = vmatpush1.msra.mxu0 %v2995
        %3176 = vmatprep.subr.mxu0 %v2993
        %3177 = vmatpush1.msra.mxu0 %v2992
        %3178 = vmatprep.subr.mxu0 %v2990
        %3179 = vmatpush1.msra.mxu0 %v2989
        %3180 = vmatprep.subr.mxu0 %v2987
        %3181 = vmatpush1.msra.mxu0 %v2986
        %3182 = vmatprep.subr.mxu0 %v2984
        %3183 = vmatpush1.msra.mxu0 %v2983
        %3184 = vmatprep.subr.mxu0 %v2981
        %3185 = vmatpush1.msra.mxu0 %v2980
        %3186 = vmatprep.subr.mxu0 %v2978
        %3187 = vmatpush1.msra.mxu0 %v2977
        %3188 = vmatprep.subr.mxu0 %v2975
        %3189 = vmatpush1.msra.mxu0 %v2974
        %3190 = vmatprep.subr.mxu0 %v3068
        %3191 = vmatpush2.msra.mxu0 %v3067
        %3192 = vmatprep.subr.mxu0 %v3065
        %3193 = vmatpush2.msra.mxu0 %v3064
        %3194 = vmatprep.subr.mxu0 %v3062
        %3195 = vmatpush2.msra.mxu0 %v3061
        %3196 = vmatprep.subr.mxu0 %v3059
        %3197 = vmatpush2.msra.mxu0 %v3058
        %3198 = vmatprep.subr.mxu0 %v3056
        %3199 = vmatpush2.msra.mxu0 %v3055
        %3200 = vmatprep.subr.mxu0 %v3053
        %3201 = vmatpush2.msra.mxu0 %v3052
        %3202 = vmatprep.subr.mxu0 %v3050
        %3203 = vmatpush2.msra.mxu0 %v3049
        %3204 = vmatprep.subr.mxu0 %v3047
        %3205 = vmatpush2.msra.mxu0 %v3046
        %3206 = vmatprep.subr.mxu0 %v3044
        %3207 = vmatpush2.msra.mxu0 %v3043
        %3208 = vmatprep.subr.mxu0 %v3041
        %3209 = vmatpush2.msra.mxu0 %v3040
        %3210 = vmatprep.subr.mxu0 %v3038
        %3211 = vmatpush2.msra.mxu0 %v3037
        %3212 = vmatprep.subr.mxu0 %v3035
        %3213 = vmatpush2.msra.mxu0 %v3034
        %3214 = vmatprep.subr.mxu0 %v3032
        %3215 = vmatpush2.msra.mxu0 %v3031
        %3216 = vmatprep.subr.mxu0 %v3029
        %3217 = vmatpush2.msra.mxu0 %v3028
        %3218 = vmatprep.subr.mxu0 %v3026
        %3219 = vmatpush2.msra.mxu0 %v3025
        %3220 = vmatprep.subr.mxu0 %v3023
        %3221 = vmatpush2.msra.mxu0 %v3022
        %3222 = vmatprep.mubr.f32.mxu0 %v2873
        %3223 = vmatmul.mubr.f32.gmra.mxu0 %v2872
        %v3224 = vpop.f32.mrf.mxu0
        %v3225 = vadd.f32 %v3154, %v3224
        %v3226 = vpop.f32.mrf.mxu0
        %v3227 = vadd.f32 %v3156, %v3226
        %3228 = vdwg.mxu0
        %3229 = vmatprep.subr.mxu0 0.0
        %3230 = vmatpush1.msra.mxu0 %v2925
        %3231 = vmatprep.subr.mxu0 0.0
        %3232 = vmatpush1.msra.mxu0 %v2922
        %3233 = vmatprep.subr.mxu0 0.0
        %3234 = vmatpush1.msra.mxu0 %v2919
        %3235 = vmatprep.subr.mxu0 0.0
        %3236 = vmatpush1.msra.mxu0 %v2916
        %3237 = vmatprep.subr.mxu0 0.0
        %3238 = vmatpush1.msra.mxu0 %v2913
        %3239 = vmatprep.subr.mxu0 0.0
        %3240 = vmatpush1.msra.mxu0 %v2910
        %3241 = vmatprep.subr.mxu0 0.0
        %3242 = vmatpush1.msra.mxu0 %v2907
        %3243 = vmatprep.subr.mxu0 0.0
        %3244 = vmatpush1.msra.mxu0 %v2904
        %3245 = vmatprep.subr.mxu0 0.0
        %3246 = vmatpush1.msra.mxu0 %v2901
        %3247 = vmatprep.subr.mxu0 0.0
        %3248 = vmatpush1.msra.mxu0 %v2898
        %3249 = vmatprep.subr.mxu0 0.0
        %3250 = vmatpush1.msra.mxu0 %v2895
        %3251 = vmatprep.subr.mxu0 0.0
        %3252 = vmatpush1.msra.mxu0 %v2892
        %3253 = vmatprep.subr.mxu0 0.0
        %3254 = vmatpush1.msra.mxu0 %v2889
        %3255 = vmatprep.subr.mxu0 0.0
        %3256 = vmatpush1.msra.mxu0 %v2886
        %3257 = vmatprep.subr.mxu0 0.0
        %3258 = vmatpush1.msra.mxu0 %v2883
        %3259 = vmatprep.subr.mxu0 0.0
        %3260 = vmatpush1.msra.mxu0 %v2880
        %3261 = vmatprep.subr.mxu0 0.0
        %3262 = vmatpush2.msra.mxu0 %v2973
        %3263 = vmatprep.subr.mxu0 0.0
        %3264 = vmatpush2.msra.mxu0 %v2970
        %3265 = vmatprep.subr.mxu0 0.0
        %3266 = vmatpush2.msra.mxu0 %v2967
        %3267 = vmatprep.subr.mxu0 0.0
        %3268 = vmatpush2.msra.mxu0 %v2964
        %3269 = vmatprep.subr.mxu0 0.0
        %3270 = vmatpush2.msra.mxu0 %v2961
        %3271 = vmatprep.subr.mxu0 0.0
        %3272 = vmatpush2.msra.mxu0 %v2958
        %3273 = vmatprep.subr.mxu0 0.0
        %3274 = vmatpush2.msra.mxu0 %v2955
        %3275 = vmatprep.subr.mxu0 0.0
        %3276 = vmatpush2.msra.mxu0 %v2952
        %3277 = vmatprep.subr.mxu0 0.0
        %3278 = vmatpush2.msra.mxu0 %v2949
        %3279 = vmatprep.subr.mxu0 0.0
        %3280 = vmatpush2.msra.mxu0 %v2946
        %3281 = vmatprep.subr.mxu0 0.0
        %3282 = vmatpush2.msra.mxu0 %v2943
        %3283 = vmatprep.subr.mxu0 0.0
        %3284 = vmatpush2.msra.mxu0 %v2940
        %3285 = vmatprep.subr.mxu0 0.0
        %3286 = vmatpush2.msra.mxu0 %v2937
        %3287 = vmatprep.subr.mxu0 0.0
        %3288 = vmatpush2.msra.mxu0 %v2934
        %3289 = vmatprep.subr.mxu0 0.0
        %3290 = vmatpush2.msra.mxu0 %v2931
        %3291 = vmatprep.subr.mxu0 0.0
        %3292 = vmatpush2.msra.mxu0 %v2928
        %3293 = vmatprep.mubr.f32.mxu0 %v2871
        %3294 = vmatmul.mubr.f32.gmra.mxu0 %v2870
        %v3295 = vpop.f32.mrf.mxu0
        %v3296 = vadd.f32 %v3083, %v3295
        %v3297 = vpop.f32.mrf.mxu0
        %3298 = vdwg.mxu0
        %3299 = vmatprep.subr.mxu0 0.0
        %3300 = vmatpush1.msra.mxu0 %v3021
        %3301 = vmatprep.subr.mxu0 0.0
        %3302 = vmatpush1.msra.mxu0 %v3018
        %3303 = vmatprep.subr.mxu0 0.0
        %3304 = vmatpush1.msra.mxu0 %v3015
        %3305 = vmatprep.subr.mxu0 0.0
        %3306 = vmatpush1.msra.mxu0 %v3012
        %3307 = vmatprep.subr.mxu0 0.0
        %3308 = vmatpush1.msra.mxu0 %v3009
        %3309 = vmatprep.subr.mxu0 0.0
        %3310 = vmatpush1.msra.mxu0 %v3006
        %3311 = vmatprep.subr.mxu0 0.0
        %3312 = vmatpush1.msra.mxu0 %v3003
        %3313 = vmatprep.subr.mxu0 0.0
        %3314 = vmatpush1.msra.mxu0 %v3000
        %3315 = vmatprep.subr.mxu0 0.0
        %3316 = vmatpush1.msra.mxu0 %v2997
        %3317 = vmatprep.subr.mxu0 0.0
        %3318 = vmatpush1.msra.mxu0 %v2994
        %3319 = vmatprep.subr.mxu0 0.0
        %3320 = vmatpush1.msra.mxu0 %v2991
        %3321 = vmatprep.subr.mxu0 0.0
        %3322 = vmatpush1.msra.mxu0 %v2988
        %3323 = vmatprep.subr.mxu0 0.0
        %3324 = vmatpush1.msra.mxu0 %v2985
        %3325 = vmatprep.subr.mxu0 0.0
        %3326 = vmatpush1.msra.mxu0 %v2982
        %3327 = vmatprep.subr.mxu0 0.0
        %3328 = vmatpush1.msra.mxu0 %v2979
        %3329 = vmatprep.subr.mxu0 0.0
        %3330 = vmatpush1.msra.mxu0 %v2976
        %3331 = vmatprep.subr.mxu0 0.0
        %3332 = vmatpush2.msra.mxu0 %v3069
        %3333 = vmatprep.subr.mxu0 0.0
        %3334 = vmatpush2.msra.mxu0 %v3066
        %3335 = vmatprep.subr.mxu0 0.0
        %3336 = vmatpush2.msra.mxu0 %v3063
        %3337 = vmatprep.subr.mxu0 0.0
        %3338 = vmatpush2.msra.mxu0 %v3060
        %3339 = vmatprep.subr.mxu0 0.0
        %3340 = vmatpush2.msra.mxu0 %v3057
        %3341 = vmatprep.subr.mxu0 0.0
        %3342 = vmatpush2.msra.mxu0 %v3054
        %3343 = vmatprep.subr.mxu0 0.0
        %3344 = vmatpush2.msra.mxu0 %v3051
        %3345 = vmatprep.subr.mxu0 0.0
        %3346 = vmatpush2.msra.mxu0 %v3048
        %3347 = vmatprep.subr.mxu0 0.0
        %3348 = vmatpush2.msra.mxu0 %v3045
        %3349 = vmatprep.subr.mxu0 0.0
        %3350 = vmatpush2.msra.mxu0 %v3042
        %3351 = vmatprep.subr.mxu0 0.0
        %3352 = vmatpush2.msra.mxu0 %v3039
        %3353 = vmatprep.subr.mxu0 0.0
        %3354 = vmatpush2.msra.mxu0 %v3036
        %3355 = vmatprep.subr.mxu0 0.0
        %3356 = vmatpush2.msra.mxu0 %v3033
        %3357 = vmatprep.subr.mxu0 0.0
        %3358 = vmatpush2.msra.mxu0 %v3030
        %3359 = vmatprep.subr.mxu0 0.0
        %3360 = vmatpush2.msra.mxu0 %v3027
        %3361 = vmatprep.subr.mxu0 0.0
        %3362 = vmatpush2.msra.mxu0 %v3024
        %3363 = vmatprep.mubr.f32.mxu0 %v2873
        %3364 = vmatmul.mubr.f32.gmra.mxu0 %v2872
        %v3365 = vpop.f32.mrf.mxu0
        %v3366 = vadd.f32 %v3296, %v3365
        %v3367 = vpop.f32.mrf.mxu0
        %3368 = vdwg.mxu0
        %3369 = vst [vmem:[%s614] sm:$0xff] %v3225
        %3370 = vst [vmem:[%s614 + $0x8] sm:$0xff] %v3227
        %3371 = vst [vmem:[%s614 + $0x10] sm:$0xff] %v3366
        %v3372 = vld [vmem:[#allocation18] sm:$0xff]
        %v3373 = vld [vmem:[#allocation18 + $0x8] sm:$0xff]
        %v3374 = vld [vmem:[#allocation18 + $0x10] sm:$0xff]
        %v3375 = vld [vmem:[#allocation18 + $0x18] sm:$0xff]
        %v3376 = vld [vmem:[#allocation18 + $0x20] sm:$0xff]
        %v3377 = vld [vmem:[#allocation18 + $0x28] sm:$0xff]
        %v3378 = vld [vmem:[#allocation18 + $0x30] sm:$0xff]
        %v3379 = vld [vmem:[#allocation18 + $0x38] sm:$0xff]
        %v3380 = vld [vmem:[#allocation18 + $0x40] sm:$0xff]
        %v3381 = vld [vmem:[#allocation18 + $0x48] sm:$0xff]
        %v3382 = vld [vmem:[#allocation18 + $0x50] sm:$0xff]
        %v3383 = vld [vmem:[#allocation18 + $0x58] sm:$0xff]
        %v3384 = vld [vmem:[#allocation18 + $0x60] sm:$0xff]
        %v3385 = vld [vmem:[#allocation18 + $0x68] sm:$0xff]
        %v3386 = vld [vmem:[#allocation18 + $0x70] sm:$0xff]
        %v3387 = vld [vmem:[#allocation18 + $0x78] sm:$0xff]
        %v3388 = vld [vmem:[#allocation18 + $0x80] sm:$0xff]
        %v3389 = vld [vmem:[#allocation18 + $0x88] sm:$0xff]
        %v3390 = vld [vmem:[#allocation18 + $0x90] sm:$0xff]
        %v3391 = vld [vmem:[#allocation18 + $0x98] sm:$0xff]
        %v3392 = vld [vmem:[#allocation18 + $0xa0] sm:$0xff]
        %v3393 = vld [vmem:[#allocation18 + $0xa8] sm:$0xff]
        %v3394 = vld [vmem:[#allocation18 + $0xb0] sm:$0xff]
        %v3395 = vld [vmem:[#allocation18 + $0xb8] sm:$0xff]
        %v3396 = vld [vmem:[#allocation18 + $0xc0] sm:$0xff]
        %v3397 = vld [vmem:[#allocation18 + $0xc8] sm:$0xff]
        %v3398 = vld [vmem:[#allocation18 + $0xd0] sm:$0xff]
        %v3399 = vld [vmem:[#allocation18 + $0xd8] sm:$0xff]
        %v3400 = vld [vmem:[#allocation18 + $0xe0] sm:$0xff]
        %v3401 = vld [vmem:[#allocation18 + $0xe8] sm:$0xff]
        %v3402 = vld [vmem:[#allocation18 + $0xf0] sm:$0xff]
        %v3403 = vld [vmem:[#allocation18 + $0xf8] sm:$0xff]
        %v3404 = vld [vmem:[#allocation18 + $0x100] sm:$0xff]
        %v3405 = vld [vmem:[#allocation18 + $0x108] sm:$0xff]
        %v3406 = vld [vmem:[#allocation18 + $0x110] sm:$0xff]
        %v3407 = vld [vmem:[#allocation18 + $0x118] sm:$0xff]
        %v3408 = vld [vmem:[#allocation18 + $0x120] sm:$0xff]
        %v3409 = vld [vmem:[#allocation18 + $0x128] sm:$0xff]
        %v3410 = vld [vmem:[#allocation18 + $0x130] sm:$0xff]
        %v3411 = vld [vmem:[#allocation18 + $0x138] sm:$0xff]
        %v3412 = vld [vmem:[#allocation18 + $0x140] sm:$0xff]
        %v3413 = vld [vmem:[#allocation18 + $0x148] sm:$0xff]
        %v3414 = vld [vmem:[#allocation18 + $0x150] sm:$0xff]
        %v3415 = vld [vmem:[#allocation18 + $0x158] sm:$0xff]
        %v3416 = vld [vmem:[#allocation18 + $0x160] sm:$0xff]
        %v3417 = vld [vmem:[#allocation18 + $0x168] sm:$0xff]
        %v3418 = vld [vmem:[#allocation18 + $0x170] sm:$0xff]
        %v3419 = vld [vmem:[#allocation18 + $0x178] sm:$0xff]
        %v3420 = vld [vmem:[#allocation18 + $0x180] sm:$0xff]
        %v3421 = vld [vmem:[#allocation18 + $0x188] sm:$0xff]
        %v3422 = vld [vmem:[#allocation18 + $0x190] sm:$0xff]
        %v3423 = vld [vmem:[#allocation18 + $0x198] sm:$0xff]
        %v3424 = vld [vmem:[#allocation18 + $0x1a0] sm:$0xff]
        %v3425 = vld [vmem:[#allocation18 + $0x1a8] sm:$0xff]
        %v3426 = vld [vmem:[#allocation18 + $0x1b0] sm:$0xff]
        %v3427 = vld [vmem:[#allocation18 + $0x1b8] sm:$0xff]
        %v3428 = vld [vmem:[#allocation18 + $0x1c0] sm:$0xff]
        %v3429 = vld [vmem:[#allocation18 + $0x1c8] sm:$0xff]
        %v3430 = vld [vmem:[#allocation18 + $0x1d0] sm:$0xff]
        %v3431 = vld [vmem:[#allocation18 + $0x1d8] sm:$0xff]
        %v3432 = vld [vmem:[#allocation18 + $0x1e0] sm:$0xff]
        %v3433 = vld [vmem:[#allocation18 + $0x1e8] sm:$0xff]
        %v3434 = vld [vmem:[#allocation18 + $0x1f0] sm:$0xff]
        %v3435 = vld [vmem:[#allocation18 + $0x1f8] sm:$0xff]
        %v3436 = vld [vmem:[#allocation18 + $0x200] sm:$0xff]
        %v3437 = vld [vmem:[#allocation18 + $0x208] sm:$0xff]
        %v3438 = vld [vmem:[#allocation18 + $0x210] sm:$0xff]
        %v3439 = vld [vmem:[#allocation18 + $0x218] sm:$0xff]
        %v3440 = vld [vmem:[#allocation18 + $0x220] sm:$0xff]
        %v3441 = vld [vmem:[#allocation18 + $0x228] sm:$0xff]
        %v3442 = vld [vmem:[#allocation18 + $0x230] sm:$0xff]
        %v3443 = vld [vmem:[#allocation18 + $0x238] sm:$0xff]
        %v3444 = vld [vmem:[#allocation18 + $0x240] sm:$0xff]
        %v3445 = vld [vmem:[#allocation18 + $0x248] sm:$0xff]
        %v3446 = vld [vmem:[#allocation18 + $0x250] sm:$0xff]
        %v3447 = vld [vmem:[#allocation18 + $0x258] sm:$0xff]
        %v3448 = vld [vmem:[#allocation18 + $0x260] sm:$0xff]
        %v3449 = vld [vmem:[#allocation18 + $0x268] sm:$0xff]
        %v3450 = vld [vmem:[#allocation18 + $0x270] sm:$0xff]
        %v3451 = vld [vmem:[#allocation18 + $0x278] sm:$0xff]
        %v3452 = vld [vmem:[#allocation18 + $0x280] sm:$0xff]
        %v3453 = vld [vmem:[#allocation18 + $0x288] sm:$0xff]
        %v3454 = vld [vmem:[#allocation18 + $0x290] sm:$0xff]
        %v3455 = vld [vmem:[#allocation18 + $0x298] sm:$0xff]
        %v3456 = vld [vmem:[#allocation18 + $0x2a0] sm:$0xff]
        %v3457 = vld [vmem:[#allocation18 + $0x2a8] sm:$0xff]
        %v3458 = vld [vmem:[#allocation18 + $0x2b0] sm:$0xff]
        %v3459 = vld [vmem:[#allocation18 + $0x2b8] sm:$0xff]
        %v3460 = vld [vmem:[#allocation18 + $0x2c0] sm:$0xff]
        %v3461 = vld [vmem:[#allocation18 + $0x2c8] sm:$0xff]
        %v3462 = vld [vmem:[#allocation18 + $0x2d0] sm:$0xff]
        %v3463 = vld [vmem:[#allocation18 + $0x2d8] sm:$0xff]
        %v3464 = vld [vmem:[#allocation18 + $0x2e0] sm:$0xff]
        %v3465 = vld [vmem:[#allocation18 + $0x2e8] sm:$0xff]
        %v3466 = vld [vmem:[#allocation18 + $0x2f0] sm:$0xff]
        %v3467 = vld [vmem:[#allocation18 + $0x2f8] sm:$0xff]
        %v3468 = vld [vmem:[#allocation18 + $0x300] sm:$0xff]
        %v3469 = vld [vmem:[#allocation18 + $0x308] sm:$0xff]
        %v3470 = vld [vmem:[#allocation18 + $0x310] sm:$0xff]
        %v3471 = vld [vmem:[#allocation18 + $0x318] sm:$0xff]
        %v3472 = vld [vmem:[#allocation18 + $0x320] sm:$0xff]
        %v3473 = vld [vmem:[#allocation18 + $0x328] sm:$0xff]
        %v3474 = vld [vmem:[#allocation18 + $0x330] sm:$0xff]
        %v3475 = vld [vmem:[#allocation18 + $0x338] sm:$0xff]
        %v3476 = vld [vmem:[#allocation18 + $0x340] sm:$0xff]
        %v3477 = vld [vmem:[#allocation18 + $0x348] sm:$0xff]
        %v3478 = vld [vmem:[#allocation18 + $0x350] sm:$0xff]
        %v3479 = vld [vmem:[#allocation18 + $0x358] sm:$0xff]
        %v3480 = vld [vmem:[#allocation18 + $0x360] sm:$0xff]
        %v3481 = vld [vmem:[#allocation18 + $0x368] sm:$0xff]
        %v3482 = vld [vmem:[#allocation18 + $0x370] sm:$0xff]
        %v3483 = vld [vmem:[#allocation18 + $0x378] sm:$0xff]
        %v3484 = vld [vmem:[#allocation18 + $0x380] sm:$0xff]
        %v3485 = vld [vmem:[#allocation18 + $0x388] sm:$0xff]
        %v3486 = vld [vmem:[#allocation18 + $0x390] sm:$0xff]
        %v3487 = vld [vmem:[#allocation18 + $0x398] sm:$0xff]
        %v3488 = vld [vmem:[#allocation18 + $0x3a0] sm:$0xff]
        %v3489 = vld [vmem:[#allocation18 + $0x3a8] sm:$0xff]
        %v3490 = vld [vmem:[#allocation18 + $0x3b0] sm:$0xff]
        %v3491 = vld [vmem:[#allocation18 + $0x3b8] sm:$0xff]
        %v3492 = vld [vmem:[#allocation18 + $0x3c0] sm:$0xff]
        %v3493 = vld [vmem:[#allocation18 + $0x3c8] sm:$0xff]
        %v3494 = vld [vmem:[#allocation18 + $0x3d0] sm:$0xff]
        %v3495 = vld [vmem:[#allocation18 + $0x3d8] sm:$0xff]
        %v3496 = vld [vmem:[#allocation18 + $0x3e0] sm:$0xff]
        %v3497 = vld [vmem:[#allocation18 + $0x3e8] sm:$0xff]
        %v3498 = vld [vmem:[#allocation18 + $0x3f0] sm:$0xff]
        %v3499 = vld [vmem:[#allocation18 + $0x3f8] sm:$0xff]
        %v3500 = vld [vmem:[#allocation18 + $0x400] sm:$0xff]
        %v3501 = vld [vmem:[#allocation18 + $0x408] sm:$0xff]
        %v3502 = vld [vmem:[#allocation18 + $0x410] sm:$0xff]
        %v3503 = vld [vmem:[#allocation18 + $0x418] sm:$0xff]
        %v3504 = vld [vmem:[#allocation18 + $0x420] sm:$0xff]
        %v3505 = vld [vmem:[#allocation18 + $0x428] sm:$0xff]
        %v3506 = vld [vmem:[#allocation18 + $0x430] sm:$0xff]
        %v3507 = vld [vmem:[#allocation18 + $0x438] sm:$0xff]
        %v3508 = vld [vmem:[#allocation18 + $0x440] sm:$0xff]
        %v3509 = vld [vmem:[#allocation18 + $0x448] sm:$0xff]
        %v3510 = vld [vmem:[#allocation18 + $0x450] sm:$0xff]
        %v3511 = vld [vmem:[#allocation18 + $0x458] sm:$0xff]
        %v3512 = vld [vmem:[#allocation18 + $0x460] sm:$0xff]
        %v3513 = vld [vmem:[#allocation18 + $0x468] sm:$0xff]
        %v3514 = vld [vmem:[#allocation18 + $0x470] sm:$0xff]
        %v3515 = vld [vmem:[#allocation18 + $0x478] sm:$0xff]
        %v3516 = vld [vmem:[#allocation18 + $0x480] sm:$0xff]
        %v3517 = vld [vmem:[#allocation18 + $0x488] sm:$0xff]
        %v3518 = vld [vmem:[#allocation18 + $0x490] sm:$0xff]
        %v3519 = vld [vmem:[#allocation18 + $0x498] sm:$0xff]
        %v3520 = vld [vmem:[#allocation18 + $0x4a0] sm:$0xff]
        %v3521 = vld [vmem:[#allocation18 + $0x4a8] sm:$0xff]
        %v3522 = vld [vmem:[#allocation18 + $0x4b0] sm:$0xff]
        %v3523 = vld [vmem:[#allocation18 + $0x4b8] sm:$0xff]
        %v3524 = vld [vmem:[#allocation18 + $0x4c0] sm:$0xff]
        %v3525 = vld [vmem:[#allocation18 + $0x4c8] sm:$0xff]
        %v3526 = vld [vmem:[#allocation18 + $0x4d0] sm:$0xff]
        %v3527 = vld [vmem:[#allocation18 + $0x4d8] sm:$0xff]
        %v3528 = vld [vmem:[#allocation18 + $0x4e0] sm:$0xff]
        %v3529 = vld [vmem:[#allocation18 + $0x4e8] sm:$0xff]
        %v3530 = vld [vmem:[#allocation18 + $0x4f0] sm:$0xff]
        %v3531 = vld [vmem:[#allocation18 + $0x4f8] sm:$0xff]
        %v3532 = vld [vmem:[#allocation18 + $0x500] sm:$0xff]
        %v3533 = vld [vmem:[#allocation18 + $0x508] sm:$0xff]
        %v3534 = vld [vmem:[#allocation18 + $0x510] sm:$0xff]
        %v3535 = vld [vmem:[#allocation18 + $0x518] sm:$0xff]
        %v3536 = vld [vmem:[#allocation18 + $0x520] sm:$0xff]
        %v3537 = vld [vmem:[#allocation18 + $0x528] sm:$0xff]
        %v3538 = vld [vmem:[#allocation18 + $0x530] sm:$0xff]
        %v3539 = vld [vmem:[#allocation18 + $0x538] sm:$0xff]
        %v3540 = vld [vmem:[#allocation18 + $0x540] sm:$0xff]
        %v3541 = vld [vmem:[#allocation18 + $0x548] sm:$0xff]
        %v3542 = vld [vmem:[#allocation18 + $0x550] sm:$0xff]
        %v3543 = vld [vmem:[#allocation18 + $0x558] sm:$0xff]
        %v3544 = vld [vmem:[#allocation18 + $0x560] sm:$0xff]
        %v3545 = vld [vmem:[#allocation18 + $0x568] sm:$0xff]
        %v3546 = vld [vmem:[#allocation18 + $0x570] sm:$0xff]
        %v3547 = vld [vmem:[#allocation18 + $0x578] sm:$0xff]
        %v3548 = vld [vmem:[#allocation18 + $0x580] sm:$0xff]
        %v3549 = vld [vmem:[#allocation18 + $0x588] sm:$0xff]
        %v3550 = vld [vmem:[#allocation18 + $0x590] sm:$0xff]
        %v3551 = vld [vmem:[#allocation18 + $0x598] sm:$0xff]
        %v3552 = vld [vmem:[#allocation18 + $0x5a0] sm:$0xff]
        %v3553 = vld [vmem:[#allocation18 + $0x5a8] sm:$0xff]
        %v3554 = vld [vmem:[#allocation18 + $0x5b0] sm:$0xff]
        %v3555 = vld [vmem:[#allocation18 + $0x5b8] sm:$0xff]
        %v3556 = vld [vmem:[#allocation18 + $0x5c0] sm:$0xff]
        %v3557 = vld [vmem:[#allocation18 + $0x5c8] sm:$0xff]
        %v3558 = vld [vmem:[#allocation18 + $0x5d0] sm:$0xff]
        %v3559 = vld [vmem:[#allocation18 + $0x5d8] sm:$0xff]
        %v3560 = vld [vmem:[#allocation18 + $0x5e0] sm:$0xff]
        %v3561 = vld [vmem:[#allocation18 + $0x5e8] sm:$0xff]
        %v3562 = vld [vmem:[#allocation18 + $0x5f0] sm:$0xff]
        %v3563 = vld [vmem:[#allocation18 + $0x5f8] sm:$0xff]
        %v3564 = vld [vmem:[#allocation20] sm:$0x7]
        %v3566 = vlaneseq
        %v3567 = vshrl.u32 %v3566, 7
        %v3568 = vsub.s32 0, %v3567
        %v3569 = vrot.slane %v3564, %v3568
        %v3570 = vlaneseq
        %v3571 = vshrl.u32 %v3570, 7
        %v3572 = vsub.s32 1, %v3571
        %v3573 = vrot.slane %v3564, %v3572
        %v3574 = vlaneseq
        %v3575 = vshrl.u32 %v3574, 7
        %v3576 = vsub.s32 2, %v3575
        %v3577 = vrot.slane %v3564, %v3576
        %3581 = vmatprep.subr.mxu0 %v3418
        %3582 = vmatpush1.msra.mxu0 %v3417
        %3583 = vmatprep.subr.mxu0 %v3415
        %3584 = vmatpush1.msra.mxu0 %v3414
        %3585 = vmatprep.subr.mxu0 %v3412
        %3586 = vmatpush1.msra.mxu0 %v3411
        %3587 = vmatprep.subr.mxu0 %v3409
        %3588 = vmatpush1.msra.mxu0 %v3408
        %3589 = vmatprep.subr.mxu0 %v3406
        %3590 = vmatpush1.msra.mxu0 %v3405
        %3591 = vmatprep.subr.mxu0 %v3403
        %3592 = vmatpush1.msra.mxu0 %v3402
        %3593 = vmatprep.subr.mxu0 %v3400
        %3594 = vmatpush1.msra.mxu0 %v3399
        %3595 = vmatprep.subr.mxu0 %v3397
        %3596 = vmatpush1.msra.mxu0 %v3396
        %3597 = vmatprep.subr.mxu0 %v3394
        %3598 = vmatpush1.msra.mxu0 %v3393
        %3599 = vmatprep.subr.mxu0 %v3391
        %3600 = vmatpush1.msra.mxu0 %v3390
        %3601 = vmatprep.subr.mxu0 %v3388
        %3602 = vmatpush1.msra.mxu0 %v3387
        %3603 = vmatprep.subr.mxu0 %v3385
        %3604 = vmatpush1.msra.mxu0 %v3384
        %3605 = vmatprep.subr.mxu0 %v3382
        %3606 = vmatpush1.msra.mxu0 %v3381
        %3607 = vmatprep.subr.mxu0 %v3379
        %3608 = vmatpush1.msra.mxu0 %v3378
        %3609 = vmatprep.subr.mxu0 %v3376
        %3610 = vmatpush1.msra.mxu0 %v3375
        %3611 = vmatprep.subr.mxu0 %v3373
        %3612 = vmatpush1.msra.mxu0 %v3372
        %3613 = vmatprep.subr.mxu0 %v3466
        %3614 = vmatpush2.msra.mxu0 %v3465
        %3615 = vmatprep.subr.mxu0 %v3463
        %3616 = vmatpush2.msra.mxu0 %v3462
        %3617 = vmatprep.subr.mxu0 %v3460
        %3618 = vmatpush2.msra.mxu0 %v3459
        %3619 = vmatprep.subr.mxu0 %v3457
        %3620 = vmatpush2.msra.mxu0 %v3456
        %3621 = vmatprep.subr.mxu0 %v3454
        %3622 = vmatpush2.msra.mxu0 %v3453
        %3623 = vmatprep.subr.mxu0 %v3451
        %3624 = vmatpush2.msra.mxu0 %v3450
        %3625 = vmatprep.subr.mxu0 %v3448
        %3626 = vmatpush2.msra.mxu0 %v3447
        %3627 = vmatprep.subr.mxu0 %v3445
        %3628 = vmatpush2.msra.mxu0 %v3444
        %3629 = vmatprep.subr.mxu0 %v3442
        %3630 = vmatpush2.msra.mxu0 %v3441
        %3631 = vmatprep.subr.mxu0 %v3439
        %3632 = vmatpush2.msra.mxu0 %v3438
        %3633 = vmatprep.subr.mxu0 %v3436
        %3634 = vmatpush2.msra.mxu0 %v3435
        %3635 = vmatprep.subr.mxu0 %v3433
        %3636 = vmatpush2.msra.mxu0 %v3432
        %3637 = vmatprep.subr.mxu0 %v3430
        %3638 = vmatpush2.msra.mxu0 %v3429
        %3639 = vmatprep.subr.mxu0 %v3427
        %3640 = vmatpush2.msra.mxu0 %v3426
        %3641 = vmatprep.subr.mxu0 %v3424
        %3642 = vmatpush2.msra.mxu0 %v3423
        %3643 = vmatprep.subr.mxu0 %v3421
        %3644 = vmatpush2.msra.mxu0 %v3420
        %3645 = vmatprep.mubr.f32.mxu0 %v2875
        %3646 = vmatmul.mubr.f32.gmra.mxu0 %v2874
        %v3647 = vpop.f32.mrf.mxu0
        %v3648 = vadd.f32 %v3569, %v3647
        %v3649 = vpop.f32.mrf.mxu0
        %v3650 = vadd.f32 %v3573, %v3649
        %3651 = vdwg.mxu0
        %3652 = vmatprep.subr.mxu0 %v3514
        %3653 = vmatpush1.msra.mxu0 %v3513
        %3654 = vmatprep.subr.mxu0 %v3511
        %3655 = vmatpush1.msra.mxu0 %v3510
        %3656 = vmatprep.subr.mxu0 %v3508
        %3657 = vmatpush1.msra.mxu0 %v3507
        %3658 = vmatprep.subr.mxu0 %v3505
        %3659 = vmatpush1.msra.mxu0 %v3504
        %3660 = vmatprep.subr.mxu0 %v3502
        %3661 = vmatpush1.msra.mxu0 %v3501
        %3662 = vmatprep.subr.mxu0 %v3499
        %3663 = vmatpush1.msra.mxu0 %v3498
        %3664 = vmatprep.subr.mxu0 %v3496
        %3665 = vmatpush1.msra.mxu0 %v3495
        %3666 = vmatprep.subr.mxu0 %v3493
        %3667 = vmatpush1.msra.mxu0 %v3492
        %3668 = vmatprep.subr.mxu0 %v3490
        %3669 = vmatpush1.msra.mxu0 %v3489
        %3670 = vmatprep.subr.mxu0 %v3487
        %3671 = vmatpush1.msra.mxu0 %v3486
        %3672 = vmatprep.subr.mxu0 %v3484
        %3673 = vmatpush1.msra.mxu0 %v3483
        %3674 = vmatprep.subr.mxu0 %v3481
        %3675 = vmatpush1.msra.mxu0 %v3480
        %3676 = vmatprep.subr.mxu0 %v3478
        %3677 = vmatpush1.msra.mxu0 %v3477
        %3678 = vmatprep.subr.mxu0 %v3475
        %3679 = vmatpush1.msra.mxu0 %v3474
        %3680 = vmatprep.subr.mxu0 %v3472
        %3681 = vmatpush1.msra.mxu0 %v3471
        %3682 = vmatprep.subr.mxu0 %v3469
        %3683 = vmatpush1.msra.mxu0 %v3468
        %3684 = vmatprep.subr.mxu0 %v3562
        %3685 = vmatpush2.msra.mxu0 %v3561
        %3686 = vmatprep.subr.mxu0 %v3559
        %3687 = vmatpush2.msra.mxu0 %v3558
        %3688 = vmatprep.subr.mxu0 %v3556
        %3689 = vmatpush2.msra.mxu0 %v3555
        %3690 = vmatprep.subr.mxu0 %v3553
        %3691 = vmatpush2.msra.mxu0 %v3552
        %3692 = vmatprep.subr.mxu0 %v3550
        %3693 = vmatpush2.msra.mxu0 %v3549
        %3694 = vmatprep.subr.mxu0 %v3547
        %3695 = vmatpush2.msra.mxu0 %v3546
        %3696 = vmatprep.subr.mxu0 %v3544
        %3697 = vmatpush2.msra.mxu0 %v3543
        %3698 = vmatprep.subr.mxu0 %v3541
        %3699 = vmatpush2.msra.mxu0 %v3540
        %3700 = vmatprep.subr.mxu0 %v3538
        %3701 = vmatpush2.msra.mxu0 %v3537
        %3702 = vmatprep.subr.mxu0 %v3535
        %3703 = vmatpush2.msra.mxu0 %v3534
        %3704 = vmatprep.subr.mxu0 %v3532
        %3705 = vmatpush2.msra.mxu0 %v3531
        %3706 = vmatprep.subr.mxu0 %v3529
        %3707 = vmatpush2.msra.mxu0 %v3528
        %3708 = vmatprep.subr.mxu0 %v3526
        %3709 = vmatpush2.msra.mxu0 %v3525
        %3710 = vmatprep.subr.mxu0 %v3523
        %3711 = vmatpush2.msra.mxu0 %v3522
        %3712 = vmatprep.subr.mxu0 %v3520
        %3713 = vmatpush2.msra.mxu0 %v3519
        %3714 = vmatprep.subr.mxu0 %v3517
        %3715 = vmatpush2.msra.mxu0 %v3516
        %3716 = vmatprep.mubr.f32.mxu0 %v2877
        %3717 = vmatmul.mubr.f32.gmra.mxu0 %v2876
        %v3718 = vpop.f32.mrf.mxu0
        %v3719 = vadd.f32 %v3648, %v3718
        %v3720 = vpop.f32.mrf.mxu0
        %v3721 = vadd.f32 %v3650, %v3720
        %3722 = vdwg.mxu0
        %3723 = vmatprep.subr.mxu0 0.0
        %3724 = vmatpush1.msra.mxu0 %v3419
        %3725 = vmatprep.subr.mxu0 0.0
        %3726 = vmatpush1.msra.mxu0 %v3416
        %3727 = vmatprep.subr.mxu0 0.0
        %3728 = vmatpush1.msra.mxu0 %v3413
        %3729 = vmatprep.subr.mxu0 0.0
        %3730 = vmatpush1.msra.mxu0 %v3410
        %3731 = vmatprep.subr.mxu0 0.0
        %3732 = vmatpush1.msra.mxu0 %v3407
        %3733 = vmatprep.subr.mxu0 0.0
        %3734 = vmatpush1.msra.mxu0 %v3404
        %3735 = vmatprep.subr.mxu0 0.0
        %3736 = vmatpush1.msra.mxu0 %v3401
        %3737 = vmatprep.subr.mxu0 0.0
        %3738 = vmatpush1.msra.mxu0 %v3398
        %3739 = vmatprep.subr.mxu0 0.0
        %3740 = vmatpush1.msra.mxu0 %v3395
        %3741 = vmatprep.subr.mxu0 0.0
        %3742 = vmatpush1.msra.mxu0 %v3392
        %3743 = vmatprep.subr.mxu0 0.0
        %3744 = vmatpush1.msra.mxu0 %v3389
        %3745 = vmatprep.subr.mxu0 0.0
        %3746 = vmatpush1.msra.mxu0 %v3386
        %3747 = vmatprep.subr.mxu0 0.0
        %3748 = vmatpush1.msra.mxu0 %v3383
        %3749 = vmatprep.subr.mxu0 0.0
        %3750 = vmatpush1.msra.mxu0 %v3380
        %3751 = vmatprep.subr.mxu0 0.0
        %3752 = vmatpush1.msra.mxu0 %v3377
        %3753 = vmatprep.subr.mxu0 0.0
        %3754 = vmatpush1.msra.mxu0 %v3374
        %3755 = vmatprep.subr.mxu0 0.0
        %3756 = vmatpush2.msra.mxu0 %v3467
        %3757 = vmatprep.subr.mxu0 0.0
        %3758 = vmatpush2.msra.mxu0 %v3464
        %3759 = vmatprep.subr.mxu0 0.0
        %3760 = vmatpush2.msra.mxu0 %v3461
        %3761 = vmatprep.subr.mxu0 0.0
        %3762 = vmatpush2.msra.mxu0 %v3458
        %3763 = vmatprep.subr.mxu0 0.0
        %3764 = vmatpush2.msra.mxu0 %v3455
        %3765 = vmatprep.subr.mxu0 0.0
        %3766 = vmatpush2.msra.mxu0 %v3452
        %3767 = vmatprep.subr.mxu0 0.0
        %3768 = vmatpush2.msra.mxu0 %v3449
        %3769 = vmatprep.subr.mxu0 0.0
        %3770 = vmatpush2.msra.mxu0 %v3446
        %3771 = vmatprep.subr.mxu0 0.0
        %3772 = vmatpush2.msra.mxu0 %v3443
        %3773 = vmatprep.subr.mxu0 0.0
        %3774 = vmatpush2.msra.mxu0 %v3440
        %3775 = vmatprep.subr.mxu0 0.0
        %3776 = vmatpush2.msra.mxu0 %v3437
        %3777 = vmatprep.subr.mxu0 0.0
        %3778 = vmatpush2.msra.mxu0 %v3434
        %3779 = vmatprep.subr.mxu0 0.0
        %3780 = vmatpush2.msra.mxu0 %v3431
        %3781 = vmatprep.subr.mxu0 0.0
        %3782 = vmatpush2.msra.mxu0 %v3428
        %3783 = vmatprep.subr.mxu0 0.0
        %3784 = vmatpush2.msra.mxu0 %v3425
        %3785 = vmatprep.subr.mxu0 0.0
        %3786 = vmatpush2.msra.mxu0 %v3422
        %3787 = vmatprep.mubr.f32.mxu0 %v2875
        %3788 = vmatmul.mubr.f32.gmra.mxu0 %v2874
        %v3789 = vpop.f32.mrf.mxu0
        %v3790 = vadd.f32 %v3577, %v3789
        %v3791 = vpop.f32.mrf.mxu0
        %3792 = vdwg.mxu0
        %3793 = vmatprep.subr.mxu0 0.0
        %3794 = vmatpush1.msra.mxu0 %v3515
        %3795 = vmatprep.subr.mxu0 0.0
        %3796 = vmatpush1.msra.mxu0 %v3512
        %3797 = vmatprep.subr.mxu0 0.0
        %3798 = vmatpush1.msra.mxu0 %v3509
        %3799 = vmatprep.subr.mxu0 0.0
        %3800 = vmatpush1.msra.mxu0 %v3506
        %3801 = vmatprep.subr.mxu0 0.0
        %3802 = vmatpush1.msra.mxu0 %v3503
        %3803 = vmatprep.subr.mxu0 0.0
        %3804 = vmatpush1.msra.mxu0 %v3500
        %3805 = vmatprep.subr.mxu0 0.0
        %3806 = vmatpush1.msra.mxu0 %v3497
        %3807 = vmatprep.subr.mxu0 0.0
        %3808 = vmatpush1.msra.mxu0 %v3494
        %3809 = vmatprep.subr.mxu0 0.0
        %3810 = vmatpush1.msra.mxu0 %v3491
        %3811 = vmatprep.subr.mxu0 0.0
        %3812 = vmatpush1.msra.mxu0 %v3488
        %3813 = vmatprep.subr.mxu0 0.0
        %3814 = vmatpush1.msra.mxu0 %v3485
        %3815 = vmatprep.subr.mxu0 0.0
        %3816 = vmatpush1.msra.mxu0 %v3482
        %3817 = vmatprep.subr.mxu0 0.0
        %3818 = vmatpush1.msra.mxu0 %v3479
        %3819 = vmatprep.subr.mxu0 0.0
        %3820 = vmatpush1.msra.mxu0 %v3476
        %3821 = vmatprep.subr.mxu0 0.0
        %3822 = vmatpush1.msra.mxu0 %v3473
        %3823 = vmatprep.subr.mxu0 0.0
        %3824 = vmatpush1.msra.mxu0 %v3470
        %3825 = vmatprep.subr.mxu0 0.0
        %3826 = vmatpush2.msra.mxu0 %v3563
        %3827 = vmatprep.subr.mxu0 0.0
        %3828 = vmatpush2.msra.mxu0 %v3560
        %3829 = vmatprep.subr.mxu0 0.0
        %3830 = vmatpush2.msra.mxu0 %v3557
        %3831 = vmatprep.subr.mxu0 0.0
        %3832 = vmatpush2.msra.mxu0 %v3554
        %3833 = vmatprep.subr.mxu0 0.0
        %3834 = vmatpush2.msra.mxu0 %v3551
        %3835 = vmatprep.subr.mxu0 0.0
        %3836 = vmatpush2.msra.mxu0 %v3548
        %3837 = vmatprep.subr.mxu0 0.0
        %3838 = vmatpush2.msra.mxu0 %v3545
        %3839 = vmatprep.subr.mxu0 0.0
        %3840 = vmatpush2.msra.mxu0 %v3542
        %3841 = vmatprep.subr.mxu0 0.0
        %3842 = vmatpush2.msra.mxu0 %v3539
        %3843 = vmatprep.subr.mxu0 0.0
        %3844 = vmatpush2.msra.mxu0 %v3536
        %3845 = vmatprep.subr.mxu0 0.0
        %3846 = vmatpush2.msra.mxu0 %v3533
        %3847 = vmatprep.subr.mxu0 0.0
        %3848 = vmatpush2.msra.mxu0 %v3530
        %3849 = vmatprep.subr.mxu0 0.0
        %3850 = vmatpush2.msra.mxu0 %v3527
        %3851 = vmatprep.subr.mxu0 0.0
        %3852 = vmatpush2.msra.mxu0 %v3524
        %3853 = vmatprep.subr.mxu0 0.0
        %3854 = vmatpush2.msra.mxu0 %v3521
        %3855 = vmatprep.subr.mxu0 0.0
        %3856 = vmatpush2.msra.mxu0 %v3518
        %3857 = vmatprep.mubr.f32.mxu0 %v2877
        %3858 = vmatmul.mubr.f32.gmra.mxu0 %v2876
        %v3859 = vpop.f32.mrf.mxu0
        %v3860 = vadd.f32 %v3790, %v3859
        %v3861 = vpop.f32.mrf.mxu0
        %3862 = vdwg.mxu0
        %3863 = vst [vmem:[%s621] sm:$0xff] %v3719
        %3864 = vst [vmem:[%s621 + $0x8] sm:$0xff] %v3721
        %3865 = vst [vmem:[%s621 + $0x10] sm:$0xff] %v3860
        %s3866 = sand.u32 %s294, 1
        %s3867 = scalar_lea.sflag [#allocation5], %s3866
        %s3868 = sand.u32 %s294, 1
        %s3869 = smul.addr %s3868, 24
        %s3870 = scalar_lea.vmem [#allocation21], %s3869
        %s3871 = sand.u32 %s320, 1
        %s3872 = scalar_lea.sflag [#allocation23], %s3871
        %s3873 = sand.u32 %s320, 1
        %s3874 = smul.addr %s3873, 24
        %s3875 = scalar_lea.vmem [#allocation22], %s3874
        // Predicated region
        $region109: #{tpu_custom_call.1} parent=63 // pred_check
          %p3876 = pneg %p304
        $region110: #{tpu_custom_call.1} parent=63 // pred_check_branch
          %3878 = sbr.rel (%p3876) target = $region112
        $region111: #{tpu_custom_call.1} parent=63 // pred_region
          %s3880 = ssub.s32 384, 384
          %3881 = vsyncadd %s3867, %s3880
          %s3882 = smul.addr %s40, 3
          %s3883 = smul.addr %s3882, 128
          %s3884 = scalar_lea.hbm %s11, %s3883
          %s3886 = sshll.u32 %s3870, 4
          %s3887 = int_to_ptr.vmem [resolvable:$true] %s3886
          %3889 = dma.vmem_to_hbm [thread:$0]  %s3887, 384, %s3884, %s3867
        $region112: #{tpu_custom_call.1} parent=63 // pred_fallthru
          _
        // Predicated region
        $region113: #{tpu_custom_call.1} parent=63 // pred_check
          %p3890 = pneg %p330
        $region114: #{tpu_custom_call.1} parent=63 // pred_check_branch
          %3892 = sbr.rel (%p3890) target = $region116
        $region115: #{tpu_custom_call.1} parent=63 // pred_region
          %s3894 = ssub.s32 384, 384
          %3895 = vsyncadd %s3872, %s3894
          %s3896 = smul.addr %s40, 3
          %s3897 = smul.addr %s3896, 128
          %s3898 = scalar_lea.hbm %s12, %s3897
          %s3900 = sshll.u32 %s3875, 4
          %s3901 = int_to_ptr.vmem [resolvable:$true] %s3900
          %3903 = dma.vmem_to_hbm [thread:$0]  %s3901, 384, %s3898, %s3872
        $region116: #{tpu_custom_call.1} parent=63 // pred_fallthru
          _
      $region64: #{tpu_custom_call.1} parent=5 // pred_fallthru
        _
      %p3904 = scmp.le.s32.totalorder 2, %s35
      // Predicated region
      $region117: #{tpu_custom_call.1} parent=5 // pred_check
        %p3905 = pneg %p3904
      $region118: #{tpu_custom_call.1} parent=5 // pred_check_branch
        %3907 = sbr.rel (%p3905) target = $region120
      $region119: #{tpu_custom_call.1} parent=5 // pred_region
        %s3908 = ssub.s32 %s35, 2
        // Predicated region
        $region121: #{tpu_custom_call.1} parent=119 // pred_check
          %p3909 = pneg %p310
        $region122: #{tpu_custom_call.1} parent=119 // pred_check_branch
          %3911 = sbr.rel (%p3909) target = $region124
        $region123: #{tpu_custom_call.1} parent=119 // pred_region
          %s3912 = sand.u32 %s295, 1
          %s3913 = scalar_lea.sflag [#allocation5], %s3912
          %s3914 = sand.u32 %s295, 1
          %s3915 = smul.addr %s3914, 24
          %s3916 = scalar_lea.vmem [#allocation21], %s3915
          %3917 = dma.done %s3913, 384
        $region124: #{tpu_custom_call.1} parent=119 // pred_fallthru
          _
        // Predicated region
        $region125: #{tpu_custom_call.1} parent=119 // pred_check
          %p3918 = pneg %p336
        $region126: #{tpu_custom_call.1} parent=119 // pred_check_branch
          %3920 = sbr.rel (%p3918) target = $region128
        $region127: #{tpu_custom_call.1} parent=119 // pred_region
          %s3921 = sand.u32 %s321, 1
          %s3922 = scalar_lea.sflag [#allocation23], %s3921
          %s3923 = sand.u32 %s321, 1
          %s3924 = smul.addr %s3923, 24
          %s3925 = scalar_lea.vmem [#allocation22], %s3924
          %3926 = dma.done %s3922, 384
        $region128: #{tpu_custom_call.1} parent=119 // pred_fallthru
          _
      $region120: #{tpu_custom_call.1} parent=5 // pred_fallthru
        _
    $region6: #{tpu_custom_call.1} parent=1 // loop_footer
      %s39 = sadd.s32 1, %s35
    $region7: #{tpu_custom_call.1} parent=1 // loop_footer_branch
      %34 = sbr.rel target = $region3
    $region8: #{tpu_custom_call.1} parent=1 // loop_exit
      _
    %3927 = vsyncpa [#allocation4], 1
    %s3928 = scalar_lea.sflag [#allocation4], 1
    %3929 = vsyncpa %s3928, 1
    %3930 = vsyncpa [#allocation7], 1
    %s3931 = scalar_lea.sflag [#allocation7], 1
    %3932 = vsyncpa %s3931, 1
    %3933 = vsyncpa [#allocation10], 1
    %3934 = vsyncpa [#allocation13], 1
    %3935 = vsyncpa [#allocation16], 1
    %3936 = vsyncpa [#allocation19], 1
    %3937 = vsyncpa [#allocation5], 1
    %s3938 = scalar_lea.sflag [#allocation5], 1
    %3939 = vsyncpa %s3938, 1
    %3940 = vsyncpa [#allocation23], 1
    %s3941 = scalar_lea.sflag [#allocation23], 1
    %3942 = vsyncpa %s3941, 1

</llo_original>
